<compile_context>
chip_gen: v6e
topology: v6e:2x2x1
jax: 0.10.0
libtpu: 0.0.40
codegen_flags: <defaults>
</compile_context>

<pallas_src>
import functools

import jax
import jax.numpy as jnp
from jax.experimental import pallas as pl
from jax.experimental.pallas import tpu as pltpu


# ----------------------------------------------------------------------------
# Fused trunk kernel: conv_in + recurrence*CCA + conv_out + cls_seg  (per batch)
# ----------------------------------------------------------------------------
def _rcca_trunk_kernel(gamma_ref, xpad_ref,
                       w_in_ref, scale_in_ref, shift_in_ref,
                       wq_ref, bq_ref, wk_ref, bk_ref, wv_ref, bv_ref,
                       cc_bias_ref,
                       w_out_ref, w_seg_x_ref, w_seg_f_ref,
                       scale_seg_ref, shift_seg_ref,
                       o_ref, pad_ref, *, h, w, recurrence):
    n = h * w
    gamma = gamma_ref[0]

    def conv3x3(src_ref, w9_ref, batched):
        # src_ref: padded [*, h+2, w+2, cin] (f32); w9_ref: [9, cin, cout] (bf16).
        cin = src_ref.shape[-1]
        cout = w9_ref.shape[-1]
        acc = jnp.zeros((n, cout), jnp.float32)
        for t in range(9):
            dy, dx = divmod(t, 3)
            if batched:
                tap = xpad_tap = src_ref[0, dy:dy + h, dx:dx + w, :]
            else:
                tap = src_ref[dy:dy + h, dx:dx + w, :]
            tap2 = tap.reshape(n, cin).astype(jnp.bfloat16)
            acc = acc + jnp.dot(tap2, w9_ref[t],
                                preferred_element_type=jnp.float32)
        return acc

    def cca(feat):
        # feat: [n, C] f32 (n = h*w).  Q/K/V 1x1 convs fused in-kernel.
        fb = feat.astype(jnp.bfloat16)
        q = jnp.dot(fb, wq_ref[...], preferred_element_type=jnp.float32) + bq_ref[...]
        k = jnp.dot(fb, wk_ref[...], preferred_element_type=jnp.float32) + bk_ref[...]
        v = jnp.dot(fb, wv_ref[...], preferred_element_type=jnp.float32) + bv_ref[...]
        # Gram energies G[p, p2] = <q_p, k_p2>; the additive bias keeps only keys in
        # the query's row or column.  The self position is kept once with its live
        # energy, matching PyTorch where the H-branch self entry is -inf and the
        # W-branch self entry participates.
        g = jax.lax.dot_general(q.astype(jnp.bfloat16), k.astype(jnp.bfloat16),
                                (((1,), (1,)), ((), ())),
                                preferred_element_type=jnp.float32)
        logits = g + cc_bias_ref[...]
        m = jnp.max(logits, axis=1, keepdims=True)
        e = jnp.exp(logits - m)
        denom = jnp.sum(e, axis=1, keepdims=True)
        attn = e * pl.reciprocal(denom, approx=True)
        agg = jnp.dot(attn.astype(jnp.bfloat16), v.astype(jnp.bfloat16),
                      preferred_element_type=jnp.float32)
        return gamma * agg + feat

    # conv_in: Conv2d(in, inter, 3, pad=1, bias=False) + folded BatchNorm affine
    feat = conv3x3(xpad_ref, w_in_ref, batched=True)
    feat = feat * scale_in_ref[...] + shift_in_ref[...]
    c_feat = feat.shape[1]

    # Recurrent criss-cross attention (weights shared across recurrences).
    for _ in range(recurrence):
        feat = cca(feat)

    # conv_out: Conv2d(inter, inter, 3, pad=1, bias=False) -- pad the resident
    # feature map into a zeroed VMEM scratch and run the 9-tap accumulation.
    pad_ref[...] = jnp.zeros_like(pad_ref)
    pad_ref[1:1 + h, 1:1 + w, :] = feat.reshape(h, w, c_feat)
    feat = conv3x3(pad_ref, w_out_ref, batched=False)

    # cls_seg: Conv2d(in+inter, inter, 3, pad=1, bias=False) on concat([x, out])
    # + folded BN affine, realised as two tap accumulations (no concat needed).
    pad_ref[1:1 + h, 1:1 + w, :] = feat.reshape(h, w, c_feat)
    seg = (conv3x3(xpad_ref, w_seg_x_ref, batched=True)
           + conv3x3(pad_ref, w_seg_f_ref, batched=False))
    o_ref[0] = seg * scale_seg_ref[...] + shift_seg_ref[...]


# ----------------------------------------------------------------------------
# Fused bilinear (align_corners=True) upsample + 1x1 classifier  (per batch)
# ----------------------------------------------------------------------------
def _upsample_cls_kernel(b_mat_ref, seg_ref, w_cls_ref, b_cls_ref, o_ref):
    up = jnp.dot(b_mat_ref[...], seg_ref[0].astype(jnp.bfloat16),
                 preferred_element_type=jnp.float32)            # [H*W, C]
    o_ref[0] = (jnp.dot(up.astype(jnp.bfloat16), w_cls_ref[...],
                        preferred_element_type=jnp.float32)
                + b_cls_ref[...])                               # [H*W, ncls]


def _interp_matrix(out_size, in_size):
    # Row-stochastic bilinear interpolation matrix, align_corners=True semantics.
    idx = jnp.arange(out_size, dtype=jnp.float32)
    scale = float(in_size - 1) / float(max(out_size - 1, 1))
    src = idx * scale
    i0 = jnp.clip(jnp.floor(src).astype(jnp.int32), 0, in_size - 1)
    i1 = jnp.clip(i0 + 1, 0, in_size - 1)
    f = src - i0.astype(jnp.float32)
    return ((1.0 - f)[:, None] * jax.nn.one_hot(i0, in_size, dtype=jnp.float32)
            + f[:, None] * jax.nn.one_hot(i1, in_size, dtype=jnp.float32))


# ----------------------------------------------------------------------------
# Full RCCAModule forward
# ----------------------------------------------------------------------------
def rcca_forward(x_nchw, params, H, W, recurrence=2):
    b, cin, h, w = x_nchw.shape
    inter = params["w_in"].shape[2]
    c_qk = params["wq"].shape[1]
    ncls = params["w_cls"].shape[1]
    n = h * w

    x = jnp.transpose(x_nchw, (0, 2, 3, 1)).astype(jnp.float32)   # NCHW -> NHWC
    xpad = jnp.pad(x, ((0, 0), (1, 1), (1, 1), (0, 0)))           # pad=1 for 3x3 convs

    # Criss-cross additive mask bias: 0 where key shares the query's row or column
    # (self included once), large-negative elsewhere.
    ids = jnp.arange(n, dtype=jnp.int32)
    same_row = (ids[:, None] // w) == (ids[None, :] // w)
    same_col = (ids[:, None] % w) == (ids[None, :] % w)
    cc_bias = jnp.where(same_row | same_col, 0.0, -1e30).astype(jnp.float32)

    bf = lambda a: a.astype(jnp.bfloat16)                         # MXU operands
    row = lambda a: a.reshape(1, -1).astype(jnp.float32)          # per-channel vecs

    mosaic = pltpu.CompilerParams(dimension_semantics=("parallel",),
                                  vmem_limit_bytes=32 * 1024 * 1024)

    trunk = pl.pallas_call(
        functools.partial(_rcca_trunk_kernel, h=h, w=w, recurrence=recurrence),
        out_shape=jax.ShapeDtypeStruct((b, n, inter), jnp.float32),
        grid=(b,),
        in_specs=[
            pl.BlockSpec(memory_space=pltpu.MemorySpace.SMEM),               # gamma
            pl.BlockSpec((1, h + 2, w + 2, cin), lambda i: (i, 0, 0, 0)),    # x padded
            pl.BlockSpec((9, cin, inter), lambda i: (0, 0, 0)),              # w_in
            pl.BlockSpec((1, inter), lambda i: (0, 0)),                      # scale_in
            pl.BlockSpec((1, inter), lambda i: (0, 0)),                      # shift_in
            pl.BlockSpec((inter, c_qk), lambda i: (0, 0)),                   # wq
            pl.BlockSpec((1, c_qk), lambda i: (0, 0)),                       # bq
            pl.BlockSpec((inter, c_qk), lambda i: (0, 0)),                   # wk
            pl.BlockSpec((1, c_qk), lambda i: (0, 0)),                       # bk
            pl.BlockSpec((inter, inter), lambda i: (0, 0)),                  # wv
            pl.BlockSpec((1, inter), lambda i: (0, 0)),                      # bv
            pl.BlockSpec((n, n), lambda i: (0, 0)),                          # cc mask
            pl.BlockSpec((9, inter, inter), lambda i: (0, 0, 0)),            # w_out
            pl.BlockSpec((9, cin, inter), lambda i: (0, 0, 0)),              # w_seg (x)
            pl.BlockSpec((9, inter, inter), lambda i: (0, 0, 0)),            # w_seg (f)
            pl.BlockSpec((1, inter), lambda i: (0, 0)),                      # scale_seg
            pl.BlockSpec((1, inter), lambda i: (0, 0)),                      # shift_seg
        ],
        out_specs=pl.BlockSpec((1, n, inter), lambda i: (i, 0, 0)),
        scratch_shapes=[pltpu.VMEM((h + 2, w + 2, inter), jnp.float32)],
        compiler_params=mosaic,
    )(
        params["gamma"].astype(jnp.float32),
        xpad,
        bf(params["w_in"]), row(params["scale_in"]), row(params["shift_in"]),
        bf(params["wq"]), row(params["bq"]),
        bf(params["wk"]), row(params["bk"]),
        bf(params["wv"]), row(params["bv"]),
        cc_bias,
        bf(params["w_out"]),
        bf(params["w_seg_x"]), bf(params["w_seg_f"]),
        row(params["scale_seg"]), row(params["shift_seg"]),
    )

    # Fused bilinear upsample + cls_seg2 (1x1 conv with bias).
    up_mat = jnp.kron(_interp_matrix(H, h), _interp_matrix(W, w)).astype(jnp.bfloat16)
    out = pl.pallas_call(
        _upsample_cls_kernel,
        out_shape=jax.ShapeDtypeStruct((b, H * W, ncls), jnp.float32),
        grid=(b,),
        in_specs=[
            pl.BlockSpec((H * W, n), lambda i: (0, 0)),
            pl.BlockSpec((1, n, inter), lambda i: (i, 0, 0)),
            pl.BlockSpec((inter, ncls), lambda i: (0, 0)),
            pl.BlockSpec((1, ncls), lambda i: (0, 0)),
        ],
        out_specs=pl.BlockSpec((1, H * W, ncls), lambda i: (i, 0, 0)),
        compiler_params=mosaic,
    )(up_mat, trunk, bf(params["w_cls"]), row(params["b_cls"]))

    return jnp.transpose(out.reshape(b, H, W, ncls), (0, 3, 1, 2))   # NHWC -> NCHW


# ----------------------------------------------------------------------------
# Deterministic synthetic parameter init (shapes per RCCAModule.__init__)
# ----------------------------------------------------------------------------
def init_params(key, in_channels, num_classes):
    inter = in_channels // 4
    c_qk = inter // 8
    ks = jax.random.split(key, 16)

    def conv3_w(k, cin, cout, fan_in):
        return jax.random.normal(k, (9, cin, cout), jnp.float32) / float(fan_in) ** 0.5

    def conv1_w(k, cin, cout):
        return jax.random.normal(k, (cin, cout), jnp.float32) / float(cin) ** 0.5

    def bn_affine(k, nch):
        k1, k2, k3, k4 = jax.random.split(k, 4)
        weight = 1.0 + 0.1 * jax.random.normal(k1, (nch,), jnp.float32)
        bias = 0.1 * jax.random.normal(k2, (nch,), jnp.float32)
        running_mean = 0.1 * jax.random.normal(k3, (nch,), jnp.float32)
        running_var = 0.5 + jax.random.uniform(k4, (nch,), jnp.float32)
        scale = weight * jax.lax.rsqrt(running_var + 1e-5)
        shift = bias - running_mean * scale
        return scale, shift

    p = {}
    # conv_in: Conv2d(in, inter, 3, pad=1, bias=False) + BatchNorm2d(inter)
    p["w_in"] = conv3_w(ks[0], in_channels, inter, 9 * in_channels)
    p["scale_in"], p["shift_in"] = bn_affine(ks[1], inter)
    # CrissCrossAttention: 1x1 convs Q/K (inter -> inter//8), V (inter -> inter), gamma
    p["wq"] = conv1_w(ks[2], inter, c_qk)
    p["bq"] = 0.05 * jax.random.normal(ks[3], (c_qk,), jnp.float32)
    p["wk"] = conv1_w(ks[4], inter, c_qk)
    p["bk"] = 0.05 * jax.random.normal(ks[5], (c_qk,), jnp.float32)
    p["wv"] = conv1_w(ks[6], inter, inter)
    p["bv"] = 0.05 * jax.random.normal(ks[7], (inter,), jnp.float32)
    # PyTorch inits gamma to 0 (making CCA a no-op); use a nonzero value so the
    # attention path is actually exercised in this synthetic run.
    p["gamma"] = jnp.array([0.3], jnp.float32)
    # conv_out: Conv2d(inter, inter, 3, pad=1, bias=False)  (no BN, no bias)
    p["w_out"] = conv3_w(ks[8], inter, inter, 9 * inter)
    # cls_seg: Conv2d(in + inter, inter, 3, pad=1, bias=False) + BatchNorm2d(inter)
    fan_seg = 9 * (in_channels + inter)
    p["w_seg_x"] = conv3_w(ks[9], in_channels, inter, fan_seg)   # taps over x channels
    p["w_seg_f"] = conv3_w(ks[10], inter, inter, fan_seg)        # taps over conv_out channels
    p["scale_seg"], p["shift_seg"] = bn_affine(ks[11], inter)
    # cls_seg2: Conv2d(inter, num_classes, 1) with bias
    p["w_cls"] = conv1_w(ks[12], inter, num_classes)
    p["b_cls"] = 0.05 * jax.random.normal(ks[13], (num_classes,), jnp.float32)
    return p


if __name__ == "__main__":
    key = jax.random.PRNGKey(0)
    b, in_channels, h, w = 2, 256, 8, 8      # inter = 64, attention channels = 8
    num_classes = 5
    H_out, W_out = 16, 16
    recurrence = 2

    k_x, k_p = jax.random.split(key)
    x = jax.random.normal(k_x, (b, in_channels, h, w), jnp.float32)
    params = init_params(k_p, in_channels, num_classes)

    fwd = jax.jit(functools.partial(rcca_forward, H=H_out, W=W_out,
                                    recurrence=recurrence))
    out = jax.block_until_ready(fwd(x, params))

    assert out.shape == (b, num_classes, H_out, W_out), out.shape
    assert bool(jnp.all(jnp.isfinite(out)))
    print("KERNEL_OK")
</pallas_src>

<mosaic_0001>
module attributes {stable_mosaic.version = 11 : i64} {
  func.func @_upsample_cls_kernel(%arg0: i32, %arg1: memref<256x64xbf16, #tpu.memory_space<vmem>>, %arg2: memref<1x64x64xf32, #tpu.memory_space<vmem>>, %arg3: memref<64x5xbf16, #tpu.memory_space<vmem>>, %arg4: memref<1x5xf32, #tpu.memory_space<vmem>>, %arg5: memref<1x256x5xf32, #tpu.memory_space<vmem>>) attributes {dimension_semantics = [#tpu.dimension_semantics<parallel>], iteration_bounds = array<i64: 2>, scalar_prefetch = 0 : i64, scratch_operands = 0 : i64, tpu.core_type = #tpu.core_type<tc>, window_params = [{pipeline_mode = #tpu.pipeline_mode<synchronous>, transform_indices = @transform_0, window_bounds = array<i64: 256, 64>}, {transform_indices = @transform_1, window_bounds = array<i64: 1, 64, 64>}, {pipeline_mode = #tpu.pipeline_mode<synchronous>, transform_indices = @transform_2, window_bounds = array<i64: 64, 5>}, {pipeline_mode = #tpu.pipeline_mode<synchronous>, transform_indices = @transform_3, window_bounds = array<i64: 1, 5>}, {transform_indices = @transform_4, window_bounds = array<i64: 1, 256, 5>}]} {
    %c0 = arith.constant 0 : index
    %c0_0 = arith.constant 0 : index
    %0 = vector.load %arg1[%c0, %c0_0] : memref<256x64xbf16, #tpu.memory_space<vmem>>, vector<256x64xbf16>
    %c0_1 = arith.constant 0 : index
    %c0_2 = arith.constant 0 : index
    %c0_3 = arith.constant 0 : index
    %1 = vector.load %arg2[%c0_1, %c0_2, %c0_3] : memref<1x64x64xf32, #tpu.memory_space<vmem>>, vector<1x64x64xf32>
    %2 = vector.shape_cast %1 : vector<1x64x64xf32> to vector<64x64xf32>
    %3 = arith.truncf %2 : vector<64x64xf32> to vector<64x64xbf16>
    %cst = arith.constant dense<0.000000e+00> : vector<256x64xf32>
    %4 = tpu.matmul %0, %3, %cst {dimension_numbers = #tpu.dot_dimension_numbers<[1], [0], [0], [1], [0, 0, 1, 1], [], []>} : vector<256x64xbf16>, vector<64x64xbf16>, vector<256x64xf32> -> vector<256x64xf32>
    %5 = arith.truncf %4 : vector<256x64xf32> to vector<256x64xbf16>
    %c0_4 = arith.constant 0 : index
    %c0_5 = arith.constant 0 : index
    %6 = vector.load %arg3[%c0_4, %c0_5] : memref<64x5xbf16, #tpu.memory_space<vmem>>, vector<64x5xbf16>
    %cst_6 = arith.constant dense<0.000000e+00> : vector<256x5xf32>
    %7 = tpu.matmul %5, %6, %cst_6 {dimension_numbers = #tpu.dot_dimension_numbers<[1], [0], [0], [1], [0, 0, 1, 1], [], []>} : vector<256x64xbf16>, vector<64x5xbf16>, vector<256x5xf32> -> vector<256x5xf32>
    %c0_7 = arith.constant 0 : index
    %c0_8 = arith.constant 0 : index
    %8 = vector.load %arg4[%c0_7, %c0_8] : memref<1x5xf32, #tpu.memory_space<vmem>>, vector<1x5xf32>
    %9 = vector.broadcast %8 : vector<1x5xf32> to vector<256x5xf32>
    %10 = arith.addf %7, %9 : vector<256x5xf32>
    %c0_9 = arith.constant 0 : index
    %c0_10 = arith.constant 0 : index
    %c0_11 = arith.constant 0 : index
    %11 = vector.load %arg5[%c0_9, %c0_10, %c0_11] : memref<1x256x5xf32, #tpu.memory_space<vmem>>, vector<1x256x5xf32>
    %12 = vector.shape_cast %11 : vector<1x256x5xf32> to vector<256x5xf32>
    %13 = vector.shape_cast %10 : vector<256x5xf32> to vector<1x256x5xf32>
    tpu.vector_store %arg5[%c0_9, %c0_10, %c0_11], %13 {strides = array<i32>} : memref<1x256x5xf32, #tpu.memory_space<vmem>>, vector<1x256x5xf32>,
    return
  }
  func.func @transform_0(%arg0: i32) -> (i32, i32) {
    %c0_i32 = arith.constant 0 : i32
    %c0_i32_0 = arith.constant 0 : i32
    %c0_i32_1 = arith.constant 0 : i32
    return %c0_i32, %c0_i32_0 : i32, i32
  }
  func.func @transform_1(%arg0: i32) -> (i32, i32, i32) {
    %c0_i32 = arith.constant 0 : i32
    %c0_i32_0 = arith.constant 0 : i32
    %c0_i32_1 = arith.constant 0 : i32
    return %arg0, %c0_i32, %c0_i32_0 : i32, i32, i32
  }
  func.func @transform_2(%arg0: i32) -> (i32, i32) {
    %c0_i32 = arith.constant 0 : i32
    %c0_i32_0 = arith.constant 0 : i32
    %c0_i32_1 = arith.constant 0 : i32
    return %c0_i32, %c0_i32_0 : i32, i32
  }
  func.func @transform_3(%arg0: i32) -> (i32, i32) {
    %c0_i32 = arith.constant 0 : i32
    %c0_i32_0 = arith.constant 0 : i32
    %c0_i32_1 = arith.constant 0 : i32
    return %c0_i32, %c0_i32_0 : i32, i32
  }
  func.func @transform_4(%arg0: i32) -> (i32, i32, i32) {
    %c0_i32 = arith.constant 0 : i32
    %c0_i32_0 = arith.constant 0 : i32
    %c0_i32_1 = arith.constant 0 : i32
    return %arg0, %c0_i32, %c0_i32_0 : i32, i32, i32
  }
}

module attributes {stable_mosaic.version = 11 : i64} {
  func.func @_rcca_trunk_kernel(%arg0: i32, %arg1: memref<1xf32, #tpu.memory_space<smem>>, %arg2: memref<1x10x10x256xf32, #tpu.memory_space<vmem>>, %arg3: memref<9x256x64xbf16, #tpu.memory_space<vmem>>, %arg4: memref<1x64xf32, #tpu.memory_space<vmem>>, %arg5: memref<1x64xf32, #tpu.memory_space<vmem>>, %arg6: memref<64x8xbf16, #tpu.memory_space<vmem>>, %arg7: memref<1x8xf32, #tpu.memory_space<vmem>>, %arg8: memref<64x8xbf16, #tpu.memory_space<vmem>>, %arg9: memref<1x8xf32, #tpu.memory_space<vmem>>, %arg10: memref<64x64xbf16, #tpu.memory_space<vmem>>, %arg11: memref<1x64xf32, #tpu.memory_space<vmem>>, %arg12: memref<64x64xf32, #tpu.memory_space<vmem>>, %arg13: memref<9x64x64xbf16, #tpu.memory_space<vmem>>, %arg14: memref<9x256x64xbf16, #tpu.memory_space<vmem>>, %arg15: memref<9x64x64xbf16, #tpu.memory_space<vmem>>, %arg16: memref<1x64xf32, #tpu.memory_space<vmem>>, %arg17: memref<1x64xf32, #tpu.memory_space<vmem>>, %arg18: memref<1x64x64xf32, #tpu.memory_space<vmem>>, %arg19: memref<10x10x64xf32, #tpu.memory_space<vmem>>) attributes {dimension_semantics = [#tpu.dimension_semantics<parallel>], iteration_bounds = array<i64: 2>, scalar_prefetch = 0 : i64, scratch_operands = 1 : i64, tpu.core_type = #tpu.core_type<tc>, window_params = [{transform_indices = @transform_0, window_bounds = array<i64: 1>}, {transform_indices = @transform_1, window_bounds = array<i64: 1, 10, 10, 256>}, {pipeline_mode = #tpu.pipeline_mode<synchronous>, transform_indices = @transform_2, window_bounds = array<i64: 9, 256, 64>}, {pipeline_mode = #tpu.pipeline_mode<synchronous>, transform_indices = @transform_3, window_bounds = array<i64: 1, 64>}, {pipeline_mode = #tpu.pipeline_mode<synchronous>, transform_indices = @transform_4, window_bounds = array<i64: 1, 64>}, {pipeline_mode = #tpu.pipeline_mode<synchronous>, transform_indices = @transform_5, window_bounds = array<i64: 64, 8>}, {pipeline_mode = #tpu.pipeline_mode<synchronous>, transform_indices = @transform_6, window_bounds = array<i64: 1, 8>}, {pipeline_mode = #tpu.pipeline_mode<synchronous>, transform_indices = @transform_7, window_bounds = array<i64: 64, 8>}, {pipeline_mode = #tpu.pipeline_mode<synchronous>, transform_indices = @transform_8, window_bounds = array<i64: 1, 8>}, {pipeline_mode = #tpu.pipeline_mode<synchronous>, transform_indices = @transform_9, window_bounds = array<i64: 64, 64>}, {pipeline_mode = #tpu.pipeline_mode<synchronous>, transform_indices = @transform_10, window_bounds = array<i64: 1, 64>}, {pipeline_mode = #tpu.pipeline_mode<synchronous>, transform_indices = @transform_11, window_bounds = array<i64: 64, 64>}, {pipeline_mode = #tpu.pipeline_mode<synchronous>, transform_indices = @transform_12, window_bounds = array<i64: 9, 64, 64>}, {pipeline_mode = #tpu.pipeline_mode<synchronous>, transform_indices = @transform_13, window_bounds = array<i64: 9, 256, 64>}, {pipeline_mode = #tpu.pipeline_mode<synchronous>, transform_indices = @transform_14, window_bounds = array<i64: 9, 64, 64>}, {pipeline_mode = #tpu.pipeline_mode<synchronous>, transform_indices = @transform_15, window_bounds = array<i64: 1, 64>}, {pipeline_mode = #tpu.pipeline_mode<synchronous>, transform_indices = @transform_16, window_bounds = array<i64: 1, 64>}, {transform_indices = @transform_17, window_bounds = array<i64: 1, 64, 64>}]} {
    %c0 = arith.constant 0 : index
    %0 = memref.load %arg1[%c0] : memref<1xf32, #tpu.memory_space<smem>>
    %cst = arith.constant 0.000000e+00 : f32
    %1 = vector.broadcast %cst : f32 to vector<64x64xf32>
    %c0_0 = arith.constant 0 : index
    %c0_1 = arith.constant 0 : index
    %c0_2 = arith.constant 0 : index
    %c0_3 = arith.constant 0 : index
    %2 = vector.load %arg2[%c0_0, %c0_1, %c0_2, %c0_3] : memref<1x10x10x256xf32, #tpu.memory_space<vmem>>, vector<1x8x8x256xf32>
    %3 = vector.shape_cast %2 : vector<1x8x8x256xf32> to vector<8x8x256xf32>
    %4 = vector.shape_cast %3 : vector<8x8x256xf32> to vector<64x256xf32>
    %5 = arith.truncf %4 : vector<64x256xf32> to vector<64x256xbf16>
    %c0_4 = arith.constant 0 : index
    %c0_5 = arith.constant 0 : index
    %c0_6 = arith.constant 0 : index
    %6 = vector.load %arg3[%c0_4, %c0_5, %c0_6] : memref<9x256x64xbf16, #tpu.memory_space<vmem>>, vector<1x256x64xbf16>
    %7 = vector.shape_cast %6 : vector<1x256x64xbf16> to vector<256x64xbf16>
    %cst_7 = arith.constant dense<0.000000e+00> : vector<64x64xf32>
    %8 = tpu.matmul %5, %7, %cst_7 {dimension_numbers = #tpu.dot_dimension_numbers<[1], [0], [0], [1], [0, 0, 1, 1], [], []>} : vector<64x256xbf16>, vector<256x64xbf16>, vector<64x64xf32> -> vector<64x64xf32>
    %9 = arith.addf %1, %8 : vector<64x64xf32>
    %c0_8 = arith.constant 0 : index
    %c0_9 = arith.constant 0 : index
    %c1 = arith.constant 1 : index
    %c0_10 = arith.constant 0 : index
    %10 = vector.load %arg2[%c0_8, %c0_9, %c1, %c0_10] : memref<1x10x10x256xf32, #tpu.memory_space<vmem>>, vector<1x8x8x256xf32>
    %11 = vector.shape_cast %10 : vector<1x8x8x256xf32> to vector<8x8x256xf32>
    %12 = vector.shape_cast %11 : vector<8x8x256xf32> to vector<64x256xf32>
    %13 = arith.truncf %12 : vector<64x256xf32> to vector<64x256xbf16>
    %c1_11 = arith.constant 1 : index
    %c0_12 = arith.constant 0 : index
    %c0_13 = arith.constant 0 : index
    %14 = vector.load %arg3[%c1_11, %c0_12, %c0_13] : memref<9x256x64xbf16, #tpu.memory_space<vmem>>, vector<1x256x64xbf16>
    %15 = vector.shape_cast %14 : vector<1x256x64xbf16> to vector<256x64xbf16>
    %cst_14 = arith.constant dense<0.000000e+00> : vector<64x64xf32>
    %16 = tpu.matmul %13, %15, %cst_14 {dimension_numbers = #tpu.dot_dimension_numbers<[1], [0], [0], [1], [0, 0, 1, 1], [], []>} : vector<64x256xbf16>, vector<256x64xbf16>, vector<64x64xf32> -> vector<64x64xf32>
    %17 = arith.addf %9, %16 : vector<64x64xf32>
    %c0_15 = arith.constant 0 : index
    %c0_16 = arith.constant 0 : index
    %c2 = arith.constant 2 : index
    %c0_17 = arith.constant 0 : index
    %18 = vector.load %arg2[%c0_15, %c0_16, %c2, %c0_17] : memref<1x10x10x256xf32, #tpu.memory_space<vmem>>, vector<1x8x8x256xf32>
    %19 = vector.shape_cast %18 : vector<1x8x8x256xf32> to vector<8x8x256xf32>
    %20 = vector.shape_cast %19 : vector<8x8x256xf32> to vector<64x256xf32>
    %21 = arith.truncf %20 : vector<64x256xf32> to vector<64x256xbf16>
    %c2_18 = arith.constant 2 : index
    %c0_19 = arith.constant 0 : index
    %c0_20 = arith.constant 0 : index
    %22 = vector.load %arg3[%c2_18, %c0_19, %c0_20] : memref<9x256x64xbf16, #tpu.memory_space<vmem>>, vector<1x256x64xbf16>
    %23 = vector.shape_cast %22 : vector<1x256x64xbf16> to vector<256x64xbf16>
    %cst_21 = arith.constant dense<0.000000e+00> : vector<64x64xf32>
    %24 = tpu.matmul %21, %23, %cst_21 {dimension_numbers = #tpu.dot_dimension_numbers<[1], [0], [0], [1], [0, 0, 1, 1], [], []>} : vector<64x256xbf16>, vector<256x64xbf16>, vector<64x64xf32> -> vector<64x64xf32>
    %25 = arith.addf %17, %24 : vector<64x64xf32>
    %c0_22 = arith.constant 0 : index
    %c1_23 = arith.constant 1 : index
    %c0_24 = arith.constant 0 : index
    %c0_25 = arith.constant 0 : index
    %26 = vector.load %arg2[%c0_22, %c1_23, %c0_24, %c0_25] : memref<1x10x10x256xf32, #tpu.memory_space<vmem>>, vector<1x8x8x256xf32>
    %27 = vector.shape_cast %26 : vector<1x8x8x256xf32> to vector<8x8x256xf32>
    %28 = vector.shape_cast %27 : vector<8x8x256xf32> to vector<64x256xf32>
    %29 = arith.truncf %28 : vector<64x256xf32> to vector<64x256xbf16>
    %c3 = arith.constant 3 : index
    %c0_26 = arith.constant 0 : index
    %c0_27 = arith.constant 0 : index
    %30 = vector.load %arg3[%c3, %c0_26, %c0_27] : memref<9x256x64xbf16, #tpu.memory_space<vmem>>, vector<1x256x64xbf16>
    %31 = vector.shape_cast %30 : vector<1x256x64xbf16> to vector<256x64xbf16>
    %cst_28 = arith.constant dense<0.000000e+00> : vector<64x64xf32>
    %32 = tpu.matmul %29, %31, %cst_28 {dimension_numbers = #tpu.dot_dimension_numbers<[1], [0], [0], [1], [0, 0, 1, 1], [], []>} : vector<64x256xbf16>, vector<256x64xbf16>, vector<64x64xf32> -> vector<64x64xf32>
    %33 = arith.addf %25, %32 : vector<64x64xf32>
    %c0_29 = arith.constant 0 : index
    %c1_30 = arith.constant 1 : index
    %c1_31 = arith.constant 1 : index
    %c0_32 = arith.constant 0 : index
    %34 = vector.load %arg2[%c0_29, %c1_30, %c1_31, %c0_32] : memref<1x10x10x256xf32, #tpu.memory_space<vmem>>, vector<1x8x8x256xf32>
    %35 = vector.shape_cast %34 : vector<1x8x8x256xf32> to vector<8x8x256xf32>
    %36 = vector.shape_cast %35 : vector<8x8x256xf32> to vector<64x256xf32>
    %37 = arith.truncf %36 : vector<64x256xf32> to vector<64x256xbf16>
    %c4 = arith.constant 4 : index
    %c0_33 = arith.constant 0 : index
    %c0_34 = arith.constant 0 : index
    %38 = vector.load %arg3[%c4, %c0_33, %c0_34] : memref<9x256x64xbf16, #tpu.memory_space<vmem>>, vector<1x256x64xbf16>
    %39 = vector.shape_cast %38 : vector<1x256x64xbf16> to vector<256x64xbf16>
    %cst_35 = arith.constant dense<0.000000e+00> : vector<64x64xf32>
    %40 = tpu.matmul %37, %39, %cst_35 {dimension_numbers = #tpu.dot_dimension_numbers<[1], [0], [0], [1], [0, 0, 1, 1], [], []>} : vector<64x256xbf16>, vector<256x64xbf16>, vector<64x64xf32> -> vector<64x64xf32>
    %41 = arith.addf %33, %40 : vector<64x64xf32>
    %c0_36 = arith.constant 0 : index
    %c1_37 = arith.constant 1 : index
    %c2_38 = arith.constant 2 : index
    %c0_39 = arith.constant 0 : index
    %42 = vector.load %arg2[%c0_36, %c1_37, %c2_38, %c0_39] : memref<1x10x10x256xf32, #tpu.memory_space<vmem>>, vector<1x8x8x256xf32>
    %43 = vector.shape_cast %42 : vector<1x8x8x256xf32> to vector<8x8x256xf32>
    %44 = vector.shape_cast %43 : vector<8x8x256xf32> to vector<64x256xf32>
    %45 = arith.truncf %44 : vector<64x256xf32> to vector<64x256xbf16>
    %c5 = arith.constant 5 : index
    %c0_40 = arith.constant 0 : index
    %c0_41 = arith.constant 0 : index
    %46 = vector.load %arg3[%c5, %c0_40, %c0_41] : memref<9x256x64xbf16, #tpu.memory_space<vmem>>, vector<1x256x64xbf16>
    %47 = vector.shape_cast %46 : vector<1x256x64xbf16> to vector<256x64xbf16>
    %cst_42 = arith.constant dense<0.000000e+00> : vector<64x64xf32>
    %48 = tpu.matmul %45, %47, %cst_42 {dimension_numbers = #tpu.dot_dimension_numbers<[1], [0], [0], [1], [0, 0, 1, 1], [], []>} : vector<64x256xbf16>, vector<256x64xbf16>, vector<64x64xf32> -> vector<64x64xf32>
    %49 = arith.addf %41, %48 : vector<64x64xf32>
    %c0_43 = arith.constant 0 : index
    %c2_44 = arith.constant 2 : index
    %c0_45 = arith.constant 0 : index
    %c0_46 = arith.constant 0 : index
    %50 = vector.load %arg2[%c0_43, %c2_44, %c0_45, %c0_46] : memref<1x10x10x256xf32, #tpu.memory_space<vmem>>, vector<1x8x8x256xf32>
    %51 = vector.shape_cast %50 : vector<1x8x8x256xf32> to vector<8x8x256xf32>
    %52 = vector.shape_cast %51 : vector<8x8x256xf32> to vector<64x256xf32>
    %53 = arith.truncf %52 : vector<64x256xf32> to vector<64x256xbf16>
    %c6 = arith.constant 6 : index
    %c0_47 = arith.constant 0 : index
    %c0_48 = arith.constant 0 : index
    %54 = vector.load %arg3[%c6, %c0_47, %c0_48] : memref<9x256x64xbf16, #tpu.memory_space<vmem>>, vector<1x256x64xbf16>
    %55 = vector.shape_cast %54 : vector<1x256x64xbf16> to vector<256x64xbf16>
    %cst_49 = arith.constant dense<0.000000e+00> : vector<64x64xf32>
    %56 = tpu.matmul %53, %55, %cst_49 {dimension_numbers = #tpu.dot_dimension_numbers<[1], [0], [0], [1], [0, 0, 1, 1], [], []>} : vector<64x256xbf16>, vector<256x64xbf16>, vector<64x64xf32> -> vector<64x64xf32>
    %57 = arith.addf %49, %56 : vector<64x64xf32>
    %c0_50 = arith.constant 0 : index
    %c2_51 = arith.constant 2 : index
    %c1_52 = arith.constant 1 : index
    %c0_53 = arith.constant 0 : index
    %58 = vector.load %arg2[%c0_50, %c2_51, %c1_52, %c0_53] : memref<1x10x10x256xf32, #tpu.memory_space<vmem>>, vector<1x8x8x256xf32>
    %59 = vector.shape_cast %58 : vector<1x8x8x256xf32> to vector<8x8x256xf32>
    %60 = vector.shape_cast %59 : vector<8x8x256xf32> to vector<64x256xf32>
    %61 = arith.truncf %60 : vector<64x256xf32> to vector<64x256xbf16>
    %c7 = arith.constant 7 : index
    %c0_54 = arith.constant 0 : index
    %c0_55 = arith.constant 0 : index
    %62 = vector.load %arg3[%c7, %c0_54, %c0_55] : memref<9x256x64xbf16, #tpu.memory_space<vmem>>, vector<1x256x64xbf16>
    %63 = vector.shape_cast %62 : vector<1x256x64xbf16> to vector<256x64xbf16>
    %cst_56 = arith.constant dense<0.000000e+00> : vector<64x64xf32>
    %64 = tpu.matmul %61, %63, %cst_56 {dimension_numbers = #tpu.dot_dimension_numbers<[1], [0], [0], [1], [0, 0, 1, 1], [], []>} : vector<64x256xbf16>, vector<256x64xbf16>, vector<64x64xf32> -> vector<64x64xf32>
    %65 = arith.addf %57, %64 : vector<64x64xf32>
    %c0_57 = arith.constant 0 : index
    %c2_58 = arith.constant 2 : index
    %c2_59 = arith.constant 2 : index
    %c0_60 = arith.constant 0 : index
    %66 = vector.load %arg2[%c0_57, %c2_58, %c2_59, %c0_60] : memref<1x10x10x256xf32, #tpu.memory_space<vmem>>, vector<1x8x8x256xf32>
    %67 = vector.shape_cast %66 : vector<1x8x8x256xf32> to vector<8x8x256xf32>
    %68 = vector.shape_cast %67 : vector<8x8x256xf32> to vector<64x256xf32>
    %69 = arith.truncf %68 : vector<64x256xf32> to vector<64x256xbf16>
    %c8 = arith.constant 8 : index
    %c0_61 = arith.constant 0 : index
    %c0_62 = arith.constant 0 : index
    %70 = vector.load %arg3[%c8, %c0_61, %c0_62] : memref<9x256x64xbf16, #tpu.memory_space<vmem>>, vector<1x256x64xbf16>
    %71 = vector.shape_cast %70 : vector<1x256x64xbf16> to vector<256x64xbf16>
    %cst_63 = arith.constant dense<0.000000e+00> : vector<64x64xf32>
    %72 = tpu.matmul %69, %71, %cst_63 {dimension_numbers = #tpu.dot_dimension_numbers<[1], [0], [0], [1], [0, 0, 1, 1], [], []>} : vector<64x256xbf16>, vector<256x64xbf16>, vector<64x64xf32> -> vector<64x64xf32>
    %73 = arith.addf %65, %72 : vector<64x64xf32>
    %c0_64 = arith.constant 0 : index
    %c0_65 = arith.constant 0 : index
    %74 = vector.load %arg4[%c0_64, %c0_65] : memref<1x64xf32, #tpu.memory_space<vmem>>, vector<1x64xf32>
    %75 = vector.broadcast %74 : vector<1x64xf32> to vector<64x64xf32>
    %76 = arith.mulf %73, %75 : vector<64x64xf32>
    %c0_66 = arith.constant 0 : index
    %c0_67 = arith.constant 0 : index
    %77 = vector.load %arg5[%c0_66, %c0_67] : memref<1x64xf32, #tpu.memory_space<vmem>>, vector<1x64xf32>
    %78 = vector.broadcast %77 : vector<1x64xf32> to vector<64x64xf32>
    %79 = arith.addf %76, %78 : vector<64x64xf32>
    %80 = arith.truncf %79 : vector<64x64xf32> to vector<64x64xbf16>
    %c0_68 = arith.constant 0 : index
    %c0_69 = arith.constant 0 : index
    %81 = vector.load %arg6[%c0_68, %c0_69] : memref<64x8xbf16, #tpu.memory_space<vmem>>, vector<64x8xbf16>
    %cst_70 = arith.constant dense<0.000000e+00> : vector<64x8xf32>
    %82 = tpu.matmul %80, %81, %cst_70 {dimension_numbers = #tpu.dot_dimension_numbers<[1], [0], [0], [1], [0, 0, 1, 1], [], []>} : vector<64x64xbf16>, vector<64x8xbf16>, vector<64x8xf32> -> vector<64x8xf32>
    %c0_71 = arith.constant 0 : index
    %c0_72 = arith.constant 0 : index
    %83 = vector.load %arg7[%c0_71, %c0_72] : memref<1x8xf32, #tpu.memory_space<vmem>>, vector<1x8xf32>
    %84 = vector.broadcast %83 : vector<1x8xf32> to vector<64x8xf32>
    %85 = arith.addf %82, %84 : vector<64x8xf32>
    %c0_73 = arith.constant 0 : index
    %c0_74 = arith.constant 0 : index
    %86 = vector.load %arg8[%c0_73, %c0_74] : memref<64x8xbf16, #tpu.memory_space<vmem>>, vector<64x8xbf16>
    %cst_75 = arith.constant dense<0.000000e+00> : vector<64x8xf32>
    %87 = tpu.matmul %80, %86, %cst_75 {dimension_numbers = #tpu.dot_dimension_numbers<[1], [0], [0], [1], [0, 0, 1, 1], [], []>} : vector<64x64xbf16>, vector<64x8xbf16>, vector<64x8xf32> -> vector<64x8xf32>
    %c0_76 = arith.constant 0 : index
    %c0_77 = arith.constant 0 : index
    %88 = vector.load %arg9[%c0_76, %c0_77] : memref<1x8xf32, #tpu.memory_space<vmem>>, vector<1x8xf32>
    %89 = vector.broadcast %88 : vector<1x8xf32> to vector<64x8xf32>
    %90 = arith.addf %87, %89 : vector<64x8xf32>
    %c0_78 = arith.constant 0 : index
    %c0_79 = arith.constant 0 : index
    %91 = vector.load %arg10[%c0_78, %c0_79] : memref<64x64xbf16, #tpu.memory_space<vmem>>, vector<64x64xbf16>
    %cst_80 = arith.constant dense<0.000000e+00> : vector<64x64xf32>
    %92 = tpu.matmul %80, %91, %cst_80 {dimension_numbers = #tpu.dot_dimension_numbers<[1], [0], [0], [1], [0, 0, 1, 1], [], []>} : vector<64x64xbf16>, vector<64x64xbf16>, vector<64x64xf32> -> vector<64x64xf32>
    %c0_81 = arith.constant 0 : index
    %c0_82 = arith.constant 0 : index
    %93 = vector.load %arg11[%c0_81, %c0_82] : memref<1x64xf32, #tpu.memory_space<vmem>>, vector<1x64xf32>
    %94 = vector.broadcast %93 : vector<1x64xf32> to vector<64x64xf32>
    %95 = arith.addf %92, %94 : vector<64x64xf32>
    %96 = arith.truncf %85 : vector<64x8xf32> to vector<64x8xbf16>
    %97 = arith.truncf %90 : vector<64x8xf32> to vector<64x8xbf16>
    %cst_83 = arith.constant dense<0.000000e+00> : vector<64x64xf32>
    %98 = tpu.matmul %96, %97, %cst_83 {dimension_numbers = #tpu.dot_dimension_numbers<[1], [1], [0], [0], [0, 0, 1, 0], [], []>} : vector<64x8xbf16>, vector<64x8xbf16>, vector<64x64xf32> -> vector<64x64xf32>
    %c0_84 = arith.constant 0 : index
    %c0_85 = arith.constant 0 : index
    %99 = vector.load %arg12[%c0_84, %c0_85] : memref<64x64xf32, #tpu.memory_space<vmem>>, vector<64x64xf32>
    %100 = arith.addf %98, %99 : vector<64x64xf32>
    %cst_86 = arith.constant dense<0xFF800000> : vector<64xf32>
    %101 = vector.multi_reduction <maximumf>, %100, %cst_86 [1] : vector<64x64xf32> to vector<64xf32>
    %102 = vector.shape_cast %101 : vector<64xf32> to vector<64x1xf32>
    %103 = vector.broadcast %102 : vector<64x1xf32> to vector<64x64xf32>
    %104 = arith.subf %100, %103 : vector<64x64xf32>
    %105 = math.exp %104 : vector<64x64xf32>
    %cst_87 = arith.constant dense<0.000000e+00> : vector<64xf32>
    %106 = vector.multi_reduction <add>, %105, %cst_87 [1] : vector<64x64xf32> to vector<64xf32>
    %107 = vector.shape_cast %106 : vector<64xf32> to vector<64x1xf32>
    %108 = tpu.reciprocal %107 {approx = true} : vector<64x1xf32> -> vector<64x1xf32>
    %109 = vector.broadcast %108 : vector<64x1xf32> to vector<64x64xf32>
    %110 = arith.mulf %105, %109 : vector<64x64xf32>
    %111 = arith.truncf %110 : vector<64x64xf32> to vector<64x64xbf16>
    %112 = arith.truncf %95 : vector<64x64xf32> to vector<64x64xbf16>
    %cst_88 = arith.constant dense<0.000000e+00> : vector<64x64xf32>
    %113 = tpu.matmul %111, %112, %cst_88 {dimension_numbers = #tpu.dot_dimension_numbers<[1], [0], [0], [1], [0, 0, 1, 1], [], []>} : vector<64x64xbf16>, vector<64x64xbf16>, vector<64x64xf32> -> vector<64x64xf32>
    %114 = vector.broadcast %0 : f32 to vector<64x64xf32>
    %115 = arith.mulf %114, %113 : vector<64x64xf32>
    %116 = arith.addf %115, %79 : vector<64x64xf32>
    %117 = arith.truncf %116 : vector<64x64xf32> to vector<64x64xbf16>
    %c0_89 = arith.constant 0 : index
    %c0_90 = arith.constant 0 : index
    %118 = vector.load %arg6[%c0_89, %c0_90] : memref<64x8xbf16, #tpu.memory_space<vmem>>, vector<64x8xbf16>
    %cst_91 = arith.constant dense<0.000000e+00> : vector<64x8xf32>
    %119 = tpu.matmul %117, %118, %cst_91 {dimension_numbers = #tpu.dot_dimension_numbers<[1], [0], [0], [1], [0, 0, 1, 1], [], []>} : vector<64x64xbf16>, vector<64x8xbf16>, vector<64x8xf32> -> vector<64x8xf32>
    %c0_92 = arith.constant 0 : index
    %c0_93 = arith.constant 0 : index
    %120 = vector.load %arg7[%c0_92, %c0_93] : memref<1x8xf32, #tpu.memory_space<vmem>>, vector<1x8xf32>
    %121 = vector.broadcast %120 : vector<1x8xf32> to vector<64x8xf32>
    %122 = arith.addf %119, %121 : vector<64x8xf32>
    %c0_94 = arith.constant 0 : index
    %c0_95 = arith.constant 0 : index
    %123 = vector.load %arg8[%c0_94, %c0_95] : memref<64x8xbf16, #tpu.memory_space<vmem>>, vector<64x8xbf16>
    %cst_96 = arith.constant dense<0.000000e+00> : vector<64x8xf32>
    %124 = tpu.matmul %117, %123, %cst_96 {dimension_numbers = #tpu.dot_dimension_numbers<[1], [0], [0], [1], [0, 0, 1, 1], [], []>} : vector<64x64xbf16>, vector<64x8xbf16>, vector<64x8xf32> -> vector<64x8xf32>
    %c0_97 = arith.constant 0 : index
    %c0_98 = arith.constant 0 : index
    %125 = vector.load %arg9[%c0_97, %c0_98] : memref<1x8xf32, #tpu.memory_space<vmem>>, vector<1x8xf32>
    %126 = vector.broadcast %125 : vector<1x8xf32> to vector<64x8xf32>
    %127 = arith.addf %124, %126 : vector<64x8xf32>
    %c0_99 = arith.constant 0 : index
    %c0_100 = arith.constant 0 : index
    %128 = vector.load %arg10[%c0_99, %c0_100] : memref<64x64xbf16, #tpu.memory_space<vmem>>, vector<64x64xbf16>
    %cst_101 = arith.constant dense<0.000000e+00> : vector<64x64xf32>
    %129 = tpu.matmul %117, %128, %cst_101 {dimension_numbers = #tpu.dot_dimension_numbers<[1], [0], [0], [1], [0, 0, 1, 1], [], []>} : vector<64x64xbf16>, vector<64x64xbf16>, vector<64x64xf32> -> vector<64x64xf32>
    %c0_102 = arith.constant 0 : index
    %c0_103 = arith.constant 0 : index
    %130 = vector.load %arg11[%c0_102, %c0_103] : memref<1x64xf32, #tpu.memory_space<vmem>>, vector<1x64xf32>
    %131 = vector.broadcast %130 : vector<1x64xf32> to vector<64x64xf32>
    %132 = arith.addf %129, %131 : vector<64x64xf32>
    %133 = arith.truncf %122 : vector<64x8xf32> to vector<64x8xbf16>
    %134 = arith.truncf %127 : vector<64x8xf32> to vector<64x8xbf16>
    %cst_104 = arith.constant dense<0.000000e+00> : vector<64x64xf32>
    %135 = tpu.matmul %133, %134, %cst_104 {dimension_numbers = #tpu.dot_dimension_numbers<[1], [1], [0], [0], [0, 0, 1, 0], [], []>} : vector<64x8xbf16>, vector<64x8xbf16>, vector<64x64xf32> -> vector<64x64xf32>
    %c0_105 = arith.constant 0 : index
    %c0_106 = arith.constant 0 : index
    %136 = vector.load %arg12[%c0_105, %c0_106] : memref<64x64xf32, #tpu.memory_space<vmem>>, vector<64x64xf32>
    %137 = arith.addf %135, %136 : vector<64x64xf32>
    %cst_107 = arith.constant dense<0xFF800000> : vector<64xf32>
    %138 = vector.multi_reduction <maximumf>, %137, %cst_107 [1] : vector<64x64xf32> to vector<64xf32>
    %139 = vector.shape_cast %138 : vector<64xf32> to vector<64x1xf32>
    %140 = vector.broadcast %139 : vector<64x1xf32> to vector<64x64xf32>
    %141 = arith.subf %137, %140 : vector<64x64xf32>
    %142 = math.exp %141 : vector<64x64xf32>
    %cst_108 = arith.constant dense<0.000000e+00> : vector<64xf32>
    %143 = vector.multi_reduction <add>, %142, %cst_108 [1] : vector<64x64xf32> to vector<64xf32>
    %144 = vector.shape_cast %143 : vector<64xf32> to vector<64x1xf32>
    %145 = tpu.reciprocal %144 {approx = true} : vector<64x1xf32> -> vector<64x1xf32>
    %146 = vector.broadcast %145 : vector<64x1xf32> to vector<64x64xf32>
    %147 = arith.mulf %142, %146 : vector<64x64xf32>
    %148 = arith.truncf %147 : vector<64x64xf32> to vector<64x64xbf16>
    %149 = arith.truncf %132 : vector<64x64xf32> to vector<64x64xbf16>
    %cst_109 = arith.constant dense<0.000000e+00> : vector<64x64xf32>
    %150 = tpu.matmul %148, %149, %cst_109 {dimension_numbers = #tpu.dot_dimension_numbers<[1], [0], [0], [1], [0, 0, 1, 1], [], []>} : vector<64x64xbf16>, vector<64x64xbf16>, vector<64x64xf32> -> vector<64x64xf32>
    %151 = vector.broadcast %0 : f32 to vector<64x64xf32>
    %152 = arith.mulf %151, %150 : vector<64x64xf32>
    %153 = arith.addf %152, %116 : vector<64x64xf32>
    %cst_110 = arith.constant 0.000000e+00 : f32
    %154 = vector.broadcast %cst_110 : f32 to vector<10x10x64xf32>
    %c0_111 = arith.constant 0 : index
    %c0_112 = arith.constant 0 : index
    %c0_113 = arith.constant 0 : index
    %155 = vector.load %arg19[%c0_111, %c0_112, %c0_113] : memref<10x10x64xf32, #tpu.memory_space<vmem>>, vector<10x10x64xf32>
    tpu.vector_store %arg19[%c0_111, %c0_112, %c0_113], %154 {strides = array<i32>} : memref<10x10x64xf32, #tpu.memory_space<vmem>>, vector<10x10x64xf32>,
    %156 = vector.shape_cast %153 : vector<64x64xf32> to vector<8x8x64xf32>
    %c1_114 = arith.constant 1 : index
    %c1_115 = arith.constant 1 : index
    %c0_116 = arith.constant 0 : index
    %157 = vector.load %arg19[%c1_114, %c1_115, %c0_116] : memref<10x10x64xf32, #tpu.memory_space<vmem>>, vector<8x8x64xf32>
    tpu.vector_store %arg19[%c1_114, %c1_115, %c0_116], %156 {strides = array<i32>} : memref<10x10x64xf32, #tpu.memory_space<vmem>>, vector<8x8x64xf32>,
    %cst_117 = arith.constant 0.000000e+00 : f32
    %158 = vector.broadcast %cst_117 : f32 to vector<64x64xf32>
    %c0_118 = arith.constant 0 : index
    %c0_119 = arith.constant 0 : index
    %c0_120 = arith.constant 0 : index
    %159 = vector.load %arg19[%c0_118, %c0_119, %c0_120] : memref<10x10x64xf32, #tpu.memory_space<vmem>>, vector<8x8x64xf32>
    %160 = vector.shape_cast %159 : vector<8x8x64xf32> to vector<64x64xf32>
    %161 = arith.truncf %160 : vector<64x64xf32> to vector<64x64xbf16>
    %c0_121 = arith.constant 0 : index
    %c0_122 = arith.constant 0 : index
    %c0_123 = arith.constant 0 : index
    %162 = vector.load %arg13[%c0_121, %c0_122, %c0_123] : memref<9x64x64xbf16, #tpu.memory_space<vmem>>, vector<1x64x64xbf16>
    %163 = vector.shape_cast %162 : vector<1x64x64xbf16> to vector<64x64xbf16>
    %cst_124 = arith.constant dense<0.000000e+00> : vector<64x64xf32>
    %164 = tpu.matmul %161, %163, %cst_124 {dimension_numbers = #tpu.dot_dimension_numbers<[1], [0], [0], [1], [0, 0, 1, 1], [], []>} : vector<64x64xbf16>, vector<64x64xbf16>, vector<64x64xf32> -> vector<64x64xf32>
    %165 = arith.addf %158, %164 : vector<64x64xf32>
    %c0_125 = arith.constant 0 : index
    %c1_126 = arith.constant 1 : index
    %c0_127 = arith.constant 0 : index
    %166 = vector.load %arg19[%c0_125, %c1_126, %c0_127] : memref<10x10x64xf32, #tpu.memory_space<vmem>>, vector<8x8x64xf32>
    %167 = vector.shape_cast %166 : vector<8x8x64xf32> to vector<64x64xf32>
    %168 = arith.truncf %167 : vector<64x64xf32> to vector<64x64xbf16>
    %c1_128 = arith.constant 1 : index
    %c0_129 = arith.constant 0 : index
    %c0_130 = arith.constant 0 : index
    %169 = vector.load %arg13[%c1_128, %c0_129, %c0_130] : memref<9x64x64xbf16, #tpu.memory_space<vmem>>, vector<1x64x64xbf16>
    %170 = vector.shape_cast %169 : vector<1x64x64xbf16> to vector<64x64xbf16>
    %cst_131 = arith.constant dense<0.000000e+00> : vector<64x64xf32>
    %171 = tpu.matmul %168, %170, %cst_131 {dimension_numbers = #tpu.dot_dimension_numbers<[1], [0], [0], [1], [0, 0, 1, 1], [], []>} : vector<64x64xbf16>, vector<64x64xbf16>, vector<64x64xf32> -> vector<64x64xf32>
    %172 = arith.addf %165, %171 : vector<64x64xf32>
    %c0_132 = arith.constant 0 : index
    %c2_133 = arith.constant 2 : index
    %c0_134 = arith.constant 0 : index
    %173 = vector.load %arg19[%c0_132, %c2_133, %c0_134] : memref<10x10x64xf32, #tpu.memory_space<vmem>>, vector<8x8x64xf32>
    %174 = vector.shape_cast %173 : vector<8x8x64xf32> to vector<64x64xf32>
    %175 = arith.truncf %174 : vector<64x64xf32> to vector<64x64xbf16>
    %c2_135 = arith.constant 2 : index
    %c0_136 = arith.constant 0 : index
    %c0_137 = arith.constant 0 : index
    %176 = vector.load %arg13[%c2_135, %c0_136, %c0_137] : memref<9x64x64xbf16, #tpu.memory_space<vmem>>, vector<1x64x64xbf16>
    %177 = vector.shape_cast %176 : vector<1x64x64xbf16> to vector<64x64xbf16>
    %cst_138 = arith.constant dense<0.000000e+00> : vector<64x64xf32>
    %178 = tpu.matmul %175, %177, %cst_138 {dimension_numbers = #tpu.dot_dimension_numbers<[1], [0], [0], [1], [0, 0, 1, 1], [], []>} : vector<64x64xbf16>, vector<64x64xbf16>, vector<64x64xf32> -> vector<64x64xf32>
    %179 = arith.addf %172, %178 : vector<64x64xf32>
    %c1_139 = arith.constant 1 : index
    %c0_140 = arith.constant 0 : index
    %c0_141 = arith.constant 0 : index
    %180 = vector.load %arg19[%c1_139, %c0_140, %c0_141] : memref<10x10x64xf32, #tpu.memory_space<vmem>>, vector<8x8x64xf32>
    %181 = vector.shape_cast %180 : vector<8x8x64xf32> to vector<64x64xf32>
    %182 = arith.truncf %181 : vector<64x64xf32> to vector<64x64xbf16>
    %c3_142 = arith.constant 3 : index
    %c0_143 = arith.constant 0 : index
    %c0_144 = arith.constant 0 : index
    %183 = vector.load %arg13[%c3_142, %c0_143, %c0_144] : memref<9x64x64xbf16, #tpu.memory_space<vmem>>, vector<1x64x64xbf16>
    %184 = vector.shape_cast %183 : vector<1x64x64xbf16> to vector<64x64xbf16>
    %cst_145 = arith.constant dense<0.000000e+00> : vector<64x64xf32>
    %185 = tpu.matmul %182, %184, %cst_145 {dimension_numbers = #tpu.dot_dimension_numbers<[1], [0], [0], [1], [0, 0, 1, 1], [], []>} : vector<64x64xbf16>, vector<64x64xbf16>, vector<64x64xf32> -> vector<64x64xf32>
    %186 = arith.addf %179, %185 : vector<64x64xf32>
    %c1_146 = arith.constant 1 : index
    %c1_147 = arith.constant 1 : index
    %c0_148 = arith.constant 0 : index
    %187 = vector.load %arg19[%c1_146, %c1_147, %c0_148] : memref<10x10x64xf32, #tpu.memory_space<vmem>>, vector<8x8x64xf32>
    %188 = vector.shape_cast %187 : vector<8x8x64xf32> to vector<64x64xf32>
    %189 = arith.truncf %188 : vector<64x64xf32> to vector<64x64xbf16>
    %c4_149 = arith.constant 4 : index
    %c0_150 = arith.constant 0 : index
    %c0_151 = arith.constant 0 : index
    %190 = vector.load %arg13[%c4_149, %c0_150, %c0_151] : memref<9x64x64xbf16, #tpu.memory_space<vmem>>, vector<1x64x64xbf16>
    %191 = vector.shape_cast %190 : vector<1x64x64xbf16> to vector<64x64xbf16>
    %cst_152 = arith.constant dense<0.000000e+00> : vector<64x64xf32>
    %192 = tpu.matmul %189, %191, %cst_152 {dimension_numbers = #tpu.dot_dimension_numbers<[1], [0], [0], [1], [0, 0, 1, 1], [], []>} : vector<64x64xbf16>, vector<64x64xbf16>, vector<64x64xf32> -> vector<64x64xf32>
    %193 = arith.addf %186, %192 : vector<64x64xf32>
    %c1_153 = arith.constant 1 : index
    %c2_154 = arith.constant 2 : index
    %c0_155 = arith.constant 0 : index
    %194 = vector.load %arg19[%c1_153, %c2_154, %c0_155] : memref<10x10x64xf32, #tpu.memory_space<vmem>>, vector<8x8x64xf32>
    %195 = vector.shape_cast %194 : vector<8x8x64xf32> to vector<64x64xf32>
    %196 = arith.truncf %195 : vector<64x64xf32> to vector<64x64xbf16>
    %c5_156 = arith.constant 5 : index
    %c0_157 = arith.constant 0 : index
    %c0_158 = arith.constant 0 : index
    %197 = vector.load %arg13[%c5_156, %c0_157, %c0_158] : memref<9x64x64xbf16, #tpu.memory_space<vmem>>, vector<1x64x64xbf16>
    %198 = vector.shape_cast %197 : vector<1x64x64xbf16> to vector<64x64xbf16>
    %cst_159 = arith.constant dense<0.000000e+00> : vector<64x64xf32>
    %199 = tpu.matmul %196, %198, %cst_159 {dimension_numbers = #tpu.dot_dimension_numbers<[1], [0], [0], [1], [0, 0, 1, 1], [], []>} : vector<64x64xbf16>, vector<64x64xbf16>, vector<64x64xf32> -> vector<64x64xf32>
    %200 = arith.addf %193, %199 : vector<64x64xf32>
    %c2_160 = arith.constant 2 : index
    %c0_161 = arith.constant 0 : index
    %c0_162 = arith.constant 0 : index
    %201 = vector.load %arg19[%c2_160, %c0_161, %c0_162] : memref<10x10x64xf32, #tpu.memory_space<vmem>>, vector<8x8x64xf32>
    %202 = vector.shape_cast %201 : vector<8x8x64xf32> to vector<64x64xf32>
    %203 = arith.truncf %202 : vector<64x64xf32> to vector<64x64xbf16>
    %c6_163 = arith.constant 6 : index
    %c0_164 = arith.constant 0 : index
    %c0_165 = arith.constant 0 : index
    %204 = vector.load %arg13[%c6_163, %c0_164, %c0_165] : memref<9x64x64xbf16, #tpu.memory_space<vmem>>, vector<1x64x64xbf16>
    %205 = vector.shape_cast %204 : vector<1x64x64xbf16> to vector<64x64xbf16>
    %cst_166 = arith.constant dense<0.000000e+00> : vector<64x64xf32>
    %206 = tpu.matmul %203, %205, %cst_166 {dimension_numbers = #tpu.dot_dimension_numbers<[1], [0], [0], [1], [0, 0, 1, 1], [], []>} : vector<64x64xbf16>, vector<64x64xbf16>, vector<64x64xf32> -> vector<64x64xf32>
    %207 = arith.addf %200, %206 : vector<64x64xf32>
    %c2_167 = arith.constant 2 : index
    %c1_168 = arith.constant 1 : index
    %c0_169 = arith.constant 0 : index
    %208 = vector.load %arg19[%c2_167, %c1_168, %c0_169] : memref<10x10x64xf32, #tpu.memory_space<vmem>>, vector<8x8x64xf32>
    %209 = vector.shape_cast %208 : vector<8x8x64xf32> to vector<64x64xf32>
    %210 = arith.truncf %209 : vector<64x64xf32> to vector<64x64xbf16>
    %c7_170 = arith.constant 7 : index
    %c0_171 = arith.constant 0 : index
    %c0_172 = arith.constant 0 : index
    %211 = vector.load %arg13[%c7_170, %c0_171, %c0_172] : memref<9x64x64xbf16, #tpu.memory_space<vmem>>, vector<1x64x64xbf16>
    %212 = vector.shape_cast %211 : vector<1x64x64xbf16> to vector<64x64xbf16>
    %cst_173 = arith.constant dense<0.000000e+00> : vector<64x64xf32>
    %213 = tpu.matmul %210, %212, %cst_173 {dimension_numbers = #tpu.dot_dimension_numbers<[1], [0], [0], [1], [0, 0, 1, 1], [], []>} : vector<64x64xbf16>, vector<64x64xbf16>, vector<64x64xf32> -> vector<64x64xf32>
    %214 = arith.addf %207, %213 : vector<64x64xf32>
    %c2_174 = arith.constant 2 : index
    %c2_175 = arith.constant 2 : index
    %c0_176 = arith.constant 0 : index
    %215 = vector.load %arg19[%c2_174, %c2_175, %c0_176] : memref<10x10x64xf32, #tpu.memory_space<vmem>>, vector<8x8x64xf32>
    %216 = vector.shape_cast %215 : vector<8x8x64xf32> to vector<64x64xf32>
    %217 = arith.truncf %216 : vector<64x64xf32> to vector<64x64xbf16>
    %c8_177 = arith.constant 8 : index
    %c0_178 = arith.constant 0 : index
    %c0_179 = arith.constant 0 : index
    %218 = vector.load %arg13[%c8_177, %c0_178, %c0_179] : memref<9x64x64xbf16, #tpu.memory_space<vmem>>, vector<1x64x64xbf16>
    %219 = vector.shape_cast %218 : vector<1x64x64xbf16> to vector<64x64xbf16>
    %cst_180 = arith.constant dense<0.000000e+00> : vector<64x64xf32>
    %220 = tpu.matmul %217, %219, %cst_180 {dimension_numbers = #tpu.dot_dimension_numbers<[1], [0], [0], [1], [0, 0, 1, 1], [], []>} : vector<64x64xbf16>, vector<64x64xbf16>, vector<64x64xf32> -> vector<64x64xf32>
    %221 = arith.addf %214, %220 : vector<64x64xf32>
    %222 = vector.shape_cast %221 : vector<64x64xf32> to vector<8x8x64xf32>
    %c1_181 = arith.constant 1 : index
    %c1_182 = arith.constant 1 : index
    %c0_183 = arith.constant 0 : index
    %223 = vector.load %arg19[%c1_181, %c1_182, %c0_183] : memref<10x10x64xf32, #tpu.memory_space<vmem>>, vector<8x8x64xf32>
    tpu.vector_store %arg19[%c1_181, %c1_182, %c0_183], %222 {strides = array<i32>} : memref<10x10x64xf32, #tpu.memory_space<vmem>>, vector<8x8x64xf32>,
    %cst_184 = arith.constant 0.000000e+00 : f32
    %224 = vector.broadcast %cst_184 : f32 to vector<64x64xf32>
    %c0_185 = arith.constant 0 : index
    %c0_186 = arith.constant 0 : index
    %c0_187 = arith.constant 0 : index
    %c0_188 = arith.constant 0 : index
    %225 = vector.load %arg2[%c0_185, %c0_186, %c0_187, %c0_188] : memref<1x10x10x256xf32, #tpu.memory_space<vmem>>, vector<1x8x8x256xf32>
    %226 = vector.shape_cast %225 : vector<1x8x8x256xf32> to vector<8x8x256xf32>
    %227 = vector.shape_cast %226 : vector<8x8x256xf32> to vector<64x256xf32>
    %228 = arith.truncf %227 : vector<64x256xf32> to vector<64x256xbf16>
    %c0_189 = arith.constant 0 : index
    %c0_190 = arith.constant 0 : index
    %c0_191 = arith.constant 0 : index
    %229 = vector.load %arg14[%c0_189, %c0_190, %c0_191] : memref<9x256x64xbf16, #tpu.memory_space<vmem>>, vector<1x256x64xbf16>
    %230 = vector.shape_cast %229 : vector<1x256x64xbf16> to vector<256x64xbf16>
    %cst_192 = arith.constant dense<0.000000e+00> : vector<64x64xf32>
    %231 = tpu.matmul %228, %230, %cst_192 {dimension_numbers = #tpu.dot_dimension_numbers<[1], [0], [0], [1], [0, 0, 1, 1], [], []>} : vector<64x256xbf16>, vector<256x64xbf16>, vector<64x64xf32> -> vector<64x64xf32>
    %232 = arith.addf %224, %231 : vector<64x64xf32>
    %c0_193 = arith.constant 0 : index
    %c0_194 = arith.constant 0 : index
    %c1_195 = arith.constant 1 : index
    %c0_196 = arith.constant 0 : index
    %233 = vector.load %arg2[%c0_193, %c0_194, %c1_195, %c0_196] : memref<1x10x10x256xf32, #tpu.memory_space<vmem>>, vector<1x8x8x256xf32>
    %234 = vector.shape_cast %233 : vector<1x8x8x256xf32> to vector<8x8x256xf32>
    %235 = vector.shape_cast %234 : vector<8x8x256xf32> to vector<64x256xf32>
    %236 = arith.truncf %235 : vector<64x256xf32> to vector<64x256xbf16>
    %c1_197 = arith.constant 1 : index
    %c0_198 = arith.constant 0 : index
    %c0_199 = arith.constant 0 : index
    %237 = vector.load %arg14[%c1_197, %c0_198, %c0_199] : memref<9x256x64xbf16, #tpu.memory_space<vmem>>, vector<1x256x64xbf16>
    %238 = vector.shape_cast %237 : vector<1x256x64xbf16> to vector<256x64xbf16>
    %cst_200 = arith.constant dense<0.000000e+00> : vector<64x64xf32>
    %239 = tpu.matmul %236, %238, %cst_200 {dimension_numbers = #tpu.dot_dimension_numbers<[1], [0], [0], [1], [0, 0, 1, 1], [], []>} : vector<64x256xbf16>, vector<256x64xbf16>, vector<64x64xf32> -> vector<64x64xf32>
    %240 = arith.addf %232, %239 : vector<64x64xf32>
    %c0_201 = arith.constant 0 : index
    %c0_202 = arith.constant 0 : index
    %c2_203 = arith.constant 2 : index
    %c0_204 = arith.constant 0 : index
    %241 = vector.load %arg2[%c0_201, %c0_202, %c2_203, %c0_204] : memref<1x10x10x256xf32, #tpu.memory_space<vmem>>, vector<1x8x8x256xf32>
    %242 = vector.shape_cast %241 : vector<1x8x8x256xf32> to vector<8x8x256xf32>
    %243 = vector.shape_cast %242 : vector<8x8x256xf32> to vector<64x256xf32>
    %244 = arith.truncf %243 : vector<64x256xf32> to vector<64x256xbf16>
    %c2_205 = arith.constant 2 : index
    %c0_206 = arith.constant 0 : index
    %c0_207 = arith.constant 0 : index
    %245 = vector.load %arg14[%c2_205, %c0_206, %c0_207] : memref<9x256x64xbf16, #tpu.memory_space<vmem>>, vector<1x256x64xbf16>
    %246 = vector.shape_cast %245 : vector<1x256x64xbf16> to vector<256x64xbf16>
    %cst_208 = arith.constant dense<0.000000e+00> : vector<64x64xf32>
    %247 = tpu.matmul %244, %246, %cst_208 {dimension_numbers = #tpu.dot_dimension_numbers<[1], [0], [0], [1], [0, 0, 1, 1], [], []>} : vector<64x256xbf16>, vector<256x64xbf16>, vector<64x64xf32> -> vector<64x64xf32>
    %248 = arith.addf %240, %247 : vector<64x64xf32>
    %c0_209 = arith.constant 0 : index
    %c1_210 = arith.constant 1 : index
    %c0_211 = arith.constant 0 : index
    %c0_212 = arith.constant 0 : index
    %249 = vector.load %arg2[%c0_209, %c1_210, %c0_211, %c0_212] : memref<1x10x10x256xf32, #tpu.memory_space<vmem>>, vector<1x8x8x256xf32>
    %250 = vector.shape_cast %249 : vector<1x8x8x256xf32> to vector<8x8x256xf32>
    %251 = vector.shape_cast %250 : vector<8x8x256xf32> to vector<64x256xf32>
    %252 = arith.truncf %251 : vector<64x256xf32> to vector<64x256xbf16>
    %c3_213 = arith.constant 3 : index
    %c0_214 = arith.constant 0 : index
    %c0_215 = arith.constant 0 : index
    %253 = vector.load %arg14[%c3_213, %c0_214, %c0_215] : memref<9x256x64xbf16, #tpu.memory_space<vmem>>, vector<1x256x64xbf16>
    %254 = vector.shape_cast %253 : vector<1x256x64xbf16> to vector<256x64xbf16>
    %cst_216 = arith.constant dense<0.000000e+00> : vector<64x64xf32>
    %255 = tpu.matmul %252, %254, %cst_216 {dimension_numbers = #tpu.dot_dimension_numbers<[1], [0], [0], [1], [0, 0, 1, 1], [], []>} : vector<64x256xbf16>, vector<256x64xbf16>, vector<64x64xf32> -> vector<64x64xf32>
    %256 = arith.addf %248, %255 : vector<64x64xf32>
    %c0_217 = arith.constant 0 : index
    %c1_218 = arith.constant 1 : index
    %c1_219 = arith.constant 1 : index
    %c0_220 = arith.constant 0 : index
    %257 = vector.load %arg2[%c0_217, %c1_218, %c1_219, %c0_220] : memref<1x10x10x256xf32, #tpu.memory_space<vmem>>, vector<1x8x8x256xf32>
    %258 = vector.shape_cast %257 : vector<1x8x8x256xf32> to vector<8x8x256xf32>
    %259 = vector.shape_cast %258 : vector<8x8x256xf32> to vector<64x256xf32>
    %260 = arith.truncf %259 : vector<64x256xf32> to vector<64x256xbf16>
    %c4_221 = arith.constant 4 : index
    %c0_222 = arith.constant 0 : index
    %c0_223 = arith.constant 0 : index
    %261 = vector.load %arg14[%c4_221, %c0_222, %c0_223] : memref<9x256x64xbf16, #tpu.memory_space<vmem>>, vector<1x256x64xbf16>
    %262 = vector.shape_cast %261 : vector<1x256x64xbf16> to vector<256x64xbf16>
    %cst_224 = arith.constant dense<0.000000e+00> : vector<64x64xf32>
    %263 = tpu.matmul %260, %262, %cst_224 {dimension_numbers = #tpu.dot_dimension_numbers<[1], [0], [0], [1], [0, 0, 1, 1], [], []>} : vector<64x256xbf16>, vector<256x64xbf16>, vector<64x64xf32> -> vector<64x64xf32>
    %264 = arith.addf %256, %263 : vector<64x64xf32>
    %c0_225 = arith.constant 0 : index
    %c1_226 = arith.constant 1 : index
    %c2_227 = arith.constant 2 : index
    %c0_228 = arith.constant 0 : index
    %265 = vector.load %arg2[%c0_225, %c1_226, %c2_227, %c0_228] : memref<1x10x10x256xf32, #tpu.memory_space<vmem>>, vector<1x8x8x256xf32>
    %266 = vector.shape_cast %265 : vector<1x8x8x256xf32> to vector<8x8x256xf32>
    %267 = vector.shape_cast %266 : vector<8x8x256xf32> to vector<64x256xf32>
    %268 = arith.truncf %267 : vector<64x256xf32> to vector<64x256xbf16>
    %c5_229 = arith.constant 5 : index
    %c0_230 = arith.constant 0 : index
    %c0_231 = arith.constant 0 : index
    %269 = vector.load %arg14[%c5_229, %c0_230, %c0_231] : memref<9x256x64xbf16, #tpu.memory_space<vmem>>, vector<1x256x64xbf16>
    %270 = vector.shape_cast %269 : vector<1x256x64xbf16> to vector<256x64xbf16>
    %cst_232 = arith.constant dense<0.000000e+00> : vector<64x64xf32>
    %271 = tpu.matmul %268, %270, %cst_232 {dimension_numbers = #tpu.dot_dimension_numbers<[1], [0], [0], [1], [0, 0, 1, 1], [], []>} : vector<64x256xbf16>, vector<256x64xbf16>, vector<64x64xf32> -> vector<64x64xf32>
    %272 = arith.addf %264, %271 : vector<64x64xf32>
    %c0_233 = arith.constant 0 : index
    %c2_234 = arith.constant 2 : index
    %c0_235 = arith.constant 0 : index
    %c0_236 = arith.constant 0 : index
    %273 = vector.load %arg2[%c0_233, %c2_234, %c0_235, %c0_236] : memref<1x10x10x256xf32, #tpu.memory_space<vmem>>, vector<1x8x8x256xf32>
    %274 = vector.shape_cast %273 : vector<1x8x8x256xf32> to vector<8x8x256xf32>
    %275 = vector.shape_cast %274 : vector<8x8x256xf32> to vector<64x256xf32>
    %276 = arith.truncf %275 : vector<64x256xf32> to vector<64x256xbf16>
    %c6_237 = arith.constant 6 : index
    %c0_238 = arith.constant 0 : index
    %c0_239 = arith.constant 0 : index
    %277 = vector.load %arg14[%c6_237, %c0_238, %c0_239] : memref<9x256x64xbf16, #tpu.memory_space<vmem>>, vector<1x256x64xbf16>
    %278 = vector.shape_cast %277 : vector<1x256x64xbf16> to vector<256x64xbf16>
    %cst_240 = arith.constant dense<0.000000e+00> : vector<64x64xf32>
    %279 = tpu.matmul %276, %278, %cst_240 {dimension_numbers = #tpu.dot_dimension_numbers<[1], [0], [0], [1], [0, 0, 1, 1], [], []>} : vector<64x256xbf16>, vector<256x64xbf16>, vector<64x64xf32> -> vector<64x64xf32>
    %280 = arith.addf %272, %279 : vector<64x64xf32>
    %c0_241 = arith.constant 0 : index
    %c2_242 = arith.constant 2 : index
    %c1_243 = arith.constant 1 : index
    %c0_244 = arith.constant 0 : index
    %281 = vector.load %arg2[%c0_241, %c2_242, %c1_243, %c0_244] : memref<1x10x10x256xf32, #tpu.memory_space<vmem>>, vector<1x8x8x256xf32>
    %282 = vector.shape_cast %281 : vector<1x8x8x256xf32> to vector<8x8x256xf32>
    %283 = vector.shape_cast %282 : vector<8x8x256xf32> to vector<64x256xf32>
    %284 = arith.truncf %283 : vector<64x256xf32> to vector<64x256xbf16>
    %c7_245 = arith.constant 7 : index
    %c0_246 = arith.constant 0 : index
    %c0_247 = arith.constant 0 : index
    %285 = vector.load %arg14[%c7_245, %c0_246, %c0_247] : memref<9x256x64xbf16, #tpu.memory_space<vmem>>, vector<1x256x64xbf16>
    %286 = vector.shape_cast %285 : vector<1x256x64xbf16> to vector<256x64xbf16>
    %cst_248 = arith.constant dense<0.000000e+00> : vector<64x64xf32>
    %287 = tpu.matmul %284, %286, %cst_248 {dimension_numbers = #tpu.dot_dimension_numbers<[1], [0], [0], [1], [0, 0, 1, 1], [], []>} : vector<64x256xbf16>, vector<256x64xbf16>, vector<64x64xf32> -> vector<64x64xf32>
    %288 = arith.addf %280, %287 : vector<64x64xf32>
    %c0_249 = arith.constant 0 : index
    %c2_250 = arith.constant 2 : index
    %c2_251 = arith.constant 2 : index
    %c0_252 = arith.constant 0 : index
    %289 = vector.load %arg2[%c0_249, %c2_250, %c2_251, %c0_252] : memref<1x10x10x256xf32, #tpu.memory_space<vmem>>, vector<1x8x8x256xf32>
    %290 = vector.shape_cast %289 : vector<1x8x8x256xf32> to vector<8x8x256xf32>
    %291 = vector.shape_cast %290 : vector<8x8x256xf32> to vector<64x256xf32>
    %292 = arith.truncf %291 : vector<64x256xf32> to vector<64x256xbf16>
    %c8_253 = arith.constant 8 : index
    %c0_254 = arith.constant 0 : index
    %c0_255 = arith.constant 0 : index
    %293 = vector.load %arg14[%c8_253, %c0_254, %c0_255] : memref<9x256x64xbf16, #tpu.memory_space<vmem>>, vector<1x256x64xbf16>
    %294 = vector.shape_cast %293 : vector<1x256x64xbf16> to vector<256x64xbf16>
    %cst_256 = arith.constant dense<0.000000e+00> : vector<64x64xf32>
    %295 = tpu.matmul %292, %294, %cst_256 {dimension_numbers = #tpu.dot_dimension_numbers<[1], [0], [0], [1], [0, 0, 1, 1], [], []>} : vector<64x256xbf16>, vector<256x64xbf16>, vector<64x64xf32> -> vector<64x64xf32>
    %296 = arith.addf %288, %295 : vector<64x64xf32>
    %cst_257 = arith.constant 0.000000e+00 : f32
    %297 = vector.broadcast %cst_257 : f32 to vector<64x64xf32>
    %c0_258 = arith.constant 0 : index
    %c0_259 = arith.constant 0 : index
    %c0_260 = arith.constant 0 : index
    %298 = vector.load %arg19[%c0_258, %c0_259, %c0_260] : memref<10x10x64xf32, #tpu.memory_space<vmem>>, vector<8x8x64xf32>
    %299 = vector.shape_cast %298 : vector<8x8x64xf32> to vector<64x64xf32>
    %300 = arith.truncf %299 : vector<64x64xf32> to vector<64x64xbf16>
    %c0_261 = arith.constant 0 : index
    %c0_262 = arith.constant 0 : index
    %c0_263 = arith.constant 0 : index
    %301 = vector.load %arg15[%c0_261, %c0_262, %c0_263] : memref<9x64x64xbf16, #tpu.memory_space<vmem>>, vector<1x64x64xbf16>
    %302 = vector.shape_cast %301 : vector<1x64x64xbf16> to vector<64x64xbf16>
    %cst_264 = arith.constant dense<0.000000e+00> : vector<64x64xf32>
    %303 = tpu.matmul %300, %302, %cst_264 {dimension_numbers = #tpu.dot_dimension_numbers<[1], [0], [0], [1], [0, 0, 1, 1], [], []>} : vector<64x64xbf16>, vector<64x64xbf16>, vector<64x64xf32> -> vector<64x64xf32>
    %304 = arith.addf %297, %303 : vector<64x64xf32>
    %c0_265 = arith.constant 0 : index
    %c1_266 = arith.constant 1 : index
    %c0_267 = arith.constant 0 : index
    %305 = vector.load %arg19[%c0_265, %c1_266, %c0_267] : memref<10x10x64xf32, #tpu.memory_space<vmem>>, vector<8x8x64xf32>
    %306 = vector.shape_cast %305 : vector<8x8x64xf32> to vector<64x64xf32>
    %307 = arith.truncf %306 : vector<64x64xf32> to vector<64x64xbf16>
    %c1_268 = arith.constant 1 : index
    %c0_269 = arith.constant 0 : index
    %c0_270 = arith.constant 0 : index
    %308 = vector.load %arg15[%c1_268, %c0_269, %c0_270] : memref<9x64x64xbf16, #tpu.memory_space<vmem>>, vector<1x64x64xbf16>
    %309 = vector.shape_cast %308 : vector<1x64x64xbf16> to vector<64x64xbf16>
    %cst_271 = arith.constant dense<0.000000e+00> : vector<64x64xf32>
    %310 = tpu.matmul %307, %309, %cst_271 {dimension_numbers = #tpu.dot_dimension_numbers<[1], [0], [0], [1], [0, 0, 1, 1], [], []>} : vector<64x64xbf16>, vector<64x64xbf16>, vector<64x64xf32> -> vector<64x64xf32>
    %311 = arith.addf %304, %310 : vector<64x64xf32>
    %c0_272 = arith.constant 0 : index
    %c2_273 = arith.constant 2 : index
    %c0_274 = arith.constant 0 : index
    %312 = vector.load %arg19[%c0_272, %c2_273, %c0_274] : memref<10x10x64xf32, #tpu.memory_space<vmem>>, vector<8x8x64xf32>
    %313 = vector.shape_cast %312 : vector<8x8x64xf32> to vector<64x64xf32>
    %314 = arith.truncf %313 : vector<64x64xf32> to vector<64x64xbf16>
    %c2_275 = arith.constant 2 : index
    %c0_276 = arith.constant 0 : index
    %c0_277 = arith.constant 0 : index
    %315 = vector.load %arg15[%c2_275, %c0_276, %c0_277] : memref<9x64x64xbf16, #tpu.memory_space<vmem>>, vector<1x64x64xbf16>
    %316 = vector.shape_cast %315 : vector<1x64x64xbf16> to vector<64x64xbf16>
    %cst_278 = arith.constant dense<0.000000e+00> : vector<64x64xf32>
    %317 = tpu.matmul %314, %316, %cst_278 {dimension_numbers = #tpu.dot_dimension_numbers<[1], [0], [0], [1], [0, 0, 1, 1], [], []>} : vector<64x64xbf16>, vector<64x64xbf16>, vector<64x64xf32> -> vector<64x64xf32>
    %318 = arith.addf %311, %317 : vector<64x64xf32>
    %c1_279 = arith.constant 1 : index
    %c0_280 = arith.constant 0 : index
    %c0_281 = arith.constant 0 : index
    %319 = vector.load %arg19[%c1_279, %c0_280, %c0_281] : memref<10x10x64xf32, #tpu.memory_space<vmem>>, vector<8x8x64xf32>
    %320 = vector.shape_cast %319 : vector<8x8x64xf32> to vector<64x64xf32>
    %321 = arith.truncf %320 : vector<64x64xf32> to vector<64x64xbf16>
    %c3_282 = arith.constant 3 : index
    %c0_283 = arith.constant 0 : index
    %c0_284 = arith.constant 0 : index
    %322 = vector.load %arg15[%c3_282, %c0_283, %c0_284] : memref<9x64x64xbf16, #tpu.memory_space<vmem>>, vector<1x64x64xbf16>
    %323 = vector.shape_cast %322 : vector<1x64x64xbf16> to vector<64x64xbf16>
    %cst_285 = arith.constant dense<0.000000e+00> : vector<64x64xf32>
    %324 = tpu.matmul %321, %323, %cst_285 {dimension_numbers = #tpu.dot_dimension_numbers<[1], [0], [0], [1], [0, 0, 1, 1], [], []>} : vector<64x64xbf16>, vector<64x64xbf16>, vector<64x64xf32> -> vector<64x64xf32>
    %325 = arith.addf %318, %324 : vector<64x64xf32>
    %c1_286 = arith.constant 1 : index
    %c1_287 = arith.constant 1 : index
    %c0_288 = arith.constant 0 : index
    %326 = vector.load %arg19[%c1_286, %c1_287, %c0_288] : memref<10x10x64xf32, #tpu.memory_space<vmem>>, vector<8x8x64xf32>
    %327 = vector.shape_cast %326 : vector<8x8x64xf32> to vector<64x64xf32>
    %328 = arith.truncf %327 : vector<64x64xf32> to vector<64x64xbf16>
    %c4_289 = arith.constant 4 : index
    %c0_290 = arith.constant 0 : index
    %c0_291 = arith.constant 0 : index
    %329 = vector.load %arg15[%c4_289, %c0_290, %c0_291] : memref<9x64x64xbf16, #tpu.memory_space<vmem>>, vector<1x64x64xbf16>
    %330 = vector.shape_cast %329 : vector<1x64x64xbf16> to vector<64x64xbf16>
    %cst_292 = arith.constant dense<0.000000e+00> : vector<64x64xf32>
    %331 = tpu.matmul %328, %330, %cst_292 {dimension_numbers = #tpu.dot_dimension_numbers<[1], [0], [0], [1], [0, 0, 1, 1], [], []>} : vector<64x64xbf16>, vector<64x64xbf16>, vector<64x64xf32> -> vector<64x64xf32>
    %332 = arith.addf %325, %331 : vector<64x64xf32>
    %c1_293 = arith.constant 1 : index
    %c2_294 = arith.constant 2 : index
    %c0_295 = arith.constant 0 : index
    %333 = vector.load %arg19[%c1_293, %c2_294, %c0_295] : memref<10x10x64xf32, #tpu.memory_space<vmem>>, vector<8x8x64xf32>
    %334 = vector.shape_cast %333 : vector<8x8x64xf32> to vector<64x64xf32>
    %335 = arith.truncf %334 : vector<64x64xf32> to vector<64x64xbf16>
    %c5_296 = arith.constant 5 : index
    %c0_297 = arith.constant 0 : index
    %c0_298 = arith.constant 0 : index
    %336 = vector.load %arg15[%c5_296, %c0_297, %c0_298] : memref<9x64x64xbf16, #tpu.memory_space<vmem>>, vector<1x64x64xbf16>
    %337 = vector.shape_cast %336 : vector<1x64x64xbf16> to vector<64x64xbf16>
    %cst_299 = arith.constant dense<0.000000e+00> : vector<64x64xf32>
    %338 = tpu.matmul %335, %337, %cst_299 {dimension_numbers = #tpu.dot_dimension_numbers<[1], [0], [0], [1], [0, 0, 1, 1], [], []>} : vector<64x64xbf16>, vector<64x64xbf16>, vector<64x64xf32> -> vector<64x64xf32>
    %339 = arith.addf %332, %338 : vector<64x64xf32>
    %c2_300 = arith.constant 2 : index
    %c0_301 = arith.constant 0 : index
    %c0_302 = arith.constant 0 : index
    %340 = vector.load %arg19[%c2_300, %c0_301, %c0_302] : memref<10x10x64xf32, #tpu.memory_space<vmem>>, vector<8x8x64xf32>
    %341 = vector.shape_cast %340 : vector<8x8x64xf32> to vector<64x64xf32>
    %342 = arith.truncf %341 : vector<64x64xf32> to vector<64x64xbf16>
    %c6_303 = arith.constant 6 : index
    %c0_304 = arith.constant 0 : index
    %c0_305 = arith.constant 0 : index
    %343 = vector.load %arg15[%c6_303, %c0_304, %c0_305] : memref<9x64x64xbf16, #tpu.memory_space<vmem>>, vector<1x64x64xbf16>
    %344 = vector.shape_cast %343 : vector<1x64x64xbf16> to vector<64x64xbf16>
    %cst_306 = arith.constant dense<0.000000e+00> : vector<64x64xf32>
    %345 = tpu.matmul %342, %344, %cst_306 {dimension_numbers = #tpu.dot_dimension_numbers<[1], [0], [0], [1], [0, 0, 1, 1], [], []>} : vector<64x64xbf16>, vector<64x64xbf16>, vector<64x64xf32> -> vector<64x64xf32>
    %346 = arith.addf %339, %345 : vector<64x64xf32>
    %c2_307 = arith.constant 2 : index
    %c1_308 = arith.constant 1 : index
    %c0_309 = arith.constant 0 : index
    %347 = vector.load %arg19[%c2_307, %c1_308, %c0_309] : memref<10x10x64xf32, #tpu.memory_space<vmem>>, vector<8x8x64xf32>
    %348 = vector.shape_cast %347 : vector<8x8x64xf32> to vector<64x64xf32>
    %349 = arith.truncf %348 : vector<64x64xf32> to vector<64x64xbf16>
    %c7_310 = arith.constant 7 : index
    %c0_311 = arith.constant 0 : index
    %c0_312 = arith.constant 0 : index
    %350 = vector.load %arg15[%c7_310, %c0_311, %c0_312] : memref<9x64x64xbf16, #tpu.memory_space<vmem>>, vector<1x64x64xbf16>
    %351 = vector.shape_cast %350 : vector<1x64x64xbf16> to vector<64x64xbf16>
    %cst_313 = arith.constant dense<0.000000e+00> : vector<64x64xf32>
    %352 = tpu.matmul %349, %351, %cst_313 {dimension_numbers = #tpu.dot_dimension_numbers<[1], [0], [0], [1], [0, 0, 1, 1], [], []>} : vector<64x64xbf16>, vector<64x64xbf16>, vector<64x64xf32> -> vector<64x64xf32>
    %353 = arith.addf %346, %352 : vector<64x64xf32>
    %c2_314 = arith.constant 2 : index
    %c2_315 = arith.constant 2 : index
    %c0_316 = arith.constant 0 : index
    %354 = vector.load %arg19[%c2_314, %c2_315, %c0_316] : memref<10x10x64xf32, #tpu.memory_space<vmem>>, vector<8x8x64xf32>
    %355 = vector.shape_cast %354 : vector<8x8x64xf32> to vector<64x64xf32>
    %356 = arith.truncf %355 : vector<64x64xf32> to vector<64x64xbf16>
    %c8_317 = arith.constant 8 : index
    %c0_318 = arith.constant 0 : index
    %c0_319 = arith.constant 0 : index
    %357 = vector.load %arg15[%c8_317, %c0_318, %c0_319] : memref<9x64x64xbf16, #tpu.memory_space<vmem>>, vector<1x64x64xbf16>
    %358 = vector.shape_cast %357 : vector<1x64x64xbf16> to vector<64x64xbf16>
    %cst_320 = arith.constant dense<0.000000e+00> : vector<64x64xf32>
    %359 = tpu.matmul %356, %358, %cst_320 {dimension_numbers = #tpu.dot_dimension_numbers<[1], [0], [0], [1], [0, 0, 1, 1], [], []>} : vector<64x64xbf16>, vector<64x64xbf16>, vector<64x64xf32> -> vector<64x64xf32>
    %360 = arith.addf %353, %359 : vector<64x64xf32>
    %361 = arith.addf %296, %360 : vector<64x64xf32>
    %c0_321 = arith.constant 0 : index
    %c0_322 = arith.constant 0 : index
    %362 = vector.load %arg16[%c0_321, %c0_322] : memref<1x64xf32, #tpu.memory_space<vmem>>, vector<1x64xf32>
    %363 = vector.broadcast %362 : vector<1x64xf32> to vector<64x64xf32>
    %364 = arith.mulf %361, %363 : vector<64x64xf32>
    %c0_323 = arith.constant 0 : index
    %c0_324 = arith.constant 0 : index
    %365 = vector.load %arg17[%c0_323, %c0_324] : memref<1x64xf32, #tpu.memory_space<vmem>>, vector<1x64xf32>
    %366 = vector.broadcast %365 : vector<1x64xf32> to vector<64x64xf32>
    %367 = arith.addf %364, %366 : vector<64x64xf32>
    %c0_325 = arith.constant 0 : index
    %c0_326 = arith.constant 0 : index
    %c0_327 = arith.constant 0 : index
    %368 = vector.load %arg18[%c0_325, %c0_326, %c0_327] : memref<1x64x64xf32, #tpu.memory_space<vmem>>, vector<1x64x64xf32>
    %369 = vector.shape_cast %368 : vector<1x64x64xf32> to vector<64x64xf32>
    %370 = vector.shape_cast %367 : vector<64x64xf32> to vector<1x64x64xf32>
    tpu.vector_store %arg18[%c0_325, %c0_326, %c0_327], %370 {strides = array<i32>} : memref<1x64x64xf32, #tpu.memory_space<vmem>>, vector<1x64x64xf32>,
    return
  }
  func.func @transform_0(%arg0: i32) -> i32 {
    %c0_i32 = arith.constant 0 : i32
    %c0_i32_0 = arith.constant 0 : i32
    return %c0_i32 : i32
  }
  func.func @transform_1(%arg0: i32) -> (i32, i32, i32, i32) {
    %c0_i32 = arith.constant 0 : i32
    %c0_i32_0 = arith.constant 0 : i32
    %c0_i32_1 = arith.constant 0 : i32
    %c0_i32_2 = arith.constant 0 : i32
    return %arg0, %c0_i32, %c0_i32_0, %c0_i32_1 : i32, i32, i32, i32
  }
  func.func @transform_2(%arg0: i32) -> (i32, i32, i32) {
    %c0_i32 = arith.constant 0 : i32
    %c0_i32_0 = arith.constant 0 : i32
    %c0_i32_1 = arith.constant 0 : i32
    %c0_i32_2 = arith.constant 0 : i32
    return %c0_i32, %c0_i32_0, %c0_i32_1 : i32, i32, i32
  }
  func.func @transform_3(%arg0: i32) -> (i32, i32) {
    %c0_i32 = arith.constant 0 : i32
    %c0_i32_0 = arith.constant 0 : i32
    %c0_i32_1 = arith.constant 0 : i32
    return %c0_i32, %c0_i32_0 : i32, i32
  }
  func.func @transform_4(%arg0: i32) -> (i32, i32) {
    %c0_i32 = arith.constant 0 : i32
    %c0_i32_0 = arith.constant 0 : i32
    %c0_i32_1 = arith.constant 0 : i32
    return %c0_i32, %c0_i32_0 : i32, i32
  }
  func.func @transform_5(%arg0: i32) -> (i32, i32) {
    %c0_i32 = arith.constant 0 : i32
    %c0_i32_0 = arith.constant 0 : i32
    %c0_i32_1 = arith.constant 0 : i32
    return %c0_i32, %c0_i32_0 : i32, i32
  }
  func.func @transform_6(%arg0: i32) -> (i32, i32) {
    %c0_i32 = arith.constant 0 : i32
    %c0_i32_0 = arith.constant 0 : i32
    %c0_i32_1 = arith.constant 0 : i32
    return %c0_i32, %c0_i32_0 : i32, i32
  }
  func.func @transform_7(%arg0: i32) -> (i32, i32) {
    %c0_i32 = arith.constant 0 : i32
    %c0_i32_0 = arith.constant 0 : i32
    %c0_i32_1 = arith.constant 0 : i32
    return %c0_i32, %c0_i32_0 : i32, i32
  }
  func.func @transform_8(%arg0: i32) -> (i32, i32) {
    %c0_i32 = arith.constant 0 : i32
    %c0_i32_0 = arith.constant 0 : i32
    %c0_i32_1 = arith.constant 0 : i32
    return %c0_i32, %c0_i32_0 : i32, i32
  }
  func.func @transform_9(%arg0: i32) -> (i32, i32) {
    %c0_i32 = arith.constant 0 : i32
    %c0_i32_0 = arith.constant 0 : i32
    %c0_i32_1 = arith.constant 0 : i32
    return %c0_i32, %c0_i32_0 : i32, i32
  }
  func.func @transform_10(%arg0: i32) -> (i32, i32) {
    %c0_i32 = arith.constant 0 : i32
    %c0_i32_0 = arith.constant 0 : i32
    %c0_i32_1 = arith.constant 0 : i32
    return %c0_i32, %c0_i32_0 : i32, i32
  }
  func.func @transform_11(%arg0: i32) -> (i32, i32) {
    %c0_i32 = arith.constant 0 : i32
    %c0_i32_0 = arith.constant 0 : i32
    %c0_i32_1 = arith.constant 0 : i32
    return %c0_i32, %c0_i32_0 : i32, i32
  }
  func.func @transform_12(%arg0: i32) -> (i32, i32, i32) {
    %c0_i32 = arith.constant 0 : i32
    %c0_i32_0 = arith.constant 0 : i32
    %c0_i32_1 = arith.constant 0 : i32
    %c0_i32_2 = arith.constant 0 : i32
    return %c0_i32, %c0_i32_0, %c0_i32_1 : i32, i32, i32
  }
  func.func @transform_13(%arg0: i32) -> (i32, i32, i32) {
    %c0_i32 = arith.constant 0 : i32
    %c0_i32_0 = arith.constant 0 : i32
    %c0_i32_1 = arith.constant 0 : i32
    %c0_i32_2 = arith.constant 0 : i32
    return %c0_i32, %c0_i32_0, %c0_i32_1 : i32, i32, i32
  }
  func.func @transform_14(%arg0: i32) -> (i32, i32, i32) {
    %c0_i32 = arith.constant 0 : i32
    %c0_i32_0 = arith.constant 0 : i32
    %c0_i32_1 = arith.constant 0 : i32
    %c0_i32_2 = arith.constant 0 : i32
    return %c0_i32, %c0_i32_0, %c0_i32_1 : i32, i32, i32
  }
  func.func @transform_15(%arg0: i32) -> (i32, i32) {
    %c0_i32 = arith.constant 0 : i32
    %c0_i32_0 = arith.constant 0 : i32
    %c0_i32_1 = arith.constant 0 : i32
    return %c0_i32, %c0_i32_0 : i32, i32
  }
  func.func @transform_16(%arg0: i32) -> (i32, i32) {
    %c0_i32 = arith.constant 0 : i32
    %c0_i32_0 = arith.constant 0 : i32
    %c0_i32_1 = arith.constant 0 : i32
    return %c0_i32, %c0_i32_0 : i32, i32
  }
  func.func @transform_17(%arg0: i32) -> (i32, i32, i32) {
    %c0_i32 = arith.constant 0 : i32
    %c0_i32_0 = arith.constant 0 : i32
    %c0_i32_1 = arith.constant 0 : i32
    return %arg0, %c0_i32, %c0_i32_0 : i32, i32, i32
  }
}

</mosaic_0001>

<llo_original>
// kernel: rcca_forward.3
$region0: #{rcca_forward.3}
  #allocation0 [shape = 'u32[]', space=smem, size = 0x4, offset = 0x4, fixed_abs, tag = 'smem constant byte address 0x4 - core index']
  #allocation1 [shape = 'u32[144,128]{1,0:T(1,128)}', space=vmem, size = 0x12000, scoped, tag = 'internal scratch']
  %s0 = inlined_call_operand.vmem [shape: bf16[256,64], index: 0, kind: input, shape index: {}]
  %s1 = inlined_call_operand.vmem [shape: f32[2,64,64], index: 1, kind: input, shape index: {}]
  %s2 = inlined_call_operand.vmem [shape: bf16[64,5], index: 2, kind: input, shape index: {}]
  %s3 = inlined_call_operand.vmem [shape: f32[1,5], index: 3, kind: input, shape index: {}]
  %s4 = inlined_call_operand.vmem [shape: f32[2,256,5], index: 4, kind: output, shape index: {}]
  %s5 = sld [smem:[#allocation0]]
  $region49: #{rcca_forward.3} parent=0
    _
  %s7 = ssub.s32 1, %s5
  %s8 = scalar_select 0, %s7, %s5
  loop: start=0, step=1, limit=4
  $region2: #{rcca_forward.3} parent=0 // loop_pre_header
    _
  $region3: #{rcca_forward.3} parent=0 // loop_header
    %s10 = sphi 0, %s14
    %p11 = scmp.ge.s32.totalorder %s10, 4
    %s18 = sphi 0, %s18
    %s20 = sphi 0, %s18
    %s21 = sphi 0, %s20
    %s35 = sphi 0, %s21
    %s41 = sphi 0, %s43
    %s44 = sphi 0, %s41
    %s45 = sphi 0, %s44
    %s61 = sphi 0, %s45
    %s65 = sphi 0, %s65
    %s67 = sphi 0, %s65
    %s68 = sphi 0, %s67
    %s82 = sphi 0, %s68
    %s86 = sphi 0, %s86
    %s88 = sphi 0, %s86
    %s89 = sphi 0, %s88
    %s103 = sphi 0, %s89
    %s109 = sphi 0, %s111
    %s112 = sphi 0, %s109
    %s113 = sphi 0, %s112
    %s129 = sphi 0, %s113
  $region4: #{rcca_forward.3} parent=0 // loop_header_branch
    %13 = sbr.rel (%p11) target = $region8
  $region5: #{rcca_forward.3} parent=0 // loop_body
    %s15 = ssub.s32 %s10, 1
    %s16 = ssub.s32 %s10, 2
    %s17 = sadd.s32 %s10, 1
    %s19 = sadd.s32 %s18, 1
    %p22 = scmp.eq.s32.totalorder %s10, 1
    %p23 = scmp.ne.s32.totalorder %s18, %s20
    %p24 = scmp.eq.s32.totalorder %s10, 0
    %p25 = por %p23, %p24
    %p26 = scmp.ne.s32.totalorder %s18, %s20
    %p27 = scmp.eq.s32.totalorder %s15, 1
    %p28 = por %p26, %p27
    %p29 = scmp.ne.s32.totalorder %s20, %s21
    %p30 = scmp.eq.s32.totalorder %s15, 0
    %p31 = por %p29, %p30
    %p32 = scmp.ne.s32.totalorder %s20, %s21
    %p33 = scmp.eq.s32.totalorder %s16, 1
    %p34 = por %p32, %p33
    %p36 = scmp.ne.s32.totalorder %s21, %s35
    %p37 = scmp.eq.s32.totalorder %s16, 0
    %p38 = por %p36, %p37
    %s39 = ssub.s32 %s10, %s17
    %p40 = scmp.eq.s32.totalorder %s39, 0
    %s42 = sadd.s32 %s41, 1
    %s43 = scalar_select %p40, %s41, %s42
    %p46 = pneg %p40
    %p47 = scmp.eq.s32.totalorder %s10, 1
    %p48 = por %p46, %p47
    %p49 = scmp.ne.s32.totalorder %s41, %s44
    %p50 = scmp.eq.s32.totalorder %s10, 0
    %p51 = por %p49, %p50
    %p52 = scmp.ne.s32.totalorder %s41, %s44
    %p53 = scmp.eq.s32.totalorder %s15, 1
    %p54 = por %p52, %p53
    %p55 = scmp.ne.s32.totalorder %s44, %s45
    %p56 = scmp.eq.s32.totalorder %s15, 0
    %p57 = por %p55, %p56
    %p58 = scmp.ne.s32.totalorder %s44, %s45
    %p59 = scmp.eq.s32.totalorder %s16, 1
    %p60 = por %p58, %p59
    %p62 = scmp.ne.s32.totalorder %s45, %s61
    %p63 = scmp.eq.s32.totalorder %s16, 0
    %p64 = por %p62, %p63
    %s66 = sadd.s32 %s65, 1
    %p69 = scmp.eq.s32.totalorder %s10, 1
    %p70 = scmp.ne.s32.totalorder %s65, %s67
    %p71 = scmp.eq.s32.totalorder %s10, 0
    %p72 = por %p70, %p71
    %p73 = scmp.ne.s32.totalorder %s65, %s67
    %p74 = scmp.eq.s32.totalorder %s15, 1
    %p75 = por %p73, %p74
    %p76 = scmp.ne.s32.totalorder %s67, %s68
    %p77 = scmp.eq.s32.totalorder %s15, 0
    %p78 = por %p76, %p77
    %p79 = scmp.ne.s32.totalorder %s67, %s68
    %p80 = scmp.eq.s32.totalorder %s16, 1
    %p81 = por %p79, %p80
    %p83 = scmp.ne.s32.totalorder %s68, %s82
    %p84 = scmp.eq.s32.totalorder %s16, 0
    %p85 = por %p83, %p84
    %s87 = sadd.s32 %s86, 1
    %p90 = scmp.eq.s32.totalorder %s10, 1
    %p91 = scmp.ne.s32.totalorder %s86, %s88
    %p92 = scmp.eq.s32.totalorder %s10, 0
    %p93 = por %p91, %p92
    %p94 = scmp.ne.s32.totalorder %s86, %s88
    %p95 = scmp.eq.s32.totalorder %s15, 1
    %p96 = por %p94, %p95
    %p97 = scmp.ne.s32.totalorder %s88, %s89
    %p98 = scmp.eq.s32.totalorder %s15, 0
    %p99 = por %p97, %p98
    %p100 = scmp.ne.s32.totalorder %s88, %s89
    %p101 = scmp.eq.s32.totalorder %s16, 1
    %p102 = por %p100, %p101
    %p104 = scmp.ne.s32.totalorder %s89, %s103
    %p105 = scmp.eq.s32.totalorder %s16, 0
    %p106 = por %p104, %p105
    %s107 = ssub.s32 %s10, %s17
    %p108 = scmp.eq.s32.totalorder %s107, 0
    %s110 = sadd.s32 %s109, 1
    %s111 = scalar_select %p108, %s109, %s110
    %p114 = pneg %p108
    %p115 = scmp.eq.s32.totalorder %s10, 1
    %p116 = por %p114, %p115
    %p117 = scmp.ne.s32.totalorder %s109, %s112
    %p118 = scmp.eq.s32.totalorder %s10, 0
    %p119 = por %p117, %p118
    %p120 = scmp.ne.s32.totalorder %s109, %s112
    %p121 = scmp.eq.s32.totalorder %s15, 1
    %p122 = por %p120, %p121
    %p123 = scmp.ne.s32.totalorder %s112, %s113
    %p124 = scmp.eq.s32.totalorder %s15, 0
    %p125 = por %p123, %p124
    %p126 = scmp.ne.s32.totalorder %s112, %s113
    %p127 = scmp.eq.s32.totalorder %s16, 1
    %p128 = por %p126, %p127
    %p130 = scmp.ne.s32.totalorder %s113, %s129
    %p131 = scmp.eq.s32.totalorder %s16, 0
    %p132 = por %p130, %p131
    %p133 = scmp.le.s32.totalorder 1, %s10
    %p134 = scmp.lt.s32.totalorder %s10, 3
    %p135 = pnand %p133, %p134
    %p136 = pneg %p135
    // Predicated region
    $region9: #{rcca_forward.3} parent=5 // pred_check
      _
    $region10: #{rcca_forward.3} parent=5 // pred_check_branch
      %138 = sbr.rel (%p135) target = $region12
    $region11: #{rcca_forward.3} parent=5 // pred_region
      %s139 = ssub.s32 %s10, 1
      // Predicated region
      $region13: #{rcca_forward.3} parent=11 // pred_check
        %p140 = pneg %p31
      $region14: #{rcca_forward.3} parent=11 // pred_check_branch
        %142 = sbr.rel (%p140) target = $region16
      $region15: #{rcca_forward.3} parent=11 // pred_region
        _
      $region16: #{rcca_forward.3} parent=11 // pred_fallthru
        _
      // Predicated region
      $region17: #{rcca_forward.3} parent=11 // pred_check
        %p143 = pneg %p78
      $region18: #{rcca_forward.3} parent=11 // pred_check_branch
        %145 = sbr.rel (%p143) target = $region20
      $region19: #{rcca_forward.3} parent=11 // pred_region
        _
      $region20: #{rcca_forward.3} parent=11 // pred_fallthru
        _
      // Predicated region
      $region21: #{rcca_forward.3} parent=11 // pred_check
        %p146 = pneg %p99
      $region22: #{rcca_forward.3} parent=11 // pred_check_branch
        %148 = sbr.rel (%p146) target = $region24
      $region23: #{rcca_forward.3} parent=11 // pred_region
        _
      $region24: #{rcca_forward.3} parent=11 // pred_fallthru
        _
    $region12: #{rcca_forward.3} parent=5 // pred_fallthru
      _
    %p149 = scmp.lt.s32.totalorder %s10, 2
    // Predicated region
    $region25: #{rcca_forward.3} parent=5 // pred_check
      %p150 = pneg %p149
    $region26: #{rcca_forward.3} parent=5 // pred_check_branch
      %152 = sbr.rel (%p150) target = $region28
    $region27: #{rcca_forward.3} parent=5 // pred_region
      // Predicated region
      $region29: #{rcca_forward.3} parent=27 // pred_check
        %p153 = pneg %p51
      $region30: #{rcca_forward.3} parent=27 // pred_check_branch
        %155 = sbr.rel (%p153) target = $region32
      $region31: #{rcca_forward.3} parent=27 // pred_region
        %p156 = scmp.lt.s32.totalorder %s10, 1
        %s157 = scalar_select %p156, %s10, 1
        %s158 = smul.addr %s157, 8
        %s159 = smul.addr %s158, 8
        %s160 = scalar_lea.vmem %s1, %s159
      $region32: #{rcca_forward.3} parent=27 // pred_fallthru
        _
    $region28: #{rcca_forward.3} parent=5 // pred_fallthru
      _
    %p161 = scmp.le.s32.totalorder 1, %s10
    %p162 = scmp.lt.s32.totalorder %s10, 3
    %p163 = pnand %p161, %p162
    %p164 = pneg %p163
    // Predicated region
    $region33: #{rcca_forward.3} parent=5 // pred_check
      _
    $region34: #{rcca_forward.3} parent=5 // pred_check_branch
      %166 = sbr.rel (%p163) target = $region36
    $region35: #{rcca_forward.3} parent=5 // pred_region
      %s167 = ssub.s32 %s10, 1
      %p168 = pneg %p31
      %p169 = pneg %p28
      %p170 = scmp.lt.s32.totalorder %s15, 1
      %s171 = scalar_select %p170, %s15, 1
      %s172 = smul.addr %s171, 8
      %s173 = smul.addr %s172, 8
      %s174 = scalar_lea.vmem %s1, %s173
      %p175 = pneg %p57
      %p176 = pneg %p54
      %p177 = pneg %p78
      %p178 = pneg %p75
      %p179 = pneg %p99
      %p180 = pneg %p96
      %p181 = pneg %p125
      %p182 = pneg %p122
      %p183 = scmp.lt.s32.totalorder %s15, 1
      %s184 = scalar_select %p183, %s15, 1
      %s185 = smul.addr %s184, 32
      %s186 = smul.addr %s185, 8
      %s187 = scalar_lea.vmem %s4, %s186
      %p188 = scmp.lt.s32.totalorder %s15, 1
      %s189 = scalar_select %p188, %s15, 1
      %s190 = smul.addr %s189, 8
      %s191 = smul.addr %s190, 8
      %s192 = scalar_lea.vmem %s1, %s191
      %p193 = scmp.lt.s32.totalorder %s15, 1
      %s194 = scalar_select %p193, %s15, 1
      %s195 = smul.addr %s194, 32
      %s196 = smul.addr %s195, 8
      %s197 = scalar_lea.vmem %s4, %s196
      %v199 = vld [vmem:[%s0] sm:$0xf]
      %v200 = vld [vmem:[%s0 + $0x4] sm:$0xf]
      %v201 = vld [vmem:[%s0 + $0x8] sm:$0xf]
      %v202 = vld [vmem:[%s0 + $0xc] sm:$0xf]
      %v203 = vld [vmem:[%s0 + $0x10] sm:$0xf]
      %v204 = vld [vmem:[%s0 + $0x14] sm:$0xf]
      %v205 = vld [vmem:[%s0 + $0x18] sm:$0xf]
      %v206 = vld [vmem:[%s0 + $0x1c] sm:$0xf]
      %v207 = vld [vmem:[%s0 + $0x20] sm:$0xf]
      %v208 = vld [vmem:[%s0 + $0x24] sm:$0xf]
      %v209 = vld [vmem:[%s0 + $0x28] sm:$0xf]
      %v210 = vld [vmem:[%s0 + $0x2c] sm:$0xf]
      %v211 = vld [vmem:[%s0 + $0x30] sm:$0xf]
      %v212 = vld [vmem:[%s0 + $0x34] sm:$0xf]
      %v213 = vld [vmem:[%s0 + $0x38] sm:$0xf]
      %v214 = vld [vmem:[%s0 + $0x3c] sm:$0xf]
      %v215 = vld [vmem:[%s0 + $0x40] sm:$0xf]
      %v216 = vld [vmem:[%s0 + $0x44] sm:$0xf]
      %v217 = vld [vmem:[%s0 + $0x48] sm:$0xf]
      %v218 = vld [vmem:[%s0 + $0x4c] sm:$0xf]
      %v219 = vld [vmem:[%s0 + $0x50] sm:$0xf]
      %v220 = vld [vmem:[%s0 + $0x54] sm:$0xf]
      %v221 = vld [vmem:[%s0 + $0x58] sm:$0xf]
      %v222 = vld [vmem:[%s0 + $0x5c] sm:$0xf]
      %v223 = vld [vmem:[%s0 + $0x60] sm:$0xf]
      %v224 = vld [vmem:[%s0 + $0x64] sm:$0xf]
      %v225 = vld [vmem:[%s0 + $0x68] sm:$0xf]
      %v226 = vld [vmem:[%s0 + $0x6c] sm:$0xf]
      %v227 = vld [vmem:[%s0 + $0x70] sm:$0xf]
      %v228 = vld [vmem:[%s0 + $0x74] sm:$0xf]
      %v229 = vld [vmem:[%s0 + $0x78] sm:$0xf]
      %v230 = vld [vmem:[%s0 + $0x7c] sm:$0xf]
      %v231 = vld [vmem:[%s192] sm:$0xff]
      %v232 = vld [vmem:[%s192 + $0x8] sm:$0xff]
      %v233 = vld [vmem:[%s192 + $0x10] sm:$0xff]
      %v234 = vld [vmem:[%s192 + $0x18] sm:$0xff]
      %v235 = vld [vmem:[%s192 + $0x20] sm:$0xff]
      %v236 = vld [vmem:[%s192 + $0x28] sm:$0xff]
      %v237 = vld [vmem:[%s192 + $0x30] sm:$0xff]
      %v238 = vld [vmem:[%s192 + $0x38] sm:$0xff]
      %v239 = vpack.c.bf16 %v232, %v231
      %v240 = vpack.c.bf16 %v234, %v233
      %v241 = vpack.c.bf16 %v236, %v235
      %v242 = vpack.c.bf16 %v238, %v237
      %v275 = vunpack.c.l.b16 %v199
      %v276 = vunpack.c.l.b16 %v200
      %v277 = vunpack.c.l.b16 %v201
      %v278 = vunpack.c.l.b16 %v202
      %v279 = vunpack.c.l.b16 %v203
      %v280 = vunpack.c.l.b16 %v204
      %v281 = vunpack.c.l.b16 %v205
      %v282 = vunpack.c.l.b16 %v206
      %v283 = vunpack.c.l.b16 %v207
      %v284 = vunpack.c.l.b16 %v208
      %v285 = vunpack.c.l.b16 %v209
      %v286 = vunpack.c.l.b16 %v210
      %v287 = vunpack.c.l.b16 %v211
      %v288 = vunpack.c.l.b16 %v212
      %v289 = vunpack.c.l.b16 %v213
      %v290 = vunpack.c.l.b16 %v214
      %v291 = vunpack.c.l.b16 %v215
      %v292 = vunpack.c.l.b16 %v216
      %v293 = vunpack.c.l.b16 %v217
      %v294 = vunpack.c.l.b16 %v218
      %v295 = vunpack.c.l.b16 %v219
      %v296 = vunpack.c.l.b16 %v220
      %v297 = vunpack.c.l.b16 %v221
      %v298 = vunpack.c.l.b16 %v222
      %v299 = vunpack.c.l.b16 %v223
      %v300 = vunpack.c.l.b16 %v224
      %v301 = vunpack.c.l.b16 %v225
      %v302 = vunpack.c.l.b16 %v226
      %v303 = vunpack.c.l.b16 %v227
      %v304 = vunpack.c.l.b16 %v228
      %v305 = vunpack.c.l.b16 %v229
      %v306 = vunpack.c.l.b16 %v230
      %v307 = vpack.c.b16 %v276, %v275
      %v308 = vpack.c.b16 %v278, %v277
      %v309 = vpack.c.b16 %v280, %v279
      %v310 = vpack.c.b16 %v282, %v281
      %v311 = vpack.c.b16 %v284, %v283
      %v312 = vpack.c.b16 %v286, %v285
      %v313 = vpack.c.b16 %v288, %v287
      %v314 = vpack.c.b16 %v290, %v289
      %v315 = vpack.c.b16 %v292, %v291
      %v316 = vpack.c.b16 %v294, %v293
      %v317 = vpack.c.b16 %v296, %v295
      %v318 = vpack.c.b16 %v298, %v297
      %v319 = vpack.c.b16 %v300, %v299
      %v320 = vpack.c.b16 %v302, %v301
      %v321 = vpack.c.b16 %v304, %v303
      %v322 = vpack.c.b16 %v306, %v305
      %vm323 = vcmask 523264
      %v325 = vsel %vm323, %v307, 0
      %v328 = vsel %vm323, %v308, 0
      %v331 = vsel %vm323, %v309, 0
      %v334 = vsel %vm323, %v310, 0
      %v337 = vsel %vm323, %v311, 0
      %v340 = vsel %vm323, %v312, 0
      %v343 = vsel %vm323, %v313, 0
      %v346 = vsel %vm323, %v314, 0
      %v349 = vsel %vm323, %v315, 0
      %v352 = vsel %vm323, %v316, 0
      %v355 = vsel %vm323, %v317, 0
      %v358 = vsel %vm323, %v318, 0
      %v361 = vsel %vm323, %v319, 0
      %v364 = vsel %vm323, %v320, 0
      %v367 = vsel %vm323, %v321, 0
      %v370 = vsel %vm323, %v322, 0
      %372 = vmatprep.subr.bf16.mxu0 0
      %373 = vmatpush1.bf16.msra.mxu0 0
      %374 = vmatprep.subr.bf16.mxu0 0
      %375 = vmatpush1.bf16.msra.mxu0 0
      %376 = vmatprep.subr.bf16.mxu0 0
      %377 = vmatpush1.bf16.msra.mxu0 0
      %378 = vmatprep.subr.bf16.mxu0 0
      %379 = vmatpush1.bf16.msra.mxu0 0
      %380 = vmatprep.subr.bf16.mxu0 0
      %381 = vmatpush1.bf16.msra.mxu0 %v242
      %382 = vmatprep.subr.bf16.mxu0 0
      %383 = vmatpush1.bf16.msra.mxu0 %v241
      %384 = vmatprep.subr.bf16.mxu0 0
      %385 = vmatpush1.bf16.msra.mxu0 %v240
      %386 = vmatprep.subr.bf16.mxu0 0
      %387 = vmatpush1.bf16.msra.mxu0 %v239
      %388 = vmatprep.subr.bf16.mxu0 0
      %389 = vmatpush2.bf16.msra.mxu0 0
      %390 = vmatprep.subr.bf16.mxu0 0
      %391 = vmatpush2.bf16.msra.mxu0 0
      %392 = vmatprep.subr.bf16.mxu0 0
      %393 = vmatpush2.bf16.msra.mxu0 0
      %394 = vmatprep.subr.bf16.mxu0 0
      %395 = vmatpush2.bf16.msra.mxu0 0
      %396 = vmatprep.subr.bf16.mxu0 0
      %397 = vmatpush2.bf16.msra.mxu0 0
      %398 = vmatprep.subr.bf16.mxu0 0
      %399 = vmatpush2.bf16.msra.mxu0 0
      %400 = vmatprep.subr.bf16.mxu0 0
      %401 = vmatpush2.bf16.msra.mxu0 0
      %402 = vmatprep.subr.bf16.mxu0 0
      %403 = vmatpush2.bf16.msra.mxu0 0
      %404 = vmatprep.mubr.bf16.mxu0 0
      %405 = vmatmul.mubr.bf16.gmra.mxu0 %v325
      %v406 = vpop.f32.mrf.mxu0
      %v407 = vadd.f32 0.0, %v406
      %v408 = vpop.f32.mrf.mxu0
      %v409 = vpop.f32.mrf.mxu0
      %v410 = vadd.f32 0.0, %v409
      %v411 = vpop.f32.mrf.mxu0
      %412 = vmatprep.mubr.bf16.mxu0 0
      %413 = vmatmul.mubr.bf16.gmra.mxu0 %v328
      %v414 = vpop.f32.mrf.mxu0
      %v415 = vadd.f32 0.0, %v414
      %v416 = vpop.f32.mrf.mxu0
      %v417 = vpop.f32.mrf.mxu0
      %v418 = vadd.f32 0.0, %v417
      %v419 = vpop.f32.mrf.mxu0
      %420 = vmatprep.mubr.bf16.mxu0 0
      %421 = vmatmul.mubr.bf16.gmra.mxu0 %v331
      %v422 = vpop.f32.mrf.mxu0
      %v423 = vadd.f32 0.0, %v422
      %v424 = vpop.f32.mrf.mxu0
      %v425 = vpop.f32.mrf.mxu0
      %v426 = vadd.f32 0.0, %v425
      %v427 = vpop.f32.mrf.mxu0
      %428 = vmatprep.mubr.bf16.mxu0 0
      %429 = vmatmul.mubr.bf16.gmra.mxu0 %v334
      %v430 = vpop.f32.mrf.mxu0
      %v431 = vadd.f32 0.0, %v430
      %v432 = vpop.f32.mrf.mxu0
      %v433 = vpop.f32.mrf.mxu0
      %v434 = vadd.f32 0.0, %v433
      %v435 = vpop.f32.mrf.mxu0
      %436 = vmatprep.mubr.bf16.mxu0 0
      %437 = vmatmul.mubr.bf16.gmra.mxu0 %v337
      %v438 = vpop.f32.mrf.mxu0
      %v439 = vadd.f32 0.0, %v438
      %v440 = vpop.f32.mrf.mxu0
      %v441 = vpop.f32.mrf.mxu0
      %v442 = vadd.f32 0.0, %v441
      %v443 = vpop.f32.mrf.mxu0
      %444 = vmatprep.mubr.bf16.mxu0 0
      %445 = vmatmul.mubr.bf16.gmra.mxu0 %v340
      %v446 = vpop.f32.mrf.mxu0
      %v447 = vadd.f32 0.0, %v446
      %v448 = vpop.f32.mrf.mxu0
      %v449 = vpop.f32.mrf.mxu0
      %v450 = vadd.f32 0.0, %v449
      %v451 = vpop.f32.mrf.mxu0
      %452 = vmatprep.mubr.bf16.mxu0 0
      %453 = vmatmul.mubr.bf16.gmra.mxu0 %v343
      %v454 = vpop.f32.mrf.mxu0
      %v455 = vadd.f32 0.0, %v454
      %v456 = vpop.f32.mrf.mxu0
      %v457 = vpop.f32.mrf.mxu0
      %v458 = vadd.f32 0.0, %v457
      %v459 = vpop.f32.mrf.mxu0
      %460 = vmatprep.mubr.bf16.mxu0 0
      %461 = vmatmul.mubr.bf16.gmra.mxu0 %v346
      %v462 = vpop.f32.mrf.mxu0
      %v463 = vadd.f32 0.0, %v462
      %v464 = vpop.f32.mrf.mxu0
      %v465 = vpop.f32.mrf.mxu0
      %v466 = vadd.f32 0.0, %v465
      %v467 = vpop.f32.mrf.mxu0
      %468 = vmatprep.mubr.bf16.mxu0 0
      %469 = vmatmul.mubr.bf16.gmra.mxu0 %v349
      %v470 = vpop.f32.mrf.mxu0
      %v471 = vadd.f32 0.0, %v470
      %v472 = vpop.f32.mrf.mxu0
      %v473 = vpop.f32.mrf.mxu0
      %v474 = vadd.f32 0.0, %v473
      %v475 = vpop.f32.mrf.mxu0
      %476 = vmatprep.mubr.bf16.mxu0 0
      %477 = vmatmul.mubr.bf16.gmra.mxu0 %v352
      %v478 = vpop.f32.mrf.mxu0
      %v479 = vadd.f32 0.0, %v478
      %v480 = vpop.f32.mrf.mxu0
      %v481 = vpop.f32.mrf.mxu0
      %v482 = vadd.f32 0.0, %v481
      %v483 = vpop.f32.mrf.mxu0
      %484 = vmatprep.mubr.bf16.mxu0 0
      %485 = vmatmul.mubr.bf16.gmra.mxu0 %v355
      %v486 = vpop.f32.mrf.mxu0
      %v487 = vadd.f32 0.0, %v486
      %v488 = vpop.f32.mrf.mxu0
      %v489 = vpop.f32.mrf.mxu0
      %v490 = vadd.f32 0.0, %v489
      %v491 = vpop.f32.mrf.mxu0
      %492 = vmatprep.mubr.bf16.mxu0 0
      %493 = vmatmul.mubr.bf16.gmra.mxu0 %v358
      %v494 = vpop.f32.mrf.mxu0
      %v495 = vadd.f32 0.0, %v494
      %v496 = vpop.f32.mrf.mxu0
      %v497 = vpop.f32.mrf.mxu0
      %v498 = vadd.f32 0.0, %v497
      %v499 = vpop.f32.mrf.mxu0
      %500 = vmatprep.mubr.bf16.mxu0 0
      %501 = vmatmul.mubr.bf16.gmra.mxu0 %v361
      %v502 = vpop.f32.mrf.mxu0
      %v503 = vadd.f32 0.0, %v502
      %v504 = vpop.f32.mrf.mxu0
      %v505 = vpop.f32.mrf.mxu0
      %v506 = vadd.f32 0.0, %v505
      %v507 = vpop.f32.mrf.mxu0
      %508 = vmatprep.mubr.bf16.mxu0 0
      %509 = vmatmul.mubr.bf16.gmra.mxu0 %v364
      %v510 = vpop.f32.mrf.mxu0
      %v511 = vadd.f32 0.0, %v510
      %v512 = vpop.f32.mrf.mxu0
      %v513 = vpop.f32.mrf.mxu0
      %v514 = vadd.f32 0.0, %v513
      %v515 = vpop.f32.mrf.mxu0
      %516 = vmatprep.mubr.bf16.mxu0 0
      %517 = vmatmul.mubr.bf16.gmra.mxu0 %v367
      %v518 = vpop.f32.mrf.mxu0
      %v519 = vadd.f32 0.0, %v518
      %v520 = vpop.f32.mrf.mxu0
      %v521 = vpop.f32.mrf.mxu0
      %v522 = vadd.f32 0.0, %v521
      %v523 = vpop.f32.mrf.mxu0
      %524 = vmatprep.mubr.bf16.mxu0 0
      %525 = vmatmul.mubr.bf16.gmra.mxu0 %v370
      %v526 = vpop.f32.mrf.mxu0
      %v527 = vadd.f32 0.0, %v526
      %v528 = vpop.f32.mrf.mxu0
      %v529 = vpop.f32.mrf.mxu0
      %v530 = vadd.f32 0.0, %v529
      %v531 = vpop.f32.mrf.mxu0
      %532 = vdwg.mxu0
      %v533 = vpack.c.bf16 %v410, %v407
      %v534 = vpack.c.bf16 %v418, %v415
      %v535 = vpack.c.bf16 %v426, %v423
      %v536 = vpack.c.bf16 %v434, %v431
      %v537 = vpack.c.bf16 %v442, %v439
      %v538 = vpack.c.bf16 %v450, %v447
      %v539 = vpack.c.bf16 %v458, %v455
      %v540 = vpack.c.bf16 %v466, %v463
      %v541 = vpack.c.bf16 %v474, %v471
      %v542 = vpack.c.bf16 %v482, %v479
      %v543 = vpack.c.bf16 %v490, %v487
      %v544 = vpack.c.bf16 %v498, %v495
      %v545 = vpack.c.bf16 %v506, %v503
      %v546 = vpack.c.bf16 %v514, %v511
      %v547 = vpack.c.bf16 %v522, %v519
      %v548 = vpack.c.bf16 %v530, %v527
      %v549 = vld [vmem:[%s2] sm:$0xf]
      %v550 = vld [vmem:[%s2 + $0x4] sm:$0xf]
      %v551 = vld [vmem:[%s2 + $0x8] sm:$0xf]
      %v552 = vld [vmem:[%s2 + $0xc] sm:$0xf]
      %v553 = vld [vmem:[%s2 + $0x10] sm:$0xf]
      %v554 = vld [vmem:[%s2 + $0x14] sm:$0xf]
      %v555 = vld [vmem:[%s2 + $0x18] sm:$0xf]
      %v556 = vld [vmem:[%s2 + $0x1c] sm:$0xf]
      %v557 = vld [vmem:[%s3] sm:$0x1]
      %v559 = vlaneseq
      %v560 = vshrl.u32 %v559, 7
      %v561 = vsub.s32 0, %v560
      %v562 = vrot.slane %v557, %v561
      %v572 = vunpack.c.l.b16 %v549
      %v573 = vunpack.c.l.b16 %v550
      %v574 = vunpack.c.l.b16 %v551
      %v575 = vunpack.c.l.b16 %v552
      %v576 = vunpack.c.l.b16 %v553
      %v577 = vunpack.c.l.b16 %v554
      %v578 = vunpack.c.l.b16 %v555
      %v579 = vunpack.c.l.b16 %v556
      %v580 = vpack.c.b16 %v573, %v572
      %v581 = vpack.c.b16 %v575, %v574
      %v582 = vpack.c.b16 %v577, %v576
      %v583 = vpack.c.b16 %v579, %v578
      %v589 = vsel %vm323, %v533, 0
      %v592 = vsel %vm323, %v534, 0
      %v595 = vsel %vm323, %v535, 0
      %v598 = vsel %vm323, %v536, 0
      %v601 = vsel %vm323, %v537, 0
      %v604 = vsel %vm323, %v538, 0
      %v607 = vsel %vm323, %v539, 0
      %v610 = vsel %vm323, %v540, 0
      %v613 = vsel %vm323, %v541, 0
      %v616 = vsel %vm323, %v542, 0
      %v619 = vsel %vm323, %v543, 0
      %v622 = vsel %vm323, %v544, 0
      %v625 = vsel %vm323, %v545, 0
      %v628 = vsel %vm323, %v546, 0
      %v631 = vsel %vm323, %v547, 0
      %v634 = vsel %vm323, %v548, 0
      %636 = vmatprep.subr.bf16.mxu0 0
      %637 = vmatpush1.bf16.msra.mxu0 0
      %638 = vmatprep.subr.bf16.mxu0 0
      %639 = vmatpush1.bf16.msra.mxu0 0
      %640 = vmatprep.subr.bf16.mxu0 0
      %641 = vmatpush1.bf16.msra.mxu0 0
      %642 = vmatprep.subr.bf16.mxu0 0
      %643 = vmatpush1.bf16.msra.mxu0 0
      %644 = vmatprep.subr.bf16.mxu0 0
      %645 = vmatpush1.bf16.msra.mxu0 %v583
      %646 = vmatprep.subr.bf16.mxu0 0
      %647 = vmatpush1.bf16.msra.mxu0 %v582
      %648 = vmatprep.subr.bf16.mxu0 0
      %649 = vmatpush1.bf16.msra.mxu0 %v581
      %650 = vmatprep.subr.bf16.mxu0 0
      %651 = vmatpush1.bf16.msra.mxu0 %v580
      %652 = vmatprep.subr.bf16.mxu0 0
      %653 = vmatpush2.bf16.msra.mxu0 0
      %654 = vmatprep.subr.bf16.mxu0 0
      %655 = vmatpush2.bf16.msra.mxu0 0
      %656 = vmatprep.subr.bf16.mxu0 0
      %657 = vmatpush2.bf16.msra.mxu0 0
      %658 = vmatprep.subr.bf16.mxu0 0
      %659 = vmatpush2.bf16.msra.mxu0 0
      %660 = vmatprep.subr.bf16.mxu0 0
      %661 = vmatpush2.bf16.msra.mxu0 0
      %662 = vmatprep.subr.bf16.mxu0 0
      %663 = vmatpush2.bf16.msra.mxu0 0
      %664 = vmatprep.subr.bf16.mxu0 0
      %665 = vmatpush2.bf16.msra.mxu0 0
      %666 = vmatprep.subr.bf16.mxu0 0
      %667 = vmatpush2.bf16.msra.mxu0 0
      %668 = vmatprep.mubr.bf16.mxu0 0
      %669 = vmatmul.mubr.bf16.gmra.mxu0 %v589
      %v670 = vpop.f32.mrf.mxu0
      %v671 = vadd.f32 %v562, %v670
      %v672 = vpop.f32.mrf.mxu0
      %v673 = vpop.f32.mrf.mxu0
      %v674 = vadd.f32 %v562, %v673
      %v675 = vpop.f32.mrf.mxu0
      %676 = vmatprep.mubr.bf16.mxu0 0
      %677 = vmatmul.mubr.bf16.gmra.mxu0 %v592
      %v678 = vpop.f32.mrf.mxu0
      %v679 = vadd.f32 %v562, %v678
      %v680 = vpop.f32.mrf.mxu0
      %v681 = vpop.f32.mrf.mxu0
      %v682 = vadd.f32 %v562, %v681
      %v683 = vpop.f32.mrf.mxu0
      %684 = vmatprep.mubr.bf16.mxu0 0
      %685 = vmatmul.mubr.bf16.gmra.mxu0 %v595
      %v686 = vpop.f32.mrf.mxu0
      %v687 = vadd.f32 %v562, %v686
      %v688 = vpop.f32.mrf.mxu0
      %v689 = vpop.f32.mrf.mxu0
      %v690 = vadd.f32 %v562, %v689
      %v691 = vpop.f32.mrf.mxu0
      %692 = vmatprep.mubr.bf16.mxu0 0
      %693 = vmatmul.mubr.bf16.gmra.mxu0 %v598
      %v694 = vpop.f32.mrf.mxu0
      %v695 = vadd.f32 %v562, %v694
      %v696 = vpop.f32.mrf.mxu0
      %v697 = vpop.f32.mrf.mxu0
      %v698 = vadd.f32 %v562, %v697
      %v699 = vpop.f32.mrf.mxu0
      %700 = vmatprep.mubr.bf16.mxu0 0
      %701 = vmatmul.mubr.bf16.gmra.mxu0 %v601
      %v702 = vpop.f32.mrf.mxu0
      %v703 = vadd.f32 %v562, %v702
      %v704 = vpop.f32.mrf.mxu0
      %v705 = vpop.f32.mrf.mxu0
      %v706 = vadd.f32 %v562, %v705
      %v707 = vpop.f32.mrf.mxu0
      %708 = vmatprep.mubr.bf16.mxu0 0
      %709 = vmatmul.mubr.bf16.gmra.mxu0 %v604
      %v710 = vpop.f32.mrf.mxu0
      %v711 = vadd.f32 %v562, %v710
      %v712 = vpop.f32.mrf.mxu0
      %v713 = vpop.f32.mrf.mxu0
      %v714 = vadd.f32 %v562, %v713
      %v715 = vpop.f32.mrf.mxu0
      %716 = vmatprep.mubr.bf16.mxu0 0
      %717 = vmatmul.mubr.bf16.gmra.mxu0 %v607
      %v718 = vpop.f32.mrf.mxu0
      %v719 = vadd.f32 %v562, %v718
      %v720 = vpop.f32.mrf.mxu0
      %v721 = vpop.f32.mrf.mxu0
      %v722 = vadd.f32 %v562, %v721
      %v723 = vpop.f32.mrf.mxu0
      %724 = vmatprep.mubr.bf16.mxu0 0
      %725 = vmatmul.mubr.bf16.gmra.mxu0 %v610
      %v726 = vpop.f32.mrf.mxu0
      %v727 = vadd.f32 %v562, %v726
      %v728 = vpop.f32.mrf.mxu0
      %v729 = vpop.f32.mrf.mxu0
      %v730 = vadd.f32 %v562, %v729
      %v731 = vpop.f32.mrf.mxu0
      %732 = vmatprep.mubr.bf16.mxu0 0
      %733 = vmatmul.mubr.bf16.gmra.mxu0 %v613
      %v734 = vpop.f32.mrf.mxu0
      %v735 = vadd.f32 %v562, %v734
      %v736 = vpop.f32.mrf.mxu0
      %v737 = vpop.f32.mrf.mxu0
      %v738 = vadd.f32 %v562, %v737
      %v739 = vpop.f32.mrf.mxu0
      %740 = vmatprep.mubr.bf16.mxu0 0
      %741 = vmatmul.mubr.bf16.gmra.mxu0 %v616
      %v742 = vpop.f32.mrf.mxu0
      %v743 = vadd.f32 %v562, %v742
      %v744 = vpop.f32.mrf.mxu0
      %v745 = vpop.f32.mrf.mxu0
      %v746 = vadd.f32 %v562, %v745
      %v747 = vpop.f32.mrf.mxu0
      %748 = vmatprep.mubr.bf16.mxu0 0
      %749 = vmatmul.mubr.bf16.gmra.mxu0 %v619
      %v750 = vpop.f32.mrf.mxu0
      %v751 = vadd.f32 %v562, %v750
      %v752 = vpop.f32.mrf.mxu0
      %v753 = vpop.f32.mrf.mxu0
      %v754 = vadd.f32 %v562, %v753
      %v755 = vpop.f32.mrf.mxu0
      %756 = vmatprep.mubr.bf16.mxu0 0
      %757 = vmatmul.mubr.bf16.gmra.mxu0 %v622
      %v758 = vpop.f32.mrf.mxu0
      %v759 = vadd.f32 %v562, %v758
      %v760 = vpop.f32.mrf.mxu0
      %v761 = vpop.f32.mrf.mxu0
      %v762 = vadd.f32 %v562, %v761
      %v763 = vpop.f32.mrf.mxu0
      %764 = vmatprep.mubr.bf16.mxu0 0
      %765 = vmatmul.mubr.bf16.gmra.mxu0 %v625
      %v766 = vpop.f32.mrf.mxu0
      %v767 = vadd.f32 %v562, %v766
      %v768 = vpop.f32.mrf.mxu0
      %v769 = vpop.f32.mrf.mxu0
      %v770 = vadd.f32 %v562, %v769
      %v771 = vpop.f32.mrf.mxu0
      %772 = vmatprep.mubr.bf16.mxu0 0
      %773 = vmatmul.mubr.bf16.gmra.mxu0 %v628
      %v774 = vpop.f32.mrf.mxu0
      %v775 = vadd.f32 %v562, %v774
      %v776 = vpop.f32.mrf.mxu0
      %v777 = vpop.f32.mrf.mxu0
      %v778 = vadd.f32 %v562, %v777
      %v779 = vpop.f32.mrf.mxu0
      %780 = vmatprep.mubr.bf16.mxu0 0
      %781 = vmatmul.mubr.bf16.gmra.mxu0 %v631
      %v782 = vpop.f32.mrf.mxu0
      %v783 = vadd.f32 %v562, %v782
      %v784 = vpop.f32.mrf.mxu0
      %v785 = vpop.f32.mrf.mxu0
      %v786 = vadd.f32 %v562, %v785
      %v787 = vpop.f32.mrf.mxu0
      %788 = vmatprep.mubr.bf16.mxu0 0
      %789 = vmatmul.mubr.bf16.gmra.mxu0 %v634
      %v790 = vpop.f32.mrf.mxu0
      %v791 = vadd.f32 %v562, %v790
      %v792 = vpop.f32.mrf.mxu0
      %v793 = vpop.f32.mrf.mxu0
      %v794 = vadd.f32 %v562, %v793
      %v795 = vpop.f32.mrf.mxu0
      %796 = vdwg.mxu0
      %vm797 = vcmask 39936
      %798 = vst.msk [vmem:[%s197] sm:$0xff] %vm797, %v671
      %799 = vst.msk [vmem:[%s197 + $0x8] sm:$0xff] %vm797, %v674
      %800 = vst.msk [vmem:[%s197 + $0x10] sm:$0xff] %vm797, %v679
      %801 = vst.msk [vmem:[%s197 + $0x18] sm:$0xff] %vm797, %v682
      %802 = vst.msk [vmem:[%s197 + $0x20] sm:$0xff] %vm797, %v687
      %803 = vst.msk [vmem:[%s197 + $0x28] sm:$0xff] %vm797, %v690
      %804 = vst.msk [vmem:[%s197 + $0x30] sm:$0xff] %vm797, %v695
      %805 = vst.msk [vmem:[%s197 + $0x38] sm:$0xff] %vm797, %v698
      %806 = vst.msk [vmem:[%s197 + $0x40] sm:$0xff] %vm797, %v703
      %807 = vst.msk [vmem:[%s197 + $0x48] sm:$0xff] %vm797, %v706
      %808 = vst.msk [vmem:[%s197 + $0x50] sm:$0xff] %vm797, %v711
      %809 = vst.msk [vmem:[%s197 + $0x58] sm:$0xff] %vm797, %v714
      %810 = vst.msk [vmem:[%s197 + $0x60] sm:$0xff] %vm797, %v719
      %811 = vst.msk [vmem:[%s197 + $0x68] sm:$0xff] %vm797, %v722
      %812 = vst.msk [vmem:[%s197 + $0x70] sm:$0xff] %vm797, %v727
      %813 = vst.msk [vmem:[%s197 + $0x78] sm:$0xff] %vm797, %v730
      %814 = vst.msk [vmem:[%s197 + $0x80] sm:$0xff] %vm797, %v735
      %815 = vst.msk [vmem:[%s197 + $0x88] sm:$0xff] %vm797, %v738
      %816 = vst.msk [vmem:[%s197 + $0x90] sm:$0xff] %vm797, %v743
      %817 = vst.msk [vmem:[%s197 + $0x98] sm:$0xff] %vm797, %v746
      %818 = vst.msk [vmem:[%s197 + $0xa0] sm:$0xff] %vm797, %v751
      %819 = vst.msk [vmem:[%s197 + $0xa8] sm:$0xff] %vm797, %v754
      %820 = vst.msk [vmem:[%s197 + $0xb0] sm:$0xff] %vm797, %v759
      %821 = vst.msk [vmem:[%s197 + $0xb8] sm:$0xff] %vm797, %v762
      %822 = vst.msk [vmem:[%s197 + $0xc0] sm:$0xff] %vm797, %v767
      %823 = vst.msk [vmem:[%s197 + $0xc8] sm:$0xff] %vm797, %v770
      %824 = vst.msk [vmem:[%s197 + $0xd0] sm:$0xff] %vm797, %v775
      %825 = vst.msk [vmem:[%s197 + $0xd8] sm:$0xff] %vm797, %v778
      %826 = vst.msk [vmem:[%s197 + $0xe0] sm:$0xff] %vm797, %v783
      %827 = vst.msk [vmem:[%s197 + $0xe8] sm:$0xff] %vm797, %v786
      %828 = vst.msk [vmem:[%s197 + $0xf0] sm:$0xff] %vm797, %v791
      %829 = vst.msk [vmem:[%s197 + $0xf8] sm:$0xff] %vm797, %v794
      %p830 = scmp.lt.s32.totalorder %s15, 1
      %s831 = scalar_select %p830, %s15, 1
      %s832 = smul.addr %s831, 32
      %s833 = smul.addr %s832, 8
      %s834 = scalar_lea.vmem %s4, %s833
      // Predicated region
      $region37: #{rcca_forward.3} parent=35 // pred_check
        %p835 = pneg %p122
      $region38: #{rcca_forward.3} parent=35 // pred_check_branch
        %837 = sbr.rel (%p835) target = $region40
      $region39: #{rcca_forward.3} parent=35 // pred_region
        _
      $region40: #{rcca_forward.3} parent=35 // pred_fallthru
        _
    $region36: #{rcca_forward.3} parent=5 // pred_fallthru
      _
    %p838 = scmp.le.s32.totalorder 2, %s10
    // Predicated region
    $region41: #{rcca_forward.3} parent=5 // pred_check
      %p839 = pneg %p838
    $region42: #{rcca_forward.3} parent=5 // pred_check_branch
      %841 = sbr.rel (%p839) target = $region44
    $region43: #{rcca_forward.3} parent=5 // pred_region
      %s842 = ssub.s32 %s10, 2
      // Predicated region
      $region45: #{rcca_forward.3} parent=43 // pred_check
        %p843 = pneg %p128
      $region46: #{rcca_forward.3} parent=43 // pred_check_branch
        %845 = sbr.rel (%p843) target = $region48
      $region47: #{rcca_forward.3} parent=43 // pred_region
        %p846 = scmp.lt.s32.totalorder %s16, 1
        %s847 = scalar_select %p846, %s16, 1
        %s848 = smul.addr %s847, 32
        %s849 = smul.addr %s848, 8
        %s850 = scalar_lea.vmem %s4, %s849
      $region48: #{rcca_forward.3} parent=43 // pred_fallthru
        _
    $region44: #{rcca_forward.3} parent=5 // pred_fallthru
      _
  $region6: #{rcca_forward.3} parent=0 // loop_footer
    %s14 = sadd.s32 1, %s10
  $region7: #{rcca_forward.3} parent=0 // loop_footer_branch
    %9 = sbr.rel target = $region3
  $region8: #{rcca_forward.3} parent=0 // loop_exit
    _

// kernel: rcca_forward.2
$region0: #{rcca_forward.2}
  #allocation0 [shape = 'u32[]', space=smem, size = 0x4, offset = 0x4, fixed_abs, tag = 'smem constant byte address 0x4 - core index']
  #allocation1 [shape = 'u32[144,128]{1,0:T(1,128)}', space=vmem, size = 0x12000, scoped, tag = 'internal scratch']
  #allocation2 [shape = 'f32[10,10,64]{2,1,0:T(8,128)}', space=vmem, size = 0x14000, scoped, tag = 'scratch operand']
  #allocation3 [shape = 'f32[1]{0:T(128)S(6)}', space=smem, size = 0x200, scoped, tag = 'scoped memory for rcca_forward.2']
  %s0 = inlined_call_operand.<no memory space> [shape: f32[1], index: 0, kind: input, shape index: {}]
  %s1 = inlined_call_operand.vmem [shape: f32[2,10,10,256], index: 1, kind: input, shape index: {}]
  %s2 = inlined_call_operand.vmem [shape: bf16[9,256,64], index: 2, kind: input, shape index: {}]
  %s3 = inlined_call_operand.vmem [shape: f32[1,64], index: 3, kind: input, shape index: {}]
  %s4 = inlined_call_operand.vmem [shape: f32[1,64], index: 4, kind: input, shape index: {}]
  %s5 = inlined_call_operand.vmem [shape: bf16[64,8], index: 5, kind: input, shape index: {}]
  %s6 = inlined_call_operand.vmem [shape: f32[1,8], index: 6, kind: input, shape index: {}]
  %s7 = inlined_call_operand.vmem [shape: bf16[64,8], index: 7, kind: input, shape index: {}]
  %s8 = inlined_call_operand.vmem [shape: f32[1,8], index: 8, kind: input, shape index: {}]
  %s9 = inlined_call_operand.vmem [shape: bf16[64,64], index: 9, kind: input, shape index: {}]
  %s10 = inlined_call_operand.vmem [shape: f32[1,64], index: 10, kind: input, shape index: {}]
  %s11 = inlined_call_operand.vmem [shape: f32[64,64], index: 11, kind: input, shape index: {}]
  %s12 = inlined_call_operand.vmem [shape: bf16[9,64,64], index: 12, kind: input, shape index: {}]
  %s13 = inlined_call_operand.vmem [shape: bf16[9,256,64], index: 13, kind: input, shape index: {}]
  %s14 = inlined_call_operand.vmem [shape: bf16[9,64,64], index: 14, kind: input, shape index: {}]
  %s15 = inlined_call_operand.vmem [shape: f32[1,64], index: 15, kind: input, shape index: {}]
  %s16 = inlined_call_operand.vmem [shape: f32[1,64], index: 16, kind: input, shape index: {}]
  %s17 = inlined_call_operand.vmem [shape: f32[2,64,64], index: 17, kind: output, shape index: {}]
  %s18 = sld [smem:[#allocation0]]
  $region101: #{rcca_forward.2} parent=0
    _
  %s20 = ssub.s32 1, %s18
  %s21 = scalar_select 0, %s20, %s18
  %22 = sst [smem:[#allocation3]] %s0
  loop: start=0, step=1, limit=4
  $region2: #{rcca_forward.2} parent=0 // loop_pre_header
    _
  $region3: #{rcca_forward.2} parent=0 // loop_header
    %s24 = sphi 0, %s28
    %p25 = scmp.ge.s32.totalorder %s24, 4
    %s32 = sphi 0, %s32
    %s34 = sphi 0, %s32
    %s35 = sphi 0, %s34
    %s49 = sphi 0, %s35
    %s55 = sphi 0, %s57
    %s58 = sphi 0, %s55
    %s59 = sphi 0, %s58
    %s75 = sphi 0, %s59
    %s79 = sphi 0, %s79
    %s81 = sphi 0, %s79
    %s82 = sphi 0, %s81
    %s96 = sphi 0, %s82
    %s100 = sphi 0, %s100
    %s102 = sphi 0, %s100
    %s103 = sphi 0, %s102
    %s117 = sphi 0, %s103
    %s121 = sphi 0, %s121
    %s123 = sphi 0, %s121
    %s124 = sphi 0, %s123
    %s138 = sphi 0, %s124
    %s142 = sphi 0, %s142
    %s144 = sphi 0, %s142
    %s145 = sphi 0, %s144
    %s159 = sphi 0, %s145
    %s163 = sphi 0, %s163
    %s165 = sphi 0, %s163
    %s166 = sphi 0, %s165
    %s180 = sphi 0, %s166
    %s184 = sphi 0, %s184
    %s186 = sphi 0, %s184
    %s187 = sphi 0, %s186
    %s201 = sphi 0, %s187
    %s205 = sphi 0, %s205
    %s207 = sphi 0, %s205
    %s208 = sphi 0, %s207
    %s222 = sphi 0, %s208
    %s226 = sphi 0, %s226
    %s228 = sphi 0, %s226
    %s229 = sphi 0, %s228
    %s243 = sphi 0, %s229
    %s247 = sphi 0, %s247
    %s249 = sphi 0, %s247
    %s250 = sphi 0, %s249
    %s264 = sphi 0, %s250
    %s268 = sphi 0, %s268
    %s270 = sphi 0, %s268
    %s271 = sphi 0, %s270
    %s285 = sphi 0, %s271
    %s289 = sphi 0, %s289
    %s291 = sphi 0, %s289
    %s292 = sphi 0, %s291
    %s306 = sphi 0, %s292
    %s310 = sphi 0, %s310
    %s312 = sphi 0, %s310
    %s313 = sphi 0, %s312
    %s327 = sphi 0, %s313
    %s331 = sphi 0, %s331
    %s333 = sphi 0, %s331
    %s334 = sphi 0, %s333
    %s348 = sphi 0, %s334
    %s352 = sphi 0, %s352
    %s354 = sphi 0, %s352
    %s355 = sphi 0, %s354
    %s369 = sphi 0, %s355
    %s373 = sphi 0, %s373
    %s375 = sphi 0, %s373
    %s376 = sphi 0, %s375
    %s390 = sphi 0, %s376
    %s396 = sphi 0, %s398
    %s399 = sphi 0, %s396
    %s400 = sphi 0, %s399
    %s416 = sphi 0, %s400
  $region4: #{rcca_forward.2} parent=0 // loop_header_branch
    %27 = sbr.rel (%p25) target = $region8
  $region5: #{rcca_forward.2} parent=0 // loop_body
    %s29 = ssub.s32 %s24, 1
    %s30 = ssub.s32 %s24, 2
    %s31 = sadd.s32 %s24, 1
    %s33 = sadd.s32 %s32, 1
    %p36 = scmp.eq.s32.totalorder %s24, 1
    %p37 = scmp.ne.s32.totalorder %s32, %s34
    %p38 = scmp.eq.s32.totalorder %s24, 0
    %p39 = por %p37, %p38
    %p40 = scmp.ne.s32.totalorder %s32, %s34
    %p41 = scmp.eq.s32.totalorder %s29, 1
    %p42 = por %p40, %p41
    %p43 = scmp.ne.s32.totalorder %s34, %s35
    %p44 = scmp.eq.s32.totalorder %s29, 0
    %p45 = por %p43, %p44
    %p46 = scmp.ne.s32.totalorder %s34, %s35
    %p47 = scmp.eq.s32.totalorder %s30, 1
    %p48 = por %p46, %p47
    %p50 = scmp.ne.s32.totalorder %s35, %s49
    %p51 = scmp.eq.s32.totalorder %s30, 0
    %p52 = por %p50, %p51
    %s53 = ssub.s32 %s24, %s31
    %p54 = scmp.eq.s32.totalorder %s53, 0
    %s56 = sadd.s32 %s55, 1
    %s57 = scalar_select %p54, %s55, %s56
    %p60 = pneg %p54
    %p61 = scmp.eq.s32.totalorder %s24, 1
    %p62 = por %p60, %p61
    %p63 = scmp.ne.s32.totalorder %s55, %s58
    %p64 = scmp.eq.s32.totalorder %s24, 0
    %p65 = por %p63, %p64
    %p66 = scmp.ne.s32.totalorder %s55, %s58
    %p67 = scmp.eq.s32.totalorder %s29, 1
    %p68 = por %p66, %p67
    %p69 = scmp.ne.s32.totalorder %s58, %s59
    %p70 = scmp.eq.s32.totalorder %s29, 0
    %p71 = por %p69, %p70
    %p72 = scmp.ne.s32.totalorder %s58, %s59
    %p73 = scmp.eq.s32.totalorder %s30, 1
    %p74 = por %p72, %p73
    %p76 = scmp.ne.s32.totalorder %s59, %s75
    %p77 = scmp.eq.s32.totalorder %s30, 0
    %p78 = por %p76, %p77
    %s80 = sadd.s32 %s79, 1
    %p83 = scmp.eq.s32.totalorder %s24, 1
    %p84 = scmp.ne.s32.totalorder %s79, %s81
    %p85 = scmp.eq.s32.totalorder %s24, 0
    %p86 = por %p84, %p85
    %p87 = scmp.ne.s32.totalorder %s79, %s81
    %p88 = scmp.eq.s32.totalorder %s29, 1
    %p89 = por %p87, %p88
    %p90 = scmp.ne.s32.totalorder %s81, %s82
    %p91 = scmp.eq.s32.totalorder %s29, 0
    %p92 = por %p90, %p91
    %p93 = scmp.ne.s32.totalorder %s81, %s82
    %p94 = scmp.eq.s32.totalorder %s30, 1
    %p95 = por %p93, %p94
    %p97 = scmp.ne.s32.totalorder %s82, %s96
    %p98 = scmp.eq.s32.totalorder %s30, 0
    %p99 = por %p97, %p98
    %s101 = sadd.s32 %s100, 1
    %p104 = scmp.eq.s32.totalorder %s24, 1
    %p105 = scmp.ne.s32.totalorder %s100, %s102
    %p106 = scmp.eq.s32.totalorder %s24, 0
    %p107 = por %p105, %p106
    %p108 = scmp.ne.s32.totalorder %s100, %s102
    %p109 = scmp.eq.s32.totalorder %s29, 1
    %p110 = por %p108, %p109
    %p111 = scmp.ne.s32.totalorder %s102, %s103
    %p112 = scmp.eq.s32.totalorder %s29, 0
    %p113 = por %p111, %p112
    %p114 = scmp.ne.s32.totalorder %s102, %s103
    %p115 = scmp.eq.s32.totalorder %s30, 1
    %p116 = por %p114, %p115
    %p118 = scmp.ne.s32.totalorder %s103, %s117
    %p119 = scmp.eq.s32.totalorder %s30, 0
    %p120 = por %p118, %p119
    %s122 = sadd.s32 %s121, 1
    %p125 = scmp.eq.s32.totalorder %s24, 1
    %p126 = scmp.ne.s32.totalorder %s121, %s123
    %p127 = scmp.eq.s32.totalorder %s24, 0
    %p128 = por %p126, %p127
    %p129 = scmp.ne.s32.totalorder %s121, %s123
    %p130 = scmp.eq.s32.totalorder %s29, 1
    %p131 = por %p129, %p130
    %p132 = scmp.ne.s32.totalorder %s123, %s124
    %p133 = scmp.eq.s32.totalorder %s29, 0
    %p134 = por %p132, %p133
    %p135 = scmp.ne.s32.totalorder %s123, %s124
    %p136 = scmp.eq.s32.totalorder %s30, 1
    %p137 = por %p135, %p136
    %p139 = scmp.ne.s32.totalorder %s124, %s138
    %p140 = scmp.eq.s32.totalorder %s30, 0
    %p141 = por %p139, %p140
    %s143 = sadd.s32 %s142, 1
    %p146 = scmp.eq.s32.totalorder %s24, 1
    %p147 = scmp.ne.s32.totalorder %s142, %s144
    %p148 = scmp.eq.s32.totalorder %s24, 0
    %p149 = por %p147, %p148
    %p150 = scmp.ne.s32.totalorder %s142, %s144
    %p151 = scmp.eq.s32.totalorder %s29, 1
    %p152 = por %p150, %p151
    %p153 = scmp.ne.s32.totalorder %s144, %s145
    %p154 = scmp.eq.s32.totalorder %s29, 0
    %p155 = por %p153, %p154
    %p156 = scmp.ne.s32.totalorder %s144, %s145
    %p157 = scmp.eq.s32.totalorder %s30, 1
    %p158 = por %p156, %p157
    %p160 = scmp.ne.s32.totalorder %s145, %s159
    %p161 = scmp.eq.s32.totalorder %s30, 0
    %p162 = por %p160, %p161
    %s164 = sadd.s32 %s163, 1
    %p167 = scmp.eq.s32.totalorder %s24, 1
    %p168 = scmp.ne.s32.totalorder %s163, %s165
    %p169 = scmp.eq.s32.totalorder %s24, 0
    %p170 = por %p168, %p169
    %p171 = scmp.ne.s32.totalorder %s163, %s165
    %p172 = scmp.eq.s32.totalorder %s29, 1
    %p173 = por %p171, %p172
    %p174 = scmp.ne.s32.totalorder %s165, %s166
    %p175 = scmp.eq.s32.totalorder %s29, 0
    %p176 = por %p174, %p175
    %p177 = scmp.ne.s32.totalorder %s165, %s166
    %p178 = scmp.eq.s32.totalorder %s30, 1
    %p179 = por %p177, %p178
    %p181 = scmp.ne.s32.totalorder %s166, %s180
    %p182 = scmp.eq.s32.totalorder %s30, 0
    %p183 = por %p181, %p182
    %s185 = sadd.s32 %s184, 1
    %p188 = scmp.eq.s32.totalorder %s24, 1
    %p189 = scmp.ne.s32.totalorder %s184, %s186
    %p190 = scmp.eq.s32.totalorder %s24, 0
    %p191 = por %p189, %p190
    %p192 = scmp.ne.s32.totalorder %s184, %s186
    %p193 = scmp.eq.s32.totalorder %s29, 1
    %p194 = por %p192, %p193
    %p195 = scmp.ne.s32.totalorder %s186, %s187
    %p196 = scmp.eq.s32.totalorder %s29, 0
    %p197 = por %p195, %p196
    %p198 = scmp.ne.s32.totalorder %s186, %s187
    %p199 = scmp.eq.s32.totalorder %s30, 1
    %p200 = por %p198, %p199
    %p202 = scmp.ne.s32.totalorder %s187, %s201
    %p203 = scmp.eq.s32.totalorder %s30, 0
    %p204 = por %p202, %p203
    %s206 = sadd.s32 %s205, 1
    %p209 = scmp.eq.s32.totalorder %s24, 1
    %p210 = scmp.ne.s32.totalorder %s205, %s207
    %p211 = scmp.eq.s32.totalorder %s24, 0
    %p212 = por %p210, %p211
    %p213 = scmp.ne.s32.totalorder %s205, %s207
    %p214 = scmp.eq.s32.totalorder %s29, 1
    %p215 = por %p213, %p214
    %p216 = scmp.ne.s32.totalorder %s207, %s208
    %p217 = scmp.eq.s32.totalorder %s29, 0
    %p218 = por %p216, %p217
    %p219 = scmp.ne.s32.totalorder %s207, %s208
    %p220 = scmp.eq.s32.totalorder %s30, 1
    %p221 = por %p219, %p220
    %p223 = scmp.ne.s32.totalorder %s208, %s222
    %p224 = scmp.eq.s32.totalorder %s30, 0
    %p225 = por %p223, %p224
    %s227 = sadd.s32 %s226, 1
    %p230 = scmp.eq.s32.totalorder %s24, 1
    %p231 = scmp.ne.s32.totalorder %s226, %s228
    %p232 = scmp.eq.s32.totalorder %s24, 0
    %p233 = por %p231, %p232
    %p234 = scmp.ne.s32.totalorder %s226, %s228
    %p235 = scmp.eq.s32.totalorder %s29, 1
    %p236 = por %p234, %p235
    %p237 = scmp.ne.s32.totalorder %s228, %s229
    %p238 = scmp.eq.s32.totalorder %s29, 0
    %p239 = por %p237, %p238
    %p240 = scmp.ne.s32.totalorder %s228, %s229
    %p241 = scmp.eq.s32.totalorder %s30, 1
    %p242 = por %p240, %p241
    %p244 = scmp.ne.s32.totalorder %s229, %s243
    %p245 = scmp.eq.s32.totalorder %s30, 0
    %p246 = por %p244, %p245
    %s248 = sadd.s32 %s247, 1
    %p251 = scmp.eq.s32.totalorder %s24, 1
    %p252 = scmp.ne.s32.totalorder %s247, %s249
    %p253 = scmp.eq.s32.totalorder %s24, 0
    %p254 = por %p252, %p253
    %p255 = scmp.ne.s32.totalorder %s247, %s249
    %p256 = scmp.eq.s32.totalorder %s29, 1
    %p257 = por %p255, %p256
    %p258 = scmp.ne.s32.totalorder %s249, %s250
    %p259 = scmp.eq.s32.totalorder %s29, 0
    %p260 = por %p258, %p259
    %p261 = scmp.ne.s32.totalorder %s249, %s250
    %p262 = scmp.eq.s32.totalorder %s30, 1
    %p263 = por %p261, %p262
    %p265 = scmp.ne.s32.totalorder %s250, %s264
    %p266 = scmp.eq.s32.totalorder %s30, 0
    %p267 = por %p265, %p266
    %s269 = sadd.s32 %s268, 1
    %p272 = scmp.eq.s32.totalorder %s24, 1
    %p273 = scmp.ne.s32.totalorder %s268, %s270
    %p274 = scmp.eq.s32.totalorder %s24, 0
    %p275 = por %p273, %p274
    %p276 = scmp.ne.s32.totalorder %s268, %s270
    %p277 = scmp.eq.s32.totalorder %s29, 1
    %p278 = por %p276, %p277
    %p279 = scmp.ne.s32.totalorder %s270, %s271
    %p280 = scmp.eq.s32.totalorder %s29, 0
    %p281 = por %p279, %p280
    %p282 = scmp.ne.s32.totalorder %s270, %s271
    %p283 = scmp.eq.s32.totalorder %s30, 1
    %p284 = por %p282, %p283
    %p286 = scmp.ne.s32.totalorder %s271, %s285
    %p287 = scmp.eq.s32.totalorder %s30, 0
    %p288 = por %p286, %p287
    %s290 = sadd.s32 %s289, 1
    %p293 = scmp.eq.s32.totalorder %s24, 1
    %p294 = scmp.ne.s32.totalorder %s289, %s291
    %p295 = scmp.eq.s32.totalorder %s24, 0
    %p296 = por %p294, %p295
    %p297 = scmp.ne.s32.totalorder %s289, %s291
    %p298 = scmp.eq.s32.totalorder %s29, 1
    %p299 = por %p297, %p298
    %p300 = scmp.ne.s32.totalorder %s291, %s292
    %p301 = scmp.eq.s32.totalorder %s29, 0
    %p302 = por %p300, %p301
    %p303 = scmp.ne.s32.totalorder %s291, %s292
    %p304 = scmp.eq.s32.totalorder %s30, 1
    %p305 = por %p303, %p304
    %p307 = scmp.ne.s32.totalorder %s292, %s306
    %p308 = scmp.eq.s32.totalorder %s30, 0
    %p309 = por %p307, %p308
    %s311 = sadd.s32 %s310, 1
    %p314 = scmp.eq.s32.totalorder %s24, 1
    %p315 = scmp.ne.s32.totalorder %s310, %s312
    %p316 = scmp.eq.s32.totalorder %s24, 0
    %p317 = por %p315, %p316
    %p318 = scmp.ne.s32.totalorder %s310, %s312
    %p319 = scmp.eq.s32.totalorder %s29, 1
    %p320 = por %p318, %p319
    %p321 = scmp.ne.s32.totalorder %s312, %s313
    %p322 = scmp.eq.s32.totalorder %s29, 0
    %p323 = por %p321, %p322
    %p324 = scmp.ne.s32.totalorder %s312, %s313
    %p325 = scmp.eq.s32.totalorder %s30, 1
    %p326 = por %p324, %p325
    %p328 = scmp.ne.s32.totalorder %s313, %s327
    %p329 = scmp.eq.s32.totalorder %s30, 0
    %p330 = por %p328, %p329
    %s332 = sadd.s32 %s331, 1
    %p335 = scmp.eq.s32.totalorder %s24, 1
    %p336 = scmp.ne.s32.totalorder %s331, %s333
    %p337 = scmp.eq.s32.totalorder %s24, 0
    %p338 = por %p336, %p337
    %p339 = scmp.ne.s32.totalorder %s331, %s333
    %p340 = scmp.eq.s32.totalorder %s29, 1
    %p341 = por %p339, %p340
    %p342 = scmp.ne.s32.totalorder %s333, %s334
    %p343 = scmp.eq.s32.totalorder %s29, 0
    %p344 = por %p342, %p343
    %p345 = scmp.ne.s32.totalorder %s333, %s334
    %p346 = scmp.eq.s32.totalorder %s30, 1
    %p347 = por %p345, %p346
    %p349 = scmp.ne.s32.totalorder %s334, %s348
    %p350 = scmp.eq.s32.totalorder %s30, 0
    %p351 = por %p349, %p350
    %s353 = sadd.s32 %s352, 1
    %p356 = scmp.eq.s32.totalorder %s24, 1
    %p357 = scmp.ne.s32.totalorder %s352, %s354
    %p358 = scmp.eq.s32.totalorder %s24, 0
    %p359 = por %p357, %p358
    %p360 = scmp.ne.s32.totalorder %s352, %s354
    %p361 = scmp.eq.s32.totalorder %s29, 1
    %p362 = por %p360, %p361
    %p363 = scmp.ne.s32.totalorder %s354, %s355
    %p364 = scmp.eq.s32.totalorder %s29, 0
    %p365 = por %p363, %p364
    %p366 = scmp.ne.s32.totalorder %s354, %s355
    %p367 = scmp.eq.s32.totalorder %s30, 1
    %p368 = por %p366, %p367
    %p370 = scmp.ne.s32.totalorder %s355, %s369
    %p371 = scmp.eq.s32.totalorder %s30, 0
    %p372 = por %p370, %p371
    %s374 = sadd.s32 %s373, 1
    %p377 = scmp.eq.s32.totalorder %s24, 1
    %p378 = scmp.ne.s32.totalorder %s373, %s375
    %p379 = scmp.eq.s32.totalorder %s24, 0
    %p380 = por %p378, %p379
    %p381 = scmp.ne.s32.totalorder %s373, %s375
    %p382 = scmp.eq.s32.totalorder %s29, 1
    %p383 = por %p381, %p382
    %p384 = scmp.ne.s32.totalorder %s375, %s376
    %p385 = scmp.eq.s32.totalorder %s29, 0
    %p386 = por %p384, %p385
    %p387 = scmp.ne.s32.totalorder %s375, %s376
    %p388 = scmp.eq.s32.totalorder %s30, 1
    %p389 = por %p387, %p388
    %p391 = scmp.ne.s32.totalorder %s376, %s390
    %p392 = scmp.eq.s32.totalorder %s30, 0
    %p393 = por %p391, %p392
    %s394 = ssub.s32 %s24, %s31
    %p395 = scmp.eq.s32.totalorder %s394, 0
    %s397 = sadd.s32 %s396, 1
    %s398 = scalar_select %p395, %s396, %s397
    %p401 = pneg %p395
    %p402 = scmp.eq.s32.totalorder %s24, 1
    %p403 = por %p401, %p402
    %p404 = scmp.ne.s32.totalorder %s396, %s399
    %p405 = scmp.eq.s32.totalorder %s24, 0
    %p406 = por %p404, %p405
    %p407 = scmp.ne.s32.totalorder %s396, %s399
    %p408 = scmp.eq.s32.totalorder %s29, 1
    %p409 = por %p407, %p408
    %p410 = scmp.ne.s32.totalorder %s399, %s400
    %p411 = scmp.eq.s32.totalorder %s29, 0
    %p412 = por %p410, %p411
    %p413 = scmp.ne.s32.totalorder %s399, %s400
    %p414 = scmp.eq.s32.totalorder %s30, 1
    %p415 = por %p413, %p414
    %p417 = scmp.ne.s32.totalorder %s400, %s416
    %p418 = scmp.eq.s32.totalorder %s30, 0
    %p419 = por %p417, %p418
    %p420 = scmp.le.s32.totalorder 1, %s24
    %p421 = scmp.lt.s32.totalorder %s24, 3
    %p422 = pnand %p420, %p421
    %p423 = pneg %p422
    // Predicated region
    $region9: #{rcca_forward.2} parent=5 // pred_check
      _
    $region10: #{rcca_forward.2} parent=5 // pred_check_branch
      %425 = sbr.rel (%p422) target = $region12
    $region11: #{rcca_forward.2} parent=5 // pred_region
      %s426 = ssub.s32 %s24, 1
      // Predicated region
      $region13: #{rcca_forward.2} parent=11 // pred_check
        %p427 = pneg %p45
      $region14: #{rcca_forward.2} parent=11 // pred_check_branch
        %429 = sbr.rel (%p427) target = $region16
      $region15: #{rcca_forward.2} parent=11 // pred_region
        _
      $region16: #{rcca_forward.2} parent=11 // pred_fallthru
        _
      // Predicated region
      $region17: #{rcca_forward.2} parent=11 // pred_check
        %p430 = pneg %p92
      $region18: #{rcca_forward.2} parent=11 // pred_check_branch
        %432 = sbr.rel (%p430) target = $region20
      $region19: #{rcca_forward.2} parent=11 // pred_region
        _
      $region20: #{rcca_forward.2} parent=11 // pred_fallthru
        _
      // Predicated region
      $region21: #{rcca_forward.2} parent=11 // pred_check
        %p433 = pneg %p113
      $region22: #{rcca_forward.2} parent=11 // pred_check_branch
        %435 = sbr.rel (%p433) target = $region24
      $region23: #{rcca_forward.2} parent=11 // pred_region
        _
      $region24: #{rcca_forward.2} parent=11 // pred_fallthru
        _
      // Predicated region
      $region25: #{rcca_forward.2} parent=11 // pred_check
        %p436 = pneg %p134
      $region26: #{rcca_forward.2} parent=11 // pred_check_branch
        %438 = sbr.rel (%p436) target = $region28
      $region27: #{rcca_forward.2} parent=11 // pred_region
        _
      $region28: #{rcca_forward.2} parent=11 // pred_fallthru
        _
      // Predicated region
      $region29: #{rcca_forward.2} parent=11 // pred_check
        %p439 = pneg %p155
      $region30: #{rcca_forward.2} parent=11 // pred_check_branch
        %441 = sbr.rel (%p439) target = $region32
      $region31: #{rcca_forward.2} parent=11 // pred_region
        _
      $region32: #{rcca_forward.2} parent=11 // pred_fallthru
        _
      // Predicated region
      $region33: #{rcca_forward.2} parent=11 // pred_check
        %p442 = pneg %p176
      $region34: #{rcca_forward.2} parent=11 // pred_check_branch
        %444 = sbr.rel (%p442) target = $region36
      $region35: #{rcca_forward.2} parent=11 // pred_region
        _
      $region36: #{rcca_forward.2} parent=11 // pred_fallthru
        _
      // Predicated region
      $region37: #{rcca_forward.2} parent=11 // pred_check
        %p445 = pneg %p197
      $region38: #{rcca_forward.2} parent=11 // pred_check_branch
        %447 = sbr.rel (%p445) target = $region40
      $region39: #{rcca_forward.2} parent=11 // pred_region
        _
      $region40: #{rcca_forward.2} parent=11 // pred_fallthru
        _
      // Predicated region
      $region41: #{rcca_forward.2} parent=11 // pred_check
        %p448 = pneg %p218
      $region42: #{rcca_forward.2} parent=11 // pred_check_branch
        %450 = sbr.rel (%p448) target = $region44
      $region43: #{rcca_forward.2} parent=11 // pred_region
        _
      $region44: #{rcca_forward.2} parent=11 // pred_fallthru
        _
      // Predicated region
      $region45: #{rcca_forward.2} parent=11 // pred_check
        %p451 = pneg %p239
      $region46: #{rcca_forward.2} parent=11 // pred_check_branch
        %453 = sbr.rel (%p451) target = $region48
      $region47: #{rcca_forward.2} parent=11 // pred_region
        _
      $region48: #{rcca_forward.2} parent=11 // pred_fallthru
        _
      // Predicated region
      $region49: #{rcca_forward.2} parent=11 // pred_check
        %p454 = pneg %p260
      $region50: #{rcca_forward.2} parent=11 // pred_check_branch
        %456 = sbr.rel (%p454) target = $region52
      $region51: #{rcca_forward.2} parent=11 // pred_region
        _
      $region52: #{rcca_forward.2} parent=11 // pred_fallthru
        _
      // Predicated region
      $region53: #{rcca_forward.2} parent=11 // pred_check
        %p457 = pneg %p281
      $region54: #{rcca_forward.2} parent=11 // pred_check_branch
        %459 = sbr.rel (%p457) target = $region56
      $region55: #{rcca_forward.2} parent=11 // pred_region
        _
      $region56: #{rcca_forward.2} parent=11 // pred_fallthru
        _
      // Predicated region
      $region57: #{rcca_forward.2} parent=11 // pred_check
        %p460 = pneg %p302
      $region58: #{rcca_forward.2} parent=11 // pred_check_branch
        %462 = sbr.rel (%p460) target = $region60
      $region59: #{rcca_forward.2} parent=11 // pred_region
        _
      $region60: #{rcca_forward.2} parent=11 // pred_fallthru
        _
      // Predicated region
      $region61: #{rcca_forward.2} parent=11 // pred_check
        %p463 = pneg %p323
      $region62: #{rcca_forward.2} parent=11 // pred_check_branch
        %465 = sbr.rel (%p463) target = $region64
      $region63: #{rcca_forward.2} parent=11 // pred_region
        _
      $region64: #{rcca_forward.2} parent=11 // pred_fallthru
        _
      // Predicated region
      $region65: #{rcca_forward.2} parent=11 // pred_check
        %p466 = pneg %p344
      $region66: #{rcca_forward.2} parent=11 // pred_check_branch
        %468 = sbr.rel (%p466) target = $region68
      $region67: #{rcca_forward.2} parent=11 // pred_region
        _
      $region68: #{rcca_forward.2} parent=11 // pred_fallthru
        _
      // Predicated region
      $region69: #{rcca_forward.2} parent=11 // pred_check
        %p469 = pneg %p365
      $region70: #{rcca_forward.2} parent=11 // pred_check_branch
        %471 = sbr.rel (%p469) target = $region72
      $region71: #{rcca_forward.2} parent=11 // pred_region
        _
      $region72: #{rcca_forward.2} parent=11 // pred_fallthru
        _
      // Predicated region
      $region73: #{rcca_forward.2} parent=11 // pred_check
        %p472 = pneg %p386
      $region74: #{rcca_forward.2} parent=11 // pred_check_branch
        %474 = sbr.rel (%p472) target = $region76
      $region75: #{rcca_forward.2} parent=11 // pred_region
        _
      $region76: #{rcca_forward.2} parent=11 // pred_fallthru
        _
    $region12: #{rcca_forward.2} parent=5 // pred_fallthru
      _
    %p475 = scmp.lt.s32.totalorder %s24, 2
    // Predicated region
    $region77: #{rcca_forward.2} parent=5 // pred_check
      %p476 = pneg %p475
    $region78: #{rcca_forward.2} parent=5 // pred_check_branch
      %478 = sbr.rel (%p476) target = $region80
    $region79: #{rcca_forward.2} parent=5 // pred_region
      // Predicated region
      $region81: #{rcca_forward.2} parent=79 // pred_check
        %p479 = pneg %p65
      $region82: #{rcca_forward.2} parent=79 // pred_check_branch
        %481 = sbr.rel (%p479) target = $region84
      $region83: #{rcca_forward.2} parent=79 // pred_region
        %p482 = scmp.lt.s32.totalorder %s24, 1
        %s483 = scalar_select %p482, %s24, 1
        %s484 = smul.addr %s483, 40
        %s485 = smul.addr %s484, 8
        %s486 = scalar_lea.vmem %s1, %s485
      $region84: #{rcca_forward.2} parent=79 // pred_fallthru
        _
    $region80: #{rcca_forward.2} parent=5 // pred_fallthru
      _
    %p487 = scmp.le.s32.totalorder 1, %s24
    %p488 = scmp.lt.s32.totalorder %s24, 3
    %p489 = pnand %p487, %p488
    %p490 = pneg %p489
    // Predicated region
    $region85: #{rcca_forward.2} parent=5 // pred_check
      _
    $region86: #{rcca_forward.2} parent=5 // pred_check_branch
      %492 = sbr.rel (%p489) target = $region88
    $region87: #{rcca_forward.2} parent=5 // pred_region
      %s493 = ssub.s32 %s24, 1
      %p494 = pneg %p45
      %p495 = pneg %p42
      %p496 = scmp.lt.s32.totalorder %s29, 1
      %s497 = scalar_select %p496, %s29, 1
      %s498 = smul.addr %s497, 40
      %s499 = smul.addr %s498, 8
      %s500 = scalar_lea.vmem %s1, %s499
      %p501 = pneg %p71
      %p502 = pneg %p68
      %p503 = pneg %p92
      %p504 = pneg %p89
      %p505 = pneg %p113
      %p506 = pneg %p110
      %p507 = pneg %p134
      %p508 = pneg %p131
      %p509 = pneg %p155
      %p510 = pneg %p152
      %p511 = pneg %p176
      %p512 = pneg %p173
      %p513 = pneg %p197
      %p514 = pneg %p194
      %p515 = pneg %p218
      %p516 = pneg %p215
      %p517 = pneg %p239
      %p518 = pneg %p236
      %p519 = pneg %p260
      %p520 = pneg %p257
      %p521 = pneg %p281
      %p522 = pneg %p278
      %p523 = pneg %p302
      %p524 = pneg %p299
      %p525 = pneg %p323
      %p526 = pneg %p320
      %p527 = pneg %p344
      %p528 = pneg %p341
      %p529 = pneg %p365
      %p530 = pneg %p362
      %p531 = pneg %p386
      %p532 = pneg %p383
      %p533 = pneg %p412
      %p534 = pneg %p409
      %p535 = scmp.lt.s32.totalorder %s29, 1
      %s536 = scalar_select %p535, %s29, 1
      %s537 = smul.addr %s536, 8
      %s538 = smul.addr %s537, 8
      %s539 = scalar_lea.vmem %s17, %s538
      %p540 = scmp.lt.s32.totalorder %s29, 1
      %s541 = scalar_select %p540, %s29, 1
      %s542 = smul.addr %s541, 40
      %s543 = smul.addr %s542, 8
      %s544 = scalar_lea.vmem %s1, %s543
      %p545 = scmp.lt.s32.totalorder %s29, 1
      %s546 = scalar_select %p545, %s29, 1
      %s547 = smul.addr %s546, 8
      %s548 = smul.addr %s547, 8
      %s549 = scalar_lea.vmem %s17, %s548
      %s551 = sld [smem:[#allocation3]]
      %v552 = vld [vmem:[%s544] sm:$0xff]
      %v553 = vld [vmem:[%s544 + $0x8] sm:$0xff]
      %v554 = vld [vmem:[%s544 + $0x20] sm:$0xff]
      %v555 = vld [vmem:[%s544 + $0x28] sm:$0xff]
      %v556 = vld [vmem:[%s544 + $0x40] sm:$0xff]
      %v557 = vld [vmem:[%s544 + $0x48] sm:$0xff]
      %v558 = vld [vmem:[%s544 + $0x60] sm:$0xff]
      %v559 = vld [vmem:[%s544 + $0x68] sm:$0xff]
      %v560 = vld [vmem:[%s544 + $0x80] sm:$0xff]
      %v561 = vld [vmem:[%s544 + $0x88] sm:$0xff]
      %v562 = vld [vmem:[%s544 + $0xa0] sm:$0xff]
      %v563 = vld [vmem:[%s544 + $0xa8] sm:$0xff]
      %v564 = vld [vmem:[%s544 + $0xc0] sm:$0xff]
      %v565 = vld [vmem:[%s544 + $0xc8] sm:$0xff]
      %v566 = vld [vmem:[%s544 + $0xe0] sm:$0xff]
      %v567 = vld [vmem:[%s544 + $0xe8] sm:$0xff]
      %v568 = vpack.c.bf16 %v554, %v552
      %v569 = vpack.c.bf16 %v555, %v553
      %v570 = vpack.c.bf16 %v558, %v556
      %v571 = vpack.c.bf16 %v559, %v557
      %v572 = vpack.c.bf16 %v562, %v560
      %v573 = vpack.c.bf16 %v563, %v561
      %v574 = vpack.c.bf16 %v566, %v564
      %v575 = vpack.c.bf16 %v567, %v565
      %v576 = vld [vmem:[%s2] sm:$0xf]
      %v577 = vld [vmem:[%s2 + $0x4] sm:$0xf]
      %v578 = vld [vmem:[%s2 + $0x8] sm:$0xf]
      %v579 = vld [vmem:[%s2 + $0xc] sm:$0xf]
      %v580 = vld [vmem:[%s2 + $0x10] sm:$0xf]
      %v581 = vld [vmem:[%s2 + $0x14] sm:$0xf]
      %v582 = vld [vmem:[%s2 + $0x18] sm:$0xf]
      %v583 = vld [vmem:[%s2 + $0x1c] sm:$0xf]
      %v584 = vld [vmem:[%s2 + $0x20] sm:$0xf]
      %v585 = vld [vmem:[%s2 + $0x24] sm:$0xf]
      %v586 = vld [vmem:[%s2 + $0x28] sm:$0xf]
      %v587 = vld [vmem:[%s2 + $0x2c] sm:$0xf]
      %v588 = vld [vmem:[%s2 + $0x30] sm:$0xf]
      %v589 = vld [vmem:[%s2 + $0x34] sm:$0xf]
      %v590 = vld [vmem:[%s2 + $0x38] sm:$0xf]
      %v591 = vld [vmem:[%s2 + $0x3c] sm:$0xf]
      %v592 = vld [vmem:[%s2 + $0x40] sm:$0xf]
      %v593 = vld [vmem:[%s2 + $0x44] sm:$0xf]
      %v594 = vld [vmem:[%s2 + $0x48] sm:$0xf]
      %v595 = vld [vmem:[%s2 + $0x4c] sm:$0xf]
      %v596 = vld [vmem:[%s2 + $0x50] sm:$0xf]
      %v597 = vld [vmem:[%s2 + $0x54] sm:$0xf]
      %v598 = vld [vmem:[%s2 + $0x58] sm:$0xf]
      %v599 = vld [vmem:[%s2 + $0x5c] sm:$0xf]
      %v600 = vld [vmem:[%s2 + $0x60] sm:$0xf]
      %v601 = vld [vmem:[%s2 + $0x64] sm:$0xf]
      %v602 = vld [vmem:[%s2 + $0x68] sm:$0xf]
      %v603 = vld [vmem:[%s2 + $0x6c] sm:$0xf]
      %v604 = vld [vmem:[%s2 + $0x70] sm:$0xf]
      %v605 = vld [vmem:[%s2 + $0x74] sm:$0xf]
      %v606 = vld [vmem:[%s2 + $0x78] sm:$0xf]
      %v607 = vld [vmem:[%s2 + $0x7c] sm:$0xf]
      %v608 = vld [vmem:[%s544] sm:$0xfe]
      %v609 = vld [vmem:[%s544 + $0x8] sm:$0xfe]
      %v610 = vld [vmem:[%s544 + $0x10] sm:$0x1]
      %v611 = vld [vmem:[%s544 + $0x18] sm:$0x1]
      %v612 = vld [vmem:[%s544 + $0x20] sm:$0xfe]
      %v613 = vld [vmem:[%s544 + $0x28] sm:$0xfe]
      %v614 = vld [vmem:[%s544 + $0x30] sm:$0x1]
      %v615 = vld [vmem:[%s544 + $0x38] sm:$0x1]
      %v616 = vld [vmem:[%s544 + $0x40] sm:$0xfe]
      %v617 = vld [vmem:[%s544 + $0x48] sm:$0xfe]
      %v618 = vld [vmem:[%s544 + $0x50] sm:$0x1]
      %v619 = vld [vmem:[%s544 + $0x58] sm:$0x1]
      %v620 = vld [vmem:[%s544 + $0x60] sm:$0xfe]
      %v621 = vld [vmem:[%s544 + $0x68] sm:$0xfe]
      %v622 = vld [vmem:[%s544 + $0x70] sm:$0x1]
      %v623 = vld [vmem:[%s544 + $0x78] sm:$0x1]
      %v624 = vld [vmem:[%s544 + $0x80] sm:$0xfe]
      %v625 = vld [vmem:[%s544 + $0x88] sm:$0xfe]
      %v626 = vld [vmem:[%s544 + $0x90] sm:$0x1]
      %v627 = vld [vmem:[%s544 + $0x98] sm:$0x1]
      %v628 = vld [vmem:[%s544 + $0xa0] sm:$0xfe]
      %v629 = vld [vmem:[%s544 + $0xa8] sm:$0xfe]
      %v630 = vld [vmem:[%s544 + $0xb0] sm:$0x1]
      %v631 = vld [vmem:[%s544 + $0xb8] sm:$0x1]
      %v632 = vld [vmem:[%s544 + $0xc0] sm:$0xfe]
      %v633 = vld [vmem:[%s544 + $0xc8] sm:$0xfe]
      %v634 = vld [vmem:[%s544 + $0xd0] sm:$0x1]
      %v635 = vld [vmem:[%s544 + $0xd8] sm:$0x1]
      %v636 = vld [vmem:[%s544 + $0xe0] sm:$0xfe]
      %v637 = vld [vmem:[%s544 + $0xe8] sm:$0xfe]
      %v638 = vld [vmem:[%s544 + $0xf0] sm:$0x1]
      %v639 = vld [vmem:[%s544 + $0xf8] sm:$0x1]
      %vm672 = vcmask 1046528
      %v673 = vrot.slane %v608, 1
      %v674 = vrot.slane %v610, 1
      %v675 = vsel %vm672, %v673, %v674
      %v676 = vrot.slane %v609, 1
      %v677 = vrot.slane %v611, 1
      %v678 = vsel %vm672, %v676, %v677
      %v679 = vrot.slane %v612, 1
      %v680 = vrot.slane %v614, 1
      %v681 = vsel %vm672, %v679, %v680
      %v682 = vrot.slane %v613, 1
      %v683 = vrot.slane %v615, 1
      %v684 = vsel %vm672, %v682, %v683
      %v685 = vrot.slane %v616, 1
      %v686 = vrot.slane %v618, 1
      %v687 = vsel %vm672, %v685, %v686
      %v688 = vrot.slane %v617, 1
      %v689 = vrot.slane %v619, 1
      %v690 = vsel %vm672, %v688, %v689
      %v691 = vrot.slane %v620, 1
      %v692 = vrot.slane %v622, 1
      %v693 = vsel %vm672, %v691, %v692
      %v694 = vrot.slane %v621, 1
      %v695 = vrot.slane %v623, 1
      %v696 = vsel %vm672, %v694, %v695
      %v697 = vrot.slane %v624, 1
      %v698 = vrot.slane %v626, 1
      %v699 = vsel %vm672, %v697, %v698
      %v700 = vrot.slane %v625, 1
      %v701 = vrot.slane %v627, 1
      %v702 = vsel %vm672, %v700, %v701
      %v703 = vrot.slane %v628, 1
      %v704 = vrot.slane %v630, 1
      %v705 = vsel %vm672, %v703, %v704
      %v706 = vrot.slane %v629, 1
      %v707 = vrot.slane %v631, 1
      %v708 = vsel %vm672, %v706, %v707
      %v709 = vrot.slane %v632, 1
      %v710 = vrot.slane %v634, 1
      %v711 = vsel %vm672, %v709, %v710
      %v712 = vrot.slane %v633, 1
      %v713 = vrot.slane %v635, 1
      %v714 = vsel %vm672, %v712, %v713
      %v715 = vrot.slane %v636, 1
      %v716 = vrot.slane %v638, 1
      %v717 = vsel %vm672, %v715, %v716
      %v718 = vrot.slane %v637, 1
      %v719 = vrot.slane %v639, 1
      %v720 = vsel %vm672, %v718, %v719
      %v737 = vpack.c.bf16 %v681, %v675
      %v738 = vpack.c.bf16 %v684, %v678
      %v739 = vpack.c.bf16 %v693, %v687
      %v740 = vpack.c.bf16 %v696, %v690
      %v741 = vpack.c.bf16 %v705, %v699
      %v742 = vpack.c.bf16 %v708, %v702
      %v743 = vpack.c.bf16 %v717, %v711
      %v744 = vpack.c.bf16 %v720, %v714
      %s745 = scalar_lea.vmem %s2, 128
      %v746 = vld [vmem:[%s745] sm:$0xf]
      %v747 = vld [vmem:[%s745 + $0x4] sm:$0xf]
      %v748 = vld [vmem:[%s745 + $0x8] sm:$0xf]
      %v749 = vld [vmem:[%s745 + $0xc] sm:$0xf]
      %v750 = vld [vmem:[%s745 + $0x10] sm:$0xf]
      %v751 = vld [vmem:[%s745 + $0x14] sm:$0xf]
      %v752 = vld [vmem:[%s745 + $0x18] sm:$0xf]
      %v753 = vld [vmem:[%s745 + $0x1c] sm:$0xf]
      %v754 = vld [vmem:[%s745 + $0x20] sm:$0xf]
      %v755 = vld [vmem:[%s745 + $0x24] sm:$0xf]
      %v756 = vld [vmem:[%s745 + $0x28] sm:$0xf]
      %v757 = vld [vmem:[%s745 + $0x2c] sm:$0xf]
      %v758 = vld [vmem:[%s745 + $0x30] sm:$0xf]
      %v759 = vld [vmem:[%s745 + $0x34] sm:$0xf]
      %v760 = vld [vmem:[%s745 + $0x38] sm:$0xf]
      %v761 = vld [vmem:[%s745 + $0x3c] sm:$0xf]
      %v762 = vld [vmem:[%s745 + $0x40] sm:$0xf]
      %v763 = vld [vmem:[%s745 + $0x44] sm:$0xf]
      %v764 = vld [vmem:[%s745 + $0x48] sm:$0xf]
      %v765 = vld [vmem:[%s745 + $0x4c] sm:$0xf]
      %v766 = vld [vmem:[%s745 + $0x50] sm:$0xf]
      %v767 = vld [vmem:[%s745 + $0x54] sm:$0xf]
      %v768 = vld [vmem:[%s745 + $0x58] sm:$0xf]
      %v769 = vld [vmem:[%s745 + $0x5c] sm:$0xf]
      %v770 = vld [vmem:[%s745 + $0x60] sm:$0xf]
      %v771 = vld [vmem:[%s745 + $0x64] sm:$0xf]
      %v772 = vld [vmem:[%s745 + $0x68] sm:$0xf]
      %v773 = vld [vmem:[%s745 + $0x6c] sm:$0xf]
      %v774 = vld [vmem:[%s745 + $0x70] sm:$0xf]
      %v775 = vld [vmem:[%s745 + $0x74] sm:$0xf]
      %v776 = vld [vmem:[%s745 + $0x78] sm:$0xf]
      %v777 = vld [vmem:[%s745 + $0x7c] sm:$0xf]
      %v810 = vunpack.c.l.b16 %v746
      %v811 = vunpack.c.l.b16 %v747
      %v812 = vunpack.c.l.b16 %v748
      %v813 = vunpack.c.l.b16 %v749
      %v814 = vunpack.c.l.b16 %v750
      %v815 = vunpack.c.l.b16 %v751
      %v816 = vunpack.c.l.b16 %v752
      %v817 = vunpack.c.l.b16 %v753
      %v818 = vunpack.c.l.b16 %v754
      %v819 = vunpack.c.l.b16 %v755
      %v820 = vunpack.c.l.b16 %v756
      %v821 = vunpack.c.l.b16 %v757
      %v822 = vunpack.c.l.b16 %v758
      %v823 = vunpack.c.l.b16 %v759
      %v824 = vunpack.c.l.b16 %v760
      %v825 = vunpack.c.l.b16 %v761
      %v826 = vunpack.c.l.b16 %v762
      %v827 = vunpack.c.l.b16 %v763
      %v828 = vunpack.c.l.b16 %v764
      %v829 = vunpack.c.l.b16 %v765
      %v830 = vunpack.c.l.b16 %v766
      %v831 = vunpack.c.l.b16 %v767
      %v832 = vunpack.c.l.b16 %v768
      %v833 = vunpack.c.l.b16 %v769
      %v834 = vunpack.c.l.b16 %v770
      %v835 = vunpack.c.l.b16 %v771
      %v836 = vunpack.c.l.b16 %v772
      %v837 = vunpack.c.l.b16 %v773
      %v838 = vunpack.c.l.b16 %v774
      %v839 = vunpack.c.l.b16 %v775
      %v840 = vunpack.c.l.b16 %v776
      %v841 = vunpack.c.l.b16 %v777
      %v842 = vpack.c.b16 %v811, %v810
      %v843 = vpack.c.b16 %v813, %v812
      %v844 = vpack.c.b16 %v815, %v814
      %v845 = vpack.c.b16 %v817, %v816
      %v846 = vpack.c.b16 %v819, %v818
      %v847 = vpack.c.b16 %v821, %v820
      %v848 = vpack.c.b16 %v823, %v822
      %v849 = vpack.c.b16 %v825, %v824
      %v850 = vpack.c.b16 %v827, %v826
      %v851 = vpack.c.b16 %v829, %v828
      %v852 = vpack.c.b16 %v831, %v830
      %v853 = vpack.c.b16 %v833, %v832
      %v854 = vpack.c.b16 %v835, %v834
      %v855 = vpack.c.b16 %v837, %v836
      %v856 = vpack.c.b16 %v839, %v838
      %v857 = vpack.c.b16 %v841, %v840
      %874 = vmatprep.subr.bf16.mxu0 0
      %875 = vmatpush1.bf16.msra.mxu0 %v849
      %876 = vmatprep.subr.bf16.mxu0 0
      %877 = vmatpush1.bf16.msra.mxu0 %v848
      %878 = vmatprep.subr.bf16.mxu0 0
      %879 = vmatpush1.bf16.msra.mxu0 %v847
      %880 = vmatprep.subr.bf16.mxu0 0
      %881 = vmatpush1.bf16.msra.mxu0 %v846
      %882 = vmatprep.subr.bf16.mxu0 0
      %883 = vmatpush1.bf16.msra.mxu0 %v845
      %884 = vmatprep.subr.bf16.mxu0 0
      %885 = vmatpush1.bf16.msra.mxu0 %v844
      %886 = vmatprep.subr.bf16.mxu0 0
      %887 = vmatpush1.bf16.msra.mxu0 %v843
      %888 = vmatprep.subr.bf16.mxu0 0
      %889 = vmatpush1.bf16.msra.mxu0 %v842
      %890 = vmatprep.subr.bf16.mxu0 0
      %891 = vmatpush2.bf16.msra.mxu0 %v857
      %892 = vmatprep.subr.bf16.mxu0 0
      %893 = vmatpush2.bf16.msra.mxu0 %v856
      %894 = vmatprep.subr.bf16.mxu0 0
      %895 = vmatpush2.bf16.msra.mxu0 %v855
      %896 = vmatprep.subr.bf16.mxu0 0
      %897 = vmatpush2.bf16.msra.mxu0 %v854
      %898 = vmatprep.subr.bf16.mxu0 0
      %899 = vmatpush2.bf16.msra.mxu0 %v853
      %900 = vmatprep.subr.bf16.mxu0 0
      %901 = vmatpush2.bf16.msra.mxu0 %v852
      %902 = vmatprep.subr.bf16.mxu0 0
      %903 = vmatpush2.bf16.msra.mxu0 %v851
      %904 = vmatprep.subr.bf16.mxu0 0
      %905 = vmatpush2.bf16.msra.mxu0 %v850
      %906 = vmatprep.mubr.bf16.mxu0 %v738
      %907 = vmatmul.mubr.bf16.gmra.mxu0 %v737
      %v908 = vpop.f32.mrf.mxu0
      %v909 = vadd.f32 0.0, %v908
      %v910 = vpop.f32.mrf.mxu0
      %v911 = vpop.f32.mrf.mxu0
      %v912 = vadd.f32 0.0, %v911
      %v913 = vpop.f32.mrf.mxu0
      %914 = vmatprep.mubr.bf16.mxu0 %v740
      %915 = vmatmul.mubr.bf16.gmra.mxu0 %v739
      %v916 = vpop.f32.mrf.mxu0
      %v917 = vadd.f32 0.0, %v916
      %v918 = vpop.f32.mrf.mxu0
      %v919 = vpop.f32.mrf.mxu0
      %v920 = vadd.f32 0.0, %v919
      %v921 = vpop.f32.mrf.mxu0
      %922 = vmatprep.mubr.bf16.mxu0 %v742
      %923 = vmatmul.mubr.bf16.gmra.mxu0 %v741
      %v924 = vpop.f32.mrf.mxu0
      %v925 = vadd.f32 0.0, %v924
      %v926 = vpop.f32.mrf.mxu0
      %v927 = vpop.f32.mrf.mxu0
      %v928 = vadd.f32 0.0, %v927
      %v929 = vpop.f32.mrf.mxu0
      %930 = vmatprep.mubr.bf16.mxu0 %v744
      %931 = vmatmul.mubr.bf16.gmra.mxu0 %v743
      %v932 = vpop.f32.mrf.mxu0
      %v933 = vadd.f32 0.0, %v932
      %v934 = vpop.f32.mrf.mxu0
      %v935 = vpop.f32.mrf.mxu0
      %v936 = vadd.f32 0.0, %v935
      %v937 = vpop.f32.mrf.mxu0
      %938 = vdwg.mxu0
      %v971 = vunpack.c.l.b16 %v576
      %v972 = vunpack.c.l.b16 %v577
      %v973 = vunpack.c.l.b16 %v578
      %v974 = vunpack.c.l.b16 %v579
      %v975 = vunpack.c.l.b16 %v580
      %v976 = vunpack.c.l.b16 %v581
      %v977 = vunpack.c.l.b16 %v582
      %v978 = vunpack.c.l.b16 %v583
      %v979 = vunpack.c.l.b16 %v584
      %v980 = vunpack.c.l.b16 %v585
      %v981 = vunpack.c.l.b16 %v586
      %v982 = vunpack.c.l.b16 %v587
      %v983 = vunpack.c.l.b16 %v588
      %v984 = vunpack.c.l.b16 %v589
      %v985 = vunpack.c.l.b16 %v590
      %v986 = vunpack.c.l.b16 %v591
      %v987 = vunpack.c.l.b16 %v592
      %v988 = vunpack.c.l.b16 %v593
      %v989 = vunpack.c.l.b16 %v594
      %v990 = vunpack.c.l.b16 %v595
      %v991 = vunpack.c.l.b16 %v596
      %v992 = vunpack.c.l.b16 %v597
      %v993 = vunpack.c.l.b16 %v598
      %v994 = vunpack.c.l.b16 %v599
      %v995 = vunpack.c.l.b16 %v600
      %v996 = vunpack.c.l.b16 %v601
      %v997 = vunpack.c.l.b16 %v602
      %v998 = vunpack.c.l.b16 %v603
      %v999 = vunpack.c.l.b16 %v604
      %v1000 = vunpack.c.l.b16 %v605
      %v1001 = vunpack.c.l.b16 %v606
      %v1002 = vunpack.c.l.b16 %v607
      %v1003 = vpack.c.b16 %v972, %v971
      %v1004 = vpack.c.b16 %v974, %v973
      %v1005 = vpack.c.b16 %v976, %v975
      %v1006 = vpack.c.b16 %v978, %v977
      %v1007 = vpack.c.b16 %v980, %v979
      %v1008 = vpack.c.b16 %v982, %v981
      %v1009 = vpack.c.b16 %v984, %v983
      %v1010 = vpack.c.b16 %v986, %v985
      %v1011 = vpack.c.b16 %v988, %v987
      %v1012 = vpack.c.b16 %v990, %v989
      %v1013 = vpack.c.b16 %v992, %v991
      %v1014 = vpack.c.b16 %v994, %v993
      %v1015 = vpack.c.b16 %v996, %v995
      %v1016 = vpack.c.b16 %v998, %v997
      %v1017 = vpack.c.b16 %v1000, %v999
      %v1018 = vpack.c.b16 %v1002, %v1001
      %1035 = vmatprep.subr.bf16.mxu0 0
      %1036 = vmatpush1.bf16.msra.mxu0 %v1010
      %1037 = vmatprep.subr.bf16.mxu0 0
      %1038 = vmatpush1.bf16.msra.mxu0 %v1009
      %1039 = vmatprep.subr.bf16.mxu0 0
      %1040 = vmatpush1.bf16.msra.mxu0 %v1008
      %1041 = vmatprep.subr.bf16.mxu0 0
      %1042 = vmatpush1.bf16.msra.mxu0 %v1007
      %1043 = vmatprep.subr.bf16.mxu0 0
      %1044 = vmatpush1.bf16.msra.mxu0 %v1006
      %1045 = vmatprep.subr.bf16.mxu0 0
      %1046 = vmatpush1.bf16.msra.mxu0 %v1005
      %1047 = vmatprep.subr.bf16.mxu0 0
      %1048 = vmatpush1.bf16.msra.mxu0 %v1004
      %1049 = vmatprep.subr.bf16.mxu0 0
      %1050 = vmatpush1.bf16.msra.mxu0 %v1003
      %1051 = vmatprep.subr.bf16.mxu0 0
      %1052 = vmatpush2.bf16.msra.mxu0 %v1018
      %1053 = vmatprep.subr.bf16.mxu0 0
      %1054 = vmatpush2.bf16.msra.mxu0 %v1017
      %1055 = vmatprep.subr.bf16.mxu0 0
      %1056 = vmatpush2.bf16.msra.mxu0 %v1016
      %1057 = vmatprep.subr.bf16.mxu0 0
      %1058 = vmatpush2.bf16.msra.mxu0 %v1015
      %1059 = vmatprep.subr.bf16.mxu0 0
      %1060 = vmatpush2.bf16.msra.mxu0 %v1014
      %1061 = vmatprep.subr.bf16.mxu0 0
      %1062 = vmatpush2.bf16.msra.mxu0 %v1013
      %1063 = vmatprep.subr.bf16.mxu0 0
      %1064 = vmatpush2.bf16.msra.mxu0 %v1012
      %1065 = vmatprep.subr.bf16.mxu0 0
      %1066 = vmatpush2.bf16.msra.mxu0 %v1011
      %1067 = vmatprep.mubr.bf16.mxu0 %v569
      %1068 = vmatmul.mubr.bf16.gmra.mxu0 %v568
      %v1069 = vpop.f32.mrf.mxu0
      %v1070 = vadd.f32 %v909, %v1069
      %v1071 = vpop.f32.mrf.mxu0
      %v1072 = vpop.f32.mrf.mxu0
      %v1073 = vadd.f32 %v912, %v1072
      %v1074 = vpop.f32.mrf.mxu0
      %1075 = vmatprep.mubr.bf16.mxu0 %v571
      %1076 = vmatmul.mubr.bf16.gmra.mxu0 %v570
      %v1077 = vpop.f32.mrf.mxu0
      %v1078 = vadd.f32 %v917, %v1077
      %v1079 = vpop.f32.mrf.mxu0
      %v1080 = vpop.f32.mrf.mxu0
      %v1081 = vadd.f32 %v920, %v1080
      %v1082 = vpop.f32.mrf.mxu0
      %1083 = vmatprep.mubr.bf16.mxu0 %v573
      %1084 = vmatmul.mubr.bf16.gmra.mxu0 %v572
      %v1085 = vpop.f32.mrf.mxu0
      %v1086 = vadd.f32 %v925, %v1085
      %v1087 = vpop.f32.mrf.mxu0
      %v1088 = vpop.f32.mrf.mxu0
      %v1089 = vadd.f32 %v928, %v1088
      %v1090 = vpop.f32.mrf.mxu0
      %1091 = vmatprep.mubr.bf16.mxu0 %v575
      %1092 = vmatmul.mubr.bf16.gmra.mxu0 %v574
      %v1093 = vpop.f32.mrf.mxu0
      %v1094 = vadd.f32 %v933, %v1093
      %v1095 = vpop.f32.mrf.mxu0
      %v1096 = vpop.f32.mrf.mxu0
      %v1097 = vadd.f32 %v936, %v1096
      %v1098 = vpop.f32.mrf.mxu0
      %1099 = vdwg.mxu0
      %v1100 = vld [vmem:[%s544] sm:$0xfc]
      %v1101 = vld [vmem:[%s544 + $0x8] sm:$0xfc]
      %v1102 = vld [vmem:[%s544 + $0x10] sm:$0x3]
      %v1103 = vld [vmem:[%s544 + $0x18] sm:$0x3]
      %v1104 = vld [vmem:[%s544 + $0x20] sm:$0xfc]
      %v1105 = vld [vmem:[%s544 + $0x28] sm:$0xfc]
      %v1106 = vld [vmem:[%s544 + $0x30] sm:$0x3]
      %v1107 = vld [vmem:[%s544 + $0x38] sm:$0x3]
      %v1108 = vld [vmem:[%s544 + $0x40] sm:$0xfc]
      %v1109 = vld [vmem:[%s544 + $0x48] sm:$0xfc]
      %v1110 = vld [vmem:[%s544 + $0x50] sm:$0x3]
      %v1111 = vld [vmem:[%s544 + $0x58] sm:$0x3]
      %v1112 = vld [vmem:[%s544 + $0x60] sm:$0xfc]
      %v1113 = vld [vmem:[%s544 + $0x68] sm:$0xfc]
      %v1114 = vld [vmem:[%s544 + $0x70] sm:$0x3]
      %v1115 = vld [vmem:[%s544 + $0x78] sm:$0x3]
      %v1116 = vld [vmem:[%s544 + $0x80] sm:$0xfc]
      %v1117 = vld [vmem:[%s544 + $0x88] sm:$0xfc]
      %v1118 = vld [vmem:[%s544 + $0x90] sm:$0x3]
      %v1119 = vld [vmem:[%s544 + $0x98] sm:$0x3]
      %v1120 = vld [vmem:[%s544 + $0xa0] sm:$0xfc]
      %v1121 = vld [vmem:[%s544 + $0xa8] sm:$0xfc]
      %v1122 = vld [vmem:[%s544 + $0xb0] sm:$0x3]
      %v1123 = vld [vmem:[%s544 + $0xb8] sm:$0x3]
      %v1124 = vld [vmem:[%s544 + $0xc0] sm:$0xfc]
      %v1125 = vld [vmem:[%s544 + $0xc8] sm:$0xfc]
      %v1126 = vld [vmem:[%s544 + $0xd0] sm:$0x3]
      %v1127 = vld [vmem:[%s544 + $0xd8] sm:$0x3]
      %v1128 = vld [vmem:[%s544 + $0xe0] sm:$0xfc]
      %v1129 = vld [vmem:[%s544 + $0xe8] sm:$0xfc]
      %v1130 = vld [vmem:[%s544 + $0xf0] sm:$0x3]
      %v1131 = vld [vmem:[%s544 + $0xf8] sm:$0x3]
      %vm1164 = vcmask 1045504
      %v1165 = vrot.slane %v1100, 2
      %v1166 = vrot.slane %v1102, 2
      %v1167 = vsel %vm1164, %v1165, %v1166
      %v1168 = vrot.slane %v1101, 2
      %v1169 = vrot.slane %v1103, 2
      %v1170 = vsel %vm1164, %v1168, %v1169
      %v1171 = vrot.slane %v1104, 2
      %v1172 = vrot.slane %v1106, 2
      %v1173 = vsel %vm1164, %v1171, %v1172
      %v1174 = vrot.slane %v1105, 2
      %v1175 = vrot.slane %v1107, 2
      %v1176 = vsel %vm1164, %v1174, %v1175
      %v1177 = vrot.slane %v1108, 2
      %v1178 = vrot.slane %v1110, 2
      %v1179 = vsel %vm1164, %v1177, %v1178
      %v1180 = vrot.slane %v1109, 2
      %v1181 = vrot.slane %v1111, 2
      %v1182 = vsel %vm1164, %v1180, %v1181
      %v1183 = vrot.slane %v1112, 2
      %v1184 = vrot.slane %v1114, 2
      %v1185 = vsel %vm1164, %v1183, %v1184
      %v1186 = vrot.slane %v1113, 2
      %v1187 = vrot.slane %v1115, 2
      %v1188 = vsel %vm1164, %v1186, %v1187
      %v1189 = vrot.slane %v1116, 2
      %v1190 = vrot.slane %v1118, 2
      %v1191 = vsel %vm1164, %v1189, %v1190
      %v1192 = vrot.slane %v1117, 2
      %v1193 = vrot.slane %v1119, 2
      %v1194 = vsel %vm1164, %v1192, %v1193
      %v1195 = vrot.slane %v1120, 2
      %v1196 = vrot.slane %v1122, 2
      %v1197 = vsel %vm1164, %v1195, %v1196
      %v1198 = vrot.slane %v1121, 2
      %v1199 = vrot.slane %v1123, 2
      %v1200 = vsel %vm1164, %v1198, %v1199
      %v1201 = vrot.slane %v1124, 2
      %v1202 = vrot.slane %v1126, 2
      %v1203 = vsel %vm1164, %v1201, %v1202
      %v1204 = vrot.slane %v1125, 2
      %v1205 = vrot.slane %v1127, 2
      %v1206 = vsel %vm1164, %v1204, %v1205
      %v1207 = vrot.slane %v1128, 2
      %v1208 = vrot.slane %v1130, 2
      %v1209 = vsel %vm1164, %v1207, %v1208
      %v1210 = vrot.slane %v1129, 2
      %v1211 = vrot.slane %v1131, 2
      %v1212 = vsel %vm1164, %v1210, %v1211
      %v1229 = vpack.c.bf16 %v1173, %v1167
      %v1230 = vpack.c.bf16 %v1176, %v1170
      %v1231 = vpack.c.bf16 %v1185, %v1179
      %v1232 = vpack.c.bf16 %v1188, %v1182
      %v1233 = vpack.c.bf16 %v1197, %v1191
      %v1234 = vpack.c.bf16 %v1200, %v1194
      %v1235 = vpack.c.bf16 %v1209, %v1203
      %v1236 = vpack.c.bf16 %v1212, %v1206
      %s1237 = scalar_lea.vmem %s2, 256
      %v1238 = vld [vmem:[%s1237] sm:$0xf]
      %v1239 = vld [vmem:[%s1237 + $0x4] sm:$0xf]
      %v1240 = vld [vmem:[%s1237 + $0x8] sm:$0xf]
      %v1241 = vld [vmem:[%s1237 + $0xc] sm:$0xf]
      %v1242 = vld [vmem:[%s1237 + $0x10] sm:$0xf]
      %v1243 = vld [vmem:[%s1237 + $0x14] sm:$0xf]
      %v1244 = vld [vmem:[%s1237 + $0x18] sm:$0xf]
      %v1245 = vld [vmem:[%s1237 + $0x1c] sm:$0xf]
      %v1246 = vld [vmem:[%s1237 + $0x20] sm:$0xf]
      %v1247 = vld [vmem:[%s1237 + $0x24] sm:$0xf]
      %v1248 = vld [vmem:[%s1237 + $0x28] sm:$0xf]
      %v1249 = vld [vmem:[%s1237 + $0x2c] sm:$0xf]
      %v1250 = vld [vmem:[%s1237 + $0x30] sm:$0xf]
      %v1251 = vld [vmem:[%s1237 + $0x34] sm:$0xf]
      %v1252 = vld [vmem:[%s1237 + $0x38] sm:$0xf]
      %v1253 = vld [vmem:[%s1237 + $0x3c] sm:$0xf]
      %v1254 = vld [vmem:[%s1237 + $0x40] sm:$0xf]
      %v1255 = vld [vmem:[%s1237 + $0x44] sm:$0xf]
      %v1256 = vld [vmem:[%s1237 + $0x48] sm:$0xf]
      %v1257 = vld [vmem:[%s1237 + $0x4c] sm:$0xf]
      %v1258 = vld [vmem:[%s1237 + $0x50] sm:$0xf]
      %v1259 = vld [vmem:[%s1237 + $0x54] sm:$0xf]
      %v1260 = vld [vmem:[%s1237 + $0x58] sm:$0xf]
      %v1261 = vld [vmem:[%s1237 + $0x5c] sm:$0xf]
      %v1262 = vld [vmem:[%s1237 + $0x60] sm:$0xf]
      %v1263 = vld [vmem:[%s1237 + $0x64] sm:$0xf]
      %v1264 = vld [vmem:[%s1237 + $0x68] sm:$0xf]
      %v1265 = vld [vmem:[%s1237 + $0x6c] sm:$0xf]
      %v1266 = vld [vmem:[%s1237 + $0x70] sm:$0xf]
      %v1267 = vld [vmem:[%s1237 + $0x74] sm:$0xf]
      %v1268 = vld [vmem:[%s1237 + $0x78] sm:$0xf]
      %v1269 = vld [vmem:[%s1237 + $0x7c] sm:$0xf]
      %v1302 = vunpack.c.l.b16 %v1238
      %v1303 = vunpack.c.l.b16 %v1239
      %v1304 = vunpack.c.l.b16 %v1240
      %v1305 = vunpack.c.l.b16 %v1241
      %v1306 = vunpack.c.l.b16 %v1242
      %v1307 = vunpack.c.l.b16 %v1243
      %v1308 = vunpack.c.l.b16 %v1244
      %v1309 = vunpack.c.l.b16 %v1245
      %v1310 = vunpack.c.l.b16 %v1246
      %v1311 = vunpack.c.l.b16 %v1247
      %v1312 = vunpack.c.l.b16 %v1248
      %v1313 = vunpack.c.l.b16 %v1249
      %v1314 = vunpack.c.l.b16 %v1250
      %v1315 = vunpack.c.l.b16 %v1251
      %v1316 = vunpack.c.l.b16 %v1252
      %v1317 = vunpack.c.l.b16 %v1253
      %v1318 = vunpack.c.l.b16 %v1254
      %v1319 = vunpack.c.l.b16 %v1255
      %v1320 = vunpack.c.l.b16 %v1256
      %v1321 = vunpack.c.l.b16 %v1257
      %v1322 = vunpack.c.l.b16 %v1258
      %v1323 = vunpack.c.l.b16 %v1259
      %v1324 = vunpack.c.l.b16 %v1260
      %v1325 = vunpack.c.l.b16 %v1261
      %v1326 = vunpack.c.l.b16 %v1262
      %v1327 = vunpack.c.l.b16 %v1263
      %v1328 = vunpack.c.l.b16 %v1264
      %v1329 = vunpack.c.l.b16 %v1265
      %v1330 = vunpack.c.l.b16 %v1266
      %v1331 = vunpack.c.l.b16 %v1267
      %v1332 = vunpack.c.l.b16 %v1268
      %v1333 = vunpack.c.l.b16 %v1269
      %v1334 = vpack.c.b16 %v1303, %v1302
      %v1335 = vpack.c.b16 %v1305, %v1304
      %v1336 = vpack.c.b16 %v1307, %v1306
      %v1337 = vpack.c.b16 %v1309, %v1308
      %v1338 = vpack.c.b16 %v1311, %v1310
      %v1339 = vpack.c.b16 %v1313, %v1312
      %v1340 = vpack.c.b16 %v1315, %v1314
      %v1341 = vpack.c.b16 %v1317, %v1316
      %v1342 = vpack.c.b16 %v1319, %v1318
      %v1343 = vpack.c.b16 %v1321, %v1320
      %v1344 = vpack.c.b16 %v1323, %v1322
      %v1345 = vpack.c.b16 %v1325, %v1324
      %v1346 = vpack.c.b16 %v1327, %v1326
      %v1347 = vpack.c.b16 %v1329, %v1328
      %v1348 = vpack.c.b16 %v1331, %v1330
      %v1349 = vpack.c.b16 %v1333, %v1332
      %1366 = vmatprep.subr.bf16.mxu0 0
      %1367 = vmatpush1.bf16.msra.mxu0 %v1341
      %1368 = vmatprep.subr.bf16.mxu0 0
      %1369 = vmatpush1.bf16.msra.mxu0 %v1340
      %1370 = vmatprep.subr.bf16.mxu0 0
      %1371 = vmatpush1.bf16.msra.mxu0 %v1339
      %1372 = vmatprep.subr.bf16.mxu0 0
      %1373 = vmatpush1.bf16.msra.mxu0 %v1338
      %1374 = vmatprep.subr.bf16.mxu0 0
      %1375 = vmatpush1.bf16.msra.mxu0 %v1337
      %1376 = vmatprep.subr.bf16.mxu0 0
      %1377 = vmatpush1.bf16.msra.mxu0 %v1336
      %1378 = vmatprep.subr.bf16.mxu0 0
      %1379 = vmatpush1.bf16.msra.mxu0 %v1335
      %1380 = vmatprep.subr.bf16.mxu0 0
      %1381 = vmatpush1.bf16.msra.mxu0 %v1334
      %1382 = vmatprep.subr.bf16.mxu0 0
      %1383 = vmatpush2.bf16.msra.mxu0 %v1349
      %1384 = vmatprep.subr.bf16.mxu0 0
      %1385 = vmatpush2.bf16.msra.mxu0 %v1348
      %1386 = vmatprep.subr.bf16.mxu0 0
      %1387 = vmatpush2.bf16.msra.mxu0 %v1347
      %1388 = vmatprep.subr.bf16.mxu0 0
      %1389 = vmatpush2.bf16.msra.mxu0 %v1346
      %1390 = vmatprep.subr.bf16.mxu0 0
      %1391 = vmatpush2.bf16.msra.mxu0 %v1345
      %1392 = vmatprep.subr.bf16.mxu0 0
      %1393 = vmatpush2.bf16.msra.mxu0 %v1344
      %1394 = vmatprep.subr.bf16.mxu0 0
      %1395 = vmatpush2.bf16.msra.mxu0 %v1343
      %1396 = vmatprep.subr.bf16.mxu0 0
      %1397 = vmatpush2.bf16.msra.mxu0 %v1342
      %1398 = vmatprep.mubr.bf16.mxu0 %v1230
      %1399 = vmatmul.mubr.bf16.gmra.mxu0 %v1229
      %v1400 = vpop.f32.mrf.mxu0
      %v1401 = vadd.f32 0.0, %v1400
      %v1402 = vpop.f32.mrf.mxu0
      %v1403 = vpop.f32.mrf.mxu0
      %v1404 = vadd.f32 0.0, %v1403
      %v1405 = vpop.f32.mrf.mxu0
      %1406 = vmatprep.mubr.bf16.mxu0 %v1232
      %1407 = vmatmul.mubr.bf16.gmra.mxu0 %v1231
      %v1408 = vpop.f32.mrf.mxu0
      %v1409 = vadd.f32 0.0, %v1408
      %v1410 = vpop.f32.mrf.mxu0
      %v1411 = vpop.f32.mrf.mxu0
      %v1412 = vadd.f32 0.0, %v1411
      %v1413 = vpop.f32.mrf.mxu0
      %1414 = vmatprep.mubr.bf16.mxu0 %v1234
      %1415 = vmatmul.mubr.bf16.gmra.mxu0 %v1233
      %v1416 = vpop.f32.mrf.mxu0
      %v1417 = vadd.f32 0.0, %v1416
      %v1418 = vpop.f32.mrf.mxu0
      %v1419 = vpop.f32.mrf.mxu0
      %v1420 = vadd.f32 0.0, %v1419
      %v1421 = vpop.f32.mrf.mxu0
      %1422 = vmatprep.mubr.bf16.mxu0 %v1236
      %1423 = vmatmul.mubr.bf16.gmra.mxu0 %v1235
      %v1424 = vpop.f32.mrf.mxu0
      %v1425 = vadd.f32 0.0, %v1424
      %v1426 = vpop.f32.mrf.mxu0
      %v1427 = vpop.f32.mrf.mxu0
      %v1428 = vadd.f32 0.0, %v1427
      %v1429 = vpop.f32.mrf.mxu0
      %1430 = vdwg.mxu0
      %v1431 = vadd.f32 %v1070, %v1401
      %v1432 = vadd.f32 %v1073, %v1404
      %v1433 = vadd.f32 %v1078, %v1409
      %v1434 = vadd.f32 %v1081, %v1412
      %v1435 = vadd.f32 %v1086, %v1417
      %v1436 = vadd.f32 %v1089, %v1420
      %v1437 = vadd.f32 %v1094, %v1425
      %v1438 = vadd.f32 %v1097, %v1428
      %s1439 = scalar_lea.vmem %s544, 32
      %v1440 = vld [vmem:[%s1439] sm:$0xff]
      %v1441 = vld [vmem:[%s1439 + $0x8] sm:$0xff]
      %v1442 = vld [vmem:[%s1439 + $0x20] sm:$0xff]
      %v1443 = vld [vmem:[%s1439 + $0x28] sm:$0xff]
      %v1444 = vld [vmem:[%s1439 + $0x40] sm:$0xff]
      %v1445 = vld [vmem:[%s1439 + $0x48] sm:$0xff]
      %v1446 = vld [vmem:[%s1439 + $0x60] sm:$0xff]
      %v1447 = vld [vmem:[%s1439 + $0x68] sm:$0xff]
      %v1448 = vld [vmem:[%s1439 + $0x80] sm:$0xff]
      %v1449 = vld [vmem:[%s1439 + $0x88] sm:$0xff]
      %v1450 = vld [vmem:[%s1439 + $0xa0] sm:$0xff]
      %v1451 = vld [vmem:[%s1439 + $0xa8] sm:$0xff]
      %v1452 = vld [vmem:[%s1439 + $0xc0] sm:$0xff]
      %v1453 = vld [vmem:[%s1439 + $0xc8] sm:$0xff]
      %v1454 = vld [vmem:[%s1439 + $0xe0] sm:$0xff]
      %v1455 = vld [vmem:[%s1439 + $0xe8] sm:$0xff]
      %v1456 = vpack.c.bf16 %v1442, %v1440
      %v1457 = vpack.c.bf16 %v1443, %v1441
      %v1458 = vpack.c.bf16 %v1446, %v1444
      %v1459 = vpack.c.bf16 %v1447, %v1445
      %v1460 = vpack.c.bf16 %v1450, %v1448
      %v1461 = vpack.c.bf16 %v1451, %v1449
      %v1462 = vpack.c.bf16 %v1454, %v1452
      %v1463 = vpack.c.bf16 %v1455, %v1453
      %s1464 = scalar_lea.vmem %s2, 384
      %v1465 = vld [vmem:[%s1464] sm:$0xf]
      %v1466 = vld [vmem:[%s1464 + $0x4] sm:$0xf]
      %v1467 = vld [vmem:[%s1464 + $0x8] sm:$0xf]
      %v1468 = vld [vmem:[%s1464 + $0xc] sm:$0xf]
      %v1469 = vld [vmem:[%s1464 + $0x10] sm:$0xf]
      %v1470 = vld [vmem:[%s1464 + $0x14] sm:$0xf]
      %v1471 = vld [vmem:[%s1464 + $0x18] sm:$0xf]
      %v1472 = vld [vmem:[%s1464 + $0x1c] sm:$0xf]
      %v1473 = vld [vmem:[%s1464 + $0x20] sm:$0xf]
      %v1474 = vld [vmem:[%s1464 + $0x24] sm:$0xf]
      %v1475 = vld [vmem:[%s1464 + $0x28] sm:$0xf]
      %v1476 = vld [vmem:[%s1464 + $0x2c] sm:$0xf]
      %v1477 = vld [vmem:[%s1464 + $0x30] sm:$0xf]
      %v1478 = vld [vmem:[%s1464 + $0x34] sm:$0xf]
      %v1479 = vld [vmem:[%s1464 + $0x38] sm:$0xf]
      %v1480 = vld [vmem:[%s1464 + $0x3c] sm:$0xf]
      %v1481 = vld [vmem:[%s1464 + $0x40] sm:$0xf]
      %v1482 = vld [vmem:[%s1464 + $0x44] sm:$0xf]
      %v1483 = vld [vmem:[%s1464 + $0x48] sm:$0xf]
      %v1484 = vld [vmem:[%s1464 + $0x4c] sm:$0xf]
      %v1485 = vld [vmem:[%s1464 + $0x50] sm:$0xf]
      %v1486 = vld [vmem:[%s1464 + $0x54] sm:$0xf]
      %v1487 = vld [vmem:[%s1464 + $0x58] sm:$0xf]
      %v1488 = vld [vmem:[%s1464 + $0x5c] sm:$0xf]
      %v1489 = vld [vmem:[%s1464 + $0x60] sm:$0xf]
      %v1490 = vld [vmem:[%s1464 + $0x64] sm:$0xf]
      %v1491 = vld [vmem:[%s1464 + $0x68] sm:$0xf]
      %v1492 = vld [vmem:[%s1464 + $0x6c] sm:$0xf]
      %v1493 = vld [vmem:[%s1464 + $0x70] sm:$0xf]
      %v1494 = vld [vmem:[%s1464 + $0x74] sm:$0xf]
      %v1495 = vld [vmem:[%s1464 + $0x78] sm:$0xf]
      %v1496 = vld [vmem:[%s1464 + $0x7c] sm:$0xf]
      %v1529 = vunpack.c.l.b16 %v1465
      %v1530 = vunpack.c.l.b16 %v1466
      %v1531 = vunpack.c.l.b16 %v1467
      %v1532 = vunpack.c.l.b16 %v1468
      %v1533 = vunpack.c.l.b16 %v1469
      %v1534 = vunpack.c.l.b16 %v1470
      %v1535 = vunpack.c.l.b16 %v1471
      %v1536 = vunpack.c.l.b16 %v1472
      %v1537 = vunpack.c.l.b16 %v1473
      %v1538 = vunpack.c.l.b16 %v1474
      %v1539 = vunpack.c.l.b16 %v1475
      %v1540 = vunpack.c.l.b16 %v1476
      %v1541 = vunpack.c.l.b16 %v1477
      %v1542 = vunpack.c.l.b16 %v1478
      %v1543 = vunpack.c.l.b16 %v1479
      %v1544 = vunpack.c.l.b16 %v1480
      %v1545 = vunpack.c.l.b16 %v1481
      %v1546 = vunpack.c.l.b16 %v1482
      %v1547 = vunpack.c.l.b16 %v1483
      %v1548 = vunpack.c.l.b16 %v1484
      %v1549 = vunpack.c.l.b16 %v1485
      %v1550 = vunpack.c.l.b16 %v1486
      %v1551 = vunpack.c.l.b16 %v1487
      %v1552 = vunpack.c.l.b16 %v1488
      %v1553 = vunpack.c.l.b16 %v1489
      %v1554 = vunpack.c.l.b16 %v1490
      %v1555 = vunpack.c.l.b16 %v1491
      %v1556 = vunpack.c.l.b16 %v1492
      %v1557 = vunpack.c.l.b16 %v1493
      %v1558 = vunpack.c.l.b16 %v1494
      %v1559 = vunpack.c.l.b16 %v1495
      %v1560 = vunpack.c.l.b16 %v1496
      %v1561 = vpack.c.b16 %v1530, %v1529
      %v1562 = vpack.c.b16 %v1532, %v1531
      %v1563 = vpack.c.b16 %v1534, %v1533
      %v1564 = vpack.c.b16 %v1536, %v1535
      %v1565 = vpack.c.b16 %v1538, %v1537
      %v1566 = vpack.c.b16 %v1540, %v1539
      %v1567 = vpack.c.b16 %v1542, %v1541
      %v1568 = vpack.c.b16 %v1544, %v1543
      %v1569 = vpack.c.b16 %v1546, %v1545
      %v1570 = vpack.c.b16 %v1548, %v1547
      %v1571 = vpack.c.b16 %v1550, %v1549
      %v1572 = vpack.c.b16 %v1552, %v1551
      %v1573 = vpack.c.b16 %v1554, %v1553
      %v1574 = vpack.c.b16 %v1556, %v1555
      %v1575 = vpack.c.b16 %v1558, %v1557
      %v1576 = vpack.c.b16 %v1560, %v1559
      %1593 = vmatprep.subr.bf16.mxu0 0
      %1594 = vmatpush1.bf16.msra.mxu0 %v1568
      %1595 = vmatprep.subr.bf16.mxu0 0
      %1596 = vmatpush1.bf16.msra.mxu0 %v1567
      %1597 = vmatprep.subr.bf16.mxu0 0
      %1598 = vmatpush1.bf16.msra.mxu0 %v1566
      %1599 = vmatprep.subr.bf16.mxu0 0
      %1600 = vmatpush1.bf16.msra.mxu0 %v1565
      %1601 = vmatprep.subr.bf16.mxu0 0
      %1602 = vmatpush1.bf16.msra.mxu0 %v1564
      %1603 = vmatprep.subr.bf16.mxu0 0
      %1604 = vmatpush1.bf16.msra.mxu0 %v1563
      %1605 = vmatprep.subr.bf16.mxu0 0
      %1606 = vmatpush1.bf16.msra.mxu0 %v1562
      %1607 = vmatprep.subr.bf16.mxu0 0
      %1608 = vmatpush1.bf16.msra.mxu0 %v1561
      %1609 = vmatprep.subr.bf16.mxu0 0
      %1610 = vmatpush2.bf16.msra.mxu0 %v1576
      %1611 = vmatprep.subr.bf16.mxu0 0
      %1612 = vmatpush2.bf16.msra.mxu0 %v1575
      %1613 = vmatprep.subr.bf16.mxu0 0
      %1614 = vmatpush2.bf16.msra.mxu0 %v1574
      %1615 = vmatprep.subr.bf16.mxu0 0
      %1616 = vmatpush2.bf16.msra.mxu0 %v1573
      %1617 = vmatprep.subr.bf16.mxu0 0
      %1618 = vmatpush2.bf16.msra.mxu0 %v1572
      %1619 = vmatprep.subr.bf16.mxu0 0
      %1620 = vmatpush2.bf16.msra.mxu0 %v1571
      %1621 = vmatprep.subr.bf16.mxu0 0
      %1622 = vmatpush2.bf16.msra.mxu0 %v1570
      %1623 = vmatprep.subr.bf16.mxu0 0
      %1624 = vmatpush2.bf16.msra.mxu0 %v1569
      %1625 = vmatprep.mubr.bf16.mxu0 %v1457
      %1626 = vmatmul.mubr.bf16.gmra.mxu0 %v1456
      %v1627 = vpop.f32.mrf.mxu0
      %v1628 = vadd.f32 0.0, %v1627
      %v1629 = vpop.f32.mrf.mxu0
      %v1630 = vpop.f32.mrf.mxu0
      %v1631 = vadd.f32 0.0, %v1630
      %v1632 = vpop.f32.mrf.mxu0
      %1633 = vmatprep.mubr.bf16.mxu0 %v1459
      %1634 = vmatmul.mubr.bf16.gmra.mxu0 %v1458
      %v1635 = vpop.f32.mrf.mxu0
      %v1636 = vadd.f32 0.0, %v1635
      %v1637 = vpop.f32.mrf.mxu0
      %v1638 = vpop.f32.mrf.mxu0
      %v1639 = vadd.f32 0.0, %v1638
      %v1640 = vpop.f32.mrf.mxu0
      %1641 = vmatprep.mubr.bf16.mxu0 %v1461
      %1642 = vmatmul.mubr.bf16.gmra.mxu0 %v1460
      %v1643 = vpop.f32.mrf.mxu0
      %v1644 = vadd.f32 0.0, %v1643
      %v1645 = vpop.f32.mrf.mxu0
      %v1646 = vpop.f32.mrf.mxu0
      %v1647 = vadd.f32 0.0, %v1646
      %v1648 = vpop.f32.mrf.mxu0
      %1649 = vmatprep.mubr.bf16.mxu0 %v1463
      %1650 = vmatmul.mubr.bf16.gmra.mxu0 %v1462
      %v1651 = vpop.f32.mrf.mxu0
      %v1652 = vadd.f32 0.0, %v1651
      %v1653 = vpop.f32.mrf.mxu0
      %v1654 = vpop.f32.mrf.mxu0
      %v1655 = vadd.f32 0.0, %v1654
      %v1656 = vpop.f32.mrf.mxu0
      %1657 = vdwg.mxu0
      %v1658 = vadd.f32 %v1431, %v1628
      %v1659 = vadd.f32 %v1432, %v1631
      %v1660 = vadd.f32 %v1433, %v1636
      %v1661 = vadd.f32 %v1434, %v1639
      %v1662 = vadd.f32 %v1435, %v1644
      %v1663 = vadd.f32 %v1436, %v1647
      %v1664 = vadd.f32 %v1437, %v1652
      %v1665 = vadd.f32 %v1438, %v1655
      %v1666 = vld [vmem:[%s1439] sm:$0xfe]
      %v1667 = vld [vmem:[%s1439 + $0x8] sm:$0xfe]
      %v1668 = vld [vmem:[%s1439 + $0x10] sm:$0x1]
      %v1669 = vld [vmem:[%s1439 + $0x18] sm:$0x1]
      %v1670 = vld [vmem:[%s1439 + $0x20] sm:$0xfe]
      %v1671 = vld [vmem:[%s1439 + $0x28] sm:$0xfe]
      %v1672 = vld [vmem:[%s1439 + $0x30] sm:$0x1]
      %v1673 = vld [vmem:[%s1439 + $0x38] sm:$0x1]
      %v1674 = vld [vmem:[%s1439 + $0x40] sm:$0xfe]
      %v1675 = vld [vmem:[%s1439 + $0x48] sm:$0xfe]
      %v1676 = vld [vmem:[%s1439 + $0x50] sm:$0x1]
      %v1677 = vld [vmem:[%s1439 + $0x58] sm:$0x1]
      %v1678 = vld [vmem:[%s1439 + $0x60] sm:$0xfe]
      %v1679 = vld [vmem:[%s1439 + $0x68] sm:$0xfe]
      %v1680 = vld [vmem:[%s1439 + $0x70] sm:$0x1]
      %v1681 = vld [vmem:[%s1439 + $0x78] sm:$0x1]
      %v1682 = vld [vmem:[%s1439 + $0x80] sm:$0xfe]
      %v1683 = vld [vmem:[%s1439 + $0x88] sm:$0xfe]
      %v1684 = vld [vmem:[%s1439 + $0x90] sm:$0x1]
      %v1685 = vld [vmem:[%s1439 + $0x98] sm:$0x1]
      %v1686 = vld [vmem:[%s1439 + $0xa0] sm:$0xfe]
      %v1687 = vld [vmem:[%s1439 + $0xa8] sm:$0xfe]
      %v1688 = vld [vmem:[%s1439 + $0xb0] sm:$0x1]
      %v1689 = vld [vmem:[%s1439 + $0xb8] sm:$0x1]
      %v1690 = vld [vmem:[%s1439 + $0xc0] sm:$0xfe]
      %v1691 = vld [vmem:[%s1439 + $0xc8] sm:$0xfe]
      %v1692 = vld [vmem:[%s1439 + $0xd0] sm:$0x1]
      %v1693 = vld [vmem:[%s1439 + $0xd8] sm:$0x1]
      %v1694 = vld [vmem:[%s1439 + $0xe0] sm:$0xfe]
      %v1695 = vld [vmem:[%s1439 + $0xe8] sm:$0xfe]
      %v1696 = vld [vmem:[%s1439 + $0xf0] sm:$0x1]
      %v1697 = vld [vmem:[%s1439 + $0xf8] sm:$0x1]
      %v1730 = vrot.slane %v1666, 1
      %v1731 = vrot.slane %v1668, 1
      %v1732 = vsel %vm672, %v1730, %v1731
      %v1733 = vrot.slane %v1667, 1
      %v1734 = vrot.slane %v1669, 1
      %v1735 = vsel %vm672, %v1733, %v1734
      %v1736 = vrot.slane %v1670, 1
      %v1737 = vrot.slane %v1672, 1
      %v1738 = vsel %vm672, %v1736, %v1737
      %v1739 = vrot.slane %v1671, 1
      %v1740 = vrot.slane %v1673, 1
      %v1741 = vsel %vm672, %v1739, %v1740
      %v1742 = vrot.slane %v1674, 1
      %v1743 = vrot.slane %v1676, 1
      %v1744 = vsel %vm672, %v1742, %v1743
      %v1745 = vrot.slane %v1675, 1
      %v1746 = vrot.slane %v1677, 1
      %v1747 = vsel %vm672, %v1745, %v1746
      %v1748 = vrot.slane %v1678, 1
      %v1749 = vrot.slane %v1680, 1
      %v1750 = vsel %vm672, %v1748, %v1749
      %v1751 = vrot.slane %v1679, 1
      %v1752 = vrot.slane %v1681, 1
      %v1753 = vsel %vm672, %v1751, %v1752
      %v1754 = vrot.slane %v1682, 1
      %v1755 = vrot.slane %v1684, 1
      %v1756 = vsel %vm672, %v1754, %v1755
      %v1757 = vrot.slane %v1683, 1
      %v1758 = vrot.slane %v1685, 1
      %v1759 = vsel %vm672, %v1757, %v1758
      %v1760 = vrot.slane %v1686, 1
      %v1761 = vrot.slane %v1688, 1
      %v1762 = vsel %vm672, %v1760, %v1761
      %v1763 = vrot.slane %v1687, 1
      %v1764 = vrot.slane %v1689, 1
      %v1765 = vsel %vm672, %v1763, %v1764
      %v1766 = vrot.slane %v1690, 1
      %v1767 = vrot.slane %v1692, 1
      %v1768 = vsel %vm672, %v1766, %v1767
      %v1769 = vrot.slane %v1691, 1
      %v1770 = vrot.slane %v1693, 1
      %v1771 = vsel %vm672, %v1769, %v1770
      %v1772 = vrot.slane %v1694, 1
      %v1773 = vrot.slane %v1696, 1
      %v1774 = vsel %vm672, %v1772, %v1773
      %v1775 = vrot.slane %v1695, 1
      %v1776 = vrot.slane %v1697, 1
      %v1777 = vsel %vm672, %v1775, %v1776
      %v1794 = vpack.c.bf16 %v1738, %v1732
      %v1795 = vpack.c.bf16 %v1741, %v1735
      %v1796 = vpack.c.bf16 %v1750, %v1744
      %v1797 = vpack.c.bf16 %v1753, %v1747
      %v1798 = vpack.c.bf16 %v1762, %v1756
      %v1799 = vpack.c.bf16 %v1765, %v1759
      %v1800 = vpack.c.bf16 %v1774, %v1768
      %v1801 = vpack.c.bf16 %v1777, %v1771
      %s1802 = scalar_lea.vmem %s2, 512
      %v1803 = vld [vmem:[%s1802] sm:$0xf]
      %v1804 = vld [vmem:[%s1802 + $0x4] sm:$0xf]
      %v1805 = vld [vmem:[%s1802 + $0x8] sm:$0xf]
      %v1806 = vld [vmem:[%s1802 + $0xc] sm:$0xf]
      %v1807 = vld [vmem:[%s1802 + $0x10] sm:$0xf]
      %v1808 = vld [vmem:[%s1802 + $0x14] sm:$0xf]
      %v1809 = vld [vmem:[%s1802 + $0x18] sm:$0xf]
      %v1810 = vld [vmem:[%s1802 + $0x1c] sm:$0xf]
      %v1811 = vld [vmem:[%s1802 + $0x20] sm:$0xf]
      %v1812 = vld [vmem:[%s1802 + $0x24] sm:$0xf]
      %v1813 = vld [vmem:[%s1802 + $0x28] sm:$0xf]
      %v1814 = vld [vmem:[%s1802 + $0x2c] sm:$0xf]
      %v1815 = vld [vmem:[%s1802 + $0x30] sm:$0xf]
      %v1816 = vld [vmem:[%s1802 + $0x34] sm:$0xf]
      %v1817 = vld [vmem:[%s1802 + $0x38] sm:$0xf]
      %v1818 = vld [vmem:[%s1802 + $0x3c] sm:$0xf]
      %v1819 = vld [vmem:[%s1802 + $0x40] sm:$0xf]
      %v1820 = vld [vmem:[%s1802 + $0x44] sm:$0xf]
      %v1821 = vld [vmem:[%s1802 + $0x48] sm:$0xf]
      %v1822 = vld [vmem:[%s1802 + $0x4c] sm:$0xf]
      %v1823 = vld [vmem:[%s1802 + $0x50] sm:$0xf]
      %v1824 = vld [vmem:[%s1802 + $0x54] sm:$0xf]
      %v1825 = vld [vmem:[%s1802 + $0x58] sm:$0xf]
      %v1826 = vld [vmem:[%s1802 + $0x5c] sm:$0xf]
      %v1827 = vld [vmem:[%s1802 + $0x60] sm:$0xf]
      %v1828 = vld [vmem:[%s1802 + $0x64] sm:$0xf]
      %v1829 = vld [vmem:[%s1802 + $0x68] sm:$0xf]
      %v1830 = vld [vmem:[%s1802 + $0x6c] sm:$0xf]
      %v1831 = vld [vmem:[%s1802 + $0x70] sm:$0xf]
      %v1832 = vld [vmem:[%s1802 + $0x74] sm:$0xf]
      %v1833 = vld [vmem:[%s1802 + $0x78] sm:$0xf]
      %v1834 = vld [vmem:[%s1802 + $0x7c] sm:$0xf]
      %v1867 = vunpack.c.l.b16 %v1803
      %v1868 = vunpack.c.l.b16 %v1804
      %v1869 = vunpack.c.l.b16 %v1805
      %v1870 = vunpack.c.l.b16 %v1806
      %v1871 = vunpack.c.l.b16 %v1807
      %v1872 = vunpack.c.l.b16 %v1808
      %v1873 = vunpack.c.l.b16 %v1809
      %v1874 = vunpack.c.l.b16 %v1810
      %v1875 = vunpack.c.l.b16 %v1811
      %v1876 = vunpack.c.l.b16 %v1812
      %v1877 = vunpack.c.l.b16 %v1813
      %v1878 = vunpack.c.l.b16 %v1814
      %v1879 = vunpack.c.l.b16 %v1815
      %v1880 = vunpack.c.l.b16 %v1816
      %v1881 = vunpack.c.l.b16 %v1817
      %v1882 = vunpack.c.l.b16 %v1818
      %v1883 = vunpack.c.l.b16 %v1819
      %v1884 = vunpack.c.l.b16 %v1820
      %v1885 = vunpack.c.l.b16 %v1821
      %v1886 = vunpack.c.l.b16 %v1822
      %v1887 = vunpack.c.l.b16 %v1823
      %v1888 = vunpack.c.l.b16 %v1824
      %v1889 = vunpack.c.l.b16 %v1825
      %v1890 = vunpack.c.l.b16 %v1826
      %v1891 = vunpack.c.l.b16 %v1827
      %v1892 = vunpack.c.l.b16 %v1828
      %v1893 = vunpack.c.l.b16 %v1829
      %v1894 = vunpack.c.l.b16 %v1830
      %v1895 = vunpack.c.l.b16 %v1831
      %v1896 = vunpack.c.l.b16 %v1832
      %v1897 = vunpack.c.l.b16 %v1833
      %v1898 = vunpack.c.l.b16 %v1834
      %v1899 = vpack.c.b16 %v1868, %v1867
      %v1900 = vpack.c.b16 %v1870, %v1869
      %v1901 = vpack.c.b16 %v1872, %v1871
      %v1902 = vpack.c.b16 %v1874, %v1873
      %v1903 = vpack.c.b16 %v1876, %v1875
      %v1904 = vpack.c.b16 %v1878, %v1877
      %v1905 = vpack.c.b16 %v1880, %v1879
      %v1906 = vpack.c.b16 %v1882, %v1881
      %v1907 = vpack.c.b16 %v1884, %v1883
      %v1908 = vpack.c.b16 %v1886, %v1885
      %v1909 = vpack.c.b16 %v1888, %v1887
      %v1910 = vpack.c.b16 %v1890, %v1889
      %v1911 = vpack.c.b16 %v1892, %v1891
      %v1912 = vpack.c.b16 %v1894, %v1893
      %v1913 = vpack.c.b16 %v1896, %v1895
      %v1914 = vpack.c.b16 %v1898, %v1897
      %1931 = vmatprep.subr.bf16.mxu0 0
      %1932 = vmatpush1.bf16.msra.mxu0 %v1906
      %1933 = vmatprep.subr.bf16.mxu0 0
      %1934 = vmatpush1.bf16.msra.mxu0 %v1905
      %1935 = vmatprep.subr.bf16.mxu0 0
      %1936 = vmatpush1.bf16.msra.mxu0 %v1904
      %1937 = vmatprep.subr.bf16.mxu0 0
      %1938 = vmatpush1.bf16.msra.mxu0 %v1903
      %1939 = vmatprep.subr.bf16.mxu0 0
      %1940 = vmatpush1.bf16.msra.mxu0 %v1902
      %1941 = vmatprep.subr.bf16.mxu0 0
      %1942 = vmatpush1.bf16.msra.mxu0 %v1901
      %1943 = vmatprep.subr.bf16.mxu0 0
      %1944 = vmatpush1.bf16.msra.mxu0 %v1900
      %1945 = vmatprep.subr.bf16.mxu0 0
      %1946 = vmatpush1.bf16.msra.mxu0 %v1899
      %1947 = vmatprep.subr.bf16.mxu0 0
      %1948 = vmatpush2.bf16.msra.mxu0 %v1914
      %1949 = vmatprep.subr.bf16.mxu0 0
      %1950 = vmatpush2.bf16.msra.mxu0 %v1913
      %1951 = vmatprep.subr.bf16.mxu0 0
      %1952 = vmatpush2.bf16.msra.mxu0 %v1912
      %1953 = vmatprep.subr.bf16.mxu0 0
      %1954 = vmatpush2.bf16.msra.mxu0 %v1911
      %1955 = vmatprep.subr.bf16.mxu0 0
      %1956 = vmatpush2.bf16.msra.mxu0 %v1910
      %1957 = vmatprep.subr.bf16.mxu0 0
      %1958 = vmatpush2.bf16.msra.mxu0 %v1909
      %1959 = vmatprep.subr.bf16.mxu0 0
      %1960 = vmatpush2.bf16.msra.mxu0 %v1908
      %1961 = vmatprep.subr.bf16.mxu0 0
      %1962 = vmatpush2.bf16.msra.mxu0 %v1907
      %1963 = vmatprep.mubr.bf16.mxu0 %v1795
      %1964 = vmatmul.mubr.bf16.gmra.mxu0 %v1794
      %v1965 = vpop.f32.mrf.mxu0
      %v1966 = vadd.f32 0.0, %v1965
      %v1967 = vpop.f32.mrf.mxu0
      %v1968 = vpop.f32.mrf.mxu0
      %v1969 = vadd.f32 0.0, %v1968
      %v1970 = vpop.f32.mrf.mxu0
      %1971 = vmatprep.mubr.bf16.mxu0 %v1797
      %1972 = vmatmul.mubr.bf16.gmra.mxu0 %v1796
      %v1973 = vpop.f32.mrf.mxu0
      %v1974 = vadd.f32 0.0, %v1973
      %v1975 = vpop.f32.mrf.mxu0
      %v1976 = vpop.f32.mrf.mxu0
      %v1977 = vadd.f32 0.0, %v1976
      %v1978 = vpop.f32.mrf.mxu0
      %1979 = vmatprep.mubr.bf16.mxu0 %v1799
      %1980 = vmatmul.mubr.bf16.gmra.mxu0 %v1798
      %v1981 = vpop.f32.mrf.mxu0
      %v1982 = vadd.f32 0.0, %v1981
      %v1983 = vpop.f32.mrf.mxu0
      %v1984 = vpop.f32.mrf.mxu0
      %v1985 = vadd.f32 0.0, %v1984
      %v1986 = vpop.f32.mrf.mxu0
      %1987 = vmatprep.mubr.bf16.mxu0 %v1801
      %1988 = vmatmul.mubr.bf16.gmra.mxu0 %v1800
      %v1989 = vpop.f32.mrf.mxu0
      %v1990 = vadd.f32 0.0, %v1989
      %v1991 = vpop.f32.mrf.mxu0
      %v1992 = vpop.f32.mrf.mxu0
      %v1993 = vadd.f32 0.0, %v1992
      %v1994 = vpop.f32.mrf.mxu0
      %1995 = vdwg.mxu0
      %v1996 = vadd.f32 %v1658, %v1966
      %v1997 = vadd.f32 %v1659, %v1969
      %v1998 = vadd.f32 %v1660, %v1974
      %v1999 = vadd.f32 %v1661, %v1977
      %v2000 = vadd.f32 %v1662, %v1982
      %v2001 = vadd.f32 %v1663, %v1985
      %v2002 = vadd.f32 %v1664, %v1990
      %v2003 = vadd.f32 %v1665, %v1993
      %v2004 = vld [vmem:[%s1439] sm:$0xfc]
      %v2005 = vld [vmem:[%s1439 + $0x8] sm:$0xfc]
      %v2006 = vld [vmem:[%s1439 + $0x10] sm:$0x3]
      %v2007 = vld [vmem:[%s1439 + $0x18] sm:$0x3]
      %v2008 = vld [vmem:[%s1439 + $0x20] sm:$0xfc]
      %v2009 = vld [vmem:[%s1439 + $0x28] sm:$0xfc]
      %v2010 = vld [vmem:[%s1439 + $0x30] sm:$0x3]
      %v2011 = vld [vmem:[%s1439 + $0x38] sm:$0x3]
      %v2012 = vld [vmem:[%s1439 + $0x40] sm:$0xfc]
      %v2013 = vld [vmem:[%s1439 + $0x48] sm:$0xfc]
      %v2014 = vld [vmem:[%s1439 + $0x50] sm:$0x3]
      %v2015 = vld [vmem:[%s1439 + $0x58] sm:$0x3]
      %v2016 = vld [vmem:[%s1439 + $0x60] sm:$0xfc]
      %v2017 = vld [vmem:[%s1439 + $0x68] sm:$0xfc]
      %v2018 = vld [vmem:[%s1439 + $0x70] sm:$0x3]
      %v2019 = vld [vmem:[%s1439 + $0x78] sm:$0x3]
      %v2020 = vld [vmem:[%s1439 + $0x80] sm:$0xfc]
      %v2021 = vld [vmem:[%s1439 + $0x88] sm:$0xfc]
      %v2022 = vld [vmem:[%s1439 + $0x90] sm:$0x3]
      %v2023 = vld [vmem:[%s1439 + $0x98] sm:$0x3]
      %v2024 = vld [vmem:[%s1439 + $0xa0] sm:$0xfc]
      %v2025 = vld [vmem:[%s1439 + $0xa8] sm:$0xfc]
      %v2026 = vld [vmem:[%s1439 + $0xb0] sm:$0x3]
      %v2027 = vld [vmem:[%s1439 + $0xb8] sm:$0x3]
      %v2028 = vld [vmem:[%s1439 + $0xc0] sm:$0xfc]
      %v2029 = vld [vmem:[%s1439 + $0xc8] sm:$0xfc]
      %v2030 = vld [vmem:[%s1439 + $0xd0] sm:$0x3]
      %v2031 = vld [vmem:[%s1439 + $0xd8] sm:$0x3]
      %v2032 = vld [vmem:[%s1439 + $0xe0] sm:$0xfc]
      %v2033 = vld [vmem:[%s1439 + $0xe8] sm:$0xfc]
      %v2034 = vld [vmem:[%s1439 + $0xf0] sm:$0x3]
      %v2035 = vld [vmem:[%s1439 + $0xf8] sm:$0x3]
      %v2068 = vrot.slane %v2004, 2
      %v2069 = vrot.slane %v2006, 2
      %v2070 = vsel %vm1164, %v2068, %v2069
      %v2071 = vrot.slane %v2005, 2
      %v2072 = vrot.slane %v2007, 2
      %v2073 = vsel %vm1164, %v2071, %v2072
      %v2074 = vrot.slane %v2008, 2
      %v2075 = vrot.slane %v2010, 2
      %v2076 = vsel %vm1164, %v2074, %v2075
      %v2077 = vrot.slane %v2009, 2
      %v2078 = vrot.slane %v2011, 2
      %v2079 = vsel %vm1164, %v2077, %v2078
      %v2080 = vrot.slane %v2012, 2
      %v2081 = vrot.slane %v2014, 2
      %v2082 = vsel %vm1164, %v2080, %v2081
      %v2083 = vrot.slane %v2013, 2
      %v2084 = vrot.slane %v2015, 2
      %v2085 = vsel %vm1164, %v2083, %v2084
      %v2086 = vrot.slane %v2016, 2
      %v2087 = vrot.slane %v2018, 2
      %v2088 = vsel %vm1164, %v2086, %v2087
      %v2089 = vrot.slane %v2017, 2
      %v2090 = vrot.slane %v2019, 2
      %v2091 = vsel %vm1164, %v2089, %v2090
      %v2092 = vrot.slane %v2020, 2
      %v2093 = vrot.slane %v2022, 2
      %v2094 = vsel %vm1164, %v2092, %v2093
      %v2095 = vrot.slane %v2021, 2
      %v2096 = vrot.slane %v2023, 2
      %v2097 = vsel %vm1164, %v2095, %v2096
      %v2098 = vrot.slane %v2024, 2
      %v2099 = vrot.slane %v2026, 2
      %v2100 = vsel %vm1164, %v2098, %v2099
      %v2101 = vrot.slane %v2025, 2
      %v2102 = vrot.slane %v2027, 2
      %v2103 = vsel %vm1164, %v2101, %v2102
      %v2104 = vrot.slane %v2028, 2
      %v2105 = vrot.slane %v2030, 2
      %v2106 = vsel %vm1164, %v2104, %v2105
      %v2107 = vrot.slane %v2029, 2
      %v2108 = vrot.slane %v2031, 2
      %v2109 = vsel %vm1164, %v2107, %v2108
      %v2110 = vrot.slane %v2032, 2
      %v2111 = vrot.slane %v2034, 2
      %v2112 = vsel %vm1164, %v2110, %v2111
      %v2113 = vrot.slane %v2033, 2
      %v2114 = vrot.slane %v2035, 2
      %v2115 = vsel %vm1164, %v2113, %v2114
      %v2132 = vpack.c.bf16 %v2076, %v2070
      %v2133 = vpack.c.bf16 %v2079, %v2073
      %v2134 = vpack.c.bf16 %v2088, %v2082
      %v2135 = vpack.c.bf16 %v2091, %v2085
      %v2136 = vpack.c.bf16 %v2100, %v2094
      %v2137 = vpack.c.bf16 %v2103, %v2097
      %v2138 = vpack.c.bf16 %v2112, %v2106
      %v2139 = vpack.c.bf16 %v2115, %v2109
      %s2140 = scalar_lea.vmem %s2, 640
      %v2141 = vld [vmem:[%s2140] sm:$0xf]
      %v2142 = vld [vmem:[%s2140 + $0x4] sm:$0xf]
      %v2143 = vld [vmem:[%s2140 + $0x8] sm:$0xf]
      %v2144 = vld [vmem:[%s2140 + $0xc] sm:$0xf]
      %v2145 = vld [vmem:[%s2140 + $0x10] sm:$0xf]
      %v2146 = vld [vmem:[%s2140 + $0x14] sm:$0xf]
      %v2147 = vld [vmem:[%s2140 + $0x18] sm:$0xf]
      %v2148 = vld [vmem:[%s2140 + $0x1c] sm:$0xf]
      %v2149 = vld [vmem:[%s2140 + $0x20] sm:$0xf]
      %v2150 = vld [vmem:[%s2140 + $0x24] sm:$0xf]
      %v2151 = vld [vmem:[%s2140 + $0x28] sm:$0xf]
      %v2152 = vld [vmem:[%s2140 + $0x2c] sm:$0xf]
      %v2153 = vld [vmem:[%s2140 + $0x30] sm:$0xf]
      %v2154 = vld [vmem:[%s2140 + $0x34] sm:$0xf]
      %v2155 = vld [vmem:[%s2140 + $0x38] sm:$0xf]
      %v2156 = vld [vmem:[%s2140 + $0x3c] sm:$0xf]
      %v2157 = vld [vmem:[%s2140 + $0x40] sm:$0xf]
      %v2158 = vld [vmem:[%s2140 + $0x44] sm:$0xf]
      %v2159 = vld [vmem:[%s2140 + $0x48] sm:$0xf]
      %v2160 = vld [vmem:[%s2140 + $0x4c] sm:$0xf]
      %v2161 = vld [vmem:[%s2140 + $0x50] sm:$0xf]
      %v2162 = vld [vmem:[%s2140 + $0x54] sm:$0xf]
      %v2163 = vld [vmem:[%s2140 + $0x58] sm:$0xf]
      %v2164 = vld [vmem:[%s2140 + $0x5c] sm:$0xf]
      %v2165 = vld [vmem:[%s2140 + $0x60] sm:$0xf]
      %v2166 = vld [vmem:[%s2140 + $0x64] sm:$0xf]
      %v2167 = vld [vmem:[%s2140 + $0x68] sm:$0xf]
      %v2168 = vld [vmem:[%s2140 + $0x6c] sm:$0xf]
      %v2169 = vld [vmem:[%s2140 + $0x70] sm:$0xf]
      %v2170 = vld [vmem:[%s2140 + $0x74] sm:$0xf]
      %v2171 = vld [vmem:[%s2140 + $0x78] sm:$0xf]
      %v2172 = vld [vmem:[%s2140 + $0x7c] sm:$0xf]
      %v2205 = vunpack.c.l.b16 %v2141
      %v2206 = vunpack.c.l.b16 %v2142
      %v2207 = vunpack.c.l.b16 %v2143
      %v2208 = vunpack.c.l.b16 %v2144
      %v2209 = vunpack.c.l.b16 %v2145
      %v2210 = vunpack.c.l.b16 %v2146
      %v2211 = vunpack.c.l.b16 %v2147
      %v2212 = vunpack.c.l.b16 %v2148
      %v2213 = vunpack.c.l.b16 %v2149
      %v2214 = vunpack.c.l.b16 %v2150
      %v2215 = vunpack.c.l.b16 %v2151
      %v2216 = vunpack.c.l.b16 %v2152
      %v2217 = vunpack.c.l.b16 %v2153
      %v2218 = vunpack.c.l.b16 %v2154
      %v2219 = vunpack.c.l.b16 %v2155
      %v2220 = vunpack.c.l.b16 %v2156
      %v2221 = vunpack.c.l.b16 %v2157
      %v2222 = vunpack.c.l.b16 %v2158
      %v2223 = vunpack.c.l.b16 %v2159
      %v2224 = vunpack.c.l.b16 %v2160
      %v2225 = vunpack.c.l.b16 %v2161
      %v2226 = vunpack.c.l.b16 %v2162
      %v2227 = vunpack.c.l.b16 %v2163
      %v2228 = vunpack.c.l.b16 %v2164
      %v2229 = vunpack.c.l.b16 %v2165
      %v2230 = vunpack.c.l.b16 %v2166
      %v2231 = vunpack.c.l.b16 %v2167
      %v2232 = vunpack.c.l.b16 %v2168
      %v2233 = vunpack.c.l.b16 %v2169
      %v2234 = vunpack.c.l.b16 %v2170
      %v2235 = vunpack.c.l.b16 %v2171
      %v2236 = vunpack.c.l.b16 %v2172
      %v2237 = vpack.c.b16 %v2206, %v2205
      %v2238 = vpack.c.b16 %v2208, %v2207
      %v2239 = vpack.c.b16 %v2210, %v2209
      %v2240 = vpack.c.b16 %v2212, %v2211
      %v2241 = vpack.c.b16 %v2214, %v2213
      %v2242 = vpack.c.b16 %v2216, %v2215
      %v2243 = vpack.c.b16 %v2218, %v2217
      %v2244 = vpack.c.b16 %v2220, %v2219
      %v2245 = vpack.c.b16 %v2222, %v2221
      %v2246 = vpack.c.b16 %v2224, %v2223
      %v2247 = vpack.c.b16 %v2226, %v2225
      %v2248 = vpack.c.b16 %v2228, %v2227
      %v2249 = vpack.c.b16 %v2230, %v2229
      %v2250 = vpack.c.b16 %v2232, %v2231
      %v2251 = vpack.c.b16 %v2234, %v2233
      %v2252 = vpack.c.b16 %v2236, %v2235
      %2269 = vmatprep.subr.bf16.mxu0 0
      %2270 = vmatpush1.bf16.msra.mxu0 %v2244
      %2271 = vmatprep.subr.bf16.mxu0 0
      %2272 = vmatpush1.bf16.msra.mxu0 %v2243
      %2273 = vmatprep.subr.bf16.mxu0 0
      %2274 = vmatpush1.bf16.msra.mxu0 %v2242
      %2275 = vmatprep.subr.bf16.mxu0 0
      %2276 = vmatpush1.bf16.msra.mxu0 %v2241
      %2277 = vmatprep.subr.bf16.mxu0 0
      %2278 = vmatpush1.bf16.msra.mxu0 %v2240
      %2279 = vmatprep.subr.bf16.mxu0 0
      %2280 = vmatpush1.bf16.msra.mxu0 %v2239
      %2281 = vmatprep.subr.bf16.mxu0 0
      %2282 = vmatpush1.bf16.msra.mxu0 %v2238
      %2283 = vmatprep.subr.bf16.mxu0 0
      %2284 = vmatpush1.bf16.msra.mxu0 %v2237
      %2285 = vmatprep.subr.bf16.mxu0 0
      %2286 = vmatpush2.bf16.msra.mxu0 %v2252
      %2287 = vmatprep.subr.bf16.mxu0 0
      %2288 = vmatpush2.bf16.msra.mxu0 %v2251
      %2289 = vmatprep.subr.bf16.mxu0 0
      %2290 = vmatpush2.bf16.msra.mxu0 %v2250
      %2291 = vmatprep.subr.bf16.mxu0 0
      %2292 = vmatpush2.bf16.msra.mxu0 %v2249
      %2293 = vmatprep.subr.bf16.mxu0 0
      %2294 = vmatpush2.bf16.msra.mxu0 %v2248
      %2295 = vmatprep.subr.bf16.mxu0 0
      %2296 = vmatpush2.bf16.msra.mxu0 %v2247
      %2297 = vmatprep.subr.bf16.mxu0 0
      %2298 = vmatpush2.bf16.msra.mxu0 %v2246
      %2299 = vmatprep.subr.bf16.mxu0 0
      %2300 = vmatpush2.bf16.msra.mxu0 %v2245
      %2301 = vmatprep.mubr.bf16.mxu0 %v2133
      %2302 = vmatmul.mubr.bf16.gmra.mxu0 %v2132
      %v2303 = vpop.f32.mrf.mxu0
      %v2304 = vadd.f32 0.0, %v2303
      %v2305 = vpop.f32.mrf.mxu0
      %v2306 = vpop.f32.mrf.mxu0
      %v2307 = vadd.f32 0.0, %v2306
      %v2308 = vpop.f32.mrf.mxu0
      %2309 = vmatprep.mubr.bf16.mxu0 %v2135
      %2310 = vmatmul.mubr.bf16.gmra.mxu0 %v2134
      %v2311 = vpop.f32.mrf.mxu0
      %v2312 = vadd.f32 0.0, %v2311
      %v2313 = vpop.f32.mrf.mxu0
      %v2314 = vpop.f32.mrf.mxu0
      %v2315 = vadd.f32 0.0, %v2314
      %v2316 = vpop.f32.mrf.mxu0
      %2317 = vmatprep.mubr.bf16.mxu0 %v2137
      %2318 = vmatmul.mubr.bf16.gmra.mxu0 %v2136
      %v2319 = vpop.f32.mrf.mxu0
      %v2320 = vadd.f32 0.0, %v2319
      %v2321 = vpop.f32.mrf.mxu0
      %v2322 = vpop.f32.mrf.mxu0
      %v2323 = vadd.f32 0.0, %v2322
      %v2324 = vpop.f32.mrf.mxu0
      %2325 = vmatprep.mubr.bf16.mxu0 %v2139
      %2326 = vmatmul.mubr.bf16.gmra.mxu0 %v2138
      %v2327 = vpop.f32.mrf.mxu0
      %v2328 = vadd.f32 0.0, %v2327
      %v2329 = vpop.f32.mrf.mxu0
      %v2330 = vpop.f32.mrf.mxu0
      %v2331 = vadd.f32 0.0, %v2330
      %v2332 = vpop.f32.mrf.mxu0
      %2333 = vdwg.mxu0
      %v2334 = vadd.f32 %v1996, %v2304
      %v2335 = vadd.f32 %v1997, %v2307
      %v2336 = vadd.f32 %v1998, %v2312
      %v2337 = vadd.f32 %v1999, %v2315
      %v2338 = vadd.f32 %v2000, %v2320
      %v2339 = vadd.f32 %v2001, %v2323
      %v2340 = vadd.f32 %v2002, %v2328
      %v2341 = vadd.f32 %v2003, %v2331
      %s2342 = scalar_lea.vmem %s544, 64
      %v2343 = vld [vmem:[%s2342] sm:$0xff]
      %v2344 = vld [vmem:[%s2342 + $0x8] sm:$0xff]
      %v2345 = vld [vmem:[%s2342 + $0x20] sm:$0xff]
      %v2346 = vld [vmem:[%s2342 + $0x28] sm:$0xff]
      %v2347 = vld [vmem:[%s2342 + $0x40] sm:$0xff]
      %v2348 = vld [vmem:[%s2342 + $0x48] sm:$0xff]
      %v2349 = vld [vmem:[%s2342 + $0x60] sm:$0xff]
      %v2350 = vld [vmem:[%s2342 + $0x68] sm:$0xff]
      %v2351 = vld [vmem:[%s2342 + $0x80] sm:$0xff]
      %v2352 = vld [vmem:[%s2342 + $0x88] sm:$0xff]
      %v2353 = vld [vmem:[%s2342 + $0xa0] sm:$0xff]
      %v2354 = vld [vmem:[%s2342 + $0xa8] sm:$0xff]
      %v2355 = vld [vmem:[%s2342 + $0xc0] sm:$0xff]
      %v2356 = vld [vmem:[%s2342 + $0xc8] sm:$0xff]
      %v2357 = vld [vmem:[%s2342 + $0xe0] sm:$0xff]
      %v2358 = vld [vmem:[%s2342 + $0xe8] sm:$0xff]
      %v2359 = vpack.c.bf16 %v2345, %v2343
      %v2360 = vpack.c.bf16 %v2346, %v2344
      %v2361 = vpack.c.bf16 %v2349, %v2347
      %v2362 = vpack.c.bf16 %v2350, %v2348
      %v2363 = vpack.c.bf16 %v2353, %v2351
      %v2364 = vpack.c.bf16 %v2354, %v2352
      %v2365 = vpack.c.bf16 %v2357, %v2355
      %v2366 = vpack.c.bf16 %v2358, %v2356
      %s2367 = scalar_lea.vmem %s2, 768
      %v2368 = vld [vmem:[%s2367] sm:$0xf]
      %v2369 = vld [vmem:[%s2367 + $0x4] sm:$0xf]
      %v2370 = vld [vmem:[%s2367 + $0x8] sm:$0xf]
      %v2371 = vld [vmem:[%s2367 + $0xc] sm:$0xf]
      %v2372 = vld [vmem:[%s2367 + $0x10] sm:$0xf]
      %v2373 = vld [vmem:[%s2367 + $0x14] sm:$0xf]
      %v2374 = vld [vmem:[%s2367 + $0x18] sm:$0xf]
      %v2375 = vld [vmem:[%s2367 + $0x1c] sm:$0xf]
      %v2376 = vld [vmem:[%s2367 + $0x20] sm:$0xf]
      %v2377 = vld [vmem:[%s2367 + $0x24] sm:$0xf]
      %v2378 = vld [vmem:[%s2367 + $0x28] sm:$0xf]
      %v2379 = vld [vmem:[%s2367 + $0x2c] sm:$0xf]
      %v2380 = vld [vmem:[%s2367 + $0x30] sm:$0xf]
      %v2381 = vld [vmem:[%s2367 + $0x34] sm:$0xf]
      %v2382 = vld [vmem:[%s2367 + $0x38] sm:$0xf]
      %v2383 = vld [vmem:[%s2367 + $0x3c] sm:$0xf]
      %v2384 = vld [vmem:[%s2367 + $0x40] sm:$0xf]
      %v2385 = vld [vmem:[%s2367 + $0x44] sm:$0xf]
      %v2386 = vld [vmem:[%s2367 + $0x48] sm:$0xf]
      %v2387 = vld [vmem:[%s2367 + $0x4c] sm:$0xf]
      %v2388 = vld [vmem:[%s2367 + $0x50] sm:$0xf]
      %v2389 = vld [vmem:[%s2367 + $0x54] sm:$0xf]
      %v2390 = vld [vmem:[%s2367 + $0x58] sm:$0xf]
      %v2391 = vld [vmem:[%s2367 + $0x5c] sm:$0xf]
      %v2392 = vld [vmem:[%s2367 + $0x60] sm:$0xf]
      %v2393 = vld [vmem:[%s2367 + $0x64] sm:$0xf]
      %v2394 = vld [vmem:[%s2367 + $0x68] sm:$0xf]
      %v2395 = vld [vmem:[%s2367 + $0x6c] sm:$0xf]
      %v2396 = vld [vmem:[%s2367 + $0x70] sm:$0xf]
      %v2397 = vld [vmem:[%s2367 + $0x74] sm:$0xf]
      %v2398 = vld [vmem:[%s2367 + $0x78] sm:$0xf]
      %v2399 = vld [vmem:[%s2367 + $0x7c] sm:$0xf]
      %v2432 = vunpack.c.l.b16 %v2368
      %v2433 = vunpack.c.l.b16 %v2369
      %v2434 = vunpack.c.l.b16 %v2370
      %v2435 = vunpack.c.l.b16 %v2371
      %v2436 = vunpack.c.l.b16 %v2372
      %v2437 = vunpack.c.l.b16 %v2373
      %v2438 = vunpack.c.l.b16 %v2374
      %v2439 = vunpack.c.l.b16 %v2375
      %v2440 = vunpack.c.l.b16 %v2376
      %v2441 = vunpack.c.l.b16 %v2377
      %v2442 = vunpack.c.l.b16 %v2378
      %v2443 = vunpack.c.l.b16 %v2379
      %v2444 = vunpack.c.l.b16 %v2380
      %v2445 = vunpack.c.l.b16 %v2381
      %v2446 = vunpack.c.l.b16 %v2382
      %v2447 = vunpack.c.l.b16 %v2383
      %v2448 = vunpack.c.l.b16 %v2384
      %v2449 = vunpack.c.l.b16 %v2385
      %v2450 = vunpack.c.l.b16 %v2386
      %v2451 = vunpack.c.l.b16 %v2387
      %v2452 = vunpack.c.l.b16 %v2388
      %v2453 = vunpack.c.l.b16 %v2389
      %v2454 = vunpack.c.l.b16 %v2390
      %v2455 = vunpack.c.l.b16 %v2391
      %v2456 = vunpack.c.l.b16 %v2392
      %v2457 = vunpack.c.l.b16 %v2393
      %v2458 = vunpack.c.l.b16 %v2394
      %v2459 = vunpack.c.l.b16 %v2395
      %v2460 = vunpack.c.l.b16 %v2396
      %v2461 = vunpack.c.l.b16 %v2397
      %v2462 = vunpack.c.l.b16 %v2398
      %v2463 = vunpack.c.l.b16 %v2399
      %v2464 = vpack.c.b16 %v2433, %v2432
      %v2465 = vpack.c.b16 %v2435, %v2434
      %v2466 = vpack.c.b16 %v2437, %v2436
      %v2467 = vpack.c.b16 %v2439, %v2438
      %v2468 = vpack.c.b16 %v2441, %v2440
      %v2469 = vpack.c.b16 %v2443, %v2442
      %v2470 = vpack.c.b16 %v2445, %v2444
      %v2471 = vpack.c.b16 %v2447, %v2446
      %v2472 = vpack.c.b16 %v2449, %v2448
      %v2473 = vpack.c.b16 %v2451, %v2450
      %v2474 = vpack.c.b16 %v2453, %v2452
      %v2475 = vpack.c.b16 %v2455, %v2454
      %v2476 = vpack.c.b16 %v2457, %v2456
      %v2477 = vpack.c.b16 %v2459, %v2458
      %v2478 = vpack.c.b16 %v2461, %v2460
      %v2479 = vpack.c.b16 %v2463, %v2462
      %2496 = vmatprep.subr.bf16.mxu0 0
      %2497 = vmatpush1.bf16.msra.mxu0 %v2471
      %2498 = vmatprep.subr.bf16.mxu0 0
      %2499 = vmatpush1.bf16.msra.mxu0 %v2470
      %2500 = vmatprep.subr.bf16.mxu0 0
      %2501 = vmatpush1.bf16.msra.mxu0 %v2469
      %2502 = vmatprep.subr.bf16.mxu0 0
      %2503 = vmatpush1.bf16.msra.mxu0 %v2468
      %2504 = vmatprep.subr.bf16.mxu0 0
      %2505 = vmatpush1.bf16.msra.mxu0 %v2467
      %2506 = vmatprep.subr.bf16.mxu0 0
      %2507 = vmatpush1.bf16.msra.mxu0 %v2466
      %2508 = vmatprep.subr.bf16.mxu0 0
      %2509 = vmatpush1.bf16.msra.mxu0 %v2465
      %2510 = vmatprep.subr.bf16.mxu0 0
      %2511 = vmatpush1.bf16.msra.mxu0 %v2464
      %2512 = vmatprep.subr.bf16.mxu0 0
      %2513 = vmatpush2.bf16.msra.mxu0 %v2479
      %2514 = vmatprep.subr.bf16.mxu0 0
      %2515 = vmatpush2.bf16.msra.mxu0 %v2478
      %2516 = vmatprep.subr.bf16.mxu0 0
      %2517 = vmatpush2.bf16.msra.mxu0 %v2477
      %2518 = vmatprep.subr.bf16.mxu0 0
      %2519 = vmatpush2.bf16.msra.mxu0 %v2476
      %2520 = vmatprep.subr.bf16.mxu0 0
      %2521 = vmatpush2.bf16.msra.mxu0 %v2475
      %2522 = vmatprep.subr.bf16.mxu0 0
      %2523 = vmatpush2.bf16.msra.mxu0 %v2474
      %2524 = vmatprep.subr.bf16.mxu0 0
      %2525 = vmatpush2.bf16.msra.mxu0 %v2473
      %2526 = vmatprep.subr.bf16.mxu0 0
      %2527 = vmatpush2.bf16.msra.mxu0 %v2472
      %2528 = vmatprep.mubr.bf16.mxu0 %v2360
      %2529 = vmatmul.mubr.bf16.gmra.mxu0 %v2359
      %v2530 = vpop.f32.mrf.mxu0
      %v2531 = vadd.f32 0.0, %v2530
      %v2532 = vpop.f32.mrf.mxu0
      %v2533 = vpop.f32.mrf.mxu0
      %v2534 = vadd.f32 0.0, %v2533
      %v2535 = vpop.f32.mrf.mxu0
      %2536 = vmatprep.mubr.bf16.mxu0 %v2362
      %2537 = vmatmul.mubr.bf16.gmra.mxu0 %v2361
      %v2538 = vpop.f32.mrf.mxu0
      %v2539 = vadd.f32 0.0, %v2538
      %v2540 = vpop.f32.mrf.mxu0
      %v2541 = vpop.f32.mrf.mxu0
      %v2542 = vadd.f32 0.0, %v2541
      %v2543 = vpop.f32.mrf.mxu0
      %2544 = vmatprep.mubr.bf16.mxu0 %v2364
      %2545 = vmatmul.mubr.bf16.gmra.mxu0 %v2363
      %v2546 = vpop.f32.mrf.mxu0
      %v2547 = vadd.f32 0.0, %v2546
      %v2548 = vpop.f32.mrf.mxu0
      %v2549 = vpop.f32.mrf.mxu0
      %v2550 = vadd.f32 0.0, %v2549
      %v2551 = vpop.f32.mrf.mxu0
      %2552 = vmatprep.mubr.bf16.mxu0 %v2366
      %2553 = vmatmul.mubr.bf16.gmra.mxu0 %v2365
      %v2554 = vpop.f32.mrf.mxu0
      %v2555 = vadd.f32 0.0, %v2554
      %v2556 = vpop.f32.mrf.mxu0
      %v2557 = vpop.f32.mrf.mxu0
      %v2558 = vadd.f32 0.0, %v2557
      %v2559 = vpop.f32.mrf.mxu0
      %2560 = vdwg.mxu0
      %v2561 = vadd.f32 %v2334, %v2531
      %v2562 = vadd.f32 %v2335, %v2534
      %v2563 = vadd.f32 %v2336, %v2539
      %v2564 = vadd.f32 %v2337, %v2542
      %v2565 = vadd.f32 %v2338, %v2547
      %v2566 = vadd.f32 %v2339, %v2550
      %v2567 = vadd.f32 %v2340, %v2555
      %v2568 = vadd.f32 %v2341, %v2558
      %v2569 = vld [vmem:[%s2342] sm:$0xfe]
      %v2570 = vld [vmem:[%s2342 + $0x8] sm:$0xfe]
      %v2571 = vld [vmem:[%s2342 + $0x10] sm:$0x1]
      %v2572 = vld [vmem:[%s2342 + $0x18] sm:$0x1]
      %v2573 = vld [vmem:[%s2342 + $0x20] sm:$0xfe]
      %v2574 = vld [vmem:[%s2342 + $0x28] sm:$0xfe]
      %v2575 = vld [vmem:[%s2342 + $0x30] sm:$0x1]
      %v2576 = vld [vmem:[%s2342 + $0x38] sm:$0x1]
      %v2577 = vld [vmem:[%s2342 + $0x40] sm:$0xfe]
      %v2578 = vld [vmem:[%s2342 + $0x48] sm:$0xfe]
      %v2579 = vld [vmem:[%s2342 + $0x50] sm:$0x1]
      %v2580 = vld [vmem:[%s2342 + $0x58] sm:$0x1]
      %v2581 = vld [vmem:[%s2342 + $0x60] sm:$0xfe]
      %v2582 = vld [vmem:[%s2342 + $0x68] sm:$0xfe]
      %v2583 = vld [vmem:[%s2342 + $0x70] sm:$0x1]
      %v2584 = vld [vmem:[%s2342 + $0x78] sm:$0x1]
      %v2585 = vld [vmem:[%s2342 + $0x80] sm:$0xfe]
      %v2586 = vld [vmem:[%s2342 + $0x88] sm:$0xfe]
      %v2587 = vld [vmem:[%s2342 + $0x90] sm:$0x1]
      %v2588 = vld [vmem:[%s2342 + $0x98] sm:$0x1]
      %v2589 = vld [vmem:[%s2342 + $0xa0] sm:$0xfe]
      %v2590 = vld [vmem:[%s2342 + $0xa8] sm:$0xfe]
      %v2591 = vld [vmem:[%s2342 + $0xb0] sm:$0x1]
      %v2592 = vld [vmem:[%s2342 + $0xb8] sm:$0x1]
      %v2593 = vld [vmem:[%s2342 + $0xc0] sm:$0xfe]
      %v2594 = vld [vmem:[%s2342 + $0xc8] sm:$0xfe]
      %v2595 = vld [vmem:[%s2342 + $0xd0] sm:$0x1]
      %v2596 = vld [vmem:[%s2342 + $0xd8] sm:$0x1]
      %v2597 = vld [vmem:[%s2342 + $0xe0] sm:$0xfe]
      %v2598 = vld [vmem:[%s2342 + $0xe8] sm:$0xfe]
      %v2599 = vld [vmem:[%s2342 + $0xf0] sm:$0x1]
      %v2600 = vld [vmem:[%s2342 + $0xf8] sm:$0x1]
      %v2633 = vrot.slane %v2569, 1
      %v2634 = vrot.slane %v2571, 1
      %v2635 = vsel %vm672, %v2633, %v2634
      %v2636 = vrot.slane %v2570, 1
      %v2637 = vrot.slane %v2572, 1
      %v2638 = vsel %vm672, %v2636, %v2637
      %v2639 = vrot.slane %v2573, 1
      %v2640 = vrot.slane %v2575, 1
      %v2641 = vsel %vm672, %v2639, %v2640
      %v2642 = vrot.slane %v2574, 1
      %v2643 = vrot.slane %v2576, 1
      %v2644 = vsel %vm672, %v2642, %v2643
      %v2645 = vrot.slane %v2577, 1
      %v2646 = vrot.slane %v2579, 1
      %v2647 = vsel %vm672, %v2645, %v2646
      %v2648 = vrot.slane %v2578, 1
      %v2649 = vrot.slane %v2580, 1
      %v2650 = vsel %vm672, %v2648, %v2649
      %v2651 = vrot.slane %v2581, 1
      %v2652 = vrot.slane %v2583, 1
      %v2653 = vsel %vm672, %v2651, %v2652
      %v2654 = vrot.slane %v2582, 1
      %v2655 = vrot.slane %v2584, 1
      %v2656 = vsel %vm672, %v2654, %v2655
      %v2657 = vrot.slane %v2585, 1
      %v2658 = vrot.slane %v2587, 1
      %v2659 = vsel %vm672, %v2657, %v2658
      %v2660 = vrot.slane %v2586, 1
      %v2661 = vrot.slane %v2588, 1
      %v2662 = vsel %vm672, %v2660, %v2661
      %v2663 = vrot.slane %v2589, 1
      %v2664 = vrot.slane %v2591, 1
      %v2665 = vsel %vm672, %v2663, %v2664
      %v2666 = vrot.slane %v2590, 1
      %v2667 = vrot.slane %v2592, 1
      %v2668 = vsel %vm672, %v2666, %v2667
      %v2669 = vrot.slane %v2593, 1
      %v2670 = vrot.slane %v2595, 1
      %v2671 = vsel %vm672, %v2669, %v2670
      %v2672 = vrot.slane %v2594, 1
      %v2673 = vrot.slane %v2596, 1
      %v2674 = vsel %vm672, %v2672, %v2673
      %v2675 = vrot.slane %v2597, 1
      %v2676 = vrot.slane %v2599, 1
      %v2677 = vsel %vm672, %v2675, %v2676
      %v2678 = vrot.slane %v2598, 1
      %v2679 = vrot.slane %v2600, 1
      %v2680 = vsel %vm672, %v2678, %v2679
      %v2697 = vpack.c.bf16 %v2641, %v2635
      %v2698 = vpack.c.bf16 %v2644, %v2638
      %v2699 = vpack.c.bf16 %v2653, %v2647
      %v2700 = vpack.c.bf16 %v2656, %v2650
      %v2701 = vpack.c.bf16 %v2665, %v2659
      %v2702 = vpack.c.bf16 %v2668, %v2662
      %v2703 = vpack.c.bf16 %v2677, %v2671
      %v2704 = vpack.c.bf16 %v2680, %v2674
      %s2705 = scalar_lea.vmem %s2, 896
      %v2706 = vld [vmem:[%s2705] sm:$0xf]
      %v2707 = vld [vmem:[%s2705 + $0x4] sm:$0xf]
      %v2708 = vld [vmem:[%s2705 + $0x8] sm:$0xf]
      %v2709 = vld [vmem:[%s2705 + $0xc] sm:$0xf]
      %v2710 = vld [vmem:[%s2705 + $0x10] sm:$0xf]
      %v2711 = vld [vmem:[%s2705 + $0x14] sm:$0xf]
      %v2712 = vld [vmem:[%s2705 + $0x18] sm:$0xf]
      %v2713 = vld [vmem:[%s2705 + $0x1c] sm:$0xf]
      %v2714 = vld [vmem:[%s2705 + $0x20] sm:$0xf]
      %v2715 = vld [vmem:[%s2705 + $0x24] sm:$0xf]
      %v2716 = vld [vmem:[%s2705 + $0x28] sm:$0xf]
      %v2717 = vld [vmem:[%s2705 + $0x2c] sm:$0xf]
      %v2718 = vld [vmem:[%s2705 + $0x30] sm:$0xf]
      %v2719 = vld [vmem:[%s2705 + $0x34] sm:$0xf]
      %v2720 = vld [vmem:[%s2705 + $0x38] sm:$0xf]
      %v2721 = vld [vmem:[%s2705 + $0x3c] sm:$0xf]
      %v2722 = vld [vmem:[%s2705 + $0x40] sm:$0xf]
      %v2723 = vld [vmem:[%s2705 + $0x44] sm:$0xf]
      %v2724 = vld [vmem:[%s2705 + $0x48] sm:$0xf]
      %v2725 = vld [vmem:[%s2705 + $0x4c] sm:$0xf]
      %v2726 = vld [vmem:[%s2705 + $0x50] sm:$0xf]
      %v2727 = vld [vmem:[%s2705 + $0x54] sm:$0xf]
      %v2728 = vld [vmem:[%s2705 + $0x58] sm:$0xf]
      %v2729 = vld [vmem:[%s2705 + $0x5c] sm:$0xf]
      %v2730 = vld [vmem:[%s2705 + $0x60] sm:$0xf]
      %v2731 = vld [vmem:[%s2705 + $0x64] sm:$0xf]
      %v2732 = vld [vmem:[%s2705 + $0x68] sm:$0xf]
      %v2733 = vld [vmem:[%s2705 + $0x6c] sm:$0xf]
      %v2734 = vld [vmem:[%s2705 + $0x70] sm:$0xf]
      %v2735 = vld [vmem:[%s2705 + $0x74] sm:$0xf]
      %v2736 = vld [vmem:[%s2705 + $0x78] sm:$0xf]
      %v2737 = vld [vmem:[%s2705 + $0x7c] sm:$0xf]
      %v2770 = vunpack.c.l.b16 %v2706
      %v2771 = vunpack.c.l.b16 %v2707
      %v2772 = vunpack.c.l.b16 %v2708
      %v2773 = vunpack.c.l.b16 %v2709
      %v2774 = vunpack.c.l.b16 %v2710
      %v2775 = vunpack.c.l.b16 %v2711
      %v2776 = vunpack.c.l.b16 %v2712
      %v2777 = vunpack.c.l.b16 %v2713
      %v2778 = vunpack.c.l.b16 %v2714
      %v2779 = vunpack.c.l.b16 %v2715
      %v2780 = vunpack.c.l.b16 %v2716
      %v2781 = vunpack.c.l.b16 %v2717
      %v2782 = vunpack.c.l.b16 %v2718
      %v2783 = vunpack.c.l.b16 %v2719
      %v2784 = vunpack.c.l.b16 %v2720
      %v2785 = vunpack.c.l.b16 %v2721
      %v2786 = vunpack.c.l.b16 %v2722
      %v2787 = vunpack.c.l.b16 %v2723
      %v2788 = vunpack.c.l.b16 %v2724
      %v2789 = vunpack.c.l.b16 %v2725
      %v2790 = vunpack.c.l.b16 %v2726
      %v2791 = vunpack.c.l.b16 %v2727
      %v2792 = vunpack.c.l.b16 %v2728
      %v2793 = vunpack.c.l.b16 %v2729
      %v2794 = vunpack.c.l.b16 %v2730
      %v2795 = vunpack.c.l.b16 %v2731
      %v2796 = vunpack.c.l.b16 %v2732
      %v2797 = vunpack.c.l.b16 %v2733
      %v2798 = vunpack.c.l.b16 %v2734
      %v2799 = vunpack.c.l.b16 %v2735
      %v2800 = vunpack.c.l.b16 %v2736
      %v2801 = vunpack.c.l.b16 %v2737
      %v2802 = vpack.c.b16 %v2771, %v2770
      %v2803 = vpack.c.b16 %v2773, %v2772
      %v2804 = vpack.c.b16 %v2775, %v2774
      %v2805 = vpack.c.b16 %v2777, %v2776
      %v2806 = vpack.c.b16 %v2779, %v2778
      %v2807 = vpack.c.b16 %v2781, %v2780
      %v2808 = vpack.c.b16 %v2783, %v2782
      %v2809 = vpack.c.b16 %v2785, %v2784
      %v2810 = vpack.c.b16 %v2787, %v2786
      %v2811 = vpack.c.b16 %v2789, %v2788
      %v2812 = vpack.c.b16 %v2791, %v2790
      %v2813 = vpack.c.b16 %v2793, %v2792
      %v2814 = vpack.c.b16 %v2795, %v2794
      %v2815 = vpack.c.b16 %v2797, %v2796
      %v2816 = vpack.c.b16 %v2799, %v2798
      %v2817 = vpack.c.b16 %v2801, %v2800
      %2834 = vmatprep.subr.bf16.mxu0 0
      %2835 = vmatpush1.bf16.msra.mxu0 %v2809
      %2836 = vmatprep.subr.bf16.mxu0 0
      %2837 = vmatpush1.bf16.msra.mxu0 %v2808
      %2838 = vmatprep.subr.bf16.mxu0 0
      %2839 = vmatpush1.bf16.msra.mxu0 %v2807
      %2840 = vmatprep.subr.bf16.mxu0 0
      %2841 = vmatpush1.bf16.msra.mxu0 %v2806
      %2842 = vmatprep.subr.bf16.mxu0 0
      %2843 = vmatpush1.bf16.msra.mxu0 %v2805
      %2844 = vmatprep.subr.bf16.mxu0 0
      %2845 = vmatpush1.bf16.msra.mxu0 %v2804
      %2846 = vmatprep.subr.bf16.mxu0 0
      %2847 = vmatpush1.bf16.msra.mxu0 %v2803
      %2848 = vmatprep.subr.bf16.mxu0 0
      %2849 = vmatpush1.bf16.msra.mxu0 %v2802
      %2850 = vmatprep.subr.bf16.mxu0 0
      %2851 = vmatpush2.bf16.msra.mxu0 %v2817
      %2852 = vmatprep.subr.bf16.mxu0 0
      %2853 = vmatpush2.bf16.msra.mxu0 %v2816
      %2854 = vmatprep.subr.bf16.mxu0 0
      %2855 = vmatpush2.bf16.msra.mxu0 %v2815
      %2856 = vmatprep.subr.bf16.mxu0 0
      %2857 = vmatpush2.bf16.msra.mxu0 %v2814
      %2858 = vmatprep.subr.bf16.mxu0 0
      %2859 = vmatpush2.bf16.msra.mxu0 %v2813
      %2860 = vmatprep.subr.bf16.mxu0 0
      %2861 = vmatpush2.bf16.msra.mxu0 %v2812
      %2862 = vmatprep.subr.bf16.mxu0 0
      %2863 = vmatpush2.bf16.msra.mxu0 %v2811
      %2864 = vmatprep.subr.bf16.mxu0 0
      %2865 = vmatpush2.bf16.msra.mxu0 %v2810
      %2866 = vmatprep.mubr.bf16.mxu0 %v2698
      %2867 = vmatmul.mubr.bf16.gmra.mxu0 %v2697
      %v2868 = vpop.f32.mrf.mxu0
      %v2869 = vadd.f32 0.0, %v2868
      %v2870 = vpop.f32.mrf.mxu0
      %v2871 = vpop.f32.mrf.mxu0
      %v2872 = vadd.f32 0.0, %v2871
      %v2873 = vpop.f32.mrf.mxu0
      %2874 = vmatprep.mubr.bf16.mxu0 %v2700
      %2875 = vmatmul.mubr.bf16.gmra.mxu0 %v2699
      %v2876 = vpop.f32.mrf.mxu0
      %v2877 = vadd.f32 0.0, %v2876
      %v2878 = vpop.f32.mrf.mxu0
      %v2879 = vpop.f32.mrf.mxu0
      %v2880 = vadd.f32 0.0, %v2879
      %v2881 = vpop.f32.mrf.mxu0
      %2882 = vmatprep.mubr.bf16.mxu0 %v2702
      %2883 = vmatmul.mubr.bf16.gmra.mxu0 %v2701
      %v2884 = vpop.f32.mrf.mxu0
      %v2885 = vadd.f32 0.0, %v2884
      %v2886 = vpop.f32.mrf.mxu0
      %v2887 = vpop.f32.mrf.mxu0
      %v2888 = vadd.f32 0.0, %v2887
      %v2889 = vpop.f32.mrf.mxu0
      %2890 = vmatprep.mubr.bf16.mxu0 %v2704
      %2891 = vmatmul.mubr.bf16.gmra.mxu0 %v2703
      %v2892 = vpop.f32.mrf.mxu0
      %v2893 = vadd.f32 0.0, %v2892
      %v2894 = vpop.f32.mrf.mxu0
      %v2895 = vpop.f32.mrf.mxu0
      %v2896 = vadd.f32 0.0, %v2895
      %v2897 = vpop.f32.mrf.mxu0
      %2898 = vdwg.mxu0
      %v2899 = vadd.f32 %v2561, %v2869
      %v2900 = vadd.f32 %v2562, %v2872
      %v2901 = vadd.f32 %v2563, %v2877
      %v2902 = vadd.f32 %v2564, %v2880
      %v2903 = vadd.f32 %v2565, %v2885
      %v2904 = vadd.f32 %v2566, %v2888
      %v2905 = vadd.f32 %v2567, %v2893
      %v2906 = vadd.f32 %v2568, %v2896
      %v2907 = vld [vmem:[%s2342] sm:$0xfc]
      %v2908 = vld [vmem:[%s2342 + $0x8] sm:$0xfc]
      %v2909 = vld [vmem:[%s2342 + $0x10] sm:$0x3]
      %v2910 = vld [vmem:[%s2342 + $0x18] sm:$0x3]
      %v2911 = vld [vmem:[%s2342 + $0x20] sm:$0xfc]
      %v2912 = vld [vmem:[%s2342 + $0x28] sm:$0xfc]
      %v2913 = vld [vmem:[%s2342 + $0x30] sm:$0x3]
      %v2914 = vld [vmem:[%s2342 + $0x38] sm:$0x3]
      %v2915 = vld [vmem:[%s2342 + $0x40] sm:$0xfc]
      %v2916 = vld [vmem:[%s2342 + $0x48] sm:$0xfc]
      %v2917 = vld [vmem:[%s2342 + $0x50] sm:$0x3]
      %v2918 = vld [vmem:[%s2342 + $0x58] sm:$0x3]
      %v2919 = vld [vmem:[%s2342 + $0x60] sm:$0xfc]
      %v2920 = vld [vmem:[%s2342 + $0x68] sm:$0xfc]
      %v2921 = vld [vmem:[%s2342 + $0x70] sm:$0x3]
      %v2922 = vld [vmem:[%s2342 + $0x78] sm:$0x3]
      %v2923 = vld [vmem:[%s2342 + $0x80] sm:$0xfc]
      %v2924 = vld [vmem:[%s2342 + $0x88] sm:$0xfc]
      %v2925 = vld [vmem:[%s2342 + $0x90] sm:$0x3]
      %v2926 = vld [vmem:[%s2342 + $0x98] sm:$0x3]
      %v2927 = vld [vmem:[%s2342 + $0xa0] sm:$0xfc]
      %v2928 = vld [vmem:[%s2342 + $0xa8] sm:$0xfc]
      %v2929 = vld [vmem:[%s2342 + $0xb0] sm:$0x3]
      %v2930 = vld [vmem:[%s2342 + $0xb8] sm:$0x3]
      %v2931 = vld [vmem:[%s2342 + $0xc0] sm:$0xfc]
      %v2932 = vld [vmem:[%s2342 + $0xc8] sm:$0xfc]
      %v2933 = vld [vmem:[%s2342 + $0xd0] sm:$0x3]
      %v2934 = vld [vmem:[%s2342 + $0xd8] sm:$0x3]
      %v2935 = vld [vmem:[%s2342 + $0xe0] sm:$0xfc]
      %v2936 = vld [vmem:[%s2342 + $0xe8] sm:$0xfc]
      %v2937 = vld [vmem:[%s2342 + $0xf0] sm:$0x3]
      %v2938 = vld [vmem:[%s2342 + $0xf8] sm:$0x3]
      %v2971 = vrot.slane %v2907, 2
      %v2972 = vrot.slane %v2909, 2
      %v2973 = vsel %vm1164, %v2971, %v2972
      %v2974 = vrot.slane %v2908, 2
      %v2975 = vrot.slane %v2910, 2
      %v2976 = vsel %vm1164, %v2974, %v2975
      %v2977 = vrot.slane %v2911, 2
      %v2978 = vrot.slane %v2913, 2
      %v2979 = vsel %vm1164, %v2977, %v2978
      %v2980 = vrot.slane %v2912, 2
      %v2981 = vrot.slane %v2914, 2
      %v2982 = vsel %vm1164, %v2980, %v2981
      %v2983 = vrot.slane %v2915, 2
      %v2984 = vrot.slane %v2917, 2
      %v2985 = vsel %vm1164, %v2983, %v2984
      %v2986 = vrot.slane %v2916, 2
      %v2987 = vrot.slane %v2918, 2
      %v2988 = vsel %vm1164, %v2986, %v2987
      %v2989 = vrot.slane %v2919, 2
      %v2990 = vrot.slane %v2921, 2
      %v2991 = vsel %vm1164, %v2989, %v2990
      %v2992 = vrot.slane %v2920, 2
      %v2993 = vrot.slane %v2922, 2
      %v2994 = vsel %vm1164, %v2992, %v2993
      %v2995 = vrot.slane %v2923, 2
      %v2996 = vrot.slane %v2925, 2
      %v2997 = vsel %vm1164, %v2995, %v2996
      %v2998 = vrot.slane %v2924, 2
      %v2999 = vrot.slane %v2926, 2
      %v3000 = vsel %vm1164, %v2998, %v2999
      %v3001 = vrot.slane %v2927, 2
      %v3002 = vrot.slane %v2929, 2
      %v3003 = vsel %vm1164, %v3001, %v3002
      %v3004 = vrot.slane %v2928, 2
      %v3005 = vrot.slane %v2930, 2
      %v3006 = vsel %vm1164, %v3004, %v3005
      %v3007 = vrot.slane %v2931, 2
      %v3008 = vrot.slane %v2933, 2
      %v3009 = vsel %vm1164, %v3007, %v3008
      %v3010 = vrot.slane %v2932, 2
      %v3011 = vrot.slane %v2934, 2
      %v3012 = vsel %vm1164, %v3010, %v3011
      %v3013 = vrot.slane %v2935, 2
      %v3014 = vrot.slane %v2937, 2
      %v3015 = vsel %vm1164, %v3013, %v3014
      %v3016 = vrot.slane %v2936, 2
      %v3017 = vrot.slane %v2938, 2
      %v3018 = vsel %vm1164, %v3016, %v3017
      %v3035 = vpack.c.bf16 %v2979, %v2973
      %v3036 = vpack.c.bf16 %v2982, %v2976
      %v3037 = vpack.c.bf16 %v2991, %v2985
      %v3038 = vpack.c.bf16 %v2994, %v2988
      %v3039 = vpack.c.bf16 %v3003, %v2997
      %v3040 = vpack.c.bf16 %v3006, %v3000
      %v3041 = vpack.c.bf16 %v3015, %v3009
      %v3042 = vpack.c.bf16 %v3018, %v3012
      %s3043 = scalar_lea.vmem %s2, 1024
      %v3044 = vld [vmem:[%s3043] sm:$0xf]
      %v3045 = vld [vmem:[%s3043 + $0x4] sm:$0xf]
      %v3046 = vld [vmem:[%s3043 + $0x8] sm:$0xf]
      %v3047 = vld [vmem:[%s3043 + $0xc] sm:$0xf]
      %v3048 = vld [vmem:[%s3043 + $0x10] sm:$0xf]
      %v3049 = vld [vmem:[%s3043 + $0x14] sm:$0xf]
      %v3050 = vld [vmem:[%s3043 + $0x18] sm:$0xf]
      %v3051 = vld [vmem:[%s3043 + $0x1c] sm:$0xf]
      %v3052 = vld [vmem:[%s3043 + $0x20] sm:$0xf]
      %v3053 = vld [vmem:[%s3043 + $0x24] sm:$0xf]
      %v3054 = vld [vmem:[%s3043 + $0x28] sm:$0xf]
      %v3055 = vld [vmem:[%s3043 + $0x2c] sm:$0xf]
      %v3056 = vld [vmem:[%s3043 + $0x30] sm:$0xf]
      %v3057 = vld [vmem:[%s3043 + $0x34] sm:$0xf]
      %v3058 = vld [vmem:[%s3043 + $0x38] sm:$0xf]
      %v3059 = vld [vmem:[%s3043 + $0x3c] sm:$0xf]
      %v3060 = vld [vmem:[%s3043 + $0x40] sm:$0xf]
      %v3061 = vld [vmem:[%s3043 + $0x44] sm:$0xf]
      %v3062 = vld [vmem:[%s3043 + $0x48] sm:$0xf]
      %v3063 = vld [vmem:[%s3043 + $0x4c] sm:$0xf]
      %v3064 = vld [vmem:[%s3043 + $0x50] sm:$0xf]
      %v3065 = vld [vmem:[%s3043 + $0x54] sm:$0xf]
      %v3066 = vld [vmem:[%s3043 + $0x58] sm:$0xf]
      %v3067 = vld [vmem:[%s3043 + $0x5c] sm:$0xf]
      %v3068 = vld [vmem:[%s3043 + $0x60] sm:$0xf]
      %v3069 = vld [vmem:[%s3043 + $0x64] sm:$0xf]
      %v3070 = vld [vmem:[%s3043 + $0x68] sm:$0xf]
      %v3071 = vld [vmem:[%s3043 + $0x6c] sm:$0xf]
      %v3072 = vld [vmem:[%s3043 + $0x70] sm:$0xf]
      %v3073 = vld [vmem:[%s3043 + $0x74] sm:$0xf]
      %v3074 = vld [vmem:[%s3043 + $0x78] sm:$0xf]
      %v3075 = vld [vmem:[%s3043 + $0x7c] sm:$0xf]
      %v3108 = vunpack.c.l.b16 %v3044
      %v3109 = vunpack.c.l.b16 %v3045
      %v3110 = vunpack.c.l.b16 %v3046
      %v3111 = vunpack.c.l.b16 %v3047
      %v3112 = vunpack.c.l.b16 %v3048
      %v3113 = vunpack.c.l.b16 %v3049
      %v3114 = vunpack.c.l.b16 %v3050
      %v3115 = vunpack.c.l.b16 %v3051
      %v3116 = vunpack.c.l.b16 %v3052
      %v3117 = vunpack.c.l.b16 %v3053
      %v3118 = vunpack.c.l.b16 %v3054
      %v3119 = vunpack.c.l.b16 %v3055
      %v3120 = vunpack.c.l.b16 %v3056
      %v3121 = vunpack.c.l.b16 %v3057
      %v3122 = vunpack.c.l.b16 %v3058
      %v3123 = vunpack.c.l.b16 %v3059
      %v3124 = vunpack.c.l.b16 %v3060
      %v3125 = vunpack.c.l.b16 %v3061
      %v3126 = vunpack.c.l.b16 %v3062
      %v3127 = vunpack.c.l.b16 %v3063
      %v3128 = vunpack.c.l.b16 %v3064
      %v3129 = vunpack.c.l.b16 %v3065
      %v3130 = vunpack.c.l.b16 %v3066
      %v3131 = vunpack.c.l.b16 %v3067
      %v3132 = vunpack.c.l.b16 %v3068
      %v3133 = vunpack.c.l.b16 %v3069
      %v3134 = vunpack.c.l.b16 %v3070
      %v3135 = vunpack.c.l.b16 %v3071
      %v3136 = vunpack.c.l.b16 %v3072
      %v3137 = vunpack.c.l.b16 %v3073
      %v3138 = vunpack.c.l.b16 %v3074
      %v3139 = vunpack.c.l.b16 %v3075
      %v3140 = vpack.c.b16 %v3109, %v3108
      %v3141 = vpack.c.b16 %v3111, %v3110
      %v3142 = vpack.c.b16 %v3113, %v3112
      %v3143 = vpack.c.b16 %v3115, %v3114
      %v3144 = vpack.c.b16 %v3117, %v3116
      %v3145 = vpack.c.b16 %v3119, %v3118
      %v3146 = vpack.c.b16 %v3121, %v3120
      %v3147 = vpack.c.b16 %v3123, %v3122
      %v3148 = vpack.c.b16 %v3125, %v3124
      %v3149 = vpack.c.b16 %v3127, %v3126
      %v3150 = vpack.c.b16 %v3129, %v3128
      %v3151 = vpack.c.b16 %v3131, %v3130
      %v3152 = vpack.c.b16 %v3133, %v3132
      %v3153 = vpack.c.b16 %v3135, %v3134
      %v3154 = vpack.c.b16 %v3137, %v3136
      %v3155 = vpack.c.b16 %v3139, %v3138
      %3172 = vmatprep.subr.bf16.mxu0 0
      %3173 = vmatpush1.bf16.msra.mxu0 %v3147
      %3174 = vmatprep.subr.bf16.mxu0 0
      %3175 = vmatpush1.bf16.msra.mxu0 %v3146
      %3176 = vmatprep.subr.bf16.mxu0 0
      %3177 = vmatpush1.bf16.msra.mxu0 %v3145
      %3178 = vmatprep.subr.bf16.mxu0 0
      %3179 = vmatpush1.bf16.msra.mxu0 %v3144
      %3180 = vmatprep.subr.bf16.mxu0 0
      %3181 = vmatpush1.bf16.msra.mxu0 %v3143
      %3182 = vmatprep.subr.bf16.mxu0 0
      %3183 = vmatpush1.bf16.msra.mxu0 %v3142
      %3184 = vmatprep.subr.bf16.mxu0 0
      %3185 = vmatpush1.bf16.msra.mxu0 %v3141
      %3186 = vmatprep.subr.bf16.mxu0 0
      %3187 = vmatpush1.bf16.msra.mxu0 %v3140
      %3188 = vmatprep.subr.bf16.mxu0 0
      %3189 = vmatpush2.bf16.msra.mxu0 %v3155
      %3190 = vmatprep.subr.bf16.mxu0 0
      %3191 = vmatpush2.bf16.msra.mxu0 %v3154
      %3192 = vmatprep.subr.bf16.mxu0 0
      %3193 = vmatpush2.bf16.msra.mxu0 %v3153
      %3194 = vmatprep.subr.bf16.mxu0 0
      %3195 = vmatpush2.bf16.msra.mxu0 %v3152
      %3196 = vmatprep.subr.bf16.mxu0 0
      %3197 = vmatpush2.bf16.msra.mxu0 %v3151
      %3198 = vmatprep.subr.bf16.mxu0 0
      %3199 = vmatpush2.bf16.msra.mxu0 %v3150
      %3200 = vmatprep.subr.bf16.mxu0 0
      %3201 = vmatpush2.bf16.msra.mxu0 %v3149
      %3202 = vmatprep.subr.bf16.mxu0 0
      %3203 = vmatpush2.bf16.msra.mxu0 %v3148
      %3204 = vmatprep.mubr.bf16.mxu0 %v3036
      %3205 = vmatmul.mubr.bf16.gmra.mxu0 %v3035
      %v3206 = vpop.f32.mrf.mxu0
      %v3207 = vadd.f32 0.0, %v3206
      %v3208 = vpop.f32.mrf.mxu0
      %v3209 = vpop.f32.mrf.mxu0
      %v3210 = vadd.f32 0.0, %v3209
      %v3211 = vpop.f32.mrf.mxu0
      %3212 = vmatprep.mubr.bf16.mxu0 %v3038
      %3213 = vmatmul.mubr.bf16.gmra.mxu0 %v3037
      %v3214 = vpop.f32.mrf.mxu0
      %v3215 = vadd.f32 0.0, %v3214
      %v3216 = vpop.f32.mrf.mxu0
      %v3217 = vpop.f32.mrf.mxu0
      %v3218 = vadd.f32 0.0, %v3217
      %v3219 = vpop.f32.mrf.mxu0
      %3220 = vmatprep.mubr.bf16.mxu0 %v3040
      %3221 = vmatmul.mubr.bf16.gmra.mxu0 %v3039
      %v3222 = vpop.f32.mrf.mxu0
      %v3223 = vadd.f32 0.0, %v3222
      %v3224 = vpop.f32.mrf.mxu0
      %v3225 = vpop.f32.mrf.mxu0
      %v3226 = vadd.f32 0.0, %v3225
      %v3227 = vpop.f32.mrf.mxu0
      %3228 = vmatprep.mubr.bf16.mxu0 %v3042
      %3229 = vmatmul.mubr.bf16.gmra.mxu0 %v3041
      %v3230 = vpop.f32.mrf.mxu0
      %v3231 = vadd.f32 0.0, %v3230
      %v3232 = vpop.f32.mrf.mxu0
      %v3233 = vpop.f32.mrf.mxu0
      %v3234 = vadd.f32 0.0, %v3233
      %v3235 = vpop.f32.mrf.mxu0
      %3236 = vdwg.mxu0
      %v3237 = vadd.f32 %v2899, %v3207
      %v3238 = vadd.f32 %v2900, %v3210
      %v3239 = vadd.f32 %v2901, %v3215
      %v3240 = vadd.f32 %v2902, %v3218
      %v3241 = vadd.f32 %v2903, %v3223
      %v3242 = vadd.f32 %v2904, %v3226
      %v3243 = vadd.f32 %v2905, %v3231
      %v3244 = vadd.f32 %v2906, %v3234
      %v3245 = vld [vmem:[%s3] sm:$0x1]
      %v3247 = vlaneseq
      %v3248 = vshrl.u32 %v3247, 7
      %v3249 = vsub.s32 0, %v3248
      %v3250 = vrot.slane %v3245, %v3249
      %v3252 = vmul.f32 %v3237, %v3250
      %v3253 = vmul.f32 %v3238, %v3250
      %v3254 = vmul.f32 %v3239, %v3250
      %v3255 = vmul.f32 %v3240, %v3250
      %v3256 = vmul.f32 %v3241, %v3250
      %v3257 = vmul.f32 %v3242, %v3250
      %v3258 = vmul.f32 %v3243, %v3250
      %v3259 = vmul.f32 %v3244, %v3250
      %v3260 = vld [vmem:[%s4] sm:$0x1]
      %v3262 = vlaneseq
      %v3263 = vshrl.u32 %v3262, 7
      %v3264 = vsub.s32 0, %v3263
      %v3265 = vrot.slane %v3260, %v3264
      %v3267 = vadd.f32 %v3252, %v3265
      %v3268 = vadd.f32 %v3253, %v3265
      %v3269 = vadd.f32 %v3254, %v3265
      %v3270 = vadd.f32 %v3255, %v3265
      %v3271 = vadd.f32 %v3256, %v3265
      %v3272 = vadd.f32 %v3257, %v3265
      %v3273 = vadd.f32 %v3258, %v3265
      %v3274 = vadd.f32 %v3259, %v3265
      %v3275 = vpack.c.bf16 %v3268, %v3267
      %v3276 = vpack.c.bf16 %v3270, %v3269
      %v3277 = vpack.c.bf16 %v3272, %v3271
      %v3278 = vpack.c.bf16 %v3274, %v3273
      %v3279 = vld [vmem:[%s5] sm:$0xf]
      %v3280 = vld [vmem:[%s5 + $0x4] sm:$0xf]
      %v3281 = vld [vmem:[%s5 + $0x8] sm:$0xf]
      %v3282 = vld [vmem:[%s5 + $0xc] sm:$0xf]
      %v3283 = vld [vmem:[%s5 + $0x10] sm:$0xf]
      %v3284 = vld [vmem:[%s5 + $0x14] sm:$0xf]
      %v3285 = vld [vmem:[%s5 + $0x18] sm:$0xf]
      %v3286 = vld [vmem:[%s5 + $0x1c] sm:$0xf]
      %v3287 = vld [vmem:[%s6] sm:$0x1]
      %v3289 = vlaneseq
      %v3290 = vshrl.u32 %v3289, 7
      %v3291 = vsub.s32 0, %v3290
      %v3292 = vrot.slane %v3287, %v3291
      %v3302 = vunpack.c.l.b16 %v3279
      %v3303 = vunpack.c.l.b16 %v3280
      %v3304 = vunpack.c.l.b16 %v3281
      %v3305 = vunpack.c.l.b16 %v3282
      %v3306 = vunpack.c.l.b16 %v3283
      %v3307 = vunpack.c.l.b16 %v3284
      %v3308 = vunpack.c.l.b16 %v3285
      %v3309 = vunpack.c.l.b16 %v3286
      %v3310 = vpack.c.b16 %v3303, %v3302
      %v3311 = vpack.c.b16 %v3305, %v3304
      %v3312 = vpack.c.b16 %v3307, %v3306
      %v3313 = vpack.c.b16 %v3309, %v3308
      %vm3318 = vcmask 523264
      %v3320 = vsel %vm3318, %v3275, 0
      %v3323 = vsel %vm3318, %v3276, 0
      %v3326 = vsel %vm3318, %v3277, 0
      %v3329 = vsel %vm3318, %v3278, 0
      %3331 = vmatprep.subr.bf16.mxu0 0
      %3332 = vmatpush1.bf16.msra.mxu0 0
      %3333 = vmatprep.subr.bf16.mxu0 0
      %3334 = vmatpush1.bf16.msra.mxu0 0
      %3335 = vmatprep.subr.bf16.mxu0 0
      %3336 = vmatpush1.bf16.msra.mxu0 0
      %3337 = vmatprep.subr.bf16.mxu0 0
      %3338 = vmatpush1.bf16.msra.mxu0 0
      %3339 = vmatprep.subr.bf16.mxu0 0
      %3340 = vmatpush1.bf16.msra.mxu0 %v3313
      %3341 = vmatprep.subr.bf16.mxu0 0
      %3342 = vmatpush1.bf16.msra.mxu0 %v3312
      %3343 = vmatprep.subr.bf16.mxu0 0
      %3344 = vmatpush1.bf16.msra.mxu0 %v3311
      %3345 = vmatprep.subr.bf16.mxu0 0
      %3346 = vmatpush1.bf16.msra.mxu0 %v3310
      %3347 = vmatprep.subr.bf16.mxu0 0
      %3348 = vmatpush2.bf16.msra.mxu0 0
      %3349 = vmatprep.subr.bf16.mxu0 0
      %3350 = vmatpush2.bf16.msra.mxu0 0
      %3351 = vmatprep.subr.bf16.mxu0 0
      %3352 = vmatpush2.bf16.msra.mxu0 0
      %3353 = vmatprep.subr.bf16.mxu0 0
      %3354 = vmatpush2.bf16.msra.mxu0 0
      %3355 = vmatprep.subr.bf16.mxu0 0
      %3356 = vmatpush2.bf16.msra.mxu0 0
      %3357 = vmatprep.subr.bf16.mxu0 0
      %3358 = vmatpush2.bf16.msra.mxu0 0
      %3359 = vmatprep.subr.bf16.mxu0 0
      %3360 = vmatpush2.bf16.msra.mxu0 0
      %3361 = vmatprep.subr.bf16.mxu0 0
      %3362 = vmatpush2.bf16.msra.mxu0 0
      %3363 = vmatprep.mubr.bf16.mxu0 0
      %3364 = vmatmul.mubr.bf16.gmra.mxu0 %v3320
      %v3365 = vpop.f32.mrf.mxu0
      %v3366 = vadd.f32 %v3292, %v3365
      %v3367 = vpop.f32.mrf.mxu0
      %v3368 = vpop.f32.mrf.mxu0
      %v3369 = vadd.f32 %v3292, %v3368
      %v3370 = vpop.f32.mrf.mxu0
      %3371 = vmatprep.mubr.bf16.mxu0 0
      %3372 = vmatmul.mubr.bf16.gmra.mxu0 %v3323
      %v3373 = vpop.f32.mrf.mxu0
      %v3374 = vadd.f32 %v3292, %v3373
      %v3375 = vpop.f32.mrf.mxu0
      %v3376 = vpop.f32.mrf.mxu0
      %v3377 = vadd.f32 %v3292, %v3376
      %v3378 = vpop.f32.mrf.mxu0
      %3379 = vmatprep.mubr.bf16.mxu0 0
      %3380 = vmatmul.mubr.bf16.gmra.mxu0 %v3326
      %v3381 = vpop.f32.mrf.mxu0
      %v3382 = vadd.f32 %v3292, %v3381
      %v3383 = vpop.f32.mrf.mxu0
      %v3384 = vpop.f32.mrf.mxu0
      %v3385 = vadd.f32 %v3292, %v3384
      %v3386 = vpop.f32.mrf.mxu0
      %3387 = vmatprep.mubr.bf16.mxu0 0
      %3388 = vmatmul.mubr.bf16.gmra.mxu0 %v3329
      %v3389 = vpop.f32.mrf.mxu0
      %v3390 = vadd.f32 %v3292, %v3389
      %v3391 = vpop.f32.mrf.mxu0
      %v3392 = vpop.f32.mrf.mxu0
      %v3393 = vadd.f32 %v3292, %v3392
      %v3394 = vpop.f32.mrf.mxu0
      %3395 = vdwg.mxu0
      %v3396 = vld [vmem:[%s7] sm:$0xf]
      %v3397 = vld [vmem:[%s7 + $0x4] sm:$0xf]
      %v3398 = vld [vmem:[%s7 + $0x8] sm:$0xf]
      %v3399 = vld [vmem:[%s7 + $0xc] sm:$0xf]
      %v3400 = vld [vmem:[%s7 + $0x10] sm:$0xf]
      %v3401 = vld [vmem:[%s7 + $0x14] sm:$0xf]
      %v3402 = vld [vmem:[%s7 + $0x18] sm:$0xf]
      %v3403 = vld [vmem:[%s7 + $0x1c] sm:$0xf]
      %v3404 = vld [vmem:[%s8] sm:$0x1]
      %v3406 = vlaneseq
      %v3407 = vshrl.u32 %v3406, 7
      %v3408 = vsub.s32 0, %v3407
      %v3409 = vrot.slane %v3404, %v3408
      %v3419 = vunpack.c.l.b16 %v3396
      %v3420 = vunpack.c.l.b16 %v3397
      %v3421 = vunpack.c.l.b16 %v3398
      %v3422 = vunpack.c.l.b16 %v3399
      %v3423 = vunpack.c.l.b16 %v3400
      %v3424 = vunpack.c.l.b16 %v3401
      %v3425 = vunpack.c.l.b16 %v3402
      %v3426 = vunpack.c.l.b16 %v3403
      %v3427 = vpack.c.b16 %v3420, %v3419
      %v3428 = vpack.c.b16 %v3422, %v3421
      %v3429 = vpack.c.b16 %v3424, %v3423
      %v3430 = vpack.c.b16 %v3426, %v3425
      %3435 = vmatprep.subr.bf16.mxu0 0
      %3436 = vmatpush1.bf16.msra.mxu0 0
      %3437 = vmatprep.subr.bf16.mxu0 0
      %3438 = vmatpush1.bf16.msra.mxu0 0
      %3439 = vmatprep.subr.bf16.mxu0 0
      %3440 = vmatpush1.bf16.msra.mxu0 0
      %3441 = vmatprep.subr.bf16.mxu0 0
      %3442 = vmatpush1.bf16.msra.mxu0 0
      %3443 = vmatprep.subr.bf16.mxu0 0
      %3444 = vmatpush1.bf16.msra.mxu0 %v3430
      %3445 = vmatprep.subr.bf16.mxu0 0
      %3446 = vmatpush1.bf16.msra.mxu0 %v3429
      %3447 = vmatprep.subr.bf16.mxu0 0
      %3448 = vmatpush1.bf16.msra.mxu0 %v3428
      %3449 = vmatprep.subr.bf16.mxu0 0
      %3450 = vmatpush1.bf16.msra.mxu0 %v3427
      %3451 = vmatprep.subr.bf16.mxu0 0
      %3452 = vmatpush2.bf16.msra.mxu0 0
      %3453 = vmatprep.subr.bf16.mxu0 0
      %3454 = vmatpush2.bf16.msra.mxu0 0
      %3455 = vmatprep.subr.bf16.mxu0 0
      %3456 = vmatpush2.bf16.msra.mxu0 0
      %3457 = vmatprep.subr.bf16.mxu0 0
      %3458 = vmatpush2.bf16.msra.mxu0 0
      %3459 = vmatprep.subr.bf16.mxu0 0
      %3460 = vmatpush2.bf16.msra.mxu0 0
      %3461 = vmatprep.subr.bf16.mxu0 0
      %3462 = vmatpush2.bf16.msra.mxu0 0
      %3463 = vmatprep.subr.bf16.mxu0 0
      %3464 = vmatpush2.bf16.msra.mxu0 0
      %3465 = vmatprep.subr.bf16.mxu0 0
      %3466 = vmatpush2.bf16.msra.mxu0 0
      %3467 = vmatprep.mubr.bf16.mxu0 0
      %3468 = vmatmul.mubr.bf16.gmra.mxu0 %v3320
      %v3469 = vpop.f32.mrf.mxu0
      %v3470 = vadd.f32 %v3409, %v3469
      %v3471 = vpop.f32.mrf.mxu0
      %v3472 = vpop.f32.mrf.mxu0
      %v3473 = vadd.f32 %v3409, %v3472
      %v3474 = vpop.f32.mrf.mxu0
      %3475 = vmatprep.mubr.bf16.mxu0 0
      %3476 = vmatmul.mubr.bf16.gmra.mxu0 %v3323
      %v3477 = vpop.f32.mrf.mxu0
      %v3478 = vadd.f32 %v3409, %v3477
      %v3479 = vpop.f32.mrf.mxu0
      %v3480 = vpop.f32.mrf.mxu0
      %v3481 = vadd.f32 %v3409, %v3480
      %v3482 = vpop.f32.mrf.mxu0
      %3483 = vmatprep.mubr.bf16.mxu0 0
      %3484 = vmatmul.mubr.bf16.gmra.mxu0 %v3326
      %v3485 = vpop.f32.mrf.mxu0
      %v3486 = vadd.f32 %v3409, %v3485
      %v3487 = vpop.f32.mrf.mxu0
      %v3488 = vpop.f32.mrf.mxu0
      %v3489 = vadd.f32 %v3409, %v3488
      %v3490 = vpop.f32.mrf.mxu0
      %3491 = vmatprep.mubr.bf16.mxu0 0
      %3492 = vmatmul.mubr.bf16.gmra.mxu0 %v3329
      %v3493 = vpop.f32.mrf.mxu0
      %v3494 = vadd.f32 %v3409, %v3493
      %v3495 = vpop.f32.mrf.mxu0
      %v3496 = vpop.f32.mrf.mxu0
      %v3497 = vadd.f32 %v3409, %v3496
      %v3498 = vpop.f32.mrf.mxu0
      %3499 = vdwg.mxu0
      %v3500 = vld [vmem:[%s9] sm:$0xf]
      %v3501 = vld [vmem:[%s9 + $0x4] sm:$0xf]
      %v3502 = vld [vmem:[%s9 + $0x8] sm:$0xf]
      %v3503 = vld [vmem:[%s9 + $0xc] sm:$0xf]
      %v3504 = vld [vmem:[%s9 + $0x10] sm:$0xf]
      %v3505 = vld [vmem:[%s9 + $0x14] sm:$0xf]
      %v3506 = vld [vmem:[%s9 + $0x18] sm:$0xf]
      %v3507 = vld [vmem:[%s9 + $0x1c] sm:$0xf]
      %v3508 = vld [vmem:[%s10] sm:$0x1]
      %v3510 = vlaneseq
      %v3511 = vshrl.u32 %v3510, 7
      %v3512 = vsub.s32 0, %v3511
      %v3513 = vrot.slane %v3508, %v3512
      %v3523 = vunpack.c.l.b16 %v3500
      %v3524 = vunpack.c.l.b16 %v3501
      %v3525 = vunpack.c.l.b16 %v3502
      %v3526 = vunpack.c.l.b16 %v3503
      %v3527 = vunpack.c.l.b16 %v3504
      %v3528 = vunpack.c.l.b16 %v3505
      %v3529 = vunpack.c.l.b16 %v3506
      %v3530 = vunpack.c.l.b16 %v3507
      %v3531 = vpack.c.b16 %v3524, %v3523
      %v3532 = vpack.c.b16 %v3526, %v3525
      %v3533 = vpack.c.b16 %v3528, %v3527
      %v3534 = vpack.c.b16 %v3530, %v3529
      %3539 = vmatprep.subr.bf16.mxu0 0
      %3540 = vmatpush1.bf16.msra.mxu0 0
      %3541 = vmatprep.subr.bf16.mxu0 0
      %3542 = vmatpush1.bf16.msra.mxu0 0
      %3543 = vmatprep.subr.bf16.mxu0 0
      %3544 = vmatpush1.bf16.msra.mxu0 0
      %3545 = vmatprep.subr.bf16.mxu0 0
      %3546 = vmatpush1.bf16.msra.mxu0 0
      %3547 = vmatprep.subr.bf16.mxu0 0
      %3548 = vmatpush1.bf16.msra.mxu0 %v3534
      %3549 = vmatprep.subr.bf16.mxu0 0
      %3550 = vmatpush1.bf16.msra.mxu0 %v3533
      %3551 = vmatprep.subr.bf16.mxu0 0
      %3552 = vmatpush1.bf16.msra.mxu0 %v3532
      %3553 = vmatprep.subr.bf16.mxu0 0
      %3554 = vmatpush1.bf16.msra.mxu0 %v3531
      %3555 = vmatprep.subr.bf16.mxu0 0
      %3556 = vmatpush2.bf16.msra.mxu0 0
      %3557 = vmatprep.subr.bf16.mxu0 0
      %3558 = vmatpush2.bf16.msra.mxu0 0
      %3559 = vmatprep.subr.bf16.mxu0 0
      %3560 = vmatpush2.bf16.msra.mxu0 0
      %3561 = vmatprep.subr.bf16.mxu0 0
      %3562 = vmatpush2.bf16.msra.mxu0 0
      %3563 = vmatprep.subr.bf16.mxu0 0
      %3564 = vmatpush2.bf16.msra.mxu0 0
      %3565 = vmatprep.subr.bf16.mxu0 0
      %3566 = vmatpush2.bf16.msra.mxu0 0
      %3567 = vmatprep.subr.bf16.mxu0 0
      %3568 = vmatpush2.bf16.msra.mxu0 0
      %3569 = vmatprep.subr.bf16.mxu0 0
      %3570 = vmatpush2.bf16.msra.mxu0 0
      %3571 = vmatprep.mubr.bf16.mxu0 0
      %3572 = vmatmul.mubr.bf16.gmra.mxu0 %v3320
      %v3573 = vpop.f32.mrf.mxu0
      %v3574 = vadd.f32 %v3513, %v3573
      %v3575 = vpop.f32.mrf.mxu0
      %v3576 = vpop.f32.mrf.mxu0
      %v3577 = vadd.f32 %v3513, %v3576
      %v3578 = vpop.f32.mrf.mxu0
      %3579 = vmatprep.mubr.bf16.mxu0 0
      %3580 = vmatmul.mubr.bf16.gmra.mxu0 %v3323
      %v3581 = vpop.f32.mrf.mxu0
      %v3582 = vadd.f32 %v3513, %v3581
      %v3583 = vpop.f32.mrf.mxu0
      %v3584 = vpop.f32.mrf.mxu0
      %v3585 = vadd.f32 %v3513, %v3584
      %v3586 = vpop.f32.mrf.mxu0
      %3587 = vmatprep.mubr.bf16.mxu0 0
      %3588 = vmatmul.mubr.bf16.gmra.mxu0 %v3326
      %v3589 = vpop.f32.mrf.mxu0
      %v3590 = vadd.f32 %v3513, %v3589
      %v3591 = vpop.f32.mrf.mxu0
      %v3592 = vpop.f32.mrf.mxu0
      %v3593 = vadd.f32 %v3513, %v3592
      %v3594 = vpop.f32.mrf.mxu0
      %3595 = vmatprep.mubr.bf16.mxu0 0
      %3596 = vmatmul.mubr.bf16.gmra.mxu0 %v3329
      %v3597 = vpop.f32.mrf.mxu0
      %v3598 = vadd.f32 %v3513, %v3597
      %v3599 = vpop.f32.mrf.mxu0
      %v3600 = vpop.f32.mrf.mxu0
      %v3601 = vadd.f32 %v3513, %v3600
      %v3602 = vpop.f32.mrf.mxu0
      %3603 = vdwg.mxu0
      %v3604 = vpack.c.bf16 %v3369, %v3366
      %v3605 = vpack.c.bf16 %v3377, %v3374
      %v3606 = vpack.c.bf16 %v3385, %v3382
      %v3607 = vpack.c.bf16 %v3393, %v3390
      %v3608 = vpack.c.bf16 %v3473, %v3470
      %v3609 = vpack.c.bf16 %v3481, %v3478
      %v3610 = vpack.c.bf16 %v3489, %v3486
      %v3611 = vpack.c.bf16 %v3497, %v3494
      %v3612 = vld [vmem:[%s11] sm:$0xff]
      %v3613 = vld [vmem:[%s11 + $0x8] sm:$0xff]
      %v3614 = vld [vmem:[%s11 + $0x10] sm:$0xff]
      %v3615 = vld [vmem:[%s11 + $0x18] sm:$0xff]
      %v3616 = vld [vmem:[%s11 + $0x20] sm:$0xff]
      %v3617 = vld [vmem:[%s11 + $0x28] sm:$0xff]
      %v3618 = vld [vmem:[%s11 + $0x30] sm:$0xff]
      %v3619 = vld [vmem:[%s11 + $0x38] sm:$0xff]
      %vm3620 = vcmask 64512
      %v3622 = vsel %vm3620, %v3604, 0
      %v3625 = vsel %vm3620, %v3605, 0
      %v3628 = vsel %vm3620, %v3606, 0
      %v3631 = vsel %vm3620, %v3607, 0
      %v3634 = vsel %vm3620, %v3608, 0
      %v3637 = vsel %vm3620, %v3609, 0
      %v3640 = vsel %vm3620, %v3610, 0
      %v3643 = vsel %vm3620, %v3611, 0
      %3645 = vmatprep.subr.bf16.mxu0 0
      %3646 = vmatpush1.bf16.xpose.msra.mxu0 0
      %3647 = vmatprep.subr.bf16.mxu0 0
      %3648 = vmatpush1.bf16.xpose.msra.mxu0 0
      %3649 = vmatprep.subr.bf16.mxu0 0
      %3650 = vmatpush1.bf16.xpose.msra.mxu0 0
      %3651 = vmatprep.subr.bf16.mxu0 0
      %3652 = vmatpush1.bf16.xpose.msra.mxu0 0
      %3653 = vmatprep.subr.bf16.mxu0 0
      %3654 = vmatpush1.bf16.xpose.msra.mxu0 %v3643
      %3655 = vmatprep.subr.bf16.mxu0 0
      %3656 = vmatpush1.bf16.xpose.msra.mxu0 %v3640
      %3657 = vmatprep.subr.bf16.mxu0 0
      %3658 = vmatpush1.bf16.xpose.msra.mxu0 %v3637
      %3659 = vmatprep.subr.bf16.mxu0 0
      %3660 = vmatpush1.bf16.xpose.msra.mxu0 %v3634
      %3661 = vmatprep.subr.bf16.mxu0 0
      %3662 = vmatpush2.bf16.xpose.msra.mxu0 0
      %3663 = vmatprep.subr.bf16.mxu0 0
      %3664 = vmatpush2.bf16.xpose.msra.mxu0 0
      %3665 = vmatprep.subr.bf16.mxu0 0
      %3666 = vmatpush2.bf16.xpose.msra.mxu0 0
      %3667 = vmatprep.subr.bf16.mxu0 0
      %3668 = vmatpush2.bf16.xpose.msra.mxu0 0
      %3669 = vmatprep.subr.bf16.mxu0 0
      %3670 = vmatpush2.bf16.xpose.msra.mxu0 0
      %3671 = vmatprep.subr.bf16.mxu0 0
      %3672 = vmatpush2.bf16.xpose.msra.mxu0 0
      %3673 = vmatprep.subr.bf16.mxu0 0
      %3674 = vmatpush2.bf16.xpose.msra.mxu0 0
      %3675 = vmatprep.subr.bf16.mxu0 0
      %3676 = vmatpush2.bf16.xpose.msra.mxu0 0
      %3677 = vmatprep.mubr.bf16.mxu0 0
      %3678 = vmatmul.mubr.bf16.gmra.mxu0 %v3622
      %v3679 = vpop.f32.mrf.mxu0
      %v3680 = vadd.f32 %v3612, %v3679
      %v3681 = vpop.f32.mrf.mxu0
      %v3682 = vpop.f32.mrf.mxu0
      %v3683 = vadd.f32 %v3613, %v3682
      %v3684 = vpop.f32.mrf.mxu0
      %3685 = vmatprep.mubr.bf16.mxu0 0
      %3686 = vmatmul.mubr.bf16.gmra.mxu0 %v3625
      %v3687 = vpop.f32.mrf.mxu0
      %v3688 = vadd.f32 %v3614, %v3687
      %v3689 = vpop.f32.mrf.mxu0
      %v3690 = vpop.f32.mrf.mxu0
      %v3691 = vadd.f32 %v3615, %v3690
      %v3692 = vpop.f32.mrf.mxu0
      %3693 = vmatprep.mubr.bf16.mxu0 0
      %3694 = vmatmul.mubr.bf16.gmra.mxu0 %v3628
      %v3695 = vpop.f32.mrf.mxu0
      %v3696 = vadd.f32 %v3616, %v3695
      %v3697 = vpop.f32.mrf.mxu0
      %v3698 = vpop.f32.mrf.mxu0
      %v3699 = vadd.f32 %v3617, %v3698
      %v3700 = vpop.f32.mrf.mxu0
      %3701 = vmatprep.mubr.bf16.mxu0 0
      %3702 = vmatmul.mubr.bf16.gmra.mxu0 %v3631
      %v3703 = vpop.f32.mrf.mxu0
      %v3704 = vadd.f32 %v3618, %v3703
      %v3705 = vpop.f32.mrf.mxu0
      %v3706 = vpop.f32.mrf.mxu0
      %v3707 = vadd.f32 %v3619, %v3706
      %v3708 = vpop.f32.mrf.mxu0
      %3709 = vdwg.mxu0
      %v3710 = vsel %vm3318, %v3680, -inf
      %3711 = vmax.xlane.f32.xlu0 %v3710
      %v3712 = vpop.xlane.xlu0 %3711
      %v3713 = vsel %vm3318, %v3683, -inf
      %3714 = vmax.xlane.f32.xlu0 %v3713
      %v3715 = vpop.xlane.xlu0 %3714
      %v3716 = vsel %vm3318, %v3688, -inf
      %3717 = vmax.xlane.f32.xlu0 %v3716
      %v3718 = vpop.xlane.xlu0 %3717
      %v3719 = vsel %vm3318, %v3691, -inf
      %3720 = vmax.xlane.f32.xlu0 %v3719
      %v3721 = vpop.xlane.xlu0 %3720
      %v3722 = vsel %vm3318, %v3696, -inf
      %3723 = vmax.xlane.f32.xlu0 %v3722
      %v3724 = vpop.xlane.xlu0 %3723
      %v3725 = vsel %vm3318, %v3699, -inf
      %3726 = vmax.xlane.f32.xlu0 %v3725
      %v3727 = vpop.xlane.xlu0 %3726
      %v3728 = vsel %vm3318, %v3704, -inf
      %3729 = vmax.xlane.f32.xlu0 %v3728
      %v3730 = vpop.xlane.xlu0 %3729
      %v3731 = vsel %vm3318, %v3707, -inf
      %3732 = vmax.xlane.f32.xlu0 %v3731
      %v3733 = vpop.xlane.xlu0 %3732
      %v3734 = vsub.f32 %v3680, %v3712
      %v3735 = vsub.f32 %v3683, %v3715
      %v3736 = vsub.f32 %v3688, %v3718
      %v3737 = vsub.f32 %v3691, %v3721
      %v3738 = vsub.f32 %v3696, %v3724
      %v3739 = vsub.f32 %v3699, %v3727
      %v3740 = vsub.f32 %v3704, %v3730
      %v3741 = vsub.f32 %v3707, %v3733
      %v3742 = vmul.f32 %v3734, 1.442695
      %v3743 = vpow.pop %v3742
      %v3744 = vmul.f32 %v3735, 1.442695
      %v3745 = vpow.pop %v3744
      %v3746 = vmul.f32 %v3736, 1.442695
      %v3747 = vpow.pop %v3746
      %v3748 = vmul.f32 %v3737, 1.442695
      %v3749 = vpow.pop %v3748
      %v3750 = vmul.f32 %v3738, 1.442695
      %v3751 = vpow.pop %v3750
      %v3752 = vmul.f32 %v3739, 1.442695
      %v3753 = vpow.pop %v3752
      %v3754 = vmul.f32 %v3740, 1.442695
      %v3755 = vpow.pop %v3754
      %v3756 = vmul.f32 %v3741, 1.442695
      %v3757 = vpow.pop %v3756
      %v3758 = vsel %vm3318, %v3743, 0.0
      %3759 = vadd.xlane.f32.xlu0 %v3758
      %v3760 = vpop.xlane.xlu0 %3759
      %v3761 = vsel %vm3318, %v3745, 0.0
      %3762 = vadd.xlane.f32.xlu0 %v3761
      %v3763 = vpop.xlane.xlu0 %3762
      %v3764 = vsel %vm3318, %v3747, 0.0
      %3765 = vadd.xlane.f32.xlu0 %v3764
      %v3766 = vpop.xlane.xlu0 %3765
      %v3767 = vsel %vm3318, %v3749, 0.0
      %3768 = vadd.xlane.f32.xlu0 %v3767
      %v3769 = vpop.xlane.xlu0 %3768
      %v3770 = vsel %vm3318, %v3751, 0.0
      %3771 = vadd.xlane.f32.xlu0 %v3770
      %v3772 = vpop.xlane.xlu0 %3771
      %v3773 = vsel %vm3318, %v3753, 0.0
      %3774 = vadd.xlane.f32.xlu0 %v3773
      %v3775 = vpop.xlane.xlu0 %3774
      %v3776 = vsel %vm3318, %v3755, 0.0
      %3777 = vadd.xlane.f32.xlu0 %v3776
      %v3778 = vpop.xlane.xlu0 %3777
      %v3779 = vsel %vm3318, %v3757, 0.0
      %3780 = vadd.xlane.f32.xlu0 %v3779
      %v3781 = vpop.xlane.xlu0 %3780
      %v3782 = vrcp.pop %v3760
      %v3783 = vrcp.pop %v3763
      %v3784 = vrcp.pop %v3766
      %v3785 = vrcp.pop %v3769
      %v3786 = vrcp.pop %v3772
      %v3787 = vrcp.pop %v3775
      %v3788 = vrcp.pop %v3778
      %v3789 = vrcp.pop %v3781
      %v3790 = vmul.f32 %v3743, %v3782
      %v3791 = vmul.f32 %v3745, %v3783
      %v3792 = vmul.f32 %v3747, %v3784
      %v3793 = vmul.f32 %v3749, %v3785
      %v3794 = vmul.f32 %v3751, %v3786
      %v3795 = vmul.f32 %v3753, %v3787
      %v3796 = vmul.f32 %v3755, %v3788
      %v3797 = vmul.f32 %v3757, %v3789
      %v3798 = vpack.c.bf16 %v3791, %v3790
      %v3799 = vpack.c.bf16 %v3793, %v3792
      %v3800 = vpack.c.bf16 %v3795, %v3794
      %v3801 = vpack.c.bf16 %v3797, %v3796
      %v3802 = vpack.c.bf16 %v3577, %v3574
      %v3803 = vpack.c.bf16 %v3585, %v3582
      %v3804 = vpack.c.bf16 %v3593, %v3590
      %v3805 = vpack.c.bf16 %v3601, %v3598
      %v3807 = vsel %vm3318, %v3798, 0
      %v3810 = vsel %vm3318, %v3799, 0
      %v3813 = vsel %vm3318, %v3800, 0
      %v3816 = vsel %vm3318, %v3801, 0
      %3818 = vmatprep.subr.bf16.mxu0 0
      %3819 = vmatpush1.bf16.msra.mxu0 0
      %3820 = vmatprep.subr.bf16.mxu0 0
      %3821 = vmatpush1.bf16.msra.mxu0 0
      %3822 = vmatprep.subr.bf16.mxu0 0
      %3823 = vmatpush1.bf16.msra.mxu0 0
      %3824 = vmatprep.subr.bf16.mxu0 0
      %3825 = vmatpush1.bf16.msra.mxu0 0
      %3826 = vmatprep.subr.bf16.mxu0 0
      %3827 = vmatpush1.bf16.msra.mxu0 %v3805
      %3828 = vmatprep.subr.bf16.mxu0 0
      %3829 = vmatpush1.bf16.msra.mxu0 %v3804
      %3830 = vmatprep.subr.bf16.mxu0 0
      %3831 = vmatpush1.bf16.msra.mxu0 %v3803
      %3832 = vmatprep.subr.bf16.mxu0 0
      %3833 = vmatpush1.bf16.msra.mxu0 %v3802
      %3834 = vmatprep.subr.bf16.mxu0 0
      %3835 = vmatpush2.bf16.msra.mxu0 0
      %3836 = vmatprep.subr.bf16.mxu0 0
      %3837 = vmatpush2.bf16.msra.mxu0 0
      %3838 = vmatprep.subr.bf16.mxu0 0
      %3839 = vmatpush2.bf16.msra.mxu0 0
      %3840 = vmatprep.subr.bf16.mxu0 0
      %3841 = vmatpush2.bf16.msra.mxu0 0
      %3842 = vmatprep.subr.bf16.mxu0 0
      %3843 = vmatpush2.bf16.msra.mxu0 0
      %3844 = vmatprep.subr.bf16.mxu0 0
      %3845 = vmatpush2.bf16.msra.mxu0 0
      %3846 = vmatprep.subr.bf16.mxu0 0
      %3847 = vmatpush2.bf16.msra.mxu0 0
      %3848 = vmatprep.subr.bf16.mxu0 0
      %3849 = vmatpush2.bf16.msra.mxu0 0
      %3850 = vmatprep.mubr.bf16.mxu0 0
      %3851 = vmatmul.mubr.bf16.gmra.mxu0 %v3807
      %v3852 = vpop.f32.mrf.mxu0
      %v3853 = vadd.f32 0.0, %v3852
      %v3854 = vpop.f32.mrf.mxu0
      %v3855 = vpop.f32.mrf.mxu0
      %v3856 = vadd.f32 0.0, %v3855
      %v3857 = vpop.f32.mrf.mxu0
      %3858 = vmatprep.mubr.bf16.mxu0 0
      %3859 = vmatmul.mubr.bf16.gmra.mxu0 %v3810
      %v3860 = vpop.f32.mrf.mxu0
      %v3861 = vadd.f32 0.0, %v3860
      %v3862 = vpop.f32.mrf.mxu0
      %v3863 = vpop.f32.mrf.mxu0
      %v3864 = vadd.f32 0.0, %v3863
      %v3865 = vpop.f32.mrf.mxu0
      %3866 = vmatprep.mubr.bf16.mxu0 0
      %3867 = vmatmul.mubr.bf16.gmra.mxu0 %v3813
      %v3868 = vpop.f32.mrf.mxu0
      %v3869 = vadd.f32 0.0, %v3868
      %v3870 = vpop.f32.mrf.mxu0
      %v3871 = vpop.f32.mrf.mxu0
      %v3872 = vadd.f32 0.0, %v3871
      %v3873 = vpop.f32.mrf.mxu0
      %3874 = vmatprep.mubr.bf16.mxu0 0
      %3875 = vmatmul.mubr.bf16.gmra.mxu0 %v3816
      %v3876 = vpop.f32.mrf.mxu0
      %v3877 = vadd.f32 0.0, %v3876
      %v3878 = vpop.f32.mrf.mxu0
      %v3879 = vpop.f32.mrf.mxu0
      %v3880 = vadd.f32 0.0, %v3879
      %v3881 = vpop.f32.mrf.mxu0
      %3882 = vdwg.mxu0
      %v3883 = vstv %s551
      %v3884 = vmul.f32 %v3883, %v3853
      %v3885 = vmul.f32 %v3883, %v3856
      %v3886 = vmul.f32 %v3883, %v3861
      %v3887 = vmul.f32 %v3883, %v3864
      %v3888 = vmul.f32 %v3883, %v3869
      %v3889 = vmul.f32 %v3883, %v3872
      %v3890 = vmul.f32 %v3883, %v3877
      %v3891 = vmul.f32 %v3883, %v3880
      %v3892 = vadd.f32 %v3884, %v3267
      %v3893 = vadd.f32 %v3885, %v3268
      %v3894 = vadd.f32 %v3886, %v3269
      %v3895 = vadd.f32 %v3887, %v3270
      %v3896 = vadd.f32 %v3888, %v3271
      %v3897 = vadd.f32 %v3889, %v3272
      %v3898 = vadd.f32 %v3890, %v3273
      %v3899 = vadd.f32 %v3891, %v3274
      %v3900 = vpack.c.bf16 %v3893, %v3892
      %v3901 = vpack.c.bf16 %v3895, %v3894
      %v3902 = vpack.c.bf16 %v3897, %v3896
      %v3903 = vpack.c.bf16 %v3899, %v3898
      %v3905 = vsel %vm3318, %v3900, 0
      %v3908 = vsel %vm3318, %v3901, 0
      %v3911 = vsel %vm3318, %v3902, 0
      %v3914 = vsel %vm3318, %v3903, 0
      %3916 = vmatprep.subr.bf16.mxu0 0
      %3917 = vmatpush1.bf16.msra.mxu0 0
      %3918 = vmatprep.subr.bf16.mxu0 0
      %3919 = vmatpush1.bf16.msra.mxu0 0
      %3920 = vmatprep.subr.bf16.mxu0 0
      %3921 = vmatpush1.bf16.msra.mxu0 0
      %3922 = vmatprep.subr.bf16.mxu0 0
      %3923 = vmatpush1.bf16.msra.mxu0 0
      %3924 = vmatprep.subr.bf16.mxu0 0
      %3925 = vmatpush1.bf16.msra.mxu0 %v3313
      %3926 = vmatprep.subr.bf16.mxu0 0
      %3927 = vmatpush1.bf16.msra.mxu0 %v3312
      %3928 = vmatprep.subr.bf16.mxu0 0
      %3929 = vmatpush1.bf16.msra.mxu0 %v3311
      %3930 = vmatprep.subr.bf16.mxu0 0
      %3931 = vmatpush1.bf16.msra.mxu0 %v3310
      %3932 = vmatprep.subr.bf16.mxu0 0
      %3933 = vmatpush2.bf16.msra.mxu0 0
      %3934 = vmatprep.subr.bf16.mxu0 0
      %3935 = vmatpush2.bf16.msra.mxu0 0
      %3936 = vmatprep.subr.bf16.mxu0 0
      %3937 = vmatpush2.bf16.msra.mxu0 0
      %3938 = vmatprep.subr.bf16.mxu0 0
      %3939 = vmatpush2.bf16.msra.mxu0 0
      %3940 = vmatprep.subr.bf16.mxu0 0
      %3941 = vmatpush2.bf16.msra.mxu0 0
      %3942 = vmatprep.subr.bf16.mxu0 0
      %3943 = vmatpush2.bf16.msra.mxu0 0
      %3944 = vmatprep.subr.bf16.mxu0 0
      %3945 = vmatpush2.bf16.msra.mxu0 0
      %3946 = vmatprep.subr.bf16.mxu0 0
      %3947 = vmatpush2.bf16.msra.mxu0 0
      %3948 = vmatprep.mubr.bf16.mxu0 0
      %3949 = vmatmul.mubr.bf16.gmra.mxu0 %v3905
      %v3950 = vpop.f32.mrf.mxu0
      %v3951 = vadd.f32 %v3292, %v3950
      %v3952 = vpop.f32.mrf.mxu0
      %v3953 = vpop.f32.mrf.mxu0
      %v3954 = vadd.f32 %v3292, %v3953
      %v3955 = vpop.f32.mrf.mxu0
      %3956 = vmatprep.mubr.bf16.mxu0 0
      %3957 = vmatmul.mubr.bf16.gmra.mxu0 %v3908
      %v3958 = vpop.f32.mrf.mxu0
      %v3959 = vadd.f32 %v3292, %v3958
      %v3960 = vpop.f32.mrf.mxu0
      %v3961 = vpop.f32.mrf.mxu0
      %v3962 = vadd.f32 %v3292, %v3961
      %v3963 = vpop.f32.mrf.mxu0
      %3964 = vmatprep.mubr.bf16.mxu0 0
      %3965 = vmatmul.mubr.bf16.gmra.mxu0 %v3911
      %v3966 = vpop.f32.mrf.mxu0
      %v3967 = vadd.f32 %v3292, %v3966
      %v3968 = vpop.f32.mrf.mxu0
      %v3969 = vpop.f32.mrf.mxu0
      %v3970 = vadd.f32 %v3292, %v3969
      %v3971 = vpop.f32.mrf.mxu0
      %3972 = vmatprep.mubr.bf16.mxu0 0
      %3973 = vmatmul.mubr.bf16.gmra.mxu0 %v3914
      %v3974 = vpop.f32.mrf.mxu0
      %v3975 = vadd.f32 %v3292, %v3974
      %v3976 = vpop.f32.mrf.mxu0
      %v3977 = vpop.f32.mrf.mxu0
      %v3978 = vadd.f32 %v3292, %v3977
      %v3979 = vpop.f32.mrf.mxu0
      %3980 = vdwg.mxu0
      %3981 = vmatprep.subr.bf16.mxu0 0
      %3982 = vmatpush1.bf16.msra.mxu0 0
      %3983 = vmatprep.subr.bf16.mxu0 0
      %3984 = vmatpush1.bf16.msra.mxu0 0
      %3985 = vmatprep.subr.bf16.mxu0 0
      %3986 = vmatpush1.bf16.msra.mxu0 0
      %3987 = vmatprep.subr.bf16.mxu0 0
      %3988 = vmatpush1.bf16.msra.mxu0 0
      %3989 = vmatprep.subr.bf16.mxu0 0
      %3990 = vmatpush1.bf16.msra.mxu0 %v3430
      %3991 = vmatprep.subr.bf16.mxu0 0
      %3992 = vmatpush1.bf16.msra.mxu0 %v3429
      %3993 = vmatprep.subr.bf16.mxu0 0
      %3994 = vmatpush1.bf16.msra.mxu0 %v3428
      %3995 = vmatprep.subr.bf16.mxu0 0
      %3996 = vmatpush1.bf16.msra.mxu0 %v3427
      %3997 = vmatprep.subr.bf16.mxu0 0
      %3998 = vmatpush2.bf16.msra.mxu0 0
      %3999 = vmatprep.subr.bf16.mxu0 0
      %4000 = vmatpush2.bf16.msra.mxu0 0
      %4001 = vmatprep.subr.bf16.mxu0 0
      %4002 = vmatpush2.bf16.msra.mxu0 0
      %4003 = vmatprep.subr.bf16.mxu0 0
      %4004 = vmatpush2.bf16.msra.mxu0 0
      %4005 = vmatprep.subr.bf16.mxu0 0
      %4006 = vmatpush2.bf16.msra.mxu0 0
      %4007 = vmatprep.subr.bf16.mxu0 0
      %4008 = vmatpush2.bf16.msra.mxu0 0
      %4009 = vmatprep.subr.bf16.mxu0 0
      %4010 = vmatpush2.bf16.msra.mxu0 0
      %4011 = vmatprep.subr.bf16.mxu0 0
      %4012 = vmatpush2.bf16.msra.mxu0 0
      %4013 = vmatprep.mubr.bf16.mxu0 0
      %4014 = vmatmul.mubr.bf16.gmra.mxu0 %v3905
      %v4015 = vpop.f32.mrf.mxu0
      %v4016 = vadd.f32 %v3409, %v4015
      %v4017 = vpop.f32.mrf.mxu0
      %v4018 = vpop.f32.mrf.mxu0
      %v4019 = vadd.f32 %v3409, %v4018
      %v4020 = vpop.f32.mrf.mxu0
      %4021 = vmatprep.mubr.bf16.mxu0 0
      %4022 = vmatmul.mubr.bf16.gmra.mxu0 %v3908
      %v4023 = vpop.f32.mrf.mxu0
      %v4024 = vadd.f32 %v3409, %v4023
      %v4025 = vpop.f32.mrf.mxu0
      %v4026 = vpop.f32.mrf.mxu0
      %v4027 = vadd.f32 %v3409, %v4026
      %v4028 = vpop.f32.mrf.mxu0
      %4029 = vmatprep.mubr.bf16.mxu0 0
      %4030 = vmatmul.mubr.bf16.gmra.mxu0 %v3911
      %v4031 = vpop.f32.mrf.mxu0
      %v4032 = vadd.f32 %v3409, %v4031
      %v4033 = vpop.f32.mrf.mxu0
      %v4034 = vpop.f32.mrf.mxu0
      %v4035 = vadd.f32 %v3409, %v4034
      %v4036 = vpop.f32.mrf.mxu0
      %4037 = vmatprep.mubr.bf16.mxu0 0
      %4038 = vmatmul.mubr.bf16.gmra.mxu0 %v3914
      %v4039 = vpop.f32.mrf.mxu0
      %v4040 = vadd.f32 %v3409, %v4039
      %v4041 = vpop.f32.mrf.mxu0
      %v4042 = vpop.f32.mrf.mxu0
      %v4043 = vadd.f32 %v3409, %v4042
      %v4044 = vpop.f32.mrf.mxu0
      %4045 = vdwg.mxu0
      %4046 = vmatprep.subr.bf16.mxu0 0
      %4047 = vmatpush1.bf16.msra.mxu0 0
      %4048 = vmatprep.subr.bf16.mxu0 0
      %4049 = vmatpush1.bf16.msra.mxu0 0
      %4050 = vmatprep.subr.bf16.mxu0 0
      %4051 = vmatpush1.bf16.msra.mxu0 0
      %4052 = vmatprep.subr.bf16.mxu0 0
      %4053 = vmatpush1.bf16.msra.mxu0 0
      %4054 = vmatprep.subr.bf16.mxu0 0
      %4055 = vmatpush1.bf16.msra.mxu0 %v3534
      %4056 = vmatprep.subr.bf16.mxu0 0
      %4057 = vmatpush1.bf16.msra.mxu0 %v3533
      %4058 = vmatprep.subr.bf16.mxu0 0
      %4059 = vmatpush1.bf16.msra.mxu0 %v3532
      %4060 = vmatprep.subr.bf16.mxu0 0
      %4061 = vmatpush1.bf16.msra.mxu0 %v3531
      %4062 = vmatprep.subr.bf16.mxu0 0
      %4063 = vmatpush2.bf16.msra.mxu0 0
      %4064 = vmatprep.subr.bf16.mxu0 0
      %4065 = vmatpush2.bf16.msra.mxu0 0
      %4066 = vmatprep.subr.bf16.mxu0 0
      %4067 = vmatpush2.bf16.msra.mxu0 0
      %4068 = vmatprep.subr.bf16.mxu0 0
      %4069 = vmatpush2.bf16.msra.mxu0 0
      %4070 = vmatprep.subr.bf16.mxu0 0
      %4071 = vmatpush2.bf16.msra.mxu0 0
      %4072 = vmatprep.subr.bf16.mxu0 0
      %4073 = vmatpush2.bf16.msra.mxu0 0
      %4074 = vmatprep.subr.bf16.mxu0 0
      %4075 = vmatpush2.bf16.msra.mxu0 0
      %4076 = vmatprep.subr.bf16.mxu0 0
      %4077 = vmatpush2.bf16.msra.mxu0 0
      %4078 = vmatprep.mubr.bf16.mxu0 0
      %4079 = vmatmul.mubr.bf16.gmra.mxu0 %v3905
      %v4080 = vpop.f32.mrf.mxu0
      %v4081 = vadd.f32 %v3513, %v4080
      %v4082 = vpop.f32.mrf.mxu0
      %v4083 = vpop.f32.mrf.mxu0
      %v4084 = vadd.f32 %v3513, %v4083
      %v4085 = vpop.f32.mrf.mxu0
      %4086 = vmatprep.mubr.bf16.mxu0 0
      %4087 = vmatmul.mubr.bf16.gmra.mxu0 %v3908
      %v4088 = vpop.f32.mrf.mxu0
      %v4089 = vadd.f32 %v3513, %v4088
      %v4090 = vpop.f32.mrf.mxu0
      %v4091 = vpop.f32.mrf.mxu0
      %v4092 = vadd.f32 %v3513, %v4091
      %v4093 = vpop.f32.mrf.mxu0
      %4094 = vmatprep.mubr.bf16.mxu0 0
      %4095 = vmatmul.mubr.bf16.gmra.mxu0 %v3911
      %v4096 = vpop.f32.mrf.mxu0
      %v4097 = vadd.f32 %v3513, %v4096
      %v4098 = vpop.f32.mrf.mxu0
      %v4099 = vpop.f32.mrf.mxu0
      %v4100 = vadd.f32 %v3513, %v4099
      %v4101 = vpop.f32.mrf.mxu0
      %4102 = vmatprep.mubr.bf16.mxu0 0
      %4103 = vmatmul.mubr.bf16.gmra.mxu0 %v3914
      %v4104 = vpop.f32.mrf.mxu0
      %v4105 = vadd.f32 %v3513, %v4104
      %v4106 = vpop.f32.mrf.mxu0
      %v4107 = vpop.f32.mrf.mxu0
      %v4108 = vadd.f32 %v3513, %v4107
      %v4109 = vpop.f32.mrf.mxu0
      %4110 = vdwg.mxu0
      %v4111 = vpack.c.bf16 %v3954, %v3951
      %v4112 = vpack.c.bf16 %v3962, %v3959
      %v4113 = vpack.c.bf16 %v3970, %v3967
      %v4114 = vpack.c.bf16 %v3978, %v3975
      %v4115 = vpack.c.bf16 %v4019, %v4016
      %v4116 = vpack.c.bf16 %v4027, %v4024
      %v4117 = vpack.c.bf16 %v4035, %v4032
      %v4118 = vpack.c.bf16 %v4043, %v4040
      %v4120 = vsel %vm3620, %v4111, 0
      %v4123 = vsel %vm3620, %v4112, 0
      %v4126 = vsel %vm3620, %v4113, 0
      %v4129 = vsel %vm3620, %v4114, 0
      %v4132 = vsel %vm3620, %v4115, 0
      %v4135 = vsel %vm3620, %v4116, 0
      %v4138 = vsel %vm3620, %v4117, 0
      %v4141 = vsel %vm3620, %v4118, 0
      %4143 = vmatprep.subr.bf16.mxu0 0
      %4144 = vmatpush1.bf16.xpose.msra.mxu0 0
      %4145 = vmatprep.subr.bf16.mxu0 0
      %4146 = vmatpush1.bf16.xpose.msra.mxu0 0
      %4147 = vmatprep.subr.bf16.mxu0 0
      %4148 = vmatpush1.bf16.xpose.msra.mxu0 0
      %4149 = vmatprep.subr.bf16.mxu0 0
      %4150 = vmatpush1.bf16.xpose.msra.mxu0 0
      %4151 = vmatprep.subr.bf16.mxu0 0
      %4152 = vmatpush1.bf16.xpose.msra.mxu0 %v4141
      %4153 = vmatprep.subr.bf16.mxu0 0
      %4154 = vmatpush1.bf16.xpose.msra.mxu0 %v4138
      %4155 = vmatprep.subr.bf16.mxu0 0
      %4156 = vmatpush1.bf16.xpose.msra.mxu0 %v4135
      %4157 = vmatprep.subr.bf16.mxu0 0
      %4158 = vmatpush1.bf16.xpose.msra.mxu0 %v4132
      %4159 = vmatprep.subr.bf16.mxu0 0
      %4160 = vmatpush2.bf16.xpose.msra.mxu0 0
      %4161 = vmatprep.subr.bf16.mxu0 0
      %4162 = vmatpush2.bf16.xpose.msra.mxu0 0
      %4163 = vmatprep.subr.bf16.mxu0 0
      %4164 = vmatpush2.bf16.xpose.msra.mxu0 0
      %4165 = vmatprep.subr.bf16.mxu0 0
      %4166 = vmatpush2.bf16.xpose.msra.mxu0 0
      %4167 = vmatprep.subr.bf16.mxu0 0
      %4168 = vmatpush2.bf16.xpose.msra.mxu0 0
      %4169 = vmatprep.subr.bf16.mxu0 0
      %4170 = vmatpush2.bf16.xpose.msra.mxu0 0
      %4171 = vmatprep.subr.bf16.mxu0 0
      %4172 = vmatpush2.bf16.xpose.msra.mxu0 0
      %4173 = vmatprep.subr.bf16.mxu0 0
      %4174 = vmatpush2.bf16.xpose.msra.mxu0 0
      %4175 = vmatprep.mubr.bf16.mxu0 0
      %4176 = vmatmul.mubr.bf16.gmra.mxu0 %v4120
      %v4177 = vpop.f32.mrf.mxu0
      %v4178 = vadd.f32 %v3612, %v4177
      %v4179 = vpop.f32.mrf.mxu0
      %v4180 = vpop.f32.mrf.mxu0
      %v4181 = vadd.f32 %v3613, %v4180
      %v4182 = vpop.f32.mrf.mxu0
      %4183 = vmatprep.mubr.bf16.mxu0 0
      %4184 = vmatmul.mubr.bf16.gmra.mxu0 %v4123
      %v4185 = vpop.f32.mrf.mxu0
      %v4186 = vadd.f32 %v3614, %v4185
      %v4187 = vpop.f32.mrf.mxu0
      %v4188 = vpop.f32.mrf.mxu0
      %v4189 = vadd.f32 %v3615, %v4188
      %v4190 = vpop.f32.mrf.mxu0
      %4191 = vmatprep.mubr.bf16.mxu0 0
      %4192 = vmatmul.mubr.bf16.gmra.mxu0 %v4126
      %v4193 = vpop.f32.mrf.mxu0
      %v4194 = vadd.f32 %v3616, %v4193
      %v4195 = vpop.f32.mrf.mxu0
      %v4196 = vpop.f32.mrf.mxu0
      %v4197 = vadd.f32 %v3617, %v4196
      %v4198 = vpop.f32.mrf.mxu0
      %4199 = vmatprep.mubr.bf16.mxu0 0
      %4200 = vmatmul.mubr.bf16.gmra.mxu0 %v4129
      %v4201 = vpop.f32.mrf.mxu0
      %v4202 = vadd.f32 %v3618, %v4201
      %v4203 = vpop.f32.mrf.mxu0
      %v4204 = vpop.f32.mrf.mxu0
      %v4205 = vadd.f32 %v3619, %v4204
      %v4206 = vpop.f32.mrf.mxu0
      %4207 = vdwg.mxu0
      %v4208 = vsel %vm3318, %v4178, -inf
      %4209 = vmax.xlane.f32.xlu0 %v4208
      %v4210 = vpop.xlane.xlu0 %4209
      %v4211 = vsel %vm3318, %v4181, -inf
      %4212 = vmax.xlane.f32.xlu0 %v4211
      %v4213 = vpop.xlane.xlu0 %4212
      %v4214 = vsel %vm3318, %v4186, -inf
      %4215 = vmax.xlane.f32.xlu0 %v4214
      %v4216 = vpop.xlane.xlu0 %4215
      %v4217 = vsel %vm3318, %v4189, -inf
      %4218 = vmax.xlane.f32.xlu0 %v4217
      %v4219 = vpop.xlane.xlu0 %4218
      %v4220 = vsel %vm3318, %v4194, -inf
      %4221 = vmax.xlane.f32.xlu0 %v4220
      %v4222 = vpop.xlane.xlu0 %4221
      %v4223 = vsel %vm3318, %v4197, -inf
      %4224 = vmax.xlane.f32.xlu0 %v4223
      %v4225 = vpop.xlane.xlu0 %4224
      %v4226 = vsel %vm3318, %v4202, -inf
      %4227 = vmax.xlane.f32.xlu0 %v4226
      %v4228 = vpop.xlane.xlu0 %4227
      %v4229 = vsel %vm3318, %v4205, -inf
      %4230 = vmax.xlane.f32.xlu0 %v4229
      %v4231 = vpop.xlane.xlu0 %4230
      %v4232 = vsub.f32 %v4178, %v4210
      %v4233 = vsub.f32 %v4181, %v4213
      %v4234 = vsub.f32 %v4186, %v4216
      %v4235 = vsub.f32 %v4189, %v4219
      %v4236 = vsub.f32 %v4194, %v4222
      %v4237 = vsub.f32 %v4197, %v4225
      %v4238 = vsub.f32 %v4202, %v4228
      %v4239 = vsub.f32 %v4205, %v4231
      %v4240 = vmul.f32 %v4232, 1.442695
      %v4241 = vpow.pop %v4240
      %v4242 = vmul.f32 %v4233, 1.442695
      %v4243 = vpow.pop %v4242
      %v4244 = vmul.f32 %v4234, 1.442695
      %v4245 = vpow.pop %v4244
      %v4246 = vmul.f32 %v4235, 1.442695
      %v4247 = vpow.pop %v4246
      %v4248 = vmul.f32 %v4236, 1.442695
      %v4249 = vpow.pop %v4248
      %v4250 = vmul.f32 %v4237, 1.442695
      %v4251 = vpow.pop %v4250
      %v4252 = vmul.f32 %v4238, 1.442695
      %v4253 = vpow.pop %v4252
      %v4254 = vmul.f32 %v4239, 1.442695
      %v4255 = vpow.pop %v4254
      %v4256 = vsel %vm3318, %v4241, 0.0
      %4257 = vadd.xlane.f32.xlu0 %v4256
      %v4258 = vpop.xlane.xlu0 %4257
      %v4259 = vsel %vm3318, %v4243, 0.0
      %4260 = vadd.xlane.f32.xlu0 %v4259
      %v4261 = vpop.xlane.xlu0 %4260
      %v4262 = vsel %vm3318, %v4245, 0.0
      %4263 = vadd.xlane.f32.xlu0 %v4262
      %v4264 = vpop.xlane.xlu0 %4263
      %v4265 = vsel %vm3318, %v4247, 0.0
      %4266 = vadd.xlane.f32.xlu0 %v4265
      %v4267 = vpop.xlane.xlu0 %4266
      %v4268 = vsel %vm3318, %v4249, 0.0
      %4269 = vadd.xlane.f32.xlu0 %v4268
      %v4270 = vpop.xlane.xlu0 %4269
      %v4271 = vsel %vm3318, %v4251, 0.0
      %4272 = vadd.xlane.f32.xlu0 %v4271
      %v4273 = vpop.xlane.xlu0 %4272
      %v4274 = vsel %vm3318, %v4253, 0.0
      %4275 = vadd.xlane.f32.xlu0 %v4274
      %v4276 = vpop.xlane.xlu0 %4275
      %v4277 = vsel %vm3318, %v4255, 0.0
      %4278 = vadd.xlane.f32.xlu0 %v4277
      %v4279 = vpop.xlane.xlu0 %4278
      %v4280 = vrcp.pop %v4258
      %v4281 = vrcp.pop %v4261
      %v4282 = vrcp.pop %v4264
      %v4283 = vrcp.pop %v4267
      %v4284 = vrcp.pop %v4270
      %v4285 = vrcp.pop %v4273
      %v4286 = vrcp.pop %v4276
      %v4287 = vrcp.pop %v4279
      %v4288 = vmul.f32 %v4241, %v4280
      %v4289 = vmul.f32 %v4243, %v4281
      %v4290 = vmul.f32 %v4245, %v4282
      %v4291 = vmul.f32 %v4247, %v4283
      %v4292 = vmul.f32 %v4249, %v4284
      %v4293 = vmul.f32 %v4251, %v4285
      %v4294 = vmul.f32 %v4253, %v4286
      %v4295 = vmul.f32 %v4255, %v4287
      %v4296 = vpack.c.bf16 %v4289, %v4288
      %v4297 = vpack.c.bf16 %v4291, %v4290
      %v4298 = vpack.c.bf16 %v4293, %v4292
      %v4299 = vpack.c.bf16 %v4295, %v4294
      %v4300 = vpack.c.bf16 %v4084, %v4081
      %v4301 = vpack.c.bf16 %v4092, %v4089
      %v4302 = vpack.c.bf16 %v4100, %v4097
      %v4303 = vpack.c.bf16 %v4108, %v4105
      %v4305 = vsel %vm3318, %v4296, 0
      %v4308 = vsel %vm3318, %v4297, 0
      %v4311 = vsel %vm3318, %v4298, 0
      %v4314 = vsel %vm3318, %v4299, 0
      %4316 = vmatprep.subr.bf16.mxu0 0
      %4317 = vmatpush1.bf16.msra.mxu0 0
      %4318 = vmatprep.subr.bf16.mxu0 0
      %4319 = vmatpush1.bf16.msra.mxu0 0
      %4320 = vmatprep.subr.bf16.mxu0 0
      %4321 = vmatpush1.bf16.msra.mxu0 0
      %4322 = vmatprep.subr.bf16.mxu0 0
      %4323 = vmatpush1.bf16.msra.mxu0 0
      %4324 = vmatprep.subr.bf16.mxu0 0
      %4325 = vmatpush1.bf16.msra.mxu0 %v4303
      %4326 = vmatprep.subr.bf16.mxu0 0
      %4327 = vmatpush1.bf16.msra.mxu0 %v4302
      %4328 = vmatprep.subr.bf16.mxu0 0
      %4329 = vmatpush1.bf16.msra.mxu0 %v4301
      %4330 = vmatprep.subr.bf16.mxu0 0
      %4331 = vmatpush1.bf16.msra.mxu0 %v4300
      %4332 = vmatprep.subr.bf16.mxu0 0
      %4333 = vmatpush2.bf16.msra.mxu0 0
      %4334 = vmatprep.subr.bf16.mxu0 0
      %4335 = vmatpush2.bf16.msra.mxu0 0
      %4336 = vmatprep.subr.bf16.mxu0 0
      %4337 = vmatpush2.bf16.msra.mxu0 0
      %4338 = vmatprep.subr.bf16.mxu0 0
      %4339 = vmatpush2.bf16.msra.mxu0 0
      %4340 = vmatprep.subr.bf16.mxu0 0
      %4341 = vmatpush2.bf16.msra.mxu0 0
      %4342 = vmatprep.subr.bf16.mxu0 0
      %4343 = vmatpush2.bf16.msra.mxu0 0
      %4344 = vmatprep.subr.bf16.mxu0 0
      %4345 = vmatpush2.bf16.msra.mxu0 0
      %4346 = vmatprep.subr.bf16.mxu0 0
      %4347 = vmatpush2.bf16.msra.mxu0 0
      %4348 = vmatprep.mubr.bf16.mxu0 0
      %4349 = vmatmul.mubr.bf16.gmra.mxu0 %v4305
      %v4350 = vpop.f32.mrf.mxu0
      %v4351 = vadd.f32 0.0, %v4350
      %v4352 = vpop.f32.mrf.mxu0
      %v4353 = vpop.f32.mrf.mxu0
      %v4354 = vadd.f32 0.0, %v4353
      %v4355 = vpop.f32.mrf.mxu0
      %4356 = vmatprep.mubr.bf16.mxu0 0
      %4357 = vmatmul.mubr.bf16.gmra.mxu0 %v4308
      %v4358 = vpop.f32.mrf.mxu0
      %v4359 = vadd.f32 0.0, %v4358
      %v4360 = vpop.f32.mrf.mxu0
      %v4361 = vpop.f32.mrf.mxu0
      %v4362 = vadd.f32 0.0, %v4361
      %v4363 = vpop.f32.mrf.mxu0
      %4364 = vmatprep.mubr.bf16.mxu0 0
      %4365 = vmatmul.mubr.bf16.gmra.mxu0 %v4311
      %v4366 = vpop.f32.mrf.mxu0
      %v4367 = vadd.f32 0.0, %v4366
      %v4368 = vpop.f32.mrf.mxu0
      %v4369 = vpop.f32.mrf.mxu0
      %v4370 = vadd.f32 0.0, %v4369
      %v4371 = vpop.f32.mrf.mxu0
      %4372 = vmatprep.mubr.bf16.mxu0 0
      %4373 = vmatmul.mubr.bf16.gmra.mxu0 %v4314
      %v4374 = vpop.f32.mrf.mxu0
      %v4375 = vadd.f32 0.0, %v4374
      %v4376 = vpop.f32.mrf.mxu0
      %v4377 = vpop.f32.mrf.mxu0
      %v4378 = vadd.f32 0.0, %v4377
      %v4379 = vpop.f32.mrf.mxu0
      %4380 = vdwg.mxu0
      %v4381 = vmul.f32 %v3883, %v4351
      %v4382 = vmul.f32 %v3883, %v4354
      %v4383 = vmul.f32 %v3883, %v4359
      %v4384 = vmul.f32 %v3883, %v4362
      %v4385 = vmul.f32 %v3883, %v4367
      %v4386 = vmul.f32 %v3883, %v4370
      %v4387 = vmul.f32 %v3883, %v4375
      %v4388 = vmul.f32 %v3883, %v4378
      %v4389 = vadd.f32 %v4381, %v3892
      %v4390 = vadd.f32 %v4382, %v3893
      %v4391 = vadd.f32 %v4383, %v3894
      %v4392 = vadd.f32 %v4384, %v3895
      %v4393 = vadd.f32 %v4385, %v3896
      %v4394 = vadd.f32 %v4386, %v3897
      %v4395 = vadd.f32 %v4387, %v3898
      %v4396 = vadd.f32 %v4388, %v3899
      %4397 = vst.msk [vmem:[#allocation2] sm:$0xff] %vm3318, 0.0
      %vm4398 = vcmask 517120
      %4399 = vst.msk [vmem:[#allocation2 + $0x8] sm:$0x3] %vm4398, 0.0
      %4400 = vst.msk [vmem:[#allocation2 + $0x10] sm:$0xff] %vm3318, 0.0
      %4401 = vst.msk [vmem:[#allocation2 + $0x18] sm:$0x3] %vm4398, 0.0
      %4402 = vst.msk [vmem:[#allocation2 + $0x20] sm:$0xff] %vm3318, 0.0
      %4403 = vst.msk [vmem:[#allocation2 + $0x28] sm:$0x3] %vm4398, 0.0
      %4404 = vst.msk [vmem:[#allocation2 + $0x30] sm:$0xff] %vm3318, 0.0
      %4405 = vst.msk [vmem:[#allocation2 + $0x38] sm:$0x3] %vm4398, 0.0
      %4406 = vst.msk [vmem:[#allocation2 + $0x40] sm:$0xff] %vm3318, 0.0
      %4407 = vst.msk [vmem:[#allocation2 + $0x48] sm:$0x3] %vm4398, 0.0
      %4408 = vst.msk [vmem:[#allocation2 + $0x50] sm:$0xff] %vm3318, 0.0
      %4409 = vst.msk [vmem:[#allocation2 + $0x58] sm:$0x3] %vm4398, 0.0
      %4410 = vst.msk [vmem:[#allocation2 + $0x60] sm:$0xff] %vm3318, 0.0
      %4411 = vst.msk [vmem:[#allocation2 + $0x68] sm:$0x3] %vm4398, 0.0
      %4412 = vst.msk [vmem:[#allocation2 + $0x70] sm:$0xff] %vm3318, 0.0
      %4413 = vst.msk [vmem:[#allocation2 + $0x78] sm:$0x3] %vm4398, 0.0
      %4414 = vst.msk [vmem:[#allocation2 + $0x80] sm:$0xff] %vm3318, 0.0
      %4415 = vst.msk [vmem:[#allocation2 + $0x88] sm:$0x3] %vm4398, 0.0
      %4416 = vst.msk [vmem:[#allocation2 + $0x90] sm:$0xff] %vm3318, 0.0
      %4417 = vst.msk [vmem:[#allocation2 + $0x98] sm:$0x3] %vm4398, 0.0
      %s4418 = scalar_lea.vmem [#allocation2], 16
      %4419 = vst.msk [vmem:[%s4418 + $0x1] sm:$0xff] %vm3318, %v4389
      %4420 = vst.msk [vmem:[%s4418 + $0x11] sm:$0xff] %vm3318, %v4390
      %4421 = vst.msk [vmem:[%s4418 + $0x21] sm:$0xff] %vm3318, %v4391
      %4422 = vst.msk [vmem:[%s4418 + $0x31] sm:$0xff] %vm3318, %v4392
      %4423 = vst.msk [vmem:[%s4418 + $0x41] sm:$0xff] %vm3318, %v4393
      %4424 = vst.msk [vmem:[%s4418 + $0x51] sm:$0xff] %vm3318, %v4394
      %4425 = vst.msk [vmem:[%s4418 + $0x61] sm:$0xff] %vm3318, %v4395
      %4426 = vst.msk [vmem:[%s4418 + $0x71] sm:$0xff] %vm3318, %v4396
      %v4427 = vld [vmem:[#allocation2] sm:$0xff]
      %v4428 = vld [vmem:[#allocation2 + $0x10] sm:$0xff]
      %v4429 = vld [vmem:[#allocation2 + $0x20] sm:$0xff]
      %v4430 = vld [vmem:[#allocation2 + $0x30] sm:$0xff]
      %v4431 = vld [vmem:[#allocation2 + $0x40] sm:$0xff]
      %v4432 = vld [vmem:[#allocation2 + $0x50] sm:$0xff]
      %v4433 = vld [vmem:[#allocation2 + $0x60] sm:$0xff]
      %v4434 = vld [vmem:[#allocation2 + $0x70] sm:$0xff]
      %v4435 = vpack.c.bf16 %v4428, %v4427
      %v4436 = vpack.c.bf16 %v4430, %v4429
      %v4437 = vpack.c.bf16 %v4432, %v4431
      %v4438 = vpack.c.bf16 %v4434, %v4433
      %v4439 = vld [vmem:[%s12] sm:$0xf]
      %v4440 = vld [vmem:[%s12 + $0x4] sm:$0xf]
      %v4441 = vld [vmem:[%s12 + $0x8] sm:$0xf]
      %v4442 = vld [vmem:[%s12 + $0xc] sm:$0xf]
      %v4443 = vld [vmem:[%s12 + $0x10] sm:$0xf]
      %v4444 = vld [vmem:[%s12 + $0x14] sm:$0xf]
      %v4445 = vld [vmem:[%s12 + $0x18] sm:$0xf]
      %v4446 = vld [vmem:[%s12 + $0x1c] sm:$0xf]
      %v4447 = vld [vmem:[#allocation2 + $0x1] sm:$0xff]
      %v4448 = vld [vmem:[#allocation2 + $0x11] sm:$0xff]
      %v4449 = vld [vmem:[#allocation2 + $0x21] sm:$0xff]
      %v4450 = vld [vmem:[#allocation2 + $0x31] sm:$0xff]
      %v4451 = vld [vmem:[#allocation2 + $0x41] sm:$0xff]
      %v4452 = vld [vmem:[#allocation2 + $0x51] sm:$0xff]
      %v4453 = vld [vmem:[#allocation2 + $0x61] sm:$0xff]
      %v4454 = vld [vmem:[#allocation2 + $0x71] sm:$0xff]
      %v4455 = vpack.c.bf16 %v4448, %v4447
      %v4456 = vpack.c.bf16 %v4450, %v4449
      %v4457 = vpack.c.bf16 %v4452, %v4451
      %v4458 = vpack.c.bf16 %v4454, %v4453
      %s4459 = scalar_lea.vmem %s12, 32
      %v4460 = vld [vmem:[%s4459] sm:$0xf]
      %v4461 = vld [vmem:[%s4459 + $0x4] sm:$0xf]
      %v4462 = vld [vmem:[%s4459 + $0x8] sm:$0xf]
      %v4463 = vld [vmem:[%s4459 + $0xc] sm:$0xf]
      %v4464 = vld [vmem:[%s4459 + $0x10] sm:$0xf]
      %v4465 = vld [vmem:[%s4459 + $0x14] sm:$0xf]
      %v4466 = vld [vmem:[%s4459 + $0x18] sm:$0xf]
      %v4467 = vld [vmem:[%s4459 + $0x1c] sm:$0xf]
      %v4476 = vunpack.c.l.b16 %v4460
      %v4477 = vunpack.c.l.b16 %v4461
      %v4478 = vunpack.c.l.b16 %v4462
      %v4479 = vunpack.c.l.b16 %v4463
      %v4480 = vunpack.c.l.b16 %v4464
      %v4481 = vunpack.c.l.b16 %v4465
      %v4482 = vunpack.c.l.b16 %v4466
      %v4483 = vunpack.c.l.b16 %v4467
      %v4484 = vpack.c.b16 %v4477, %v4476
      %v4485 = vpack.c.b16 %v4479, %v4478
      %v4486 = vpack.c.b16 %v4481, %v4480
      %v4487 = vpack.c.b16 %v4483, %v4482
      %v4493 = vsel %vm3318, %v4455, 0
      %v4496 = vsel %vm3318, %v4456, 0
      %v4499 = vsel %vm3318, %v4457, 0
      %v4502 = vsel %vm3318, %v4458, 0
      %4504 = vmatprep.subr.bf16.mxu0 0
      %4505 = vmatpush1.bf16.msra.mxu0 0
      %4506 = vmatprep.subr.bf16.mxu0 0
      %4507 = vmatpush1.bf16.msra.mxu0 0
      %4508 = vmatprep.subr.bf16.mxu0 0
      %4509 = vmatpush1.bf16.msra.mxu0 0
      %4510 = vmatprep.subr.bf16.mxu0 0
      %4511 = vmatpush1.bf16.msra.mxu0 0
      %4512 = vmatprep.subr.bf16.mxu0 0
      %4513 = vmatpush1.bf16.msra.mxu0 %v4487
      %4514 = vmatprep.subr.bf16.mxu0 0
      %4515 = vmatpush1.bf16.msra.mxu0 %v4486
      %4516 = vmatprep.subr.bf16.mxu0 0
      %4517 = vmatpush1.bf16.msra.mxu0 %v4485
      %4518 = vmatprep.subr.bf16.mxu0 0
      %4519 = vmatpush1.bf16.msra.mxu0 %v4484
      %4520 = vmatprep.subr.bf16.mxu0 0
      %4521 = vmatpush2.bf16.msra.mxu0 0
      %4522 = vmatprep.subr.bf16.mxu0 0
      %4523 = vmatpush2.bf16.msra.mxu0 0
      %4524 = vmatprep.subr.bf16.mxu0 0
      %4525 = vmatpush2.bf16.msra.mxu0 0
      %4526 = vmatprep.subr.bf16.mxu0 0
      %4527 = vmatpush2.bf16.msra.mxu0 0
      %4528 = vmatprep.subr.bf16.mxu0 0
      %4529 = vmatpush2.bf16.msra.mxu0 0
      %4530 = vmatprep.subr.bf16.mxu0 0
      %4531 = vmatpush2.bf16.msra.mxu0 0
      %4532 = vmatprep.subr.bf16.mxu0 0
      %4533 = vmatpush2.bf16.msra.mxu0 0
      %4534 = vmatprep.subr.bf16.mxu0 0
      %4535 = vmatpush2.bf16.msra.mxu0 0
      %4536 = vmatprep.mubr.bf16.mxu0 0
      %4537 = vmatmul.mubr.bf16.gmra.mxu0 %v4493
      %v4538 = vpop.f32.mrf.mxu0
      %v4539 = vadd.f32 0.0, %v4538
      %v4540 = vpop.f32.mrf.mxu0
      %v4541 = vpop.f32.mrf.mxu0
      %v4542 = vadd.f32 0.0, %v4541
      %v4543 = vpop.f32.mrf.mxu0
      %4544 = vmatprep.mubr.bf16.mxu0 0
      %4545 = vmatmul.mubr.bf16.gmra.mxu0 %v4496
      %v4546 = vpop.f32.mrf.mxu0
      %v4547 = vadd.f32 0.0, %v4546
      %v4548 = vpop.f32.mrf.mxu0
      %v4549 = vpop.f32.mrf.mxu0
      %v4550 = vadd.f32 0.0, %v4549
      %v4551 = vpop.f32.mrf.mxu0
      %4552 = vmatprep.mubr.bf16.mxu0 0
      %4553 = vmatmul.mubr.bf16.gmra.mxu0 %v4499
      %v4554 = vpop.f32.mrf.mxu0
      %v4555 = vadd.f32 0.0, %v4554
      %v4556 = vpop.f32.mrf.mxu0
      %v4557 = vpop.f32.mrf.mxu0
      %v4558 = vadd.f32 0.0, %v4557
      %v4559 = vpop.f32.mrf.mxu0
      %4560 = vmatprep.mubr.bf16.mxu0 0
      %4561 = vmatmul.mubr.bf16.gmra.mxu0 %v4502
      %v4562 = vpop.f32.mrf.mxu0
      %v4563 = vadd.f32 0.0, %v4562
      %v4564 = vpop.f32.mrf.mxu0
      %v4565 = vpop.f32.mrf.mxu0
      %v4566 = vadd.f32 0.0, %v4565
      %v4567 = vpop.f32.mrf.mxu0
      %4568 = vdwg.mxu0
      %v4577 = vunpack.c.l.b16 %v4439
      %v4578 = vunpack.c.l.b16 %v4440
      %v4579 = vunpack.c.l.b16 %v4441
      %v4580 = vunpack.c.l.b16 %v4442
      %v4581 = vunpack.c.l.b16 %v4443
      %v4582 = vunpack.c.l.b16 %v4444
      %v4583 = vunpack.c.l.b16 %v4445
      %v4584 = vunpack.c.l.b16 %v4446
      %v4585 = vpack.c.b16 %v4578, %v4577
      %v4586 = vpack.c.b16 %v4580, %v4579
      %v4587 = vpack.c.b16 %v4582, %v4581
      %v4588 = vpack.c.b16 %v4584, %v4583
      %v4594 = vsel %vm3318, %v4435, 0
      %v4597 = vsel %vm3318, %v4436, 0
      %v4600 = vsel %vm3318, %v4437, 0
      %v4603 = vsel %vm3318, %v4438, 0
      %4605 = vmatprep.subr.bf16.mxu0 0
      %4606 = vmatpush1.bf16.msra.mxu0 0
      %4607 = vmatprep.subr.bf16.mxu0 0
      %4608 = vmatpush1.bf16.msra.mxu0 0
      %4609 = vmatprep.subr.bf16.mxu0 0
      %4610 = vmatpush1.bf16.msra.mxu0 0
      %4611 = vmatprep.subr.bf16.mxu0 0
      %4612 = vmatpush1.bf16.msra.mxu0 0
      %4613 = vmatprep.subr.bf16.mxu0 0
      %4614 = vmatpush1.bf16.msra.mxu0 %v4588
      %4615 = vmatprep.subr.bf16.mxu0 0
      %4616 = vmatpush1.bf16.msra.mxu0 %v4587
      %4617 = vmatprep.subr.bf16.mxu0 0
      %4618 = vmatpush1.bf16.msra.mxu0 %v4586
      %4619 = vmatprep.subr.bf16.mxu0 0
      %4620 = vmatpush1.bf16.msra.mxu0 %v4585
      %4621 = vmatprep.subr.bf16.mxu0 0
      %4622 = vmatpush2.bf16.msra.mxu0 0
      %4623 = vmatprep.subr.bf16.mxu0 0
      %4624 = vmatpush2.bf16.msra.mxu0 0
      %4625 = vmatprep.subr.bf16.mxu0 0
      %4626 = vmatpush2.bf16.msra.mxu0 0
      %4627 = vmatprep.subr.bf16.mxu0 0
      %4628 = vmatpush2.bf16.msra.mxu0 0
      %4629 = vmatprep.subr.bf16.mxu0 0
      %4630 = vmatpush2.bf16.msra.mxu0 0
      %4631 = vmatprep.subr.bf16.mxu0 0
      %4632 = vmatpush2.bf16.msra.mxu0 0
      %4633 = vmatprep.subr.bf16.mxu0 0
      %4634 = vmatpush2.bf16.msra.mxu0 0
      %4635 = vmatprep.subr.bf16.mxu0 0
      %4636 = vmatpush2.bf16.msra.mxu0 0
      %4637 = vmatprep.mubr.bf16.mxu0 0
      %4638 = vmatmul.mubr.bf16.gmra.mxu0 %v4594
      %v4639 = vpop.f32.mrf.mxu0
      %v4640 = vadd.f32 %v4539, %v4639
      %v4641 = vpop.f32.mrf.mxu0
      %v4642 = vpop.f32.mrf.mxu0
      %v4643 = vadd.f32 %v4542, %v4642
      %v4644 = vpop.f32.mrf.mxu0
      %4645 = vmatprep.mubr.bf16.mxu0 0
      %4646 = vmatmul.mubr.bf16.gmra.mxu0 %v4597
      %v4647 = vpop.f32.mrf.mxu0
      %v4648 = vadd.f32 %v4547, %v4647
      %v4649 = vpop.f32.mrf.mxu0
      %v4650 = vpop.f32.mrf.mxu0
      %v4651 = vadd.f32 %v4550, %v4650
      %v4652 = vpop.f32.mrf.mxu0
      %4653 = vmatprep.mubr.bf16.mxu0 0
      %4654 = vmatmul.mubr.bf16.gmra.mxu0 %v4600
      %v4655 = vpop.f32.mrf.mxu0
      %v4656 = vadd.f32 %v4555, %v4655
      %v4657 = vpop.f32.mrf.mxu0
      %v4658 = vpop.f32.mrf.mxu0
      %v4659 = vadd.f32 %v4558, %v4658
      %v4660 = vpop.f32.mrf.mxu0
      %4661 = vmatprep.mubr.bf16.mxu0 0
      %4662 = vmatmul.mubr.bf16.gmra.mxu0 %v4603
      %v4663 = vpop.f32.mrf.mxu0
      %v4664 = vadd.f32 %v4563, %v4663
      %v4665 = vpop.f32.mrf.mxu0
      %v4666 = vpop.f32.mrf.mxu0
      %v4667 = vadd.f32 %v4566, %v4666
      %v4668 = vpop.f32.mrf.mxu0
      %4669 = vdwg.mxu0
      %v4670 = vld [vmem:[#allocation2 + $0x2] sm:$0xff]
      %v4671 = vld [vmem:[#allocation2 + $0x12] sm:$0xff]
      %v4672 = vld [vmem:[#allocation2 + $0x22] sm:$0xff]
      %v4673 = vld [vmem:[#allocation2 + $0x32] sm:$0xff]
      %v4674 = vld [vmem:[#allocation2 + $0x42] sm:$0xff]
      %v4675 = vld [vmem:[#allocation2 + $0x52] sm:$0xff]
      %v4676 = vld [vmem:[#allocation2 + $0x62] sm:$0xff]
      %v4677 = vld [vmem:[#allocation2 + $0x72] sm:$0xff]
      %v4678 = vpack.c.bf16 %v4671, %v4670
      %v4679 = vpack.c.bf16 %v4673, %v4672
      %v4680 = vpack.c.bf16 %v4675, %v4674
      %v4681 = vpack.c.bf16 %v4677, %v4676
      %s4682 = scalar_lea.vmem %s12, 64
      %v4683 = vld [vmem:[%s4682] sm:$0xf]
      %v4684 = vld [vmem:[%s4682 + $0x4] sm:$0xf]
      %v4685 = vld [vmem:[%s4682 + $0x8] sm:$0xf]
      %v4686 = vld [vmem:[%s4682 + $0xc] sm:$0xf]
      %v4687 = vld [vmem:[%s4682 + $0x10] sm:$0xf]
      %v4688 = vld [vmem:[%s4682 + $0x14] sm:$0xf]
      %v4689 = vld [vmem:[%s4682 + $0x18] sm:$0xf]
      %v4690 = vld [vmem:[%s4682 + $0x1c] sm:$0xf]
      %v4699 = vunpack.c.l.b16 %v4683
      %v4700 = vunpack.c.l.b16 %v4684
      %v4701 = vunpack.c.l.b16 %v4685
      %v4702 = vunpack.c.l.b16 %v4686
      %v4703 = vunpack.c.l.b16 %v4687
      %v4704 = vunpack.c.l.b16 %v4688
      %v4705 = vunpack.c.l.b16 %v4689
      %v4706 = vunpack.c.l.b16 %v4690
      %v4707 = vpack.c.b16 %v4700, %v4699
      %v4708 = vpack.c.b16 %v4702, %v4701
      %v4709 = vpack.c.b16 %v4704, %v4703
      %v4710 = vpack.c.b16 %v4706, %v4705
      %v4716 = vsel %vm3318, %v4678, 0
      %v4719 = vsel %vm3318, %v4679, 0
      %v4722 = vsel %vm3318, %v4680, 0
      %v4725 = vsel %vm3318, %v4681, 0
      %4727 = vmatprep.subr.bf16.mxu0 0
      %4728 = vmatpush1.bf16.msra.mxu0 0
      %4729 = vmatprep.subr.bf16.mxu0 0
      %4730 = vmatpush1.bf16.msra.mxu0 0
      %4731 = vmatprep.subr.bf16.mxu0 0
      %4732 = vmatpush1.bf16.msra.mxu0 0
      %4733 = vmatprep.subr.bf16.mxu0 0
      %4734 = vmatpush1.bf16.msra.mxu0 0
      %4735 = vmatprep.subr.bf16.mxu0 0
      %4736 = vmatpush1.bf16.msra.mxu0 %v4710
      %4737 = vmatprep.subr.bf16.mxu0 0
      %4738 = vmatpush1.bf16.msra.mxu0 %v4709
      %4739 = vmatprep.subr.bf16.mxu0 0
      %4740 = vmatpush1.bf16.msra.mxu0 %v4708
      %4741 = vmatprep.subr.bf16.mxu0 0
      %4742 = vmatpush1.bf16.msra.mxu0 %v4707
      %4743 = vmatprep.subr.bf16.mxu0 0
      %4744 = vmatpush2.bf16.msra.mxu0 0
      %4745 = vmatprep.subr.bf16.mxu0 0
      %4746 = vmatpush2.bf16.msra.mxu0 0
      %4747 = vmatprep.subr.bf16.mxu0 0
      %4748 = vmatpush2.bf16.msra.mxu0 0
      %4749 = vmatprep.subr.bf16.mxu0 0
      %4750 = vmatpush2.bf16.msra.mxu0 0
      %4751 = vmatprep.subr.bf16.mxu0 0
      %4752 = vmatpush2.bf16.msra.mxu0 0
      %4753 = vmatprep.subr.bf16.mxu0 0
      %4754 = vmatpush2.bf16.msra.mxu0 0
      %4755 = vmatprep.subr.bf16.mxu0 0
      %4756 = vmatpush2.bf16.msra.mxu0 0
      %4757 = vmatprep.subr.bf16.mxu0 0
      %4758 = vmatpush2.bf16.msra.mxu0 0
      %4759 = vmatprep.mubr.bf16.mxu0 0
      %4760 = vmatmul.mubr.bf16.gmra.mxu0 %v4716
      %v4761 = vpop.f32.mrf.mxu0
      %v4762 = vadd.f32 0.0, %v4761
      %v4763 = vpop.f32.mrf.mxu0
      %v4764 = vpop.f32.mrf.mxu0
      %v4765 = vadd.f32 0.0, %v4764
      %v4766 = vpop.f32.mrf.mxu0
      %4767 = vmatprep.mubr.bf16.mxu0 0
      %4768 = vmatmul.mubr.bf16.gmra.mxu0 %v4719
      %v4769 = vpop.f32.mrf.mxu0
      %v4770 = vadd.f32 0.0, %v4769
      %v4771 = vpop.f32.mrf.mxu0
      %v4772 = vpop.f32.mrf.mxu0
      %v4773 = vadd.f32 0.0, %v4772
      %v4774 = vpop.f32.mrf.mxu0
      %4775 = vmatprep.mubr.bf16.mxu0 0
      %4776 = vmatmul.mubr.bf16.gmra.mxu0 %v4722
      %v4777 = vpop.f32.mrf.mxu0
      %v4778 = vadd.f32 0.0, %v4777
      %v4779 = vpop.f32.mrf.mxu0
      %v4780 = vpop.f32.mrf.mxu0
      %v4781 = vadd.f32 0.0, %v4780
      %v4782 = vpop.f32.mrf.mxu0
      %4783 = vmatprep.mubr.bf16.mxu0 0
      %4784 = vmatmul.mubr.bf16.gmra.mxu0 %v4725
      %v4785 = vpop.f32.mrf.mxu0
      %v4786 = vadd.f32 0.0, %v4785
      %v4787 = vpop.f32.mrf.mxu0
      %v4788 = vpop.f32.mrf.mxu0
      %v4789 = vadd.f32 0.0, %v4788
      %v4790 = vpop.f32.mrf.mxu0
      %4791 = vdwg.mxu0
      %v4792 = vadd.f32 %v4640, %v4762
      %v4793 = vadd.f32 %v4643, %v4765
      %v4794 = vadd.f32 %v4648, %v4770
      %v4795 = vadd.f32 %v4651, %v4773
      %v4796 = vadd.f32 %v4656, %v4778
      %v4797 = vadd.f32 %v4659, %v4781
      %v4798 = vadd.f32 %v4664, %v4786
      %v4799 = vadd.f32 %v4667, %v4789
      %v4800 = vld [vmem:[%s4418] sm:$0xff]
      %v4801 = vld [vmem:[%s4418 + $0x10] sm:$0xff]
      %v4802 = vld [vmem:[%s4418 + $0x20] sm:$0xff]
      %v4803 = vld [vmem:[%s4418 + $0x30] sm:$0xff]
      %v4804 = vld [vmem:[%s4418 + $0x40] sm:$0xff]
      %v4805 = vld [vmem:[%s4418 + $0x50] sm:$0xff]
      %v4806 = vld [vmem:[%s4418 + $0x60] sm:$0xff]
      %v4807 = vld [vmem:[%s4418 + $0x70] sm:$0xff]
      %v4808 = vpack.c.bf16 %v4801, %v4800
      %v4809 = vpack.c.bf16 %v4803, %v4802
      %v4810 = vpack.c.bf16 %v4805, %v4804
      %v4811 = vpack.c.bf16 %v4807, %v4806
      %s4812 = scalar_lea.vmem %s12, 96
      %v4813 = vld [vmem:[%s4812] sm:$0xf]
      %v4814 = vld [vmem:[%s4812 + $0x4] sm:$0xf]
      %v4815 = vld [vmem:[%s4812 + $0x8] sm:$0xf]
      %v4816 = vld [vmem:[%s4812 + $0xc] sm:$0xf]
      %v4817 = vld [vmem:[%s4812 + $0x10] sm:$0xf]
      %v4818 = vld [vmem:[%s4812 + $0x14] sm:$0xf]
      %v4819 = vld [vmem:[%s4812 + $0x18] sm:$0xf]
      %v4820 = vld [vmem:[%s4812 + $0x1c] sm:$0xf]
      %v4829 = vunpack.c.l.b16 %v4813
      %v4830 = vunpack.c.l.b16 %v4814
      %v4831 = vunpack.c.l.b16 %v4815
      %v4832 = vunpack.c.l.b16 %v4816
      %v4833 = vunpack.c.l.b16 %v4817
      %v4834 = vunpack.c.l.b16 %v4818
      %v4835 = vunpack.c.l.b16 %v4819
      %v4836 = vunpack.c.l.b16 %v4820
      %v4837 = vpack.c.b16 %v4830, %v4829
      %v4838 = vpack.c.b16 %v4832, %v4831
      %v4839 = vpack.c.b16 %v4834, %v4833
      %v4840 = vpack.c.b16 %v4836, %v4835
      %v4846 = vsel %vm3318, %v4808, 0
      %v4849 = vsel %vm3318, %v4809, 0
      %v4852 = vsel %vm3318, %v4810, 0
      %v4855 = vsel %vm3318, %v4811, 0
      %4857 = vmatprep.subr.bf16.mxu0 0
      %4858 = vmatpush1.bf16.msra.mxu0 0
      %4859 = vmatprep.subr.bf16.mxu0 0
      %4860 = vmatpush1.bf16.msra.mxu0 0
      %4861 = vmatprep.subr.bf16.mxu0 0
      %4862 = vmatpush1.bf16.msra.mxu0 0
      %4863 = vmatprep.subr.bf16.mxu0 0
      %4864 = vmatpush1.bf16.msra.mxu0 0
      %4865 = vmatprep.subr.bf16.mxu0 0
      %4866 = vmatpush1.bf16.msra.mxu0 %v4840
      %4867 = vmatprep.subr.bf16.mxu0 0
      %4868 = vmatpush1.bf16.msra.mxu0 %v4839
      %4869 = vmatprep.subr.bf16.mxu0 0
      %4870 = vmatpush1.bf16.msra.mxu0 %v4838
      %4871 = vmatprep.subr.bf16.mxu0 0
      %4872 = vmatpush1.bf16.msra.mxu0 %v4837
      %4873 = vmatprep.subr.bf16.mxu0 0
      %4874 = vmatpush2.bf16.msra.mxu0 0
      %4875 = vmatprep.subr.bf16.mxu0 0
      %4876 = vmatpush2.bf16.msra.mxu0 0
      %4877 = vmatprep.subr.bf16.mxu0 0
      %4878 = vmatpush2.bf16.msra.mxu0 0
      %4879 = vmatprep.subr.bf16.mxu0 0
      %4880 = vmatpush2.bf16.msra.mxu0 0
      %4881 = vmatprep.subr.bf16.mxu0 0
      %4882 = vmatpush2.bf16.msra.mxu0 0
      %4883 = vmatprep.subr.bf16.mxu0 0
      %4884 = vmatpush2.bf16.msra.mxu0 0
      %4885 = vmatprep.subr.bf16.mxu0 0
      %4886 = vmatpush2.bf16.msra.mxu0 0
      %4887 = vmatprep.subr.bf16.mxu0 0
      %4888 = vmatpush2.bf16.msra.mxu0 0
      %4889 = vmatprep.mubr.bf16.mxu0 0
      %4890 = vmatmul.mubr.bf16.gmra.mxu0 %v4846
      %v4891 = vpop.f32.mrf.mxu0
      %v4892 = vadd.f32 0.0, %v4891
      %v4893 = vpop.f32.mrf.mxu0
      %v4894 = vpop.f32.mrf.mxu0
      %v4895 = vadd.f32 0.0, %v4894
      %v4896 = vpop.f32.mrf.mxu0
      %4897 = vmatprep.mubr.bf16.mxu0 0
      %4898 = vmatmul.mubr.bf16.gmra.mxu0 %v4849
      %v4899 = vpop.f32.mrf.mxu0
      %v4900 = vadd.f32 0.0, %v4899
      %v4901 = vpop.f32.mrf.mxu0
      %v4902 = vpop.f32.mrf.mxu0
      %v4903 = vadd.f32 0.0, %v4902
      %v4904 = vpop.f32.mrf.mxu0
      %4905 = vmatprep.mubr.bf16.mxu0 0
      %4906 = vmatmul.mubr.bf16.gmra.mxu0 %v4852
      %v4907 = vpop.f32.mrf.mxu0
      %v4908 = vadd.f32 0.0, %v4907
      %v4909 = vpop.f32.mrf.mxu0
      %v4910 = vpop.f32.mrf.mxu0
      %v4911 = vadd.f32 0.0, %v4910
      %v4912 = vpop.f32.mrf.mxu0
      %4913 = vmatprep.mubr.bf16.mxu0 0
      %4914 = vmatmul.mubr.bf16.gmra.mxu0 %v4855
      %v4915 = vpop.f32.mrf.mxu0
      %v4916 = vadd.f32 0.0, %v4915
      %v4917 = vpop.f32.mrf.mxu0
      %v4918 = vpop.f32.mrf.mxu0
      %v4919 = vadd.f32 0.0, %v4918
      %v4920 = vpop.f32.mrf.mxu0
      %4921 = vdwg.mxu0
      %v4922 = vadd.f32 %v4792, %v4892
      %v4923 = vadd.f32 %v4793, %v4895
      %v4924 = vadd.f32 %v4794, %v4900
      %v4925 = vadd.f32 %v4795, %v4903
      %v4926 = vadd.f32 %v4796, %v4908
      %v4927 = vadd.f32 %v4797, %v4911
      %v4928 = vadd.f32 %v4798, %v4916
      %v4929 = vadd.f32 %v4799, %v4919
      %v4930 = vld [vmem:[%s4418 + $0x1] sm:$0xff]
      %v4931 = vld [vmem:[%s4418 + $0x11] sm:$0xff]
      %v4932 = vld [vmem:[%s4418 + $0x21] sm:$0xff]
      %v4933 = vld [vmem:[%s4418 + $0x31] sm:$0xff]
      %v4934 = vld [vmem:[%s4418 + $0x41] sm:$0xff]
      %v4935 = vld [vmem:[%s4418 + $0x51] sm:$0xff]
      %v4936 = vld [vmem:[%s4418 + $0x61] sm:$0xff]
      %v4937 = vld [vmem:[%s4418 + $0x71] sm:$0xff]
      %v4938 = vpack.c.bf16 %v4931, %v4930
      %v4939 = vpack.c.bf16 %v4933, %v4932
      %v4940 = vpack.c.bf16 %v4935, %v4934
      %v4941 = vpack.c.bf16 %v4937, %v4936
      %s4942 = scalar_lea.vmem %s12, 128
      %v4943 = vld [vmem:[%s4942] sm:$0xf]
      %v4944 = vld [vmem:[%s4942 + $0x4] sm:$0xf]
      %v4945 = vld [vmem:[%s4942 + $0x8] sm:$0xf]
      %v4946 = vld [vmem:[%s4942 + $0xc] sm:$0xf]
      %v4947 = vld [vmem:[%s4942 + $0x10] sm:$0xf]
      %v4948 = vld [vmem:[%s4942 + $0x14] sm:$0xf]
      %v4949 = vld [vmem:[%s4942 + $0x18] sm:$0xf]
      %v4950 = vld [vmem:[%s4942 + $0x1c] sm:$0xf]
      %v4959 = vunpack.c.l.b16 %v4943
      %v4960 = vunpack.c.l.b16 %v4944
      %v4961 = vunpack.c.l.b16 %v4945
      %v4962 = vunpack.c.l.b16 %v4946
      %v4963 = vunpack.c.l.b16 %v4947
      %v4964 = vunpack.c.l.b16 %v4948
      %v4965 = vunpack.c.l.b16 %v4949
      %v4966 = vunpack.c.l.b16 %v4950
      %v4967 = vpack.c.b16 %v4960, %v4959
      %v4968 = vpack.c.b16 %v4962, %v4961
      %v4969 = vpack.c.b16 %v4964, %v4963
      %v4970 = vpack.c.b16 %v4966, %v4965
      %v4976 = vsel %vm3318, %v4938, 0
      %v4979 = vsel %vm3318, %v4939, 0
      %v4982 = vsel %vm3318, %v4940, 0
      %v4985 = vsel %vm3318, %v4941, 0
      %4987 = vmatprep.subr.bf16.mxu0 0
      %4988 = vmatpush1.bf16.msra.mxu0 0
      %4989 = vmatprep.subr.bf16.mxu0 0
      %4990 = vmatpush1.bf16.msra.mxu0 0
      %4991 = vmatprep.subr.bf16.mxu0 0
      %4992 = vmatpush1.bf16.msra.mxu0 0
      %4993 = vmatprep.subr.bf16.mxu0 0
      %4994 = vmatpush1.bf16.msra.mxu0 0
      %4995 = vmatprep.subr.bf16.mxu0 0
      %4996 = vmatpush1.bf16.msra.mxu0 %v4970
      %4997 = vmatprep.subr.bf16.mxu0 0
      %4998 = vmatpush1.bf16.msra.mxu0 %v4969
      %4999 = vmatprep.subr.bf16.mxu0 0
      %5000 = vmatpush1.bf16.msra.mxu0 %v4968
      %5001 = vmatprep.subr.bf16.mxu0 0
      %5002 = vmatpush1.bf16.msra.mxu0 %v4967
      %5003 = vmatprep.subr.bf16.mxu0 0
      %5004 = vmatpush2.bf16.msra.mxu0 0
      %5005 = vmatprep.subr.bf16.mxu0 0
      %5006 = vmatpush2.bf16.msra.mxu0 0
      %5007 = vmatprep.subr.bf16.mxu0 0
      %5008 = vmatpush2.bf16.msra.mxu0 0
      %5009 = vmatprep.subr.bf16.mxu0 0
      %5010 = vmatpush2.bf16.msra.mxu0 0
      %5011 = vmatprep.subr.bf16.mxu0 0
      %5012 = vmatpush2.bf16.msra.mxu0 0
      %5013 = vmatprep.subr.bf16.mxu0 0
      %5014 = vmatpush2.bf16.msra.mxu0 0
      %5015 = vmatprep.subr.bf16.mxu0 0
      %5016 = vmatpush2.bf16.msra.mxu0 0
      %5017 = vmatprep.subr.bf16.mxu0 0
      %5018 = vmatpush2.bf16.msra.mxu0 0
      %5019 = vmatprep.mubr.bf16.mxu0 0
      %5020 = vmatmul.mubr.bf16.gmra.mxu0 %v4976
      %v5021 = vpop.f32.mrf.mxu0
      %v5022 = vadd.f32 0.0, %v5021
      %v5023 = vpop.f32.mrf.mxu0
      %v5024 = vpop.f32.mrf.mxu0
      %v5025 = vadd.f32 0.0, %v5024
      %v5026 = vpop.f32.mrf.mxu0
      %5027 = vmatprep.mubr.bf16.mxu0 0
      %5028 = vmatmul.mubr.bf16.gmra.mxu0 %v4979
      %v5029 = vpop.f32.mrf.mxu0
      %v5030 = vadd.f32 0.0, %v5029
      %v5031 = vpop.f32.mrf.mxu0
      %v5032 = vpop.f32.mrf.mxu0
      %v5033 = vadd.f32 0.0, %v5032
      %v5034 = vpop.f32.mrf.mxu0
      %5035 = vmatprep.mubr.bf16.mxu0 0
      %5036 = vmatmul.mubr.bf16.gmra.mxu0 %v4982
      %v5037 = vpop.f32.mrf.mxu0
      %v5038 = vadd.f32 0.0, %v5037
      %v5039 = vpop.f32.mrf.mxu0
      %v5040 = vpop.f32.mrf.mxu0
      %v5041 = vadd.f32 0.0, %v5040
      %v5042 = vpop.f32.mrf.mxu0
      %5043 = vmatprep.mubr.bf16.mxu0 0
      %5044 = vmatmul.mubr.bf16.gmra.mxu0 %v4985
      %v5045 = vpop.f32.mrf.mxu0
      %v5046 = vadd.f32 0.0, %v5045
      %v5047 = vpop.f32.mrf.mxu0
      %v5048 = vpop.f32.mrf.mxu0
      %v5049 = vadd.f32 0.0, %v5048
      %v5050 = vpop.f32.mrf.mxu0
      %5051 = vdwg.mxu0
      %v5052 = vadd.f32 %v4922, %v5022
      %v5053 = vadd.f32 %v4923, %v5025
      %v5054 = vadd.f32 %v4924, %v5030
      %v5055 = vadd.f32 %v4925, %v5033
      %v5056 = vadd.f32 %v4926, %v5038
      %v5057 = vadd.f32 %v4927, %v5041
      %v5058 = vadd.f32 %v4928, %v5046
      %v5059 = vadd.f32 %v4929, %v5049
      %v5060 = vld [vmem:[%s4418 + $0x2] sm:$0xff]
      %v5061 = vld [vmem:[%s4418 + $0x12] sm:$0xff]
      %v5062 = vld [vmem:[%s4418 + $0x22] sm:$0xff]
      %v5063 = vld [vmem:[%s4418 + $0x32] sm:$0xff]
      %v5064 = vld [vmem:[%s4418 + $0x42] sm:$0xff]
      %v5065 = vld [vmem:[%s4418 + $0x52] sm:$0xff]
      %v5066 = vld [vmem:[%s4418 + $0x62] sm:$0xff]
      %v5067 = vld [vmem:[%s4418 + $0x72] sm:$0xff]
      %v5068 = vpack.c.bf16 %v5061, %v5060
      %v5069 = vpack.c.bf16 %v5063, %v5062
      %v5070 = vpack.c.bf16 %v5065, %v5064
      %v5071 = vpack.c.bf16 %v5067, %v5066
      %s5072 = scalar_lea.vmem %s12, 160
      %v5073 = vld [vmem:[%s5072] sm:$0xf]
      %v5074 = vld [vmem:[%s5072 + $0x4] sm:$0xf]
      %v5075 = vld [vmem:[%s5072 + $0x8] sm:$0xf]
      %v5076 = vld [vmem:[%s5072 + $0xc] sm:$0xf]
      %v5077 = vld [vmem:[%s5072 + $0x10] sm:$0xf]
      %v5078 = vld [vmem:[%s5072 + $0x14] sm:$0xf]
      %v5079 = vld [vmem:[%s5072 + $0x18] sm:$0xf]
      %v5080 = vld [vmem:[%s5072 + $0x1c] sm:$0xf]
      %v5089 = vunpack.c.l.b16 %v5073
      %v5090 = vunpack.c.l.b16 %v5074
      %v5091 = vunpack.c.l.b16 %v5075
      %v5092 = vunpack.c.l.b16 %v5076
      %v5093 = vunpack.c.l.b16 %v5077
      %v5094 = vunpack.c.l.b16 %v5078
      %v5095 = vunpack.c.l.b16 %v5079
      %v5096 = vunpack.c.l.b16 %v5080
      %v5097 = vpack.c.b16 %v5090, %v5089
      %v5098 = vpack.c.b16 %v5092, %v5091
      %v5099 = vpack.c.b16 %v5094, %v5093
      %v5100 = vpack.c.b16 %v5096, %v5095
      %v5106 = vsel %vm3318, %v5068, 0
      %v5109 = vsel %vm3318, %v5069, 0
      %v5112 = vsel %vm3318, %v5070, 0
      %v5115 = vsel %vm3318, %v5071, 0
      %5117 = vmatprep.subr.bf16.mxu0 0
      %5118 = vmatpush1.bf16.msra.mxu0 0
      %5119 = vmatprep.subr.bf16.mxu0 0
      %5120 = vmatpush1.bf16.msra.mxu0 0
      %5121 = vmatprep.subr.bf16.mxu0 0
      %5122 = vmatpush1.bf16.msra.mxu0 0
      %5123 = vmatprep.subr.bf16.mxu0 0
      %5124 = vmatpush1.bf16.msra.mxu0 0
      %5125 = vmatprep.subr.bf16.mxu0 0
      %5126 = vmatpush1.bf16.msra.mxu0 %v5100
      %5127 = vmatprep.subr.bf16.mxu0 0
      %5128 = vmatpush1.bf16.msra.mxu0 %v5099
      %5129 = vmatprep.subr.bf16.mxu0 0
      %5130 = vmatpush1.bf16.msra.mxu0 %v5098
      %5131 = vmatprep.subr.bf16.mxu0 0
      %5132 = vmatpush1.bf16.msra.mxu0 %v5097
      %5133 = vmatprep.subr.bf16.mxu0 0
      %5134 = vmatpush2.bf16.msra.mxu0 0
      %5135 = vmatprep.subr.bf16.mxu0 0
      %5136 = vmatpush2.bf16.msra.mxu0 0
      %5137 = vmatprep.subr.bf16.mxu0 0
      %5138 = vmatpush2.bf16.msra.mxu0 0
      %5139 = vmatprep.subr.bf16.mxu0 0
      %5140 = vmatpush2.bf16.msra.mxu0 0
      %5141 = vmatprep.subr.bf16.mxu0 0
      %5142 = vmatpush2.bf16.msra.mxu0 0
      %5143 = vmatprep.subr.bf16.mxu0 0
      %5144 = vmatpush2.bf16.msra.mxu0 0
      %5145 = vmatprep.subr.bf16.mxu0 0
      %5146 = vmatpush2.bf16.msra.mxu0 0
      %5147 = vmatprep.subr.bf16.mxu0 0
      %5148 = vmatpush2.bf16.msra.mxu0 0
      %5149 = vmatprep.mubr.bf16.mxu0 0
      %5150 = vmatmul.mubr.bf16.gmra.mxu0 %v5106
      %v5151 = vpop.f32.mrf.mxu0
      %v5152 = vadd.f32 0.0, %v5151
      %v5153 = vpop.f32.mrf.mxu0
      %v5154 = vpop.f32.mrf.mxu0
      %v5155 = vadd.f32 0.0, %v5154
      %v5156 = vpop.f32.mrf.mxu0
      %5157 = vmatprep.mubr.bf16.mxu0 0
      %5158 = vmatmul.mubr.bf16.gmra.mxu0 %v5109
      %v5159 = vpop.f32.mrf.mxu0
      %v5160 = vadd.f32 0.0, %v5159
      %v5161 = vpop.f32.mrf.mxu0
      %v5162 = vpop.f32.mrf.mxu0
      %v5163 = vadd.f32 0.0, %v5162
      %v5164 = vpop.f32.mrf.mxu0
      %5165 = vmatprep.mubr.bf16.mxu0 0
      %5166 = vmatmul.mubr.bf16.gmra.mxu0 %v5112
      %v5167 = vpop.f32.mrf.mxu0
      %v5168 = vadd.f32 0.0, %v5167
      %v5169 = vpop.f32.mrf.mxu0
      %v5170 = vpop.f32.mrf.mxu0
      %v5171 = vadd.f32 0.0, %v5170
      %v5172 = vpop.f32.mrf.mxu0
      %5173 = vmatprep.mubr.bf16.mxu0 0
      %5174 = vmatmul.mubr.bf16.gmra.mxu0 %v5115
      %v5175 = vpop.f32.mrf.mxu0
      %v5176 = vadd.f32 0.0, %v5175
      %v5177 = vpop.f32.mrf.mxu0
      %v5178 = vpop.f32.mrf.mxu0
      %v5179 = vadd.f32 0.0, %v5178
      %v5180 = vpop.f32.mrf.mxu0
      %5181 = vdwg.mxu0
      %v5182 = vadd.f32 %v5052, %v5152
      %v5183 = vadd.f32 %v5053, %v5155
      %v5184 = vadd.f32 %v5054, %v5160
      %v5185 = vadd.f32 %v5055, %v5163
      %v5186 = vadd.f32 %v5056, %v5168
      %v5187 = vadd.f32 %v5057, %v5171
      %v5188 = vadd.f32 %v5058, %v5176
      %v5189 = vadd.f32 %v5059, %v5179
      %s5190 = scalar_lea.vmem [#allocation2], 32
      %v5191 = vld [vmem:[%s5190] sm:$0xff]
      %v5192 = vld [vmem:[%s5190 + $0x10] sm:$0xff]
      %v5193 = vld [vmem:[%s5190 + $0x20] sm:$0xff]
      %v5194 = vld [vmem:[%s5190 + $0x30] sm:$0xff]
      %v5195 = vld [vmem:[%s5190 + $0x40] sm:$0xff]
      %v5196 = vld [vmem:[%s5190 + $0x50] sm:$0xff]
      %v5197 = vld [vmem:[%s5190 + $0x60] sm:$0xff]
      %v5198 = vld [vmem:[%s5190 + $0x70] sm:$0xff]
      %v5199 = vpack.c.bf16 %v5192, %v5191
      %v5200 = vpack.c.bf16 %v5194, %v5193
      %v5201 = vpack.c.bf16 %v5196, %v5195
      %v5202 = vpack.c.bf16 %v5198, %v5197
      %s5203 = scalar_lea.vmem %s12, 192
      %v5204 = vld [vmem:[%s5203] sm:$0xf]
      %v5205 = vld [vmem:[%s5203 + $0x4] sm:$0xf]
      %v5206 = vld [vmem:[%s5203 + $0x8] sm:$0xf]
      %v5207 = vld [vmem:[%s5203 + $0xc] sm:$0xf]
      %v5208 = vld [vmem:[%s5203 + $0x10] sm:$0xf]
      %v5209 = vld [vmem:[%s5203 + $0x14] sm:$0xf]
      %v5210 = vld [vmem:[%s5203 + $0x18] sm:$0xf]
      %v5211 = vld [vmem:[%s5203 + $0x1c] sm:$0xf]
      %v5220 = vunpack.c.l.b16 %v5204
      %v5221 = vunpack.c.l.b16 %v5205
      %v5222 = vunpack.c.l.b16 %v5206
      %v5223 = vunpack.c.l.b16 %v5207
      %v5224 = vunpack.c.l.b16 %v5208
      %v5225 = vunpack.c.l.b16 %v5209
      %v5226 = vunpack.c.l.b16 %v5210
      %v5227 = vunpack.c.l.b16 %v5211
      %v5228 = vpack.c.b16 %v5221, %v5220
      %v5229 = vpack.c.b16 %v5223, %v5222
      %v5230 = vpack.c.b16 %v5225, %v5224
      %v5231 = vpack.c.b16 %v5227, %v5226
      %v5237 = vsel %vm3318, %v5199, 0
      %v5240 = vsel %vm3318, %v5200, 0
      %v5243 = vsel %vm3318, %v5201, 0
      %v5246 = vsel %vm3318, %v5202, 0
      %5248 = vmatprep.subr.bf16.mxu0 0
      %5249 = vmatpush1.bf16.msra.mxu0 0
      %5250 = vmatprep.subr.bf16.mxu0 0
      %5251 = vmatpush1.bf16.msra.mxu0 0
      %5252 = vmatprep.subr.bf16.mxu0 0
      %5253 = vmatpush1.bf16.msra.mxu0 0
      %5254 = vmatprep.subr.bf16.mxu0 0
      %5255 = vmatpush1.bf16.msra.mxu0 0
      %5256 = vmatprep.subr.bf16.mxu0 0
      %5257 = vmatpush1.bf16.msra.mxu0 %v5231
      %5258 = vmatprep.subr.bf16.mxu0 0
      %5259 = vmatpush1.bf16.msra.mxu0 %v5230
      %5260 = vmatprep.subr.bf16.mxu0 0
      %5261 = vmatpush1.bf16.msra.mxu0 %v5229
      %5262 = vmatprep.subr.bf16.mxu0 0
      %5263 = vmatpush1.bf16.msra.mxu0 %v5228
      %5264 = vmatprep.subr.bf16.mxu0 0
      %5265 = vmatpush2.bf16.msra.mxu0 0
      %5266 = vmatprep.subr.bf16.mxu0 0
      %5267 = vmatpush2.bf16.msra.mxu0 0
      %5268 = vmatprep.subr.bf16.mxu0 0
      %5269 = vmatpush2.bf16.msra.mxu0 0
      %5270 = vmatprep.subr.bf16.mxu0 0
      %5271 = vmatpush2.bf16.msra.mxu0 0
      %5272 = vmatprep.subr.bf16.mxu0 0
      %5273 = vmatpush2.bf16.msra.mxu0 0
      %5274 = vmatprep.subr.bf16.mxu0 0
      %5275 = vmatpush2.bf16.msra.mxu0 0
      %5276 = vmatprep.subr.bf16.mxu0 0
      %5277 = vmatpush2.bf16.msra.mxu0 0
      %5278 = vmatprep.subr.bf16.mxu0 0
      %5279 = vmatpush2.bf16.msra.mxu0 0
      %5280 = vmatprep.mubr.bf16.mxu0 0
      %5281 = vmatmul.mubr.bf16.gmra.mxu0 %v5237
      %v5282 = vpop.f32.mrf.mxu0
      %v5283 = vadd.f32 0.0, %v5282
      %v5284 = vpop.f32.mrf.mxu0
      %v5285 = vpop.f32.mrf.mxu0
      %v5286 = vadd.f32 0.0, %v5285
      %v5287 = vpop.f32.mrf.mxu0
      %5288 = vmatprep.mubr.bf16.mxu0 0
      %5289 = vmatmul.mubr.bf16.gmra.mxu0 %v5240
      %v5290 = vpop.f32.mrf.mxu0
      %v5291 = vadd.f32 0.0, %v5290
      %v5292 = vpop.f32.mrf.mxu0
      %v5293 = vpop.f32.mrf.mxu0
      %v5294 = vadd.f32 0.0, %v5293
      %v5295 = vpop.f32.mrf.mxu0
      %5296 = vmatprep.mubr.bf16.mxu0 0
      %5297 = vmatmul.mubr.bf16.gmra.mxu0 %v5243
      %v5298 = vpop.f32.mrf.mxu0
      %v5299 = vadd.f32 0.0, %v5298
      %v5300 = vpop.f32.mrf.mxu0
      %v5301 = vpop.f32.mrf.mxu0
      %v5302 = vadd.f32 0.0, %v5301
      %v5303 = vpop.f32.mrf.mxu0
      %5304 = vmatprep.mubr.bf16.mxu0 0
      %5305 = vmatmul.mubr.bf16.gmra.mxu0 %v5246
      %v5306 = vpop.f32.mrf.mxu0
      %v5307 = vadd.f32 0.0, %v5306
      %v5308 = vpop.f32.mrf.mxu0
      %v5309 = vpop.f32.mrf.mxu0
      %v5310 = vadd.f32 0.0, %v5309
      %v5311 = vpop.f32.mrf.mxu0
      %5312 = vdwg.mxu0
      %v5313 = vadd.f32 %v5182, %v5283
      %v5314 = vadd.f32 %v5183, %v5286
      %v5315 = vadd.f32 %v5184, %v5291
      %v5316 = vadd.f32 %v5185, %v5294
      %v5317 = vadd.f32 %v5186, %v5299
      %v5318 = vadd.f32 %v5187, %v5302
      %v5319 = vadd.f32 %v5188, %v5307
      %v5320 = vadd.f32 %v5189, %v5310
      %v5321 = vld [vmem:[%s5190 + $0x1] sm:$0xff]
      %v5322 = vld [vmem:[%s5190 + $0x11] sm:$0xff]
      %v5323 = vld [vmem:[%s5190 + $0x21] sm:$0xff]
      %v5324 = vld [vmem:[%s5190 + $0x31] sm:$0xff]
      %v5325 = vld [vmem:[%s5190 + $0x41] sm:$0xff]
      %v5326 = vld [vmem:[%s5190 + $0x51] sm:$0xff]
      %v5327 = vld [vmem:[%s5190 + $0x61] sm:$0xff]
      %v5328 = vld [vmem:[%s5190 + $0x71] sm:$0xff]
      %v5329 = vpack.c.bf16 %v5322, %v5321
      %v5330 = vpack.c.bf16 %v5324, %v5323
      %v5331 = vpack.c.bf16 %v5326, %v5325
      %v5332 = vpack.c.bf16 %v5328, %v5327
      %s5333 = scalar_lea.vmem %s12, 224
      %v5334 = vld [vmem:[%s5333] sm:$0xf]
      %v5335 = vld [vmem:[%s5333 + $0x4] sm:$0xf]
      %v5336 = vld [vmem:[%s5333 + $0x8] sm:$0xf]
      %v5337 = vld [vmem:[%s5333 + $0xc] sm:$0xf]
      %v5338 = vld [vmem:[%s5333 + $0x10] sm:$0xf]
      %v5339 = vld [vmem:[%s5333 + $0x14] sm:$0xf]
      %v5340 = vld [vmem:[%s5333 + $0x18] sm:$0xf]
      %v5341 = vld [vmem:[%s5333 + $0x1c] sm:$0xf]
      %v5350 = vunpack.c.l.b16 %v5334
      %v5351 = vunpack.c.l.b16 %v5335
      %v5352 = vunpack.c.l.b16 %v5336
      %v5353 = vunpack.c.l.b16 %v5337
      %v5354 = vunpack.c.l.b16 %v5338
      %v5355 = vunpack.c.l.b16 %v5339
      %v5356 = vunpack.c.l.b16 %v5340
      %v5357 = vunpack.c.l.b16 %v5341
      %v5358 = vpack.c.b16 %v5351, %v5350
      %v5359 = vpack.c.b16 %v5353, %v5352
      %v5360 = vpack.c.b16 %v5355, %v5354
      %v5361 = vpack.c.b16 %v5357, %v5356
      %v5367 = vsel %vm3318, %v5329, 0
      %v5370 = vsel %vm3318, %v5330, 0
      %v5373 = vsel %vm3318, %v5331, 0
      %v5376 = vsel %vm3318, %v5332, 0
      %5378 = vmatprep.subr.bf16.mxu0 0
      %5379 = vmatpush1.bf16.msra.mxu0 0
      %5380 = vmatprep.subr.bf16.mxu0 0
      %5381 = vmatpush1.bf16.msra.mxu0 0
      %5382 = vmatprep.subr.bf16.mxu0 0
      %5383 = vmatpush1.bf16.msra.mxu0 0
      %5384 = vmatprep.subr.bf16.mxu0 0
      %5385 = vmatpush1.bf16.msra.mxu0 0
      %5386 = vmatprep.subr.bf16.mxu0 0
      %5387 = vmatpush1.bf16.msra.mxu0 %v5361
      %5388 = vmatprep.subr.bf16.mxu0 0
      %5389 = vmatpush1.bf16.msra.mxu0 %v5360
      %5390 = vmatprep.subr.bf16.mxu0 0
      %5391 = vmatpush1.bf16.msra.mxu0 %v5359
      %5392 = vmatprep.subr.bf16.mxu0 0
      %5393 = vmatpush1.bf16.msra.mxu0 %v5358
      %5394 = vmatprep.subr.bf16.mxu0 0
      %5395 = vmatpush2.bf16.msra.mxu0 0
      %5396 = vmatprep.subr.bf16.mxu0 0
      %5397 = vmatpush2.bf16.msra.mxu0 0
      %5398 = vmatprep.subr.bf16.mxu0 0
      %5399 = vmatpush2.bf16.msra.mxu0 0
      %5400 = vmatprep.subr.bf16.mxu0 0
      %5401 = vmatpush2.bf16.msra.mxu0 0
      %5402 = vmatprep.subr.bf16.mxu0 0
      %5403 = vmatpush2.bf16.msra.mxu0 0
      %5404 = vmatprep.subr.bf16.mxu0 0
      %5405 = vmatpush2.bf16.msra.mxu0 0
      %5406 = vmatprep.subr.bf16.mxu0 0
      %5407 = vmatpush2.bf16.msra.mxu0 0
      %5408 = vmatprep.subr.bf16.mxu0 0
      %5409 = vmatpush2.bf16.msra.mxu0 0
      %5410 = vmatprep.mubr.bf16.mxu0 0
      %5411 = vmatmul.mubr.bf16.gmra.mxu0 %v5367
      %v5412 = vpop.f32.mrf.mxu0
      %v5413 = vadd.f32 0.0, %v5412
      %v5414 = vpop.f32.mrf.mxu0
      %v5415 = vpop.f32.mrf.mxu0
      %v5416 = vadd.f32 0.0, %v5415
      %v5417 = vpop.f32.mrf.mxu0
      %5418 = vmatprep.mubr.bf16.mxu0 0
      %5419 = vmatmul.mubr.bf16.gmra.mxu0 %v5370
      %v5420 = vpop.f32.mrf.mxu0
      %v5421 = vadd.f32 0.0, %v5420
      %v5422 = vpop.f32.mrf.mxu0
      %v5423 = vpop.f32.mrf.mxu0
      %v5424 = vadd.f32 0.0, %v5423
      %v5425 = vpop.f32.mrf.mxu0
      %5426 = vmatprep.mubr.bf16.mxu0 0
      %5427 = vmatmul.mubr.bf16.gmra.mxu0 %v5373
      %v5428 = vpop.f32.mrf.mxu0
      %v5429 = vadd.f32 0.0, %v5428
      %v5430 = vpop.f32.mrf.mxu0
      %v5431 = vpop.f32.mrf.mxu0
      %v5432 = vadd.f32 0.0, %v5431
      %v5433 = vpop.f32.mrf.mxu0
      %5434 = vmatprep.mubr.bf16.mxu0 0
      %5435 = vmatmul.mubr.bf16.gmra.mxu0 %v5376
      %v5436 = vpop.f32.mrf.mxu0
      %v5437 = vadd.f32 0.0, %v5436
      %v5438 = vpop.f32.mrf.mxu0
      %v5439 = vpop.f32.mrf.mxu0
      %v5440 = vadd.f32 0.0, %v5439
      %v5441 = vpop.f32.mrf.mxu0
      %5442 = vdwg.mxu0
      %v5443 = vadd.f32 %v5313, %v5413
      %v5444 = vadd.f32 %v5314, %v5416
      %v5445 = vadd.f32 %v5315, %v5421
      %v5446 = vadd.f32 %v5316, %v5424
      %v5447 = vadd.f32 %v5317, %v5429
      %v5448 = vadd.f32 %v5318, %v5432
      %v5449 = vadd.f32 %v5319, %v5437
      %v5450 = vadd.f32 %v5320, %v5440
      %v5451 = vld [vmem:[%s5190 + $0x2] sm:$0xff]
      %v5452 = vld [vmem:[%s5190 + $0x12] sm:$0xff]
      %v5453 = vld [vmem:[%s5190 + $0x22] sm:$0xff]
      %v5454 = vld [vmem:[%s5190 + $0x32] sm:$0xff]
      %v5455 = vld [vmem:[%s5190 + $0x42] sm:$0xff]
      %v5456 = vld [vmem:[%s5190 + $0x52] sm:$0xff]
      %v5457 = vld [vmem:[%s5190 + $0x62] sm:$0xff]
      %v5458 = vld [vmem:[%s5190 + $0x72] sm:$0xff]
      %v5459 = vpack.c.bf16 %v5452, %v5451
      %v5460 = vpack.c.bf16 %v5454, %v5453
      %v5461 = vpack.c.bf16 %v5456, %v5455
      %v5462 = vpack.c.bf16 %v5458, %v5457
      %s5463 = scalar_lea.vmem %s12, 256
      %v5464 = vld [vmem:[%s5463] sm:$0xf]
      %v5465 = vld [vmem:[%s5463 + $0x4] sm:$0xf]
      %v5466 = vld [vmem:[%s5463 + $0x8] sm:$0xf]
      %v5467 = vld [vmem:[%s5463 + $0xc] sm:$0xf]
      %v5468 = vld [vmem:[%s5463 + $0x10] sm:$0xf]
      %v5469 = vld [vmem:[%s5463 + $0x14] sm:$0xf]
      %v5470 = vld [vmem:[%s5463 + $0x18] sm:$0xf]
      %v5471 = vld [vmem:[%s5463 + $0x1c] sm:$0xf]
      %v5480 = vunpack.c.l.b16 %v5464
      %v5481 = vunpack.c.l.b16 %v5465
      %v5482 = vunpack.c.l.b16 %v5466
      %v5483 = vunpack.c.l.b16 %v5467
      %v5484 = vunpack.c.l.b16 %v5468
      %v5485 = vunpack.c.l.b16 %v5469
      %v5486 = vunpack.c.l.b16 %v5470
      %v5487 = vunpack.c.l.b16 %v5471
      %v5488 = vpack.c.b16 %v5481, %v5480
      %v5489 = vpack.c.b16 %v5483, %v5482
      %v5490 = vpack.c.b16 %v5485, %v5484
      %v5491 = vpack.c.b16 %v5487, %v5486
      %v5497 = vsel %vm3318, %v5459, 0
      %v5500 = vsel %vm3318, %v5460, 0
      %v5503 = vsel %vm3318, %v5461, 0
      %v5506 = vsel %vm3318, %v5462, 0
      %5508 = vmatprep.subr.bf16.mxu0 0
      %5509 = vmatpush1.bf16.msra.mxu0 0
      %5510 = vmatprep.subr.bf16.mxu0 0
      %5511 = vmatpush1.bf16.msra.mxu0 0
      %5512 = vmatprep.subr.bf16.mxu0 0
      %5513 = vmatpush1.bf16.msra.mxu0 0
      %5514 = vmatprep.subr.bf16.mxu0 0
      %5515 = vmatpush1.bf16.msra.mxu0 0
      %5516 = vmatprep.subr.bf16.mxu0 0
      %5517 = vmatpush1.bf16.msra.mxu0 %v5491
      %5518 = vmatprep.subr.bf16.mxu0 0
      %5519 = vmatpush1.bf16.msra.mxu0 %v5490
      %5520 = vmatprep.subr.bf16.mxu0 0
      %5521 = vmatpush1.bf16.msra.mxu0 %v5489
      %5522 = vmatprep.subr.bf16.mxu0 0
      %5523 = vmatpush1.bf16.msra.mxu0 %v5488
      %5524 = vmatprep.subr.bf16.mxu0 0
      %5525 = vmatpush2.bf16.msra.mxu0 0
      %5526 = vmatprep.subr.bf16.mxu0 0
      %5527 = vmatpush2.bf16.msra.mxu0 0
      %5528 = vmatprep.subr.bf16.mxu0 0
      %5529 = vmatpush2.bf16.msra.mxu0 0
      %5530 = vmatprep.subr.bf16.mxu0 0
      %5531 = vmatpush2.bf16.msra.mxu0 0
      %5532 = vmatprep.subr.bf16.mxu0 0
      %5533 = vmatpush2.bf16.msra.mxu0 0
      %5534 = vmatprep.subr.bf16.mxu0 0
      %5535 = vmatpush2.bf16.msra.mxu0 0
      %5536 = vmatprep.subr.bf16.mxu0 0
      %5537 = vmatpush2.bf16.msra.mxu0 0
      %5538 = vmatprep.subr.bf16.mxu0 0
      %5539 = vmatpush2.bf16.msra.mxu0 0
      %5540 = vmatprep.mubr.bf16.mxu0 0
      %5541 = vmatmul.mubr.bf16.gmra.mxu0 %v5497
      %v5542 = vpop.f32.mrf.mxu0
      %v5543 = vadd.f32 0.0, %v5542
      %v5544 = vpop.f32.mrf.mxu0
      %v5545 = vpop.f32.mrf.mxu0
      %v5546 = vadd.f32 0.0, %v5545
      %v5547 = vpop.f32.mrf.mxu0
      %5548 = vmatprep.mubr.bf16.mxu0 0
      %5549 = vmatmul.mubr.bf16.gmra.mxu0 %v5500
      %v5550 = vpop.f32.mrf.mxu0
      %v5551 = vadd.f32 0.0, %v5550
      %v5552 = vpop.f32.mrf.mxu0
      %v5553 = vpop.f32.mrf.mxu0
      %v5554 = vadd.f32 0.0, %v5553
      %v5555 = vpop.f32.mrf.mxu0
      %5556 = vmatprep.mubr.bf16.mxu0 0
      %5557 = vmatmul.mubr.bf16.gmra.mxu0 %v5503
      %v5558 = vpop.f32.mrf.mxu0
      %v5559 = vadd.f32 0.0, %v5558
      %v5560 = vpop.f32.mrf.mxu0
      %v5561 = vpop.f32.mrf.mxu0
      %v5562 = vadd.f32 0.0, %v5561
      %v5563 = vpop.f32.mrf.mxu0
      %5564 = vmatprep.mubr.bf16.mxu0 0
      %5565 = vmatmul.mubr.bf16.gmra.mxu0 %v5506
      %v5566 = vpop.f32.mrf.mxu0
      %v5567 = vadd.f32 0.0, %v5566
      %v5568 = vpop.f32.mrf.mxu0
      %v5569 = vpop.f32.mrf.mxu0
      %v5570 = vadd.f32 0.0, %v5569
      %v5571 = vpop.f32.mrf.mxu0
      %5572 = vdwg.mxu0
      %v5573 = vadd.f32 %v5443, %v5543
      %v5574 = vadd.f32 %v5444, %v5546
      %v5575 = vadd.f32 %v5445, %v5551
      %v5576 = vadd.f32 %v5446, %v5554
      %v5577 = vadd.f32 %v5447, %v5559
      %v5578 = vadd.f32 %v5448, %v5562
      %v5579 = vadd.f32 %v5449, %v5567
      %v5580 = vadd.f32 %v5450, %v5570
      %5581 = vst.msk [vmem:[%s4418 + $0x1] sm:$0xff] %vm3318, %v5573
      %5582 = vst.msk [vmem:[%s4418 + $0x11] sm:$0xff] %vm3318, %v5574
      %5583 = vst.msk [vmem:[%s4418 + $0x21] sm:$0xff] %vm3318, %v5575
      %5584 = vst.msk [vmem:[%s4418 + $0x31] sm:$0xff] %vm3318, %v5576
      %5585 = vst.msk [vmem:[%s4418 + $0x41] sm:$0xff] %vm3318, %v5577
      %5586 = vst.msk [vmem:[%s4418 + $0x51] sm:$0xff] %vm3318, %v5578
      %5587 = vst.msk [vmem:[%s4418 + $0x61] sm:$0xff] %vm3318, %v5579
      %5588 = vst.msk [vmem:[%s4418 + $0x71] sm:$0xff] %vm3318, %v5580
      %v5589 = vld [vmem:[%s544] sm:$0xff]
      %v5590 = vld [vmem:[%s544 + $0x8] sm:$0xff]
      %v5591 = vld [vmem:[%s544 + $0x20] sm:$0xff]
      %v5592 = vld [vmem:[%s544 + $0x28] sm:$0xff]
      %v5593 = vld [vmem:[%s544 + $0x40] sm:$0xff]
      %v5594 = vld [vmem:[%s544 + $0x48] sm:$0xff]
      %v5595 = vld [vmem:[%s544 + $0x60] sm:$0xff]
      %v5596 = vld [vmem:[%s544 + $0x68] sm:$0xff]
      %v5597 = vld [vmem:[%s544 + $0x80] sm:$0xff]
      %v5598 = vld [vmem:[%s544 + $0x88] sm:$0xff]
      %v5599 = vld [vmem:[%s544 + $0xa0] sm:$0xff]
      %v5600 = vld [vmem:[%s544 + $0xa8] sm:$0xff]
      %v5601 = vld [vmem:[%s544 + $0xc0] sm:$0xff]
      %v5602 = vld [vmem:[%s544 + $0xc8] sm:$0xff]
      %v5603 = vld [vmem:[%s544 + $0xe0] sm:$0xff]
      %v5604 = vld [vmem:[%s544 + $0xe8] sm:$0xff]
      %v5605 = vpack.c.bf16 %v5591, %v5589
      %v5606 = vpack.c.bf16 %v5592, %v5590
      %v5607 = vpack.c.bf16 %v5595, %v5593
      %v5608 = vpack.c.bf16 %v5596, %v5594
      %v5609 = vpack.c.bf16 %v5599, %v5597
      %v5610 = vpack.c.bf16 %v5600, %v5598
      %v5611 = vpack.c.bf16 %v5603, %v5601
      %v5612 = vpack.c.bf16 %v5604, %v5602
      %v5613 = vld [vmem:[%s13] sm:$0xf]
      %v5614 = vld [vmem:[%s13 + $0x4] sm:$0xf]
      %v5615 = vld [vmem:[%s13 + $0x8] sm:$0xf]
      %v5616 = vld [vmem:[%s13 + $0xc] sm:$0xf]
      %v5617 = vld [vmem:[%s13 + $0x10] sm:$0xf]
      %v5618 = vld [vmem:[%s13 + $0x14] sm:$0xf]
      %v5619 = vld [vmem:[%s13 + $0x18] sm:$0xf]
      %v5620 = vld [vmem:[%s13 + $0x1c] sm:$0xf]
      %v5621 = vld [vmem:[%s13 + $0x20] sm:$0xf]
      %v5622 = vld [vmem:[%s13 + $0x24] sm:$0xf]
      %v5623 = vld [vmem:[%s13 + $0x28] sm:$0xf]
      %v5624 = vld [vmem:[%s13 + $0x2c] sm:$0xf]
      %v5625 = vld [vmem:[%s13 + $0x30] sm:$0xf]
      %v5626 = vld [vmem:[%s13 + $0x34] sm:$0xf]
      %v5627 = vld [vmem:[%s13 + $0x38] sm:$0xf]
      %v5628 = vld [vmem:[%s13 + $0x3c] sm:$0xf]
      %v5629 = vld [vmem:[%s13 + $0x40] sm:$0xf]
      %v5630 = vld [vmem:[%s13 + $0x44] sm:$0xf]
      %v5631 = vld [vmem:[%s13 + $0x48] sm:$0xf]
      %v5632 = vld [vmem:[%s13 + $0x4c] sm:$0xf]
      %v5633 = vld [vmem:[%s13 + $0x50] sm:$0xf]
      %v5634 = vld [vmem:[%s13 + $0x54] sm:$0xf]
      %v5635 = vld [vmem:[%s13 + $0x58] sm:$0xf]
      %v5636 = vld [vmem:[%s13 + $0x5c] sm:$0xf]
      %v5637 = vld [vmem:[%s13 + $0x60] sm:$0xf]
      %v5638 = vld [vmem:[%s13 + $0x64] sm:$0xf]
      %v5639 = vld [vmem:[%s13 + $0x68] sm:$0xf]
      %v5640 = vld [vmem:[%s13 + $0x6c] sm:$0xf]
      %v5641 = vld [vmem:[%s13 + $0x70] sm:$0xf]
      %v5642 = vld [vmem:[%s13 + $0x74] sm:$0xf]
      %v5643 = vld [vmem:[%s13 + $0x78] sm:$0xf]
      %v5644 = vld [vmem:[%s13 + $0x7c] sm:$0xf]
      %v5645 = vld [vmem:[%s544] sm:$0xfe]
      %v5646 = vld [vmem:[%s544 + $0x8] sm:$0xfe]
      %v5647 = vld [vmem:[%s544 + $0x10] sm:$0x1]
      %v5648 = vld [vmem:[%s544 + $0x18] sm:$0x1]
      %v5649 = vld [vmem:[%s544 + $0x20] sm:$0xfe]
      %v5650 = vld [vmem:[%s544 + $0x28] sm:$0xfe]
      %v5651 = vld [vmem:[%s544 + $0x30] sm:$0x1]
      %v5652 = vld [vmem:[%s544 + $0x38] sm:$0x1]
      %v5653 = vld [vmem:[%s544 + $0x40] sm:$0xfe]
      %v5654 = vld [vmem:[%s544 + $0x48] sm:$0xfe]
      %v5655 = vld [vmem:[%s544 + $0x50] sm:$0x1]
      %v5656 = vld [vmem:[%s544 + $0x58] sm:$0x1]
      %v5657 = vld [vmem:[%s544 + $0x60] sm:$0xfe]
      %v5658 = vld [vmem:[%s544 + $0x68] sm:$0xfe]
      %v5659 = vld [vmem:[%s544 + $0x70] sm:$0x1]
      %v5660 = vld [vmem:[%s544 + $0x78] sm:$0x1]
      %v5661 = vld [vmem:[%s544 + $0x80] sm:$0xfe]
      %v5662 = vld [vmem:[%s544 + $0x88] sm:$0xfe]
      %v5663 = vld [vmem:[%s544 + $0x90] sm:$0x1]
      %v5664 = vld [vmem:[%s544 + $0x98] sm:$0x1]
      %v5665 = vld [vmem:[%s544 + $0xa0] sm:$0xfe]
      %v5666 = vld [vmem:[%s544 + $0xa8] sm:$0xfe]
      %v5667 = vld [vmem:[%s544 + $0xb0] sm:$0x1]
      %v5668 = vld [vmem:[%s544 + $0xb8] sm:$0x1]
      %v5669 = vld [vmem:[%s544 + $0xc0] sm:$0xfe]
      %v5670 = vld [vmem:[%s544 + $0xc8] sm:$0xfe]
      %v5671 = vld [vmem:[%s544 + $0xd0] sm:$0x1]
      %v5672 = vld [vmem:[%s544 + $0xd8] sm:$0x1]
      %v5673 = vld [vmem:[%s544 + $0xe0] sm:$0xfe]
      %v5674 = vld [vmem:[%s544 + $0xe8] sm:$0xfe]
      %v5675 = vld [vmem:[%s544 + $0xf0] sm:$0x1]
      %v5676 = vld [vmem:[%s544 + $0xf8] sm:$0x1]
      %v5709 = vrot.slane %v5645, 1
      %v5710 = vrot.slane %v5647, 1
      %v5711 = vsel %vm672, %v5709, %v5710
      %v5712 = vrot.slane %v5646, 1
      %v5713 = vrot.slane %v5648, 1
      %v5714 = vsel %vm672, %v5712, %v5713
      %v5715 = vrot.slane %v5649, 1
      %v5716 = vrot.slane %v5651, 1
      %v5717 = vsel %vm672, %v5715, %v5716
      %v5718 = vrot.slane %v5650, 1
      %v5719 = vrot.slane %v5652, 1
      %v5720 = vsel %vm672, %v5718, %v5719
      %v5721 = vrot.slane %v5653, 1
      %v5722 = vrot.slane %v5655, 1
      %v5723 = vsel %vm672, %v5721, %v5722
      %v5724 = vrot.slane %v5654, 1
      %v5725 = vrot.slane %v5656, 1
      %v5726 = vsel %vm672, %v5724, %v5725
      %v5727 = vrot.slane %v5657, 1
      %v5728 = vrot.slane %v5659, 1
      %v5729 = vsel %vm672, %v5727, %v5728
      %v5730 = vrot.slane %v5658, 1
      %v5731 = vrot.slane %v5660, 1
      %v5732 = vsel %vm672, %v5730, %v5731
      %v5733 = vrot.slane %v5661, 1
      %v5734 = vrot.slane %v5663, 1
      %v5735 = vsel %vm672, %v5733, %v5734
      %v5736 = vrot.slane %v5662, 1
      %v5737 = vrot.slane %v5664, 1
      %v5738 = vsel %vm672, %v5736, %v5737
      %v5739 = vrot.slane %v5665, 1
      %v5740 = vrot.slane %v5667, 1
      %v5741 = vsel %vm672, %v5739, %v5740
      %v5742 = vrot.slane %v5666, 1
      %v5743 = vrot.slane %v5668, 1
      %v5744 = vsel %vm672, %v5742, %v5743
      %v5745 = vrot.slane %v5669, 1
      %v5746 = vrot.slane %v5671, 1
      %v5747 = vsel %vm672, %v5745, %v5746
      %v5748 = vrot.slane %v5670, 1
      %v5749 = vrot.slane %v5672, 1
      %v5750 = vsel %vm672, %v5748, %v5749
      %v5751 = vrot.slane %v5673, 1
      %v5752 = vrot.slane %v5675, 1
      %v5753 = vsel %vm672, %v5751, %v5752
      %v5754 = vrot.slane %v5674, 1
      %v5755 = vrot.slane %v5676, 1
      %v5756 = vsel %vm672, %v5754, %v5755
      %v5773 = vpack.c.bf16 %v5717, %v5711
      %v5774 = vpack.c.bf16 %v5720, %v5714
      %v5775 = vpack.c.bf16 %v5729, %v5723
      %v5776 = vpack.c.bf16 %v5732, %v5726
      %v5777 = vpack.c.bf16 %v5741, %v5735
      %v5778 = vpack.c.bf16 %v5744, %v5738
      %v5779 = vpack.c.bf16 %v5753, %v5747
      %v5780 = vpack.c.bf16 %v5756, %v5750
      %s5781 = scalar_lea.vmem %s13, 128
      %v5782 = vld [vmem:[%s5781] sm:$0xf]
      %v5783 = vld [vmem:[%s5781 + $0x4] sm:$0xf]
      %v5784 = vld [vmem:[%s5781 + $0x8] sm:$0xf]
      %v5785 = vld [vmem:[%s5781 + $0xc] sm:$0xf]
      %v5786 = vld [vmem:[%s5781 + $0x10] sm:$0xf]
      %v5787 = vld [vmem:[%s5781 + $0x14] sm:$0xf]
      %v5788 = vld [vmem:[%s5781 + $0x18] sm:$0xf]
      %v5789 = vld [vmem:[%s5781 + $0x1c] sm:$0xf]
      %v5790 = vld [vmem:[%s5781 + $0x20] sm:$0xf]
      %v5791 = vld [vmem:[%s5781 + $0x24] sm:$0xf]
      %v5792 = vld [vmem:[%s5781 + $0x28] sm:$0xf]
      %v5793 = vld [vmem:[%s5781 + $0x2c] sm:$0xf]
      %v5794 = vld [vmem:[%s5781 + $0x30] sm:$0xf]
      %v5795 = vld [vmem:[%s5781 + $0x34] sm:$0xf]
      %v5796 = vld [vmem:[%s5781 + $0x38] sm:$0xf]
      %v5797 = vld [vmem:[%s5781 + $0x3c] sm:$0xf]
      %v5798 = vld [vmem:[%s5781 + $0x40] sm:$0xf]
      %v5799 = vld [vmem:[%s5781 + $0x44] sm:$0xf]
      %v5800 = vld [vmem:[%s5781 + $0x48] sm:$0xf]
      %v5801 = vld [vmem:[%s5781 + $0x4c] sm:$0xf]
      %v5802 = vld [vmem:[%s5781 + $0x50] sm:$0xf]
      %v5803 = vld [vmem:[%s5781 + $0x54] sm:$0xf]
      %v5804 = vld [vmem:[%s5781 + $0x58] sm:$0xf]
      %v5805 = vld [vmem:[%s5781 + $0x5c] sm:$0xf]
      %v5806 = vld [vmem:[%s5781 + $0x60] sm:$0xf]
      %v5807 = vld [vmem:[%s5781 + $0x64] sm:$0xf]
      %v5808 = vld [vmem:[%s5781 + $0x68] sm:$0xf]
      %v5809 = vld [vmem:[%s5781 + $0x6c] sm:$0xf]
      %v5810 = vld [vmem:[%s5781 + $0x70] sm:$0xf]
      %v5811 = vld [vmem:[%s5781 + $0x74] sm:$0xf]
      %v5812 = vld [vmem:[%s5781 + $0x78] sm:$0xf]
      %v5813 = vld [vmem:[%s5781 + $0x7c] sm:$0xf]
      %v5846 = vunpack.c.l.b16 %v5782
      %v5847 = vunpack.c.l.b16 %v5783
      %v5848 = vunpack.c.l.b16 %v5784
      %v5849 = vunpack.c.l.b16 %v5785
      %v5850 = vunpack.c.l.b16 %v5786
      %v5851 = vunpack.c.l.b16 %v5787
      %v5852 = vunpack.c.l.b16 %v5788
      %v5853 = vunpack.c.l.b16 %v5789
      %v5854 = vunpack.c.l.b16 %v5790
      %v5855 = vunpack.c.l.b16 %v5791
      %v5856 = vunpack.c.l.b16 %v5792
      %v5857 = vunpack.c.l.b16 %v5793
      %v5858 = vunpack.c.l.b16 %v5794
      %v5859 = vunpack.c.l.b16 %v5795
      %v5860 = vunpack.c.l.b16 %v5796
      %v5861 = vunpack.c.l.b16 %v5797
      %v5862 = vunpack.c.l.b16 %v5798
      %v5863 = vunpack.c.l.b16 %v5799
      %v5864 = vunpack.c.l.b16 %v5800
      %v5865 = vunpack.c.l.b16 %v5801
      %v5866 = vunpack.c.l.b16 %v5802
      %v5867 = vunpack.c.l.b16 %v5803
      %v5868 = vunpack.c.l.b16 %v5804
      %v5869 = vunpack.c.l.b16 %v5805
      %v5870 = vunpack.c.l.b16 %v5806
      %v5871 = vunpack.c.l.b16 %v5807
      %v5872 = vunpack.c.l.b16 %v5808
      %v5873 = vunpack.c.l.b16 %v5809
      %v5874 = vunpack.c.l.b16 %v5810
      %v5875 = vunpack.c.l.b16 %v5811
      %v5876 = vunpack.c.l.b16 %v5812
      %v5877 = vunpack.c.l.b16 %v5813
      %v5878 = vpack.c.b16 %v5847, %v5846
      %v5879 = vpack.c.b16 %v5849, %v5848
      %v5880 = vpack.c.b16 %v5851, %v5850
      %v5881 = vpack.c.b16 %v5853, %v5852
      %v5882 = vpack.c.b16 %v5855, %v5854
      %v5883 = vpack.c.b16 %v5857, %v5856
      %v5884 = vpack.c.b16 %v5859, %v5858
      %v5885 = vpack.c.b16 %v5861, %v5860
      %v5886 = vpack.c.b16 %v5863, %v5862
      %v5887 = vpack.c.b16 %v5865, %v5864
      %v5888 = vpack.c.b16 %v5867, %v5866
      %v5889 = vpack.c.b16 %v5869, %v5868
      %v5890 = vpack.c.b16 %v5871, %v5870
      %v5891 = vpack.c.b16 %v5873, %v5872
      %v5892 = vpack.c.b16 %v5875, %v5874
      %v5893 = vpack.c.b16 %v5877, %v5876
      %5910 = vmatprep.subr.bf16.mxu0 0
      %5911 = vmatpush1.bf16.msra.mxu0 %v5885
      %5912 = vmatprep.subr.bf16.mxu0 0
      %5913 = vmatpush1.bf16.msra.mxu0 %v5884
      %5914 = vmatprep.subr.bf16.mxu0 0
      %5915 = vmatpush1.bf16.msra.mxu0 %v5883
      %5916 = vmatprep.subr.bf16.mxu0 0
      %5917 = vmatpush1.bf16.msra.mxu0 %v5882
      %5918 = vmatprep.subr.bf16.mxu0 0
      %5919 = vmatpush1.bf16.msra.mxu0 %v5881
      %5920 = vmatprep.subr.bf16.mxu0 0
      %5921 = vmatpush1.bf16.msra.mxu0 %v5880
      %5922 = vmatprep.subr.bf16.mxu0 0
      %5923 = vmatpush1.bf16.msra.mxu0 %v5879
      %5924 = vmatprep.subr.bf16.mxu0 0
      %5925 = vmatpush1.bf16.msra.mxu0 %v5878
      %5926 = vmatprep.subr.bf16.mxu0 0
      %5927 = vmatpush2.bf16.msra.mxu0 %v5893
      %5928 = vmatprep.subr.bf16.mxu0 0
      %5929 = vmatpush2.bf16.msra.mxu0 %v5892
      %5930 = vmatprep.subr.bf16.mxu0 0
      %5931 = vmatpush2.bf16.msra.mxu0 %v5891
      %5932 = vmatprep.subr.bf16.mxu0 0
      %5933 = vmatpush2.bf16.msra.mxu0 %v5890
      %5934 = vmatprep.subr.bf16.mxu0 0
      %5935 = vmatpush2.bf16.msra.mxu0 %v5889
      %5936 = vmatprep.subr.bf16.mxu0 0
      %5937 = vmatpush2.bf16.msra.mxu0 %v5888
      %5938 = vmatprep.subr.bf16.mxu0 0
      %5939 = vmatpush2.bf16.msra.mxu0 %v5887
      %5940 = vmatprep.subr.bf16.mxu0 0
      %5941 = vmatpush2.bf16.msra.mxu0 %v5886
      %5942 = vmatprep.mubr.bf16.mxu0 %v5774
      %5943 = vmatmul.mubr.bf16.gmra.mxu0 %v5773
      %v5944 = vpop.f32.mrf.mxu0
      %v5945 = vadd.f32 0.0, %v5944
      %v5946 = vpop.f32.mrf.mxu0
      %v5947 = vpop.f32.mrf.mxu0
      %v5948 = vadd.f32 0.0, %v5947
      %v5949 = vpop.f32.mrf.mxu0
      %5950 = vmatprep.mubr.bf16.mxu0 %v5776
      %5951 = vmatmul.mubr.bf16.gmra.mxu0 %v5775
      %v5952 = vpop.f32.mrf.mxu0
      %v5953 = vadd.f32 0.0, %v5952
      %v5954 = vpop.f32.mrf.mxu0
      %v5955 = vpop.f32.mrf.mxu0
      %v5956 = vadd.f32 0.0, %v5955
      %v5957 = vpop.f32.mrf.mxu0
      %5958 = vmatprep.mubr.bf16.mxu0 %v5778
      %5959 = vmatmul.mubr.bf16.gmra.mxu0 %v5777
      %v5960 = vpop.f32.mrf.mxu0
      %v5961 = vadd.f32 0.0, %v5960
      %v5962 = vpop.f32.mrf.mxu0
      %v5963 = vpop.f32.mrf.mxu0
      %v5964 = vadd.f32 0.0, %v5963
      %v5965 = vpop.f32.mrf.mxu0
      %5966 = vmatprep.mubr.bf16.mxu0 %v5780
      %5967 = vmatmul.mubr.bf16.gmra.mxu0 %v5779
      %v5968 = vpop.f32.mrf.mxu0
      %v5969 = vadd.f32 0.0, %v5968
      %v5970 = vpop.f32.mrf.mxu0
      %v5971 = vpop.f32.mrf.mxu0
      %v5972 = vadd.f32 0.0, %v5971
      %v5973 = vpop.f32.mrf.mxu0
      %5974 = vdwg.mxu0
      %v6007 = vunpack.c.l.b16 %v5613
      %v6008 = vunpack.c.l.b16 %v5614
      %v6009 = vunpack.c.l.b16 %v5615
      %v6010 = vunpack.c.l.b16 %v5616
      %v6011 = vunpack.c.l.b16 %v5617
      %v6012 = vunpack.c.l.b16 %v5618
      %v6013 = vunpack.c.l.b16 %v5619
      %v6014 = vunpack.c.l.b16 %v5620
      %v6015 = vunpack.c.l.b16 %v5621
      %v6016 = vunpack.c.l.b16 %v5622
      %v6017 = vunpack.c.l.b16 %v5623
      %v6018 = vunpack.c.l.b16 %v5624
      %v6019 = vunpack.c.l.b16 %v5625
      %v6020 = vunpack.c.l.b16 %v5626
      %v6021 = vunpack.c.l.b16 %v5627
      %v6022 = vunpack.c.l.b16 %v5628
      %v6023 = vunpack.c.l.b16 %v5629
      %v6024 = vunpack.c.l.b16 %v5630
      %v6025 = vunpack.c.l.b16 %v5631
      %v6026 = vunpack.c.l.b16 %v5632
      %v6027 = vunpack.c.l.b16 %v5633
      %v6028 = vunpack.c.l.b16 %v5634
      %v6029 = vunpack.c.l.b16 %v5635
      %v6030 = vunpack.c.l.b16 %v5636
      %v6031 = vunpack.c.l.b16 %v5637
      %v6032 = vunpack.c.l.b16 %v5638
      %v6033 = vunpack.c.l.b16 %v5639
      %v6034 = vunpack.c.l.b16 %v5640
      %v6035 = vunpack.c.l.b16 %v5641
      %v6036 = vunpack.c.l.b16 %v5642
      %v6037 = vunpack.c.l.b16 %v5643
      %v6038 = vunpack.c.l.b16 %v5644
      %v6039 = vpack.c.b16 %v6008, %v6007
      %v6040 = vpack.c.b16 %v6010, %v6009
      %v6041 = vpack.c.b16 %v6012, %v6011
      %v6042 = vpack.c.b16 %v6014, %v6013
      %v6043 = vpack.c.b16 %v6016, %v6015
      %v6044 = vpack.c.b16 %v6018, %v6017
      %v6045 = vpack.c.b16 %v6020, %v6019
      %v6046 = vpack.c.b16 %v6022, %v6021
      %v6047 = vpack.c.b16 %v6024, %v6023
      %v6048 = vpack.c.b16 %v6026, %v6025
      %v6049 = vpack.c.b16 %v6028, %v6027
      %v6050 = vpack.c.b16 %v6030, %v6029
      %v6051 = vpack.c.b16 %v6032, %v6031
      %v6052 = vpack.c.b16 %v6034, %v6033
      %v6053 = vpack.c.b16 %v6036, %v6035
      %v6054 = vpack.c.b16 %v6038, %v6037
      %6071 = vmatprep.subr.bf16.mxu0 0
      %6072 = vmatpush1.bf16.msra.mxu0 %v6046
      %6073 = vmatprep.subr.bf16.mxu0 0
      %6074 = vmatpush1.bf16.msra.mxu0 %v6045
      %6075 = vmatprep.subr.bf16.mxu0 0
      %6076 = vmatpush1.bf16.msra.mxu0 %v6044
      %6077 = vmatprep.subr.bf16.mxu0 0
      %6078 = vmatpush1.bf16.msra.mxu0 %v6043
      %6079 = vmatprep.subr.bf16.mxu0 0
      %6080 = vmatpush1.bf16.msra.mxu0 %v6042
      %6081 = vmatprep.subr.bf16.mxu0 0
      %6082 = vmatpush1.bf16.msra.mxu0 %v6041
      %6083 = vmatprep.subr.bf16.mxu0 0
      %6084 = vmatpush1.bf16.msra.mxu0 %v6040
      %6085 = vmatprep.subr.bf16.mxu0 0
      %6086 = vmatpush1.bf16.msra.mxu0 %v6039
      %6087 = vmatprep.subr.bf16.mxu0 0
      %6088 = vmatpush2.bf16.msra.mxu0 %v6054
      %6089 = vmatprep.subr.bf16.mxu0 0
      %6090 = vmatpush2.bf16.msra.mxu0 %v6053
      %6091 = vmatprep.subr.bf16.mxu0 0
      %6092 = vmatpush2.bf16.msra.mxu0 %v6052
      %6093 = vmatprep.subr.bf16.mxu0 0
      %6094 = vmatpush2.bf16.msra.mxu0 %v6051
      %6095 = vmatprep.subr.bf16.mxu0 0
      %6096 = vmatpush2.bf16.msra.mxu0 %v6050
      %6097 = vmatprep.subr.bf16.mxu0 0
      %6098 = vmatpush2.bf16.msra.mxu0 %v6049
      %6099 = vmatprep.subr.bf16.mxu0 0
      %6100 = vmatpush2.bf16.msra.mxu0 %v6048
      %6101 = vmatprep.subr.bf16.mxu0 0
      %6102 = vmatpush2.bf16.msra.mxu0 %v6047
      %6103 = vmatprep.mubr.bf16.mxu0 %v5606
      %6104 = vmatmul.mubr.bf16.gmra.mxu0 %v5605
      %v6105 = vpop.f32.mrf.mxu0
      %v6106 = vadd.f32 %v5945, %v6105
      %v6107 = vpop.f32.mrf.mxu0
      %v6108 = vpop.f32.mrf.mxu0
      %v6109 = vadd.f32 %v5948, %v6108
      %v6110 = vpop.f32.mrf.mxu0
      %6111 = vmatprep.mubr.bf16.mxu0 %v5608
      %6112 = vmatmul.mubr.bf16.gmra.mxu0 %v5607
      %v6113 = vpop.f32.mrf.mxu0
      %v6114 = vadd.f32 %v5953, %v6113
      %v6115 = vpop.f32.mrf.mxu0
      %v6116 = vpop.f32.mrf.mxu0
      %v6117 = vadd.f32 %v5956, %v6116
      %v6118 = vpop.f32.mrf.mxu0
      %6119 = vmatprep.mubr.bf16.mxu0 %v5610
      %6120 = vmatmul.mubr.bf16.gmra.mxu0 %v5609
      %v6121 = vpop.f32.mrf.mxu0
      %v6122 = vadd.f32 %v5961, %v6121
      %v6123 = vpop.f32.mrf.mxu0
      %v6124 = vpop.f32.mrf.mxu0
      %v6125 = vadd.f32 %v5964, %v6124
      %v6126 = vpop.f32.mrf.mxu0
      %6127 = vmatprep.mubr.bf16.mxu0 %v5612
      %6128 = vmatmul.mubr.bf16.gmra.mxu0 %v5611
      %v6129 = vpop.f32.mrf.mxu0
      %v6130 = vadd.f32 %v5969, %v6129
      %v6131 = vpop.f32.mrf.mxu0
      %v6132 = vpop.f32.mrf.mxu0
      %v6133 = vadd.f32 %v5972, %v6132
      %v6134 = vpop.f32.mrf.mxu0
      %6135 = vdwg.mxu0
      %v6136 = vld [vmem:[%s544] sm:$0xfc]
      %v6137 = vld [vmem:[%s544 + $0x8] sm:$0xfc]
      %v6138 = vld [vmem:[%s544 + $0x10] sm:$0x3]
      %v6139 = vld [vmem:[%s544 + $0x18] sm:$0x3]
      %v6140 = vld [vmem:[%s544 + $0x20] sm:$0xfc]
      %v6141 = vld [vmem:[%s544 + $0x28] sm:$0xfc]
      %v6142 = vld [vmem:[%s544 + $0x30] sm:$0x3]
      %v6143 = vld [vmem:[%s544 + $0x38] sm:$0x3]
      %v6144 = vld [vmem:[%s544 + $0x40] sm:$0xfc]
      %v6145 = vld [vmem:[%s544 + $0x48] sm:$0xfc]
      %v6146 = vld [vmem:[%s544 + $0x50] sm:$0x3]
      %v6147 = vld [vmem:[%s544 + $0x58] sm:$0x3]
      %v6148 = vld [vmem:[%s544 + $0x60] sm:$0xfc]
      %v6149 = vld [vmem:[%s544 + $0x68] sm:$0xfc]
      %v6150 = vld [vmem:[%s544 + $0x70] sm:$0x3]
      %v6151 = vld [vmem:[%s544 + $0x78] sm:$0x3]
      %v6152 = vld [vmem:[%s544 + $0x80] sm:$0xfc]
      %v6153 = vld [vmem:[%s544 + $0x88] sm:$0xfc]
      %v6154 = vld [vmem:[%s544 + $0x90] sm:$0x3]
      %v6155 = vld [vmem:[%s544 + $0x98] sm:$0x3]
      %v6156 = vld [vmem:[%s544 + $0xa0] sm:$0xfc]
      %v6157 = vld [vmem:[%s544 + $0xa8] sm:$0xfc]
      %v6158 = vld [vmem:[%s544 + $0xb0] sm:$0x3]
      %v6159 = vld [vmem:[%s544 + $0xb8] sm:$0x3]
      %v6160 = vld [vmem:[%s544 + $0xc0] sm:$0xfc]
      %v6161 = vld [vmem:[%s544 + $0xc8] sm:$0xfc]
      %v6162 = vld [vmem:[%s544 + $0xd0] sm:$0x3]
      %v6163 = vld [vmem:[%s544 + $0xd8] sm:$0x3]
      %v6164 = vld [vmem:[%s544 + $0xe0] sm:$0xfc]
      %v6165 = vld [vmem:[%s544 + $0xe8] sm:$0xfc]
      %v6166 = vld [vmem:[%s544 + $0xf0] sm:$0x3]
      %v6167 = vld [vmem:[%s544 + $0xf8] sm:$0x3]
      %v6200 = vrot.slane %v6136, 2
      %v6201 = vrot.slane %v6138, 2
      %v6202 = vsel %vm1164, %v6200, %v6201
      %v6203 = vrot.slane %v6137, 2
      %v6204 = vrot.slane %v6139, 2
      %v6205 = vsel %vm1164, %v6203, %v6204
      %v6206 = vrot.slane %v6140, 2
      %v6207 = vrot.slane %v6142, 2
      %v6208 = vsel %vm1164, %v6206, %v6207
      %v6209 = vrot.slane %v6141, 2
      %v6210 = vrot.slane %v6143, 2
      %v6211 = vsel %vm1164, %v6209, %v6210
      %v6212 = vrot.slane %v6144, 2
      %v6213 = vrot.slane %v6146, 2
      %v6214 = vsel %vm1164, %v6212, %v6213
      %v6215 = vrot.slane %v6145, 2
      %v6216 = vrot.slane %v6147, 2
      %v6217 = vsel %vm1164, %v6215, %v6216
      %v6218 = vrot.slane %v6148, 2
      %v6219 = vrot.slane %v6150, 2
      %v6220 = vsel %vm1164, %v6218, %v6219
      %v6221 = vrot.slane %v6149, 2
      %v6222 = vrot.slane %v6151, 2
      %v6223 = vsel %vm1164, %v6221, %v6222
      %v6224 = vrot.slane %v6152, 2
      %v6225 = vrot.slane %v6154, 2
      %v6226 = vsel %vm1164, %v6224, %v6225
      %v6227 = vrot.slane %v6153, 2
      %v6228 = vrot.slane %v6155, 2
      %v6229 = vsel %vm1164, %v6227, %v6228
      %v6230 = vrot.slane %v6156, 2
      %v6231 = vrot.slane %v6158, 2
      %v6232 = vsel %vm1164, %v6230, %v6231
      %v6233 = vrot.slane %v6157, 2
      %v6234 = vrot.slane %v6159, 2
      %v6235 = vsel %vm1164, %v6233, %v6234
      %v6236 = vrot.slane %v6160, 2
      %v6237 = vrot.slane %v6162, 2
      %v6238 = vsel %vm1164, %v6236, %v6237
      %v6239 = vrot.slane %v6161, 2
      %v6240 = vrot.slane %v6163, 2
      %v6241 = vsel %vm1164, %v6239, %v6240
      %v6242 = vrot.slane %v6164, 2
      %v6243 = vrot.slane %v6166, 2
      %v6244 = vsel %vm1164, %v6242, %v6243
      %v6245 = vrot.slane %v6165, 2
      %v6246 = vrot.slane %v6167, 2
      %v6247 = vsel %vm1164, %v6245, %v6246
      %v6264 = vpack.c.bf16 %v6208, %v6202
      %v6265 = vpack.c.bf16 %v6211, %v6205
      %v6266 = vpack.c.bf16 %v6220, %v6214
      %v6267 = vpack.c.bf16 %v6223, %v6217
      %v6268 = vpack.c.bf16 %v6232, %v6226
      %v6269 = vpack.c.bf16 %v6235, %v6229
      %v6270 = vpack.c.bf16 %v6244, %v6238
      %v6271 = vpack.c.bf16 %v6247, %v6241
      %s6272 = scalar_lea.vmem %s13, 256
      %v6273 = vld [vmem:[%s6272] sm:$0xf]
      %v6274 = vld [vmem:[%s6272 + $0x4] sm:$0xf]
      %v6275 = vld [vmem:[%s6272 + $0x8] sm:$0xf]
      %v6276 = vld [vmem:[%s6272 + $0xc] sm:$0xf]
      %v6277 = vld [vmem:[%s6272 + $0x10] sm:$0xf]
      %v6278 = vld [vmem:[%s6272 + $0x14] sm:$0xf]
      %v6279 = vld [vmem:[%s6272 + $0x18] sm:$0xf]
      %v6280 = vld [vmem:[%s6272 + $0x1c] sm:$0xf]
      %v6281 = vld [vmem:[%s6272 + $0x20] sm:$0xf]
      %v6282 = vld [vmem:[%s6272 + $0x24] sm:$0xf]
      %v6283 = vld [vmem:[%s6272 + $0x28] sm:$0xf]
      %v6284 = vld [vmem:[%s6272 + $0x2c] sm:$0xf]
      %v6285 = vld [vmem:[%s6272 + $0x30] sm:$0xf]
      %v6286 = vld [vmem:[%s6272 + $0x34] sm:$0xf]
      %v6287 = vld [vmem:[%s6272 + $0x38] sm:$0xf]
      %v6288 = vld [vmem:[%s6272 + $0x3c] sm:$0xf]
      %v6289 = vld [vmem:[%s6272 + $0x40] sm:$0xf]
      %v6290 = vld [vmem:[%s6272 + $0x44] sm:$0xf]
      %v6291 = vld [vmem:[%s6272 + $0x48] sm:$0xf]
      %v6292 = vld [vmem:[%s6272 + $0x4c] sm:$0xf]
      %v6293 = vld [vmem:[%s6272 + $0x50] sm:$0xf]
      %v6294 = vld [vmem:[%s6272 + $0x54] sm:$0xf]
      %v6295 = vld [vmem:[%s6272 + $0x58] sm:$0xf]
      %v6296 = vld [vmem:[%s6272 + $0x5c] sm:$0xf]
      %v6297 = vld [vmem:[%s6272 + $0x60] sm:$0xf]
      %v6298 = vld [vmem:[%s6272 + $0x64] sm:$0xf]
      %v6299 = vld [vmem:[%s6272 + $0x68] sm:$0xf]
      %v6300 = vld [vmem:[%s6272 + $0x6c] sm:$0xf]
      %v6301 = vld [vmem:[%s6272 + $0x70] sm:$0xf]
      %v6302 = vld [vmem:[%s6272 + $0x74] sm:$0xf]
      %v6303 = vld [vmem:[%s6272 + $0x78] sm:$0xf]
      %v6304 = vld [vmem:[%s6272 + $0x7c] sm:$0xf]
      %v6337 = vunpack.c.l.b16 %v6273
      %v6338 = vunpack.c.l.b16 %v6274
      %v6339 = vunpack.c.l.b16 %v6275
      %v6340 = vunpack.c.l.b16 %v6276
      %v6341 = vunpack.c.l.b16 %v6277
      %v6342 = vunpack.c.l.b16 %v6278
      %v6343 = vunpack.c.l.b16 %v6279
      %v6344 = vunpack.c.l.b16 %v6280
      %v6345 = vunpack.c.l.b16 %v6281
      %v6346 = vunpack.c.l.b16 %v6282
      %v6347 = vunpack.c.l.b16 %v6283
      %v6348 = vunpack.c.l.b16 %v6284
      %v6349 = vunpack.c.l.b16 %v6285
      %v6350 = vunpack.c.l.b16 %v6286
      %v6351 = vunpack.c.l.b16 %v6287
      %v6352 = vunpack.c.l.b16 %v6288
      %v6353 = vunpack.c.l.b16 %v6289
      %v6354 = vunpack.c.l.b16 %v6290
      %v6355 = vunpack.c.l.b16 %v6291
      %v6356 = vunpack.c.l.b16 %v6292
      %v6357 = vunpack.c.l.b16 %v6293
      %v6358 = vunpack.c.l.b16 %v6294
      %v6359 = vunpack.c.l.b16 %v6295
      %v6360 = vunpack.c.l.b16 %v6296
      %v6361 = vunpack.c.l.b16 %v6297
      %v6362 = vunpack.c.l.b16 %v6298
      %v6363 = vunpack.c.l.b16 %v6299
      %v6364 = vunpack.c.l.b16 %v6300
      %v6365 = vunpack.c.l.b16 %v6301
      %v6366 = vunpack.c.l.b16 %v6302
      %v6367 = vunpack.c.l.b16 %v6303
      %v6368 = vunpack.c.l.b16 %v6304
      %v6369 = vpack.c.b16 %v6338, %v6337
      %v6370 = vpack.c.b16 %v6340, %v6339
      %v6371 = vpack.c.b16 %v6342, %v6341
      %v6372 = vpack.c.b16 %v6344, %v6343
      %v6373 = vpack.c.b16 %v6346, %v6345
      %v6374 = vpack.c.b16 %v6348, %v6347
      %v6375 = vpack.c.b16 %v6350, %v6349
      %v6376 = vpack.c.b16 %v6352, %v6351
      %v6377 = vpack.c.b16 %v6354, %v6353
      %v6378 = vpack.c.b16 %v6356, %v6355
      %v6379 = vpack.c.b16 %v6358, %v6357
      %v6380 = vpack.c.b16 %v6360, %v6359
      %v6381 = vpack.c.b16 %v6362, %v6361
      %v6382 = vpack.c.b16 %v6364, %v6363
      %v6383 = vpack.c.b16 %v6366, %v6365
      %v6384 = vpack.c.b16 %v6368, %v6367
      %6401 = vmatprep.subr.bf16.mxu0 0
      %6402 = vmatpush1.bf16.msra.mxu0 %v6376
      %6403 = vmatprep.subr.bf16.mxu0 0
      %6404 = vmatpush1.bf16.msra.mxu0 %v6375
      %6405 = vmatprep.subr.bf16.mxu0 0
      %6406 = vmatpush1.bf16.msra.mxu0 %v6374
      %6407 = vmatprep.subr.bf16.mxu0 0
      %6408 = vmatpush1.bf16.msra.mxu0 %v6373
      %6409 = vmatprep.subr.bf16.mxu0 0
      %6410 = vmatpush1.bf16.msra.mxu0 %v6372
      %6411 = vmatprep.subr.bf16.mxu0 0
      %6412 = vmatpush1.bf16.msra.mxu0 %v6371
      %6413 = vmatprep.subr.bf16.mxu0 0
      %6414 = vmatpush1.bf16.msra.mxu0 %v6370
      %6415 = vmatprep.subr.bf16.mxu0 0
      %6416 = vmatpush1.bf16.msra.mxu0 %v6369
      %6417 = vmatprep.subr.bf16.mxu0 0
      %6418 = vmatpush2.bf16.msra.mxu0 %v6384
      %6419 = vmatprep.subr.bf16.mxu0 0
      %6420 = vmatpush2.bf16.msra.mxu0 %v6383
      %6421 = vmatprep.subr.bf16.mxu0 0
      %6422 = vmatpush2.bf16.msra.mxu0 %v6382
      %6423 = vmatprep.subr.bf16.mxu0 0
      %6424 = vmatpush2.bf16.msra.mxu0 %v6381
      %6425 = vmatprep.subr.bf16.mxu0 0
      %6426 = vmatpush2.bf16.msra.mxu0 %v6380
      %6427 = vmatprep.subr.bf16.mxu0 0
      %6428 = vmatpush2.bf16.msra.mxu0 %v6379
      %6429 = vmatprep.subr.bf16.mxu0 0
      %6430 = vmatpush2.bf16.msra.mxu0 %v6378
      %6431 = vmatprep.subr.bf16.mxu0 0
      %6432 = vmatpush2.bf16.msra.mxu0 %v6377
      %6433 = vmatprep.mubr.bf16.mxu0 %v6265
      %6434 = vmatmul.mubr.bf16.gmra.mxu0 %v6264
      %v6435 = vpop.f32.mrf.mxu0
      %v6436 = vadd.f32 0.0, %v6435
      %v6437 = vpop.f32.mrf.mxu0
      %v6438 = vpop.f32.mrf.mxu0
      %v6439 = vadd.f32 0.0, %v6438
      %v6440 = vpop.f32.mrf.mxu0
      %6441 = vmatprep.mubr.bf16.mxu0 %v6267
      %6442 = vmatmul.mubr.bf16.gmra.mxu0 %v6266
      %v6443 = vpop.f32.mrf.mxu0
      %v6444 = vadd.f32 0.0, %v6443
      %v6445 = vpop.f32.mrf.mxu0
      %v6446 = vpop.f32.mrf.mxu0
      %v6447 = vadd.f32 0.0, %v6446
      %v6448 = vpop.f32.mrf.mxu0
      %6449 = vmatprep.mubr.bf16.mxu0 %v6269
      %6450 = vmatmul.mubr.bf16.gmra.mxu0 %v6268
      %v6451 = vpop.f32.mrf.mxu0
      %v6452 = vadd.f32 0.0, %v6451
      %v6453 = vpop.f32.mrf.mxu0
      %v6454 = vpop.f32.mrf.mxu0
      %v6455 = vadd.f32 0.0, %v6454
      %v6456 = vpop.f32.mrf.mxu0
      %6457 = vmatprep.mubr.bf16.mxu0 %v6271
      %6458 = vmatmul.mubr.bf16.gmra.mxu0 %v6270
      %v6459 = vpop.f32.mrf.mxu0
      %v6460 = vadd.f32 0.0, %v6459
      %v6461 = vpop.f32.mrf.mxu0
      %v6462 = vpop.f32.mrf.mxu0
      %v6463 = vadd.f32 0.0, %v6462
      %v6464 = vpop.f32.mrf.mxu0
      %6465 = vdwg.mxu0
      %v6466 = vadd.f32 %v6106, %v6436
      %v6467 = vadd.f32 %v6109, %v6439
      %v6468 = vadd.f32 %v6114, %v6444
      %v6469 = vadd.f32 %v6117, %v6447
      %v6470 = vadd.f32 %v6122, %v6452
      %v6471 = vadd.f32 %v6125, %v6455
      %v6472 = vadd.f32 %v6130, %v6460
      %v6473 = vadd.f32 %v6133, %v6463
      %v6474 = vld [vmem:[%s1439] sm:$0xff]
      %v6475 = vld [vmem:[%s1439 + $0x8] sm:$0xff]
      %v6476 = vld [vmem:[%s1439 + $0x20] sm:$0xff]
      %v6477 = vld [vmem:[%s1439 + $0x28] sm:$0xff]
      %v6478 = vld [vmem:[%s1439 + $0x40] sm:$0xff]
      %v6479 = vld [vmem:[%s1439 + $0x48] sm:$0xff]
      %v6480 = vld [vmem:[%s1439 + $0x60] sm:$0xff]
      %v6481 = vld [vmem:[%s1439 + $0x68] sm:$0xff]
      %v6482 = vld [vmem:[%s1439 + $0x80] sm:$0xff]
      %v6483 = vld [vmem:[%s1439 + $0x88] sm:$0xff]
      %v6484 = vld [vmem:[%s1439 + $0xa0] sm:$0xff]
      %v6485 = vld [vmem:[%s1439 + $0xa8] sm:$0xff]
      %v6486 = vld [vmem:[%s1439 + $0xc0] sm:$0xff]
      %v6487 = vld [vmem:[%s1439 + $0xc8] sm:$0xff]
      %v6488 = vld [vmem:[%s1439 + $0xe0] sm:$0xff]
      %v6489 = vld [vmem:[%s1439 + $0xe8] sm:$0xff]
      %v6490 = vpack.c.bf16 %v6476, %v6474
      %v6491 = vpack.c.bf16 %v6477, %v6475
      %v6492 = vpack.c.bf16 %v6480, %v6478
      %v6493 = vpack.c.bf16 %v6481, %v6479
      %v6494 = vpack.c.bf16 %v6484, %v6482
      %v6495 = vpack.c.bf16 %v6485, %v6483
      %v6496 = vpack.c.bf16 %v6488, %v6486
      %v6497 = vpack.c.bf16 %v6489, %v6487
      %s6498 = scalar_lea.vmem %s13, 384
      %v6499 = vld [vmem:[%s6498] sm:$0xf]
      %v6500 = vld [vmem:[%s6498 + $0x4] sm:$0xf]
      %v6501 = vld [vmem:[%s6498 + $0x8] sm:$0xf]
      %v6502 = vld [vmem:[%s6498 + $0xc] sm:$0xf]
      %v6503 = vld [vmem:[%s6498 + $0x10] sm:$0xf]
      %v6504 = vld [vmem:[%s6498 + $0x14] sm:$0xf]
      %v6505 = vld [vmem:[%s6498 + $0x18] sm:$0xf]
      %v6506 = vld [vmem:[%s6498 + $0x1c] sm:$0xf]
      %v6507 = vld [vmem:[%s6498 + $0x20] sm:$0xf]
      %v6508 = vld [vmem:[%s6498 + $0x24] sm:$0xf]
      %v6509 = vld [vmem:[%s6498 + $0x28] sm:$0xf]
      %v6510 = vld [vmem:[%s6498 + $0x2c] sm:$0xf]
      %v6511 = vld [vmem:[%s6498 + $0x30] sm:$0xf]
      %v6512 = vld [vmem:[%s6498 + $0x34] sm:$0xf]
      %v6513 = vld [vmem:[%s6498 + $0x38] sm:$0xf]
      %v6514 = vld [vmem:[%s6498 + $0x3c] sm:$0xf]
      %v6515 = vld [vmem:[%s6498 + $0x40] sm:$0xf]
      %v6516 = vld [vmem:[%s6498 + $0x44] sm:$0xf]
      %v6517 = vld [vmem:[%s6498 + $0x48] sm:$0xf]
      %v6518 = vld [vmem:[%s6498 + $0x4c] sm:$0xf]
      %v6519 = vld [vmem:[%s6498 + $0x50] sm:$0xf]
      %v6520 = vld [vmem:[%s6498 + $0x54] sm:$0xf]
      %v6521 = vld [vmem:[%s6498 + $0x58] sm:$0xf]
      %v6522 = vld [vmem:[%s6498 + $0x5c] sm:$0xf]
      %v6523 = vld [vmem:[%s6498 + $0x60] sm:$0xf]
      %v6524 = vld [vmem:[%s6498 + $0x64] sm:$0xf]
      %v6525 = vld [vmem:[%s6498 + $0x68] sm:$0xf]
      %v6526 = vld [vmem:[%s6498 + $0x6c] sm:$0xf]
      %v6527 = vld [vmem:[%s6498 + $0x70] sm:$0xf]
      %v6528 = vld [vmem:[%s6498 + $0x74] sm:$0xf]
      %v6529 = vld [vmem:[%s6498 + $0x78] sm:$0xf]
      %v6530 = vld [vmem:[%s6498 + $0x7c] sm:$0xf]
      %v6563 = vunpack.c.l.b16 %v6499
      %v6564 = vunpack.c.l.b16 %v6500
      %v6565 = vunpack.c.l.b16 %v6501
      %v6566 = vunpack.c.l.b16 %v6502
      %v6567 = vunpack.c.l.b16 %v6503
      %v6568 = vunpack.c.l.b16 %v6504
      %v6569 = vunpack.c.l.b16 %v6505
      %v6570 = vunpack.c.l.b16 %v6506
      %v6571 = vunpack.c.l.b16 %v6507
      %v6572 = vunpack.c.l.b16 %v6508
      %v6573 = vunpack.c.l.b16 %v6509
      %v6574 = vunpack.c.l.b16 %v6510
      %v6575 = vunpack.c.l.b16 %v6511
      %v6576 = vunpack.c.l.b16 %v6512
      %v6577 = vunpack.c.l.b16 %v6513
      %v6578 = vunpack.c.l.b16 %v6514
      %v6579 = vunpack.c.l.b16 %v6515
      %v6580 = vunpack.c.l.b16 %v6516
      %v6581 = vunpack.c.l.b16 %v6517
      %v6582 = vunpack.c.l.b16 %v6518
      %v6583 = vunpack.c.l.b16 %v6519
      %v6584 = vunpack.c.l.b16 %v6520
      %v6585 = vunpack.c.l.b16 %v6521
      %v6586 = vunpack.c.l.b16 %v6522
      %v6587 = vunpack.c.l.b16 %v6523
      %v6588 = vunpack.c.l.b16 %v6524
      %v6589 = vunpack.c.l.b16 %v6525
      %v6590 = vunpack.c.l.b16 %v6526
      %v6591 = vunpack.c.l.b16 %v6527
      %v6592 = vunpack.c.l.b16 %v6528
      %v6593 = vunpack.c.l.b16 %v6529
      %v6594 = vunpack.c.l.b16 %v6530
      %v6595 = vpack.c.b16 %v6564, %v6563
      %v6596 = vpack.c.b16 %v6566, %v6565
      %v6597 = vpack.c.b16 %v6568, %v6567
      %v6598 = vpack.c.b16 %v6570, %v6569
      %v6599 = vpack.c.b16 %v6572, %v6571
      %v6600 = vpack.c.b16 %v6574, %v6573
      %v6601 = vpack.c.b16 %v6576, %v6575
      %v6602 = vpack.c.b16 %v6578, %v6577
      %v6603 = vpack.c.b16 %v6580, %v6579
      %v6604 = vpack.c.b16 %v6582, %v6581
      %v6605 = vpack.c.b16 %v6584, %v6583
      %v6606 = vpack.c.b16 %v6586, %v6585
      %v6607 = vpack.c.b16 %v6588, %v6587
      %v6608 = vpack.c.b16 %v6590, %v6589
      %v6609 = vpack.c.b16 %v6592, %v6591
      %v6610 = vpack.c.b16 %v6594, %v6593
      %6627 = vmatprep.subr.bf16.mxu0 0
      %6628 = vmatpush1.bf16.msra.mxu0 %v6602
      %6629 = vmatprep.subr.bf16.mxu0 0
      %6630 = vmatpush1.bf16.msra.mxu0 %v6601
      %6631 = vmatprep.subr.bf16.mxu0 0
      %6632 = vmatpush1.bf16.msra.mxu0 %v6600
      %6633 = vmatprep.subr.bf16.mxu0 0
      %6634 = vmatpush1.bf16.msra.mxu0 %v6599
      %6635 = vmatprep.subr.bf16.mxu0 0
      %6636 = vmatpush1.bf16.msra.mxu0 %v6598
      %6637 = vmatprep.subr.bf16.mxu0 0
      %6638 = vmatpush1.bf16.msra.mxu0 %v6597
      %6639 = vmatprep.subr.bf16.mxu0 0
      %6640 = vmatpush1.bf16.msra.mxu0 %v6596
      %6641 = vmatprep.subr.bf16.mxu0 0
      %6642 = vmatpush1.bf16.msra.mxu0 %v6595
      %6643 = vmatprep.subr.bf16.mxu0 0
      %6644 = vmatpush2.bf16.msra.mxu0 %v6610
      %6645 = vmatprep.subr.bf16.mxu0 0
      %6646 = vmatpush2.bf16.msra.mxu0 %v6609
      %6647 = vmatprep.subr.bf16.mxu0 0
      %6648 = vmatpush2.bf16.msra.mxu0 %v6608
      %6649 = vmatprep.subr.bf16.mxu0 0
      %6650 = vmatpush2.bf16.msra.mxu0 %v6607
      %6651 = vmatprep.subr.bf16.mxu0 0
      %6652 = vmatpush2.bf16.msra.mxu0 %v6606
      %6653 = vmatprep.subr.bf16.mxu0 0
      %6654 = vmatpush2.bf16.msra.mxu0 %v6605
      %6655 = vmatprep.subr.bf16.mxu0 0
      %6656 = vmatpush2.bf16.msra.mxu0 %v6604
      %6657 = vmatprep.subr.bf16.mxu0 0
      %6658 = vmatpush2.bf16.msra.mxu0 %v6603
      %6659 = vmatprep.mubr.bf16.mxu0 %v6491
      %6660 = vmatmul.mubr.bf16.gmra.mxu0 %v6490
      %v6661 = vpop.f32.mrf.mxu0
      %v6662 = vadd.f32 0.0, %v6661
      %v6663 = vpop.f32.mrf.mxu0
      %v6664 = vpop.f32.mrf.mxu0
      %v6665 = vadd.f32 0.0, %v6664
      %v6666 = vpop.f32.mrf.mxu0
      %6667 = vmatprep.mubr.bf16.mxu0 %v6493
      %6668 = vmatmul.mubr.bf16.gmra.mxu0 %v6492
      %v6669 = vpop.f32.mrf.mxu0
      %v6670 = vadd.f32 0.0, %v6669
      %v6671 = vpop.f32.mrf.mxu0
      %v6672 = vpop.f32.mrf.mxu0
      %v6673 = vadd.f32 0.0, %v6672
      %v6674 = vpop.f32.mrf.mxu0
      %6675 = vmatprep.mubr.bf16.mxu0 %v6495
      %6676 = vmatmul.mubr.bf16.gmra.mxu0 %v6494
      %v6677 = vpop.f32.mrf.mxu0
      %v6678 = vadd.f32 0.0, %v6677
      %v6679 = vpop.f32.mrf.mxu0
      %v6680 = vpop.f32.mrf.mxu0
      %v6681 = vadd.f32 0.0, %v6680
      %v6682 = vpop.f32.mrf.mxu0
      %6683 = vmatprep.mubr.bf16.mxu0 %v6497
      %6684 = vmatmul.mubr.bf16.gmra.mxu0 %v6496
      %v6685 = vpop.f32.mrf.mxu0
      %v6686 = vadd.f32 0.0, %v6685
      %v6687 = vpop.f32.mrf.mxu0
      %v6688 = vpop.f32.mrf.mxu0
      %v6689 = vadd.f32 0.0, %v6688
      %v6690 = vpop.f32.mrf.mxu0
      %6691 = vdwg.mxu0
      %v6692 = vadd.f32 %v6466, %v6662
      %v6693 = vadd.f32 %v6467, %v6665
      %v6694 = vadd.f32 %v6468, %v6670
      %v6695 = vadd.f32 %v6469, %v6673
      %v6696 = vadd.f32 %v6470, %v6678
      %v6697 = vadd.f32 %v6471, %v6681
      %v6698 = vadd.f32 %v6472, %v6686
      %v6699 = vadd.f32 %v6473, %v6689
      %v6700 = vld [vmem:[%s1439] sm:$0xfe]
      %v6701 = vld [vmem:[%s1439 + $0x8] sm:$0xfe]
      %v6702 = vld [vmem:[%s1439 + $0x10] sm:$0x1]
      %v6703 = vld [vmem:[%s1439 + $0x18] sm:$0x1]
      %v6704 = vld [vmem:[%s1439 + $0x20] sm:$0xfe]
      %v6705 = vld [vmem:[%s1439 + $0x28] sm:$0xfe]
      %v6706 = vld [vmem:[%s1439 + $0x30] sm:$0x1]
      %v6707 = vld [vmem:[%s1439 + $0x38] sm:$0x1]
      %v6708 = vld [vmem:[%s1439 + $0x40] sm:$0xfe]
      %v6709 = vld [vmem:[%s1439 + $0x48] sm:$0xfe]
      %v6710 = vld [vmem:[%s1439 + $0x50] sm:$0x1]
      %v6711 = vld [vmem:[%s1439 + $0x58] sm:$0x1]
      %v6712 = vld [vmem:[%s1439 + $0x60] sm:$0xfe]
      %v6713 = vld [vmem:[%s1439 + $0x68] sm:$0xfe]
      %v6714 = vld [vmem:[%s1439 + $0x70] sm:$0x1]
      %v6715 = vld [vmem:[%s1439 + $0x78] sm:$0x1]
      %v6716 = vld [vmem:[%s1439 + $0x80] sm:$0xfe]
      %v6717 = vld [vmem:[%s1439 + $0x88] sm:$0xfe]
      %v6718 = vld [vmem:[%s1439 + $0x90] sm:$0x1]
      %v6719 = vld [vmem:[%s1439 + $0x98] sm:$0x1]
      %v6720 = vld [vmem:[%s1439 + $0xa0] sm:$0xfe]
      %v6721 = vld [vmem:[%s1439 + $0xa8] sm:$0xfe]
      %v6722 = vld [vmem:[%s1439 + $0xb0] sm:$0x1]
      %v6723 = vld [vmem:[%s1439 + $0xb8] sm:$0x1]
      %v6724 = vld [vmem:[%s1439 + $0xc0] sm:$0xfe]
      %v6725 = vld [vmem:[%s1439 + $0xc8] sm:$0xfe]
      %v6726 = vld [vmem:[%s1439 + $0xd0] sm:$0x1]
      %v6727 = vld [vmem:[%s1439 + $0xd8] sm:$0x1]
      %v6728 = vld [vmem:[%s1439 + $0xe0] sm:$0xfe]
      %v6729 = vld [vmem:[%s1439 + $0xe8] sm:$0xfe]
      %v6730 = vld [vmem:[%s1439 + $0xf0] sm:$0x1]
      %v6731 = vld [vmem:[%s1439 + $0xf8] sm:$0x1]
      %v6764 = vrot.slane %v6700, 1
      %v6765 = vrot.slane %v6702, 1
      %v6766 = vsel %vm672, %v6764, %v6765
      %v6767 = vrot.slane %v6701, 1
      %v6768 = vrot.slane %v6703, 1
      %v6769 = vsel %vm672, %v6767, %v6768
      %v6770 = vrot.slane %v6704, 1
      %v6771 = vrot.slane %v6706, 1
      %v6772 = vsel %vm672, %v6770, %v6771
      %v6773 = vrot.slane %v6705, 1
      %v6774 = vrot.slane %v6707, 1
      %v6775 = vsel %vm672, %v6773, %v6774
      %v6776 = vrot.slane %v6708, 1
      %v6777 = vrot.slane %v6710, 1
      %v6778 = vsel %vm672, %v6776, %v6777
      %v6779 = vrot.slane %v6709, 1
      %v6780 = vrot.slane %v6711, 1
      %v6781 = vsel %vm672, %v6779, %v6780
      %v6782 = vrot.slane %v6712, 1
      %v6783 = vrot.slane %v6714, 1
      %v6784 = vsel %vm672, %v6782, %v6783
      %v6785 = vrot.slane %v6713, 1
      %v6786 = vrot.slane %v6715, 1
      %v6787 = vsel %vm672, %v6785, %v6786
      %v6788 = vrot.slane %v6716, 1
      %v6789 = vrot.slane %v6718, 1
      %v6790 = vsel %vm672, %v6788, %v6789
      %v6791 = vrot.slane %v6717, 1
      %v6792 = vrot.slane %v6719, 1
      %v6793 = vsel %vm672, %v6791, %v6792
      %v6794 = vrot.slane %v6720, 1
      %v6795 = vrot.slane %v6722, 1
      %v6796 = vsel %vm672, %v6794, %v6795
      %v6797 = vrot.slane %v6721, 1
      %v6798 = vrot.slane %v6723, 1
      %v6799 = vsel %vm672, %v6797, %v6798
      %v6800 = vrot.slane %v6724, 1
      %v6801 = vrot.slane %v6726, 1
      %v6802 = vsel %vm672, %v6800, %v6801
      %v6803 = vrot.slane %v6725, 1
      %v6804 = vrot.slane %v6727, 1
      %v6805 = vsel %vm672, %v6803, %v6804
      %v6806 = vrot.slane %v6728, 1
      %v6807 = vrot.slane %v6730, 1
      %v6808 = vsel %vm672, %v6806, %v6807
      %v6809 = vrot.slane %v6729, 1
      %v6810 = vrot.slane %v6731, 1
      %v6811 = vsel %vm672, %v6809, %v6810
      %v6828 = vpack.c.bf16 %v6772, %v6766
      %v6829 = vpack.c.bf16 %v6775, %v6769
      %v6830 = vpack.c.bf16 %v6784, %v6778
      %v6831 = vpack.c.bf16 %v6787, %v6781
      %v6832 = vpack.c.bf16 %v6796, %v6790
      %v6833 = vpack.c.bf16 %v6799, %v6793
      %v6834 = vpack.c.bf16 %v6808, %v6802
      %v6835 = vpack.c.bf16 %v6811, %v6805
      %s6836 = scalar_lea.vmem %s13, 512
      %v6837 = vld [vmem:[%s6836] sm:$0xf]
      %v6838 = vld [vmem:[%s6836 + $0x4] sm:$0xf]
      %v6839 = vld [vmem:[%s6836 + $0x8] sm:$0xf]
      %v6840 = vld [vmem:[%s6836 + $0xc] sm:$0xf]
      %v6841 = vld [vmem:[%s6836 + $0x10] sm:$0xf]
      %v6842 = vld [vmem:[%s6836 + $0x14] sm:$0xf]
      %v6843 = vld [vmem:[%s6836 + $0x18] sm:$0xf]
      %v6844 = vld [vmem:[%s6836 + $0x1c] sm:$0xf]
      %v6845 = vld [vmem:[%s6836 + $0x20] sm:$0xf]
      %v6846 = vld [vmem:[%s6836 + $0x24] sm:$0xf]
      %v6847 = vld [vmem:[%s6836 + $0x28] sm:$0xf]
      %v6848 = vld [vmem:[%s6836 + $0x2c] sm:$0xf]
      %v6849 = vld [vmem:[%s6836 + $0x30] sm:$0xf]
      %v6850 = vld [vmem:[%s6836 + $0x34] sm:$0xf]
      %v6851 = vld [vmem:[%s6836 + $0x38] sm:$0xf]
      %v6852 = vld [vmem:[%s6836 + $0x3c] sm:$0xf]
      %v6853 = vld [vmem:[%s6836 + $0x40] sm:$0xf]
      %v6854 = vld [vmem:[%s6836 + $0x44] sm:$0xf]
      %v6855 = vld [vmem:[%s6836 + $0x48] sm:$0xf]
      %v6856 = vld [vmem:[%s6836 + $0x4c] sm:$0xf]
      %v6857 = vld [vmem:[%s6836 + $0x50] sm:$0xf]
      %v6858 = vld [vmem:[%s6836 + $0x54] sm:$0xf]
      %v6859 = vld [vmem:[%s6836 + $0x58] sm:$0xf]
      %v6860 = vld [vmem:[%s6836 + $0x5c] sm:$0xf]
      %v6861 = vld [vmem:[%s6836 + $0x60] sm:$0xf]
      %v6862 = vld [vmem:[%s6836 + $0x64] sm:$0xf]
      %v6863 = vld [vmem:[%s6836 + $0x68] sm:$0xf]
      %v6864 = vld [vmem:[%s6836 + $0x6c] sm:$0xf]
      %v6865 = vld [vmem:[%s6836 + $0x70] sm:$0xf]
      %v6866 = vld [vmem:[%s6836 + $0x74] sm:$0xf]
      %v6867 = vld [vmem:[%s6836 + $0x78] sm:$0xf]
      %v6868 = vld [vmem:[%s6836 + $0x7c] sm:$0xf]
      %v6901 = vunpack.c.l.b16 %v6837
      %v6902 = vunpack.c.l.b16 %v6838
      %v6903 = vunpack.c.l.b16 %v6839
      %v6904 = vunpack.c.l.b16 %v6840
      %v6905 = vunpack.c.l.b16 %v6841
      %v6906 = vunpack.c.l.b16 %v6842
      %v6907 = vunpack.c.l.b16 %v6843
      %v6908 = vunpack.c.l.b16 %v6844
      %v6909 = vunpack.c.l.b16 %v6845
      %v6910 = vunpack.c.l.b16 %v6846
      %v6911 = vunpack.c.l.b16 %v6847
      %v6912 = vunpack.c.l.b16 %v6848
      %v6913 = vunpack.c.l.b16 %v6849
      %v6914 = vunpack.c.l.b16 %v6850
      %v6915 = vunpack.c.l.b16 %v6851
      %v6916 = vunpack.c.l.b16 %v6852
      %v6917 = vunpack.c.l.b16 %v6853
      %v6918 = vunpack.c.l.b16 %v6854
      %v6919 = vunpack.c.l.b16 %v6855
      %v6920 = vunpack.c.l.b16 %v6856
      %v6921 = vunpack.c.l.b16 %v6857
      %v6922 = vunpack.c.l.b16 %v6858
      %v6923 = vunpack.c.l.b16 %v6859
      %v6924 = vunpack.c.l.b16 %v6860
      %v6925 = vunpack.c.l.b16 %v6861
      %v6926 = vunpack.c.l.b16 %v6862
      %v6927 = vunpack.c.l.b16 %v6863
      %v6928 = vunpack.c.l.b16 %v6864
      %v6929 = vunpack.c.l.b16 %v6865
      %v6930 = vunpack.c.l.b16 %v6866
      %v6931 = vunpack.c.l.b16 %v6867
      %v6932 = vunpack.c.l.b16 %v6868
      %v6933 = vpack.c.b16 %v6902, %v6901
      %v6934 = vpack.c.b16 %v6904, %v6903
      %v6935 = vpack.c.b16 %v6906, %v6905
      %v6936 = vpack.c.b16 %v6908, %v6907
      %v6937 = vpack.c.b16 %v6910, %v6909
      %v6938 = vpack.c.b16 %v6912, %v6911
      %v6939 = vpack.c.b16 %v6914, %v6913
      %v6940 = vpack.c.b16 %v6916, %v6915
      %v6941 = vpack.c.b16 %v6918, %v6917
      %v6942 = vpack.c.b16 %v6920, %v6919
      %v6943 = vpack.c.b16 %v6922, %v6921
      %v6944 = vpack.c.b16 %v6924, %v6923
      %v6945 = vpack.c.b16 %v6926, %v6925
      %v6946 = vpack.c.b16 %v6928, %v6927
      %v6947 = vpack.c.b16 %v6930, %v6929
      %v6948 = vpack.c.b16 %v6932, %v6931
      %6965 = vmatprep.subr.bf16.mxu0 0
      %6966 = vmatpush1.bf16.msra.mxu0 %v6940
      %6967 = vmatprep.subr.bf16.mxu0 0
      %6968 = vmatpush1.bf16.msra.mxu0 %v6939
      %6969 = vmatprep.subr.bf16.mxu0 0
      %6970 = vmatpush1.bf16.msra.mxu0 %v6938
      %6971 = vmatprep.subr.bf16.mxu0 0
      %6972 = vmatpush1.bf16.msra.mxu0 %v6937
      %6973 = vmatprep.subr.bf16.mxu0 0
      %6974 = vmatpush1.bf16.msra.mxu0 %v6936
      %6975 = vmatprep.subr.bf16.mxu0 0
      %6976 = vmatpush1.bf16.msra.mxu0 %v6935
      %6977 = vmatprep.subr.bf16.mxu0 0
      %6978 = vmatpush1.bf16.msra.mxu0 %v6934
      %6979 = vmatprep.subr.bf16.mxu0 0
      %6980 = vmatpush1.bf16.msra.mxu0 %v6933
      %6981 = vmatprep.subr.bf16.mxu0 0
      %6982 = vmatpush2.bf16.msra.mxu0 %v6948
      %6983 = vmatprep.subr.bf16.mxu0 0
      %6984 = vmatpush2.bf16.msra.mxu0 %v6947
      %6985 = vmatprep.subr.bf16.mxu0 0
      %6986 = vmatpush2.bf16.msra.mxu0 %v6946
      %6987 = vmatprep.subr.bf16.mxu0 0
      %6988 = vmatpush2.bf16.msra.mxu0 %v6945
      %6989 = vmatprep.subr.bf16.mxu0 0
      %6990 = vmatpush2.bf16.msra.mxu0 %v6944
      %6991 = vmatprep.subr.bf16.mxu0 0
      %6992 = vmatpush2.bf16.msra.mxu0 %v6943
      %6993 = vmatprep.subr.bf16.mxu0 0
      %6994 = vmatpush2.bf16.msra.mxu0 %v6942
      %6995 = vmatprep.subr.bf16.mxu0 0
      %6996 = vmatpush2.bf16.msra.mxu0 %v6941
      %6997 = vmatprep.mubr.bf16.mxu0 %v6829
      %6998 = vmatmul.mubr.bf16.gmra.mxu0 %v6828
      %v6999 = vpop.f32.mrf.mxu0
      %v7000 = vadd.f32 0.0, %v6999
      %v7001 = vpop.f32.mrf.mxu0
      %v7002 = vpop.f32.mrf.mxu0
      %v7003 = vadd.f32 0.0, %v7002
      %v7004 = vpop.f32.mrf.mxu0
      %7005 = vmatprep.mubr.bf16.mxu0 %v6831
      %7006 = vmatmul.mubr.bf16.gmra.mxu0 %v6830
      %v7007 = vpop.f32.mrf.mxu0
      %v7008 = vadd.f32 0.0, %v7007
      %v7009 = vpop.f32.mrf.mxu0
      %v7010 = vpop.f32.mrf.mxu0
      %v7011 = vadd.f32 0.0, %v7010
      %v7012 = vpop.f32.mrf.mxu0
      %7013 = vmatprep.mubr.bf16.mxu0 %v6833
      %7014 = vmatmul.mubr.bf16.gmra.mxu0 %v6832
      %v7015 = vpop.f32.mrf.mxu0
      %v7016 = vadd.f32 0.0, %v7015
      %v7017 = vpop.f32.mrf.mxu0
      %v7018 = vpop.f32.mrf.mxu0
      %v7019 = vadd.f32 0.0, %v7018
      %v7020 = vpop.f32.mrf.mxu0
      %7021 = vmatprep.mubr.bf16.mxu0 %v6835
      %7022 = vmatmul.mubr.bf16.gmra.mxu0 %v6834
      %v7023 = vpop.f32.mrf.mxu0
      %v7024 = vadd.f32 0.0, %v7023
      %v7025 = vpop.f32.mrf.mxu0
      %v7026 = vpop.f32.mrf.mxu0
      %v7027 = vadd.f32 0.0, %v7026
      %v7028 = vpop.f32.mrf.mxu0
      %7029 = vdwg.mxu0
      %v7030 = vadd.f32 %v6692, %v7000
      %v7031 = vadd.f32 %v6693, %v7003
      %v7032 = vadd.f32 %v6694, %v7008
      %v7033 = vadd.f32 %v6695, %v7011
      %v7034 = vadd.f32 %v6696, %v7016
      %v7035 = vadd.f32 %v6697, %v7019
      %v7036 = vadd.f32 %v6698, %v7024
      %v7037 = vadd.f32 %v6699, %v7027
      %v7038 = vld [vmem:[%s1439] sm:$0xfc]
      %v7039 = vld [vmem:[%s1439 + $0x8] sm:$0xfc]
      %v7040 = vld [vmem:[%s1439 + $0x10] sm:$0x3]
      %v7041 = vld [vmem:[%s1439 + $0x18] sm:$0x3]
      %v7042 = vld [vmem:[%s1439 + $0x20] sm:$0xfc]
      %v7043 = vld [vmem:[%s1439 + $0x28] sm:$0xfc]
      %v7044 = vld [vmem:[%s1439 + $0x30] sm:$0x3]
      %v7045 = vld [vmem:[%s1439 + $0x38] sm:$0x3]
      %v7046 = vld [vmem:[%s1439 + $0x40] sm:$0xfc]
      %v7047 = vld [vmem:[%s1439 + $0x48] sm:$0xfc]
      %v7048 = vld [vmem:[%s1439 + $0x50] sm:$0x3]
      %v7049 = vld [vmem:[%s1439 + $0x58] sm:$0x3]
      %v7050 = vld [vmem:[%s1439 + $0x60] sm:$0xfc]
      %v7051 = vld [vmem:[%s1439 + $0x68] sm:$0xfc]
      %v7052 = vld [vmem:[%s1439 + $0x70] sm:$0x3]
      %v7053 = vld [vmem:[%s1439 + $0x78] sm:$0x3]
      %v7054 = vld [vmem:[%s1439 + $0x80] sm:$0xfc]
      %v7055 = vld [vmem:[%s1439 + $0x88] sm:$0xfc]
      %v7056 = vld [vmem:[%s1439 + $0x90] sm:$0x3]
      %v7057 = vld [vmem:[%s1439 + $0x98] sm:$0x3]
      %v7058 = vld [vmem:[%s1439 + $0xa0] sm:$0xfc]
      %v7059 = vld [vmem:[%s1439 + $0xa8] sm:$0xfc]
      %v7060 = vld [vmem:[%s1439 + $0xb0] sm:$0x3]
      %v7061 = vld [vmem:[%s1439 + $0xb8] sm:$0x3]
      %v7062 = vld [vmem:[%s1439 + $0xc0] sm:$0xfc]
      %v7063 = vld [vmem:[%s1439 + $0xc8] sm:$0xfc]
      %v7064 = vld [vmem:[%s1439 + $0xd0] sm:$0x3]
      %v7065 = vld [vmem:[%s1439 + $0xd8] sm:$0x3]
      %v7066 = vld [vmem:[%s1439 + $0xe0] sm:$0xfc]
      %v7067 = vld [vmem:[%s1439 + $0xe8] sm:$0xfc]
      %v7068 = vld [vmem:[%s1439 + $0xf0] sm:$0x3]
      %v7069 = vld [vmem:[%s1439 + $0xf8] sm:$0x3]
      %v7102 = vrot.slane %v7038, 2
      %v7103 = vrot.slane %v7040, 2
      %v7104 = vsel %vm1164, %v7102, %v7103
      %v7105 = vrot.slane %v7039, 2
      %v7106 = vrot.slane %v7041, 2
      %v7107 = vsel %vm1164, %v7105, %v7106
      %v7108 = vrot.slane %v7042, 2
      %v7109 = vrot.slane %v7044, 2
      %v7110 = vsel %vm1164, %v7108, %v7109
      %v7111 = vrot.slane %v7043, 2
      %v7112 = vrot.slane %v7045, 2
      %v7113 = vsel %vm1164, %v7111, %v7112
      %v7114 = vrot.slane %v7046, 2
      %v7115 = vrot.slane %v7048, 2
      %v7116 = vsel %vm1164, %v7114, %v7115
      %v7117 = vrot.slane %v7047, 2
      %v7118 = vrot.slane %v7049, 2
      %v7119 = vsel %vm1164, %v7117, %v7118
      %v7120 = vrot.slane %v7050, 2
      %v7121 = vrot.slane %v7052, 2
      %v7122 = vsel %vm1164, %v7120, %v7121
      %v7123 = vrot.slane %v7051, 2
      %v7124 = vrot.slane %v7053, 2
      %v7125 = vsel %vm1164, %v7123, %v7124
      %v7126 = vrot.slane %v7054, 2
      %v7127 = vrot.slane %v7056, 2
      %v7128 = vsel %vm1164, %v7126, %v7127
      %v7129 = vrot.slane %v7055, 2
      %v7130 = vrot.slane %v7057, 2
      %v7131 = vsel %vm1164, %v7129, %v7130
      %v7132 = vrot.slane %v7058, 2
      %v7133 = vrot.slane %v7060, 2
      %v7134 = vsel %vm1164, %v7132, %v7133
      %v7135 = vrot.slane %v7059, 2
      %v7136 = vrot.slane %v7061, 2
      %v7137 = vsel %vm1164, %v7135, %v7136
      %v7138 = vrot.slane %v7062, 2
      %v7139 = vrot.slane %v7064, 2
      %v7140 = vsel %vm1164, %v7138, %v7139
      %v7141 = vrot.slane %v7063, 2
      %v7142 = vrot.slane %v7065, 2
      %v7143 = vsel %vm1164, %v7141, %v7142
      %v7144 = vrot.slane %v7066, 2
      %v7145 = vrot.slane %v7068, 2
      %v7146 = vsel %vm1164, %v7144, %v7145
      %v7147 = vrot.slane %v7067, 2
      %v7148 = vrot.slane %v7069, 2
      %v7149 = vsel %vm1164, %v7147, %v7148
      %v7166 = vpack.c.bf16 %v7110, %v7104
      %v7167 = vpack.c.bf16 %v7113, %v7107
      %v7168 = vpack.c.bf16 %v7122, %v7116
      %v7169 = vpack.c.bf16 %v7125, %v7119
      %v7170 = vpack.c.bf16 %v7134, %v7128
      %v7171 = vpack.c.bf16 %v7137, %v7131
      %v7172 = vpack.c.bf16 %v7146, %v7140
      %v7173 = vpack.c.bf16 %v7149, %v7143
      %s7174 = scalar_lea.vmem %s13, 640
      %v7175 = vld [vmem:[%s7174] sm:$0xf]
      %v7176 = vld [vmem:[%s7174 + $0x4] sm:$0xf]
      %v7177 = vld [vmem:[%s7174 + $0x8] sm:$0xf]
      %v7178 = vld [vmem:[%s7174 + $0xc] sm:$0xf]
      %v7179 = vld [vmem:[%s7174 + $0x10] sm:$0xf]
      %v7180 = vld [vmem:[%s7174 + $0x14] sm:$0xf]
      %v7181 = vld [vmem:[%s7174 + $0x18] sm:$0xf]
      %v7182 = vld [vmem:[%s7174 + $0x1c] sm:$0xf]
      %v7183 = vld [vmem:[%s7174 + $0x20] sm:$0xf]
      %v7184 = vld [vmem:[%s7174 + $0x24] sm:$0xf]
      %v7185 = vld [vmem:[%s7174 + $0x28] sm:$0xf]
      %v7186 = vld [vmem:[%s7174 + $0x2c] sm:$0xf]
      %v7187 = vld [vmem:[%s7174 + $0x30] sm:$0xf]
      %v7188 = vld [vmem:[%s7174 + $0x34] sm:$0xf]
      %v7189 = vld [vmem:[%s7174 + $0x38] sm:$0xf]
      %v7190 = vld [vmem:[%s7174 + $0x3c] sm:$0xf]
      %v7191 = vld [vmem:[%s7174 + $0x40] sm:$0xf]
      %v7192 = vld [vmem:[%s7174 + $0x44] sm:$0xf]
      %v7193 = vld [vmem:[%s7174 + $0x48] sm:$0xf]
      %v7194 = vld [vmem:[%s7174 + $0x4c] sm:$0xf]
      %v7195 = vld [vmem:[%s7174 + $0x50] sm:$0xf]
      %v7196 = vld [vmem:[%s7174 + $0x54] sm:$0xf]
      %v7197 = vld [vmem:[%s7174 + $0x58] sm:$0xf]
      %v7198 = vld [vmem:[%s7174 + $0x5c] sm:$0xf]
      %v7199 = vld [vmem:[%s7174 + $0x60] sm:$0xf]
      %v7200 = vld [vmem:[%s7174 + $0x64] sm:$0xf]
      %v7201 = vld [vmem:[%s7174 + $0x68] sm:$0xf]
      %v7202 = vld [vmem:[%s7174 + $0x6c] sm:$0xf]
      %v7203 = vld [vmem:[%s7174 + $0x70] sm:$0xf]
      %v7204 = vld [vmem:[%s7174 + $0x74] sm:$0xf]
      %v7205 = vld [vmem:[%s7174 + $0x78] sm:$0xf]
      %v7206 = vld [vmem:[%s7174 + $0x7c] sm:$0xf]
      %v7239 = vunpack.c.l.b16 %v7175
      %v7240 = vunpack.c.l.b16 %v7176
      %v7241 = vunpack.c.l.b16 %v7177
      %v7242 = vunpack.c.l.b16 %v7178
      %v7243 = vunpack.c.l.b16 %v7179
      %v7244 = vunpack.c.l.b16 %v7180
      %v7245 = vunpack.c.l.b16 %v7181
      %v7246 = vunpack.c.l.b16 %v7182
      %v7247 = vunpack.c.l.b16 %v7183
      %v7248 = vunpack.c.l.b16 %v7184
      %v7249 = vunpack.c.l.b16 %v7185
      %v7250 = vunpack.c.l.b16 %v7186
      %v7251 = vunpack.c.l.b16 %v7187
      %v7252 = vunpack.c.l.b16 %v7188
      %v7253 = vunpack.c.l.b16 %v7189
      %v7254 = vunpack.c.l.b16 %v7190
      %v7255 = vunpack.c.l.b16 %v7191
      %v7256 = vunpack.c.l.b16 %v7192
      %v7257 = vunpack.c.l.b16 %v7193
      %v7258 = vunpack.c.l.b16 %v7194
      %v7259 = vunpack.c.l.b16 %v7195
      %v7260 = vunpack.c.l.b16 %v7196
      %v7261 = vunpack.c.l.b16 %v7197
      %v7262 = vunpack.c.l.b16 %v7198
      %v7263 = vunpack.c.l.b16 %v7199
      %v7264 = vunpack.c.l.b16 %v7200
      %v7265 = vunpack.c.l.b16 %v7201
      %v7266 = vunpack.c.l.b16 %v7202
      %v7267 = vunpack.c.l.b16 %v7203
      %v7268 = vunpack.c.l.b16 %v7204
      %v7269 = vunpack.c.l.b16 %v7205
      %v7270 = vunpack.c.l.b16 %v7206
      %v7271 = vpack.c.b16 %v7240, %v7239
      %v7272 = vpack.c.b16 %v7242, %v7241
      %v7273 = vpack.c.b16 %v7244, %v7243
      %v7274 = vpack.c.b16 %v7246, %v7245
      %v7275 = vpack.c.b16 %v7248, %v7247
      %v7276 = vpack.c.b16 %v7250, %v7249
      %v7277 = vpack.c.b16 %v7252, %v7251
      %v7278 = vpack.c.b16 %v7254, %v7253
      %v7279 = vpack.c.b16 %v7256, %v7255
      %v7280 = vpack.c.b16 %v7258, %v7257
      %v7281 = vpack.c.b16 %v7260, %v7259
      %v7282 = vpack.c.b16 %v7262, %v7261
      %v7283 = vpack.c.b16 %v7264, %v7263
      %v7284 = vpack.c.b16 %v7266, %v7265
      %v7285 = vpack.c.b16 %v7268, %v7267
      %v7286 = vpack.c.b16 %v7270, %v7269
      %7303 = vmatprep.subr.bf16.mxu0 0
      %7304 = vmatpush1.bf16.msra.mxu0 %v7278
      %7305 = vmatprep.subr.bf16.mxu0 0
      %7306 = vmatpush1.bf16.msra.mxu0 %v7277
      %7307 = vmatprep.subr.bf16.mxu0 0
      %7308 = vmatpush1.bf16.msra.mxu0 %v7276
      %7309 = vmatprep.subr.bf16.mxu0 0
      %7310 = vmatpush1.bf16.msra.mxu0 %v7275
      %7311 = vmatprep.subr.bf16.mxu0 0
      %7312 = vmatpush1.bf16.msra.mxu0 %v7274
      %7313 = vmatprep.subr.bf16.mxu0 0
      %7314 = vmatpush1.bf16.msra.mxu0 %v7273
      %7315 = vmatprep.subr.bf16.mxu0 0
      %7316 = vmatpush1.bf16.msra.mxu0 %v7272
      %7317 = vmatprep.subr.bf16.mxu0 0
      %7318 = vmatpush1.bf16.msra.mxu0 %v7271
      %7319 = vmatprep.subr.bf16.mxu0 0
      %7320 = vmatpush2.bf16.msra.mxu0 %v7286
      %7321 = vmatprep.subr.bf16.mxu0 0
      %7322 = vmatpush2.bf16.msra.mxu0 %v7285
      %7323 = vmatprep.subr.bf16.mxu0 0
      %7324 = vmatpush2.bf16.msra.mxu0 %v7284
      %7325 = vmatprep.subr.bf16.mxu0 0
      %7326 = vmatpush2.bf16.msra.mxu0 %v7283
      %7327 = vmatprep.subr.bf16.mxu0 0
      %7328 = vmatpush2.bf16.msra.mxu0 %v7282
      %7329 = vmatprep.subr.bf16.mxu0 0
      %7330 = vmatpush2.bf16.msra.mxu0 %v7281
      %7331 = vmatprep.subr.bf16.mxu0 0
      %7332 = vmatpush2.bf16.msra.mxu0 %v7280
      %7333 = vmatprep.subr.bf16.mxu0 0
      %7334 = vmatpush2.bf16.msra.mxu0 %v7279
      %7335 = vmatprep.mubr.bf16.mxu0 %v7167
      %7336 = vmatmul.mubr.bf16.gmra.mxu0 %v7166
      %v7337 = vpop.f32.mrf.mxu0
      %v7338 = vadd.f32 0.0, %v7337
      %v7339 = vpop.f32.mrf.mxu0
      %v7340 = vpop.f32.mrf.mxu0
      %v7341 = vadd.f32 0.0, %v7340
      %v7342 = vpop.f32.mrf.mxu0
      %7343 = vmatprep.mubr.bf16.mxu0 %v7169
      %7344 = vmatmul.mubr.bf16.gmra.mxu0 %v7168
      %v7345 = vpop.f32.mrf.mxu0
      %v7346 = vadd.f32 0.0, %v7345
      %v7347 = vpop.f32.mrf.mxu0
      %v7348 = vpop.f32.mrf.mxu0
      %v7349 = vadd.f32 0.0, %v7348
      %v7350 = vpop.f32.mrf.mxu0
      %7351 = vmatprep.mubr.bf16.mxu0 %v7171
      %7352 = vmatmul.mubr.bf16.gmra.mxu0 %v7170
      %v7353 = vpop.f32.mrf.mxu0
      %v7354 = vadd.f32 0.0, %v7353
      %v7355 = vpop.f32.mrf.mxu0
      %v7356 = vpop.f32.mrf.mxu0
      %v7357 = vadd.f32 0.0, %v7356
      %v7358 = vpop.f32.mrf.mxu0
      %7359 = vmatprep.mubr.bf16.mxu0 %v7173
      %7360 = vmatmul.mubr.bf16.gmra.mxu0 %v7172
      %v7361 = vpop.f32.mrf.mxu0
      %v7362 = vadd.f32 0.0, %v7361
      %v7363 = vpop.f32.mrf.mxu0
      %v7364 = vpop.f32.mrf.mxu0
      %v7365 = vadd.f32 0.0, %v7364
      %v7366 = vpop.f32.mrf.mxu0
      %7367 = vdwg.mxu0
      %v7368 = vadd.f32 %v7030, %v7338
      %v7369 = vadd.f32 %v7031, %v7341
      %v7370 = vadd.f32 %v7032, %v7346
      %v7371 = vadd.f32 %v7033, %v7349
      %v7372 = vadd.f32 %v7034, %v7354
      %v7373 = vadd.f32 %v7035, %v7357
      %v7374 = vadd.f32 %v7036, %v7362
      %v7375 = vadd.f32 %v7037, %v7365
      %v7376 = vld [vmem:[%s2342] sm:$0xff]
      %v7377 = vld [vmem:[%s2342 + $0x8] sm:$0xff]
      %v7378 = vld [vmem:[%s2342 + $0x20] sm:$0xff]
      %v7379 = vld [vmem:[%s2342 + $0x28] sm:$0xff]
      %v7380 = vld [vmem:[%s2342 + $0x40] sm:$0xff]
      %v7381 = vld [vmem:[%s2342 + $0x48] sm:$0xff]
      %v7382 = vld [vmem:[%s2342 + $0x60] sm:$0xff]
      %v7383 = vld [vmem:[%s2342 + $0x68] sm:$0xff]
      %v7384 = vld [vmem:[%s2342 + $0x80] sm:$0xff]
      %v7385 = vld [vmem:[%s2342 + $0x88] sm:$0xff]
      %v7386 = vld [vmem:[%s2342 + $0xa0] sm:$0xff]
      %v7387 = vld [vmem:[%s2342 + $0xa8] sm:$0xff]
      %v7388 = vld [vmem:[%s2342 + $0xc0] sm:$0xff]
      %v7389 = vld [vmem:[%s2342 + $0xc8] sm:$0xff]
      %v7390 = vld [vmem:[%s2342 + $0xe0] sm:$0xff]
      %v7391 = vld [vmem:[%s2342 + $0xe8] sm:$0xff]
      %v7392 = vpack.c.bf16 %v7378, %v7376
      %v7393 = vpack.c.bf16 %v7379, %v7377
      %v7394 = vpack.c.bf16 %v7382, %v7380
      %v7395 = vpack.c.bf16 %v7383, %v7381
      %v7396 = vpack.c.bf16 %v7386, %v7384
      %v7397 = vpack.c.bf16 %v7387, %v7385
      %v7398 = vpack.c.bf16 %v7390, %v7388
      %v7399 = vpack.c.bf16 %v7391, %v7389
      %s7400 = scalar_lea.vmem %s13, 768
      %v7401 = vld [vmem:[%s7400] sm:$0xf]
      %v7402 = vld [vmem:[%s7400 + $0x4] sm:$0xf]
      %v7403 = vld [vmem:[%s7400 + $0x8] sm:$0xf]
      %v7404 = vld [vmem:[%s7400 + $0xc] sm:$0xf]
      %v7405 = vld [vmem:[%s7400 + $0x10] sm:$0xf]
      %v7406 = vld [vmem:[%s7400 + $0x14] sm:$0xf]
      %v7407 = vld [vmem:[%s7400 + $0x18] sm:$0xf]
      %v7408 = vld [vmem:[%s7400 + $0x1c] sm:$0xf]
      %v7409 = vld [vmem:[%s7400 + $0x20] sm:$0xf]
      %v7410 = vld [vmem:[%s7400 + $0x24] sm:$0xf]
      %v7411 = vld [vmem:[%s7400 + $0x28] sm:$0xf]
      %v7412 = vld [vmem:[%s7400 + $0x2c] sm:$0xf]
      %v7413 = vld [vmem:[%s7400 + $0x30] sm:$0xf]
      %v7414 = vld [vmem:[%s7400 + $0x34] sm:$0xf]
      %v7415 = vld [vmem:[%s7400 + $0x38] sm:$0xf]
      %v7416 = vld [vmem:[%s7400 + $0x3c] sm:$0xf]
      %v7417 = vld [vmem:[%s7400 + $0x40] sm:$0xf]
      %v7418 = vld [vmem:[%s7400 + $0x44] sm:$0xf]
      %v7419 = vld [vmem:[%s7400 + $0x48] sm:$0xf]
      %v7420 = vld [vmem:[%s7400 + $0x4c] sm:$0xf]
      %v7421 = vld [vmem:[%s7400 + $0x50] sm:$0xf]
      %v7422 = vld [vmem:[%s7400 + $0x54] sm:$0xf]
      %v7423 = vld [vmem:[%s7400 + $0x58] sm:$0xf]
      %v7424 = vld [vmem:[%s7400 + $0x5c] sm:$0xf]
      %v7425 = vld [vmem:[%s7400 + $0x60] sm:$0xf]
      %v7426 = vld [vmem:[%s7400 + $0x64] sm:$0xf]
      %v7427 = vld [vmem:[%s7400 + $0x68] sm:$0xf]
      %v7428 = vld [vmem:[%s7400 + $0x6c] sm:$0xf]
      %v7429 = vld [vmem:[%s7400 + $0x70] sm:$0xf]
      %v7430 = vld [vmem:[%s7400 + $0x74] sm:$0xf]
      %v7431 = vld [vmem:[%s7400 + $0x78] sm:$0xf]
      %v7432 = vld [vmem:[%s7400 + $0x7c] sm:$0xf]
      %v7465 = vunpack.c.l.b16 %v7401
      %v7466 = vunpack.c.l.b16 %v7402
      %v7467 = vunpack.c.l.b16 %v7403
      %v7468 = vunpack.c.l.b16 %v7404
      %v7469 = vunpack.c.l.b16 %v7405
      %v7470 = vunpack.c.l.b16 %v7406
      %v7471 = vunpack.c.l.b16 %v7407
      %v7472 = vunpack.c.l.b16 %v7408
      %v7473 = vunpack.c.l.b16 %v7409
      %v7474 = vunpack.c.l.b16 %v7410
      %v7475 = vunpack.c.l.b16 %v7411
      %v7476 = vunpack.c.l.b16 %v7412
      %v7477 = vunpack.c.l.b16 %v7413
      %v7478 = vunpack.c.l.b16 %v7414
      %v7479 = vunpack.c.l.b16 %v7415
      %v7480 = vunpack.c.l.b16 %v7416
      %v7481 = vunpack.c.l.b16 %v7417
      %v7482 = vunpack.c.l.b16 %v7418
      %v7483 = vunpack.c.l.b16 %v7419
      %v7484 = vunpack.c.l.b16 %v7420
      %v7485 = vunpack.c.l.b16 %v7421
      %v7486 = vunpack.c.l.b16 %v7422
      %v7487 = vunpack.c.l.b16 %v7423
      %v7488 = vunpack.c.l.b16 %v7424
      %v7489 = vunpack.c.l.b16 %v7425
      %v7490 = vunpack.c.l.b16 %v7426
      %v7491 = vunpack.c.l.b16 %v7427
      %v7492 = vunpack.c.l.b16 %v7428
      %v7493 = vunpack.c.l.b16 %v7429
      %v7494 = vunpack.c.l.b16 %v7430
      %v7495 = vunpack.c.l.b16 %v7431
      %v7496 = vunpack.c.l.b16 %v7432
      %v7497 = vpack.c.b16 %v7466, %v7465
      %v7498 = vpack.c.b16 %v7468, %v7467
      %v7499 = vpack.c.b16 %v7470, %v7469
      %v7500 = vpack.c.b16 %v7472, %v7471
      %v7501 = vpack.c.b16 %v7474, %v7473
      %v7502 = vpack.c.b16 %v7476, %v7475
      %v7503 = vpack.c.b16 %v7478, %v7477
      %v7504 = vpack.c.b16 %v7480, %v7479
      %v7505 = vpack.c.b16 %v7482, %v7481
      %v7506 = vpack.c.b16 %v7484, %v7483
      %v7507 = vpack.c.b16 %v7486, %v7485
      %v7508 = vpack.c.b16 %v7488, %v7487
      %v7509 = vpack.c.b16 %v7490, %v7489
      %v7510 = vpack.c.b16 %v7492, %v7491
      %v7511 = vpack.c.b16 %v7494, %v7493
      %v7512 = vpack.c.b16 %v7496, %v7495
      %7529 = vmatprep.subr.bf16.mxu0 0
      %7530 = vmatpush1.bf16.msra.mxu0 %v7504
      %7531 = vmatprep.subr.bf16.mxu0 0
      %7532 = vmatpush1.bf16.msra.mxu0 %v7503
      %7533 = vmatprep.subr.bf16.mxu0 0
      %7534 = vmatpush1.bf16.msra.mxu0 %v7502
      %7535 = vmatprep.subr.bf16.mxu0 0
      %7536 = vmatpush1.bf16.msra.mxu0 %v7501
      %7537 = vmatprep.subr.bf16.mxu0 0
      %7538 = vmatpush1.bf16.msra.mxu0 %v7500
      %7539 = vmatprep.subr.bf16.mxu0 0
      %7540 = vmatpush1.bf16.msra.mxu0 %v7499
      %7541 = vmatprep.subr.bf16.mxu0 0
      %7542 = vmatpush1.bf16.msra.mxu0 %v7498
      %7543 = vmatprep.subr.bf16.mxu0 0
      %7544 = vmatpush1.bf16.msra.mxu0 %v7497
      %7545 = vmatprep.subr.bf16.mxu0 0
      %7546 = vmatpush2.bf16.msra.mxu0 %v7512
      %7547 = vmatprep.subr.bf16.mxu0 0
      %7548 = vmatpush2.bf16.msra.mxu0 %v7511
      %7549 = vmatprep.subr.bf16.mxu0 0
      %7550 = vmatpush2.bf16.msra.mxu0 %v7510
      %7551 = vmatprep.subr.bf16.mxu0 0
      %7552 = vmatpush2.bf16.msra.mxu0 %v7509
      %7553 = vmatprep.subr.bf16.mxu0 0
      %7554 = vmatpush2.bf16.msra.mxu0 %v7508
      %7555 = vmatprep.subr.bf16.mxu0 0
      %7556 = vmatpush2.bf16.msra.mxu0 %v7507
      %7557 = vmatprep.subr.bf16.mxu0 0
      %7558 = vmatpush2.bf16.msra.mxu0 %v7506
      %7559 = vmatprep.subr.bf16.mxu0 0
      %7560 = vmatpush2.bf16.msra.mxu0 %v7505
      %7561 = vmatprep.mubr.bf16.mxu0 %v7393
      %7562 = vmatmul.mubr.bf16.gmra.mxu0 %v7392
      %v7563 = vpop.f32.mrf.mxu0
      %v7564 = vadd.f32 0.0, %v7563
      %v7565 = vpop.f32.mrf.mxu0
      %v7566 = vpop.f32.mrf.mxu0
      %v7567 = vadd.f32 0.0, %v7566
      %v7568 = vpop.f32.mrf.mxu0
      %7569 = vmatprep.mubr.bf16.mxu0 %v7395
      %7570 = vmatmul.mubr.bf16.gmra.mxu0 %v7394
      %v7571 = vpop.f32.mrf.mxu0
      %v7572 = vadd.f32 0.0, %v7571
      %v7573 = vpop.f32.mrf.mxu0
      %v7574 = vpop.f32.mrf.mxu0
      %v7575 = vadd.f32 0.0, %v7574
      %v7576 = vpop.f32.mrf.mxu0
      %7577 = vmatprep.mubr.bf16.mxu0 %v7397
      %7578 = vmatmul.mubr.bf16.gmra.mxu0 %v7396
      %v7579 = vpop.f32.mrf.mxu0
      %v7580 = vadd.f32 0.0, %v7579
      %v7581 = vpop.f32.mrf.mxu0
      %v7582 = vpop.f32.mrf.mxu0
      %v7583 = vadd.f32 0.0, %v7582
      %v7584 = vpop.f32.mrf.mxu0
      %7585 = vmatprep.mubr.bf16.mxu0 %v7399
      %7586 = vmatmul.mubr.bf16.gmra.mxu0 %v7398
      %v7587 = vpop.f32.mrf.mxu0
      %v7588 = vadd.f32 0.0, %v7587
      %v7589 = vpop.f32.mrf.mxu0
      %v7590 = vpop.f32.mrf.mxu0
      %v7591 = vadd.f32 0.0, %v7590
      %v7592 = vpop.f32.mrf.mxu0
      %7593 = vdwg.mxu0
      %v7594 = vadd.f32 %v7368, %v7564
      %v7595 = vadd.f32 %v7369, %v7567
      %v7596 = vadd.f32 %v7370, %v7572
      %v7597 = vadd.f32 %v7371, %v7575
      %v7598 = vadd.f32 %v7372, %v7580
      %v7599 = vadd.f32 %v7373, %v7583
      %v7600 = vadd.f32 %v7374, %v7588
      %v7601 = vadd.f32 %v7375, %v7591
      %v7602 = vld [vmem:[%s2342] sm:$0xfe]
      %v7603 = vld [vmem:[%s2342 + $0x8] sm:$0xfe]
      %v7604 = vld [vmem:[%s2342 + $0x10] sm:$0x1]
      %v7605 = vld [vmem:[%s2342 + $0x18] sm:$0x1]
      %v7606 = vld [vmem:[%s2342 + $0x20] sm:$0xfe]
      %v7607 = vld [vmem:[%s2342 + $0x28] sm:$0xfe]
      %v7608 = vld [vmem:[%s2342 + $0x30] sm:$0x1]
      %v7609 = vld [vmem:[%s2342 + $0x38] sm:$0x1]
      %v7610 = vld [vmem:[%s2342 + $0x40] sm:$0xfe]
      %v7611 = vld [vmem:[%s2342 + $0x48] sm:$0xfe]
      %v7612 = vld [vmem:[%s2342 + $0x50] sm:$0x1]
      %v7613 = vld [vmem:[%s2342 + $0x58] sm:$0x1]
      %v7614 = vld [vmem:[%s2342 + $0x60] sm:$0xfe]
      %v7615 = vld [vmem:[%s2342 + $0x68] sm:$0xfe]
      %v7616 = vld [vmem:[%s2342 + $0x70] sm:$0x1]
      %v7617 = vld [vmem:[%s2342 + $0x78] sm:$0x1]
      %v7618 = vld [vmem:[%s2342 + $0x80] sm:$0xfe]
      %v7619 = vld [vmem:[%s2342 + $0x88] sm:$0xfe]
      %v7620 = vld [vmem:[%s2342 + $0x90] sm:$0x1]
      %v7621 = vld [vmem:[%s2342 + $0x98] sm:$0x1]
      %v7622 = vld [vmem:[%s2342 + $0xa0] sm:$0xfe]
      %v7623 = vld [vmem:[%s2342 + $0xa8] sm:$0xfe]
      %v7624 = vld [vmem:[%s2342 + $0xb0] sm:$0x1]
      %v7625 = vld [vmem:[%s2342 + $0xb8] sm:$0x1]
      %v7626 = vld [vmem:[%s2342 + $0xc0] sm:$0xfe]
      %v7627 = vld [vmem:[%s2342 + $0xc8] sm:$0xfe]
      %v7628 = vld [vmem:[%s2342 + $0xd0] sm:$0x1]
      %v7629 = vld [vmem:[%s2342 + $0xd8] sm:$0x1]
      %v7630 = vld [vmem:[%s2342 + $0xe0] sm:$0xfe]
      %v7631 = vld [vmem:[%s2342 + $0xe8] sm:$0xfe]
      %v7632 = vld [vmem:[%s2342 + $0xf0] sm:$0x1]
      %v7633 = vld [vmem:[%s2342 + $0xf8] sm:$0x1]
      %v7666 = vrot.slane %v7602, 1
      %v7667 = vrot.slane %v7604, 1
      %v7668 = vsel %vm672, %v7666, %v7667
      %v7669 = vrot.slane %v7603, 1
      %v7670 = vrot.slane %v7605, 1
      %v7671 = vsel %vm672, %v7669, %v7670
      %v7672 = vrot.slane %v7606, 1
      %v7673 = vrot.slane %v7608, 1
      %v7674 = vsel %vm672, %v7672, %v7673
      %v7675 = vrot.slane %v7607, 1
      %v7676 = vrot.slane %v7609, 1
      %v7677 = vsel %vm672, %v7675, %v7676
      %v7678 = vrot.slane %v7610, 1
      %v7679 = vrot.slane %v7612, 1
      %v7680 = vsel %vm672, %v7678, %v7679
      %v7681 = vrot.slane %v7611, 1
      %v7682 = vrot.slane %v7613, 1
      %v7683 = vsel %vm672, %v7681, %v7682
      %v7684 = vrot.slane %v7614, 1
      %v7685 = vrot.slane %v7616, 1
      %v7686 = vsel %vm672, %v7684, %v7685
      %v7687 = vrot.slane %v7615, 1
      %v7688 = vrot.slane %v7617, 1
      %v7689 = vsel %vm672, %v7687, %v7688
      %v7690 = vrot.slane %v7618, 1
      %v7691 = vrot.slane %v7620, 1
      %v7692 = vsel %vm672, %v7690, %v7691
      %v7693 = vrot.slane %v7619, 1
      %v7694 = vrot.slane %v7621, 1
      %v7695 = vsel %vm672, %v7693, %v7694
      %v7696 = vrot.slane %v7622, 1
      %v7697 = vrot.slane %v7624, 1
      %v7698 = vsel %vm672, %v7696, %v7697
      %v7699 = vrot.slane %v7623, 1
      %v7700 = vrot.slane %v7625, 1
      %v7701 = vsel %vm672, %v7699, %v7700
      %v7702 = vrot.slane %v7626, 1
      %v7703 = vrot.slane %v7628, 1
      %v7704 = vsel %vm672, %v7702, %v7703
      %v7705 = vrot.slane %v7627, 1
      %v7706 = vrot.slane %v7629, 1
      %v7707 = vsel %vm672, %v7705, %v7706
      %v7708 = vrot.slane %v7630, 1
      %v7709 = vrot.slane %v7632, 1
      %v7710 = vsel %vm672, %v7708, %v7709
      %v7711 = vrot.slane %v7631, 1
      %v7712 = vrot.slane %v7633, 1
      %v7713 = vsel %vm672, %v7711, %v7712
      %v7730 = vpack.c.bf16 %v7674, %v7668
      %v7731 = vpack.c.bf16 %v7677, %v7671
      %v7732 = vpack.c.bf16 %v7686, %v7680
      %v7733 = vpack.c.bf16 %v7689, %v7683
      %v7734 = vpack.c.bf16 %v7698, %v7692
      %v7735 = vpack.c.bf16 %v7701, %v7695
      %v7736 = vpack.c.bf16 %v7710, %v7704
      %v7737 = vpack.c.bf16 %v7713, %v7707
      %s7738 = scalar_lea.vmem %s13, 896
      %v7739 = vld [vmem:[%s7738] sm:$0xf]
      %v7740 = vld [vmem:[%s7738 + $0x4] sm:$0xf]
      %v7741 = vld [vmem:[%s7738 + $0x8] sm:$0xf]
      %v7742 = vld [vmem:[%s7738 + $0xc] sm:$0xf]
      %v7743 = vld [vmem:[%s7738 + $0x10] sm:$0xf]
      %v7744 = vld [vmem:[%s7738 + $0x14] sm:$0xf]
      %v7745 = vld [vmem:[%s7738 + $0x18] sm:$0xf]
      %v7746 = vld [vmem:[%s7738 + $0x1c] sm:$0xf]
      %v7747 = vld [vmem:[%s7738 + $0x20] sm:$0xf]
      %v7748 = vld [vmem:[%s7738 + $0x24] sm:$0xf]
      %v7749 = vld [vmem:[%s7738 + $0x28] sm:$0xf]
      %v7750 = vld [vmem:[%s7738 + $0x2c] sm:$0xf]
      %v7751 = vld [vmem:[%s7738 + $0x30] sm:$0xf]
      %v7752 = vld [vmem:[%s7738 + $0x34] sm:$0xf]
      %v7753 = vld [vmem:[%s7738 + $0x38] sm:$0xf]
      %v7754 = vld [vmem:[%s7738 + $0x3c] sm:$0xf]
      %v7755 = vld [vmem:[%s7738 + $0x40] sm:$0xf]
      %v7756 = vld [vmem:[%s7738 + $0x44] sm:$0xf]
      %v7757 = vld [vmem:[%s7738 + $0x48] sm:$0xf]
      %v7758 = vld [vmem:[%s7738 + $0x4c] sm:$0xf]
      %v7759 = vld [vmem:[%s7738 + $0x50] sm:$0xf]
      %v7760 = vld [vmem:[%s7738 + $0x54] sm:$0xf]
      %v7761 = vld [vmem:[%s7738 + $0x58] sm:$0xf]
      %v7762 = vld [vmem:[%s7738 + $0x5c] sm:$0xf]
      %v7763 = vld [vmem:[%s7738 + $0x60] sm:$0xf]
      %v7764 = vld [vmem:[%s7738 + $0x64] sm:$0xf]
      %v7765 = vld [vmem:[%s7738 + $0x68] sm:$0xf]
      %v7766 = vld [vmem:[%s7738 + $0x6c] sm:$0xf]
      %v7767 = vld [vmem:[%s7738 + $0x70] sm:$0xf]
      %v7768 = vld [vmem:[%s7738 + $0x74] sm:$0xf]
      %v7769 = vld [vmem:[%s7738 + $0x78] sm:$0xf]
      %v7770 = vld [vmem:[%s7738 + $0x7c] sm:$0xf]
      %v7803 = vunpack.c.l.b16 %v7739
      %v7804 = vunpack.c.l.b16 %v7740
      %v7805 = vunpack.c.l.b16 %v7741
      %v7806 = vunpack.c.l.b16 %v7742
      %v7807 = vunpack.c.l.b16 %v7743
      %v7808 = vunpack.c.l.b16 %v7744
      %v7809 = vunpack.c.l.b16 %v7745
      %v7810 = vunpack.c.l.b16 %v7746
      %v7811 = vunpack.c.l.b16 %v7747
      %v7812 = vunpack.c.l.b16 %v7748
      %v7813 = vunpack.c.l.b16 %v7749
      %v7814 = vunpack.c.l.b16 %v7750
      %v7815 = vunpack.c.l.b16 %v7751
      %v7816 = vunpack.c.l.b16 %v7752
      %v7817 = vunpack.c.l.b16 %v7753
      %v7818 = vunpack.c.l.b16 %v7754
      %v7819 = vunpack.c.l.b16 %v7755
      %v7820 = vunpack.c.l.b16 %v7756
      %v7821 = vunpack.c.l.b16 %v7757
      %v7822 = vunpack.c.l.b16 %v7758
      %v7823 = vunpack.c.l.b16 %v7759
      %v7824 = vunpack.c.l.b16 %v7760
      %v7825 = vunpack.c.l.b16 %v7761
      %v7826 = vunpack.c.l.b16 %v7762
      %v7827 = vunpack.c.l.b16 %v7763
      %v7828 = vunpack.c.l.b16 %v7764
      %v7829 = vunpack.c.l.b16 %v7765
      %v7830 = vunpack.c.l.b16 %v7766
      %v7831 = vunpack.c.l.b16 %v7767
      %v7832 = vunpack.c.l.b16 %v7768
      %v7833 = vunpack.c.l.b16 %v7769
      %v7834 = vunpack.c.l.b16 %v7770
      %v7835 = vpack.c.b16 %v7804, %v7803
      %v7836 = vpack.c.b16 %v7806, %v7805
      %v7837 = vpack.c.b16 %v7808, %v7807
      %v7838 = vpack.c.b16 %v7810, %v7809
      %v7839 = vpack.c.b16 %v7812, %v7811
      %v7840 = vpack.c.b16 %v7814, %v7813
      %v7841 = vpack.c.b16 %v7816, %v7815
      %v7842 = vpack.c.b16 %v7818, %v7817
      %v7843 = vpack.c.b16 %v7820, %v7819
      %v7844 = vpack.c.b16 %v7822, %v7821
      %v7845 = vpack.c.b16 %v7824, %v7823
      %v7846 = vpack.c.b16 %v7826, %v7825
      %v7847 = vpack.c.b16 %v7828, %v7827
      %v7848 = vpack.c.b16 %v7830, %v7829
      %v7849 = vpack.c.b16 %v7832, %v7831
      %v7850 = vpack.c.b16 %v7834, %v7833
      %7867 = vmatprep.subr.bf16.mxu0 0
      %7868 = vmatpush1.bf16.msra.mxu0 %v7842
      %7869 = vmatprep.subr.bf16.mxu0 0
      %7870 = vmatpush1.bf16.msra.mxu0 %v7841
      %7871 = vmatprep.subr.bf16.mxu0 0
      %7872 = vmatpush1.bf16.msra.mxu0 %v7840
      %7873 = vmatprep.subr.bf16.mxu0 0
      %7874 = vmatpush1.bf16.msra.mxu0 %v7839
      %7875 = vmatprep.subr.bf16.mxu0 0
      %7876 = vmatpush1.bf16.msra.mxu0 %v7838
      %7877 = vmatprep.subr.bf16.mxu0 0
      %7878 = vmatpush1.bf16.msra.mxu0 %v7837
      %7879 = vmatprep.subr.bf16.mxu0 0
      %7880 = vmatpush1.bf16.msra.mxu0 %v7836
      %7881 = vmatprep.subr.bf16.mxu0 0
      %7882 = vmatpush1.bf16.msra.mxu0 %v7835
      %7883 = vmatprep.subr.bf16.mxu0 0
      %7884 = vmatpush2.bf16.msra.mxu0 %v7850
      %7885 = vmatprep.subr.bf16.mxu0 0
      %7886 = vmatpush2.bf16.msra.mxu0 %v7849
      %7887 = vmatprep.subr.bf16.mxu0 0
      %7888 = vmatpush2.bf16.msra.mxu0 %v7848
      %7889 = vmatprep.subr.bf16.mxu0 0
      %7890 = vmatpush2.bf16.msra.mxu0 %v7847
      %7891 = vmatprep.subr.bf16.mxu0 0
      %7892 = vmatpush2.bf16.msra.mxu0 %v7846
      %7893 = vmatprep.subr.bf16.mxu0 0
      %7894 = vmatpush2.bf16.msra.mxu0 %v7845
      %7895 = vmatprep.subr.bf16.mxu0 0
      %7896 = vmatpush2.bf16.msra.mxu0 %v7844
      %7897 = vmatprep.subr.bf16.mxu0 0
      %7898 = vmatpush2.bf16.msra.mxu0 %v7843
      %7899 = vmatprep.mubr.bf16.mxu0 %v7731
      %7900 = vmatmul.mubr.bf16.gmra.mxu0 %v7730
      %v7901 = vpop.f32.mrf.mxu0
      %v7902 = vadd.f32 0.0, %v7901
      %v7903 = vpop.f32.mrf.mxu0
      %v7904 = vpop.f32.mrf.mxu0
      %v7905 = vadd.f32 0.0, %v7904
      %v7906 = vpop.f32.mrf.mxu0
      %7907 = vmatprep.mubr.bf16.mxu0 %v7733
      %7908 = vmatmul.mubr.bf16.gmra.mxu0 %v7732
      %v7909 = vpop.f32.mrf.mxu0
      %v7910 = vadd.f32 0.0, %v7909
      %v7911 = vpop.f32.mrf.mxu0
      %v7912 = vpop.f32.mrf.mxu0
      %v7913 = vadd.f32 0.0, %v7912
      %v7914 = vpop.f32.mrf.mxu0
      %7915 = vmatprep.mubr.bf16.mxu0 %v7735
      %7916 = vmatmul.mubr.bf16.gmra.mxu0 %v7734
      %v7917 = vpop.f32.mrf.mxu0
      %v7918 = vadd.f32 0.0, %v7917
      %v7919 = vpop.f32.mrf.mxu0
      %v7920 = vpop.f32.mrf.mxu0
      %v7921 = vadd.f32 0.0, %v7920
      %v7922 = vpop.f32.mrf.mxu0
      %7923 = vmatprep.mubr.bf16.mxu0 %v7737
      %7924 = vmatmul.mubr.bf16.gmra.mxu0 %v7736
      %v7925 = vpop.f32.mrf.mxu0
      %v7926 = vadd.f32 0.0, %v7925
      %v7927 = vpop.f32.mrf.mxu0
      %v7928 = vpop.f32.mrf.mxu0
      %v7929 = vadd.f32 0.0, %v7928
      %v7930 = vpop.f32.mrf.mxu0
      %7931 = vdwg.mxu0
      %v7932 = vadd.f32 %v7594, %v7902
      %v7933 = vadd.f32 %v7595, %v7905
      %v7934 = vadd.f32 %v7596, %v7910
      %v7935 = vadd.f32 %v7597, %v7913
      %v7936 = vadd.f32 %v7598, %v7918
      %v7937 = vadd.f32 %v7599, %v7921
      %v7938 = vadd.f32 %v7600, %v7926
      %v7939 = vadd.f32 %v7601, %v7929
      %v7940 = vld [vmem:[%s2342] sm:$0xfc]
      %v7941 = vld [vmem:[%s2342 + $0x8] sm:$0xfc]
      %v7942 = vld [vmem:[%s2342 + $0x10] sm:$0x3]
      %v7943 = vld [vmem:[%s2342 + $0x18] sm:$0x3]
      %v7944 = vld [vmem:[%s2342 + $0x20] sm:$0xfc]
      %v7945 = vld [vmem:[%s2342 + $0x28] sm:$0xfc]
      %v7946 = vld [vmem:[%s2342 + $0x30] sm:$0x3]
      %v7947 = vld [vmem:[%s2342 + $0x38] sm:$0x3]
      %v7948 = vld [vmem:[%s2342 + $0x40] sm:$0xfc]
      %v7949 = vld [vmem:[%s2342 + $0x48] sm:$0xfc]
      %v7950 = vld [vmem:[%s2342 + $0x50] sm:$0x3]
      %v7951 = vld [vmem:[%s2342 + $0x58] sm:$0x3]
      %v7952 = vld [vmem:[%s2342 + $0x60] sm:$0xfc]
      %v7953 = vld [vmem:[%s2342 + $0x68] sm:$0xfc]
      %v7954 = vld [vmem:[%s2342 + $0x70] sm:$0x3]
      %v7955 = vld [vmem:[%s2342 + $0x78] sm:$0x3]
      %v7956 = vld [vmem:[%s2342 + $0x80] sm:$0xfc]
      %v7957 = vld [vmem:[%s2342 + $0x88] sm:$0xfc]
      %v7958 = vld [vmem:[%s2342 + $0x90] sm:$0x3]
      %v7959 = vld [vmem:[%s2342 + $0x98] sm:$0x3]
      %v7960 = vld [vmem:[%s2342 + $0xa0] sm:$0xfc]
      %v7961 = vld [vmem:[%s2342 + $0xa8] sm:$0xfc]
      %v7962 = vld [vmem:[%s2342 + $0xb0] sm:$0x3]
      %v7963 = vld [vmem:[%s2342 + $0xb8] sm:$0x3]
      %v7964 = vld [vmem:[%s2342 + $0xc0] sm:$0xfc]
      %v7965 = vld [vmem:[%s2342 + $0xc8] sm:$0xfc]
      %v7966 = vld [vmem:[%s2342 + $0xd0] sm:$0x3]
      %v7967 = vld [vmem:[%s2342 + $0xd8] sm:$0x3]
      %v7968 = vld [vmem:[%s2342 + $0xe0] sm:$0xfc]
      %v7969 = vld [vmem:[%s2342 + $0xe8] sm:$0xfc]
      %v7970 = vld [vmem:[%s2342 + $0xf0] sm:$0x3]
      %v7971 = vld [vmem:[%s2342 + $0xf8] sm:$0x3]
      %v8004 = vrot.slane %v7940, 2
      %v8005 = vrot.slane %v7942, 2
      %v8006 = vsel %vm1164, %v8004, %v8005
      %v8007 = vrot.slane %v7941, 2
      %v8008 = vrot.slane %v7943, 2
      %v8009 = vsel %vm1164, %v8007, %v8008
      %v8010 = vrot.slane %v7944, 2
      %v8011 = vrot.slane %v7946, 2
      %v8012 = vsel %vm1164, %v8010, %v8011
      %v8013 = vrot.slane %v7945, 2
      %v8014 = vrot.slane %v7947, 2
      %v8015 = vsel %vm1164, %v8013, %v8014
      %v8016 = vrot.slane %v7948, 2
      %v8017 = vrot.slane %v7950, 2
      %v8018 = vsel %vm1164, %v8016, %v8017
      %v8019 = vrot.slane %v7949, 2
      %v8020 = vrot.slane %v7951, 2
      %v8021 = vsel %vm1164, %v8019, %v8020
      %v8022 = vrot.slane %v7952, 2
      %v8023 = vrot.slane %v7954, 2
      %v8024 = vsel %vm1164, %v8022, %v8023
      %v8025 = vrot.slane %v7953, 2
      %v8026 = vrot.slane %v7955, 2
      %v8027 = vsel %vm1164, %v8025, %v8026
      %v8028 = vrot.slane %v7956, 2
      %v8029 = vrot.slane %v7958, 2
      %v8030 = vsel %vm1164, %v8028, %v8029
      %v8031 = vrot.slane %v7957, 2
      %v8032 = vrot.slane %v7959, 2
      %v8033 = vsel %vm1164, %v8031, %v8032
      %v8034 = vrot.slane %v7960, 2
      %v8035 = vrot.slane %v7962, 2
      %v8036 = vsel %vm1164, %v8034, %v8035
      %v8037 = vrot.slane %v7961, 2
      %v8038 = vrot.slane %v7963, 2
      %v8039 = vsel %vm1164, %v8037, %v8038
      %v8040 = vrot.slane %v7964, 2
      %v8041 = vrot.slane %v7966, 2
      %v8042 = vsel %vm1164, %v8040, %v8041
      %v8043 = vrot.slane %v7965, 2
      %v8044 = vrot.slane %v7967, 2
      %v8045 = vsel %vm1164, %v8043, %v8044
      %v8046 = vrot.slane %v7968, 2
      %v8047 = vrot.slane %v7970, 2
      %v8048 = vsel %vm1164, %v8046, %v8047
      %v8049 = vrot.slane %v7969, 2
      %v8050 = vrot.slane %v7971, 2
      %v8051 = vsel %vm1164, %v8049, %v8050
      %v8068 = vpack.c.bf16 %v8012, %v8006
      %v8069 = vpack.c.bf16 %v8015, %v8009
      %v8070 = vpack.c.bf16 %v8024, %v8018
      %v8071 = vpack.c.bf16 %v8027, %v8021
      %v8072 = vpack.c.bf16 %v8036, %v8030
      %v8073 = vpack.c.bf16 %v8039, %v8033
      %v8074 = vpack.c.bf16 %v8048, %v8042
      %v8075 = vpack.c.bf16 %v8051, %v8045
      %s8076 = scalar_lea.vmem %s13, 1024
      %v8077 = vld [vmem:[%s8076] sm:$0xf]
      %v8078 = vld [vmem:[%s8076 + $0x4] sm:$0xf]
      %v8079 = vld [vmem:[%s8076 + $0x8] sm:$0xf]
      %v8080 = vld [vmem:[%s8076 + $0xc] sm:$0xf]
      %v8081 = vld [vmem:[%s8076 + $0x10] sm:$0xf]
      %v8082 = vld [vmem:[%s8076 + $0x14] sm:$0xf]
      %v8083 = vld [vmem:[%s8076 + $0x18] sm:$0xf]
      %v8084 = vld [vmem:[%s8076 + $0x1c] sm:$0xf]
      %v8085 = vld [vmem:[%s8076 + $0x20] sm:$0xf]
      %v8086 = vld [vmem:[%s8076 + $0x24] sm:$0xf]
      %v8087 = vld [vmem:[%s8076 + $0x28] sm:$0xf]
      %v8088 = vld [vmem:[%s8076 + $0x2c] sm:$0xf]
      %v8089 = vld [vmem:[%s8076 + $0x30] sm:$0xf]
      %v8090 = vld [vmem:[%s8076 + $0x34] sm:$0xf]
      %v8091 = vld [vmem:[%s8076 + $0x38] sm:$0xf]
      %v8092 = vld [vmem:[%s8076 + $0x3c] sm:$0xf]
      %v8093 = vld [vmem:[%s8076 + $0x40] sm:$0xf]
      %v8094 = vld [vmem:[%s8076 + $0x44] sm:$0xf]
      %v8095 = vld [vmem:[%s8076 + $0x48] sm:$0xf]
      %v8096 = vld [vmem:[%s8076 + $0x4c] sm:$0xf]
      %v8097 = vld [vmem:[%s8076 + $0x50] sm:$0xf]
      %v8098 = vld [vmem:[%s8076 + $0x54] sm:$0xf]
      %v8099 = vld [vmem:[%s8076 + $0x58] sm:$0xf]
      %v8100 = vld [vmem:[%s8076 + $0x5c] sm:$0xf]
      %v8101 = vld [vmem:[%s8076 + $0x60] sm:$0xf]
      %v8102 = vld [vmem:[%s8076 + $0x64] sm:$0xf]
      %v8103 = vld [vmem:[%s8076 + $0x68] sm:$0xf]
      %v8104 = vld [vmem:[%s8076 + $0x6c] sm:$0xf]
      %v8105 = vld [vmem:[%s8076 + $0x70] sm:$0xf]
      %v8106 = vld [vmem:[%s8076 + $0x74] sm:$0xf]
      %v8107 = vld [vmem:[%s8076 + $0x78] sm:$0xf]
      %v8108 = vld [vmem:[%s8076 + $0x7c] sm:$0xf]
      %v8141 = vunpack.c.l.b16 %v8077
      %v8142 = vunpack.c.l.b16 %v8078
      %v8143 = vunpack.c.l.b16 %v8079
      %v8144 = vunpack.c.l.b16 %v8080
      %v8145 = vunpack.c.l.b16 %v8081
      %v8146 = vunpack.c.l.b16 %v8082
      %v8147 = vunpack.c.l.b16 %v8083
      %v8148 = vunpack.c.l.b16 %v8084
      %v8149 = vunpack.c.l.b16 %v8085
      %v8150 = vunpack.c.l.b16 %v8086
      %v8151 = vunpack.c.l.b16 %v8087
      %v8152 = vunpack.c.l.b16 %v8088
      %v8153 = vunpack.c.l.b16 %v8089
      %v8154 = vunpack.c.l.b16 %v8090
      %v8155 = vunpack.c.l.b16 %v8091
      %v8156 = vunpack.c.l.b16 %v8092
      %v8157 = vunpack.c.l.b16 %v8093
      %v8158 = vunpack.c.l.b16 %v8094
      %v8159 = vunpack.c.l.b16 %v8095
      %v8160 = vunpack.c.l.b16 %v8096
      %v8161 = vunpack.c.l.b16 %v8097
      %v8162 = vunpack.c.l.b16 %v8098
      %v8163 = vunpack.c.l.b16 %v8099
      %v8164 = vunpack.c.l.b16 %v8100
      %v8165 = vunpack.c.l.b16 %v8101
      %v8166 = vunpack.c.l.b16 %v8102
      %v8167 = vunpack.c.l.b16 %v8103
      %v8168 = vunpack.c.l.b16 %v8104
      %v8169 = vunpack.c.l.b16 %v8105
      %v8170 = vunpack.c.l.b16 %v8106
      %v8171 = vunpack.c.l.b16 %v8107
      %v8172 = vunpack.c.l.b16 %v8108
      %v8173 = vpack.c.b16 %v8142, %v8141
      %v8174 = vpack.c.b16 %v8144, %v8143
      %v8175 = vpack.c.b16 %v8146, %v8145
      %v8176 = vpack.c.b16 %v8148, %v8147
      %v8177 = vpack.c.b16 %v8150, %v8149
      %v8178 = vpack.c.b16 %v8152, %v8151
      %v8179 = vpack.c.b16 %v8154, %v8153
      %v8180 = vpack.c.b16 %v8156, %v8155
      %v8181 = vpack.c.b16 %v8158, %v8157
      %v8182 = vpack.c.b16 %v8160, %v8159
      %v8183 = vpack.c.b16 %v8162, %v8161
      %v8184 = vpack.c.b16 %v8164, %v8163
      %v8185 = vpack.c.b16 %v8166, %v8165
      %v8186 = vpack.c.b16 %v8168, %v8167
      %v8187 = vpack.c.b16 %v8170, %v8169
      %v8188 = vpack.c.b16 %v8172, %v8171
      %8205 = vmatprep.subr.bf16.mxu0 0
      %8206 = vmatpush1.bf16.msra.mxu0 %v8180
      %8207 = vmatprep.subr.bf16.mxu0 0
      %8208 = vmatpush1.bf16.msra.mxu0 %v8179
      %8209 = vmatprep.subr.bf16.mxu0 0
      %8210 = vmatpush1.bf16.msra.mxu0 %v8178
      %8211 = vmatprep.subr.bf16.mxu0 0
      %8212 = vmatpush1.bf16.msra.mxu0 %v8177
      %8213 = vmatprep.subr.bf16.mxu0 0
      %8214 = vmatpush1.bf16.msra.mxu0 %v8176
      %8215 = vmatprep.subr.bf16.mxu0 0
      %8216 = vmatpush1.bf16.msra.mxu0 %v8175
      %8217 = vmatprep.subr.bf16.mxu0 0
      %8218 = vmatpush1.bf16.msra.mxu0 %v8174
      %8219 = vmatprep.subr.bf16.mxu0 0
      %8220 = vmatpush1.bf16.msra.mxu0 %v8173
      %8221 = vmatprep.subr.bf16.mxu0 0
      %8222 = vmatpush2.bf16.msra.mxu0 %v8188
      %8223 = vmatprep.subr.bf16.mxu0 0
      %8224 = vmatpush2.bf16.msra.mxu0 %v8187
      %8225 = vmatprep.subr.bf16.mxu0 0
      %8226 = vmatpush2.bf16.msra.mxu0 %v8186
      %8227 = vmatprep.subr.bf16.mxu0 0
      %8228 = vmatpush2.bf16.msra.mxu0 %v8185
      %8229 = vmatprep.subr.bf16.mxu0 0
      %8230 = vmatpush2.bf16.msra.mxu0 %v8184
      %8231 = vmatprep.subr.bf16.mxu0 0
      %8232 = vmatpush2.bf16.msra.mxu0 %v8183
      %8233 = vmatprep.subr.bf16.mxu0 0
      %8234 = vmatpush2.bf16.msra.mxu0 %v8182
      %8235 = vmatprep.subr.bf16.mxu0 0
      %8236 = vmatpush2.bf16.msra.mxu0 %v8181
      %8237 = vmatprep.mubr.bf16.mxu0 %v8069
      %8238 = vmatmul.mubr.bf16.gmra.mxu0 %v8068
      %v8239 = vpop.f32.mrf.mxu0
      %v8240 = vadd.f32 0.0, %v8239
      %v8241 = vpop.f32.mrf.mxu0
      %v8242 = vpop.f32.mrf.mxu0
      %v8243 = vadd.f32 0.0, %v8242
      %v8244 = vpop.f32.mrf.mxu0
      %8245 = vmatprep.mubr.bf16.mxu0 %v8071
      %8246 = vmatmul.mubr.bf16.gmra.mxu0 %v8070
      %v8247 = vpop.f32.mrf.mxu0
      %v8248 = vadd.f32 0.0, %v8247
      %v8249 = vpop.f32.mrf.mxu0
      %v8250 = vpop.f32.mrf.mxu0
      %v8251 = vadd.f32 0.0, %v8250
      %v8252 = vpop.f32.mrf.mxu0
      %8253 = vmatprep.mubr.bf16.mxu0 %v8073
      %8254 = vmatmul.mubr.bf16.gmra.mxu0 %v8072
      %v8255 = vpop.f32.mrf.mxu0
      %v8256 = vadd.f32 0.0, %v8255
      %v8257 = vpop.f32.mrf.mxu0
      %v8258 = vpop.f32.mrf.mxu0
      %v8259 = vadd.f32 0.0, %v8258
      %v8260 = vpop.f32.mrf.mxu0
      %8261 = vmatprep.mubr.bf16.mxu0 %v8075
      %8262 = vmatmul.mubr.bf16.gmra.mxu0 %v8074
      %v8263 = vpop.f32.mrf.mxu0
      %v8264 = vadd.f32 0.0, %v8263
      %v8265 = vpop.f32.mrf.mxu0
      %v8266 = vpop.f32.mrf.mxu0
      %v8267 = vadd.f32 0.0, %v8266
      %v8268 = vpop.f32.mrf.mxu0
      %8269 = vdwg.mxu0
      %v8270 = vadd.f32 %v7932, %v8240
      %v8271 = vadd.f32 %v7933, %v8243
      %v8272 = vadd.f32 %v7934, %v8248
      %v8273 = vadd.f32 %v7935, %v8251
      %v8274 = vadd.f32 %v7936, %v8256
      %v8275 = vadd.f32 %v7937, %v8259
      %v8276 = vadd.f32 %v7938, %v8264
      %v8277 = vadd.f32 %v7939, %v8267
      %v8278 = vld [vmem:[#allocation2] sm:$0xff]
      %v8279 = vld [vmem:[#allocation2 + $0x10] sm:$0xff]
      %v8280 = vld [vmem:[#allocation2 + $0x20] sm:$0xff]
      %v8281 = vld [vmem:[#allocation2 + $0x30] sm:$0xff]
      %v8282 = vld [vmem:[#allocation2 + $0x40] sm:$0xff]
      %v8283 = vld [vmem:[#allocation2 + $0x50] sm:$0xff]
      %v8284 = vld [vmem:[#allocation2 + $0x60] sm:$0xff]
      %v8285 = vld [vmem:[#allocation2 + $0x70] sm:$0xff]
      %v8286 = vpack.c.bf16 %v8279, %v8278
      %v8287 = vpack.c.bf16 %v8281, %v8280
      %v8288 = vpack.c.bf16 %v8283, %v8282
      %v8289 = vpack.c.bf16 %v8285, %v8284
      %v8290 = vld [vmem:[%s14] sm:$0xf]
      %v8291 = vld [vmem:[%s14 + $0x4] sm:$0xf]
      %v8292 = vld [vmem:[%s14 + $0x8] sm:$0xf]
      %v8293 = vld [vmem:[%s14 + $0xc] sm:$0xf]
      %v8294 = vld [vmem:[%s14 + $0x10] sm:$0xf]
      %v8295 = vld [vmem:[%s14 + $0x14] sm:$0xf]
      %v8296 = vld [vmem:[%s14 + $0x18] sm:$0xf]
      %v8297 = vld [vmem:[%s14 + $0x1c] sm:$0xf]
      %v8298 = vld [vmem:[#allocation2 + $0x1] sm:$0xff]
      %v8299 = vld [vmem:[#allocation2 + $0x11] sm:$0xff]
      %v8300 = vld [vmem:[#allocation2 + $0x21] sm:$0xff]
      %v8301 = vld [vmem:[#allocation2 + $0x31] sm:$0xff]
      %v8302 = vld [vmem:[#allocation2 + $0x41] sm:$0xff]
      %v8303 = vld [vmem:[#allocation2 + $0x51] sm:$0xff]
      %v8304 = vld [vmem:[#allocation2 + $0x61] sm:$0xff]
      %v8305 = vld [vmem:[#allocation2 + $0x71] sm:$0xff]
      %v8306 = vpack.c.bf16 %v8299, %v8298
      %v8307 = vpack.c.bf16 %v8301, %v8300
      %v8308 = vpack.c.bf16 %v8303, %v8302
      %v8309 = vpack.c.bf16 %v8305, %v8304
      %s8310 = scalar_lea.vmem %s14, 32
      %v8311 = vld [vmem:[%s8310] sm:$0xf]
      %v8312 = vld [vmem:[%s8310 + $0x4] sm:$0xf]
      %v8313 = vld [vmem:[%s8310 + $0x8] sm:$0xf]
      %v8314 = vld [vmem:[%s8310 + $0xc] sm:$0xf]
      %v8315 = vld [vmem:[%s8310 + $0x10] sm:$0xf]
      %v8316 = vld [vmem:[%s8310 + $0x14] sm:$0xf]
      %v8317 = vld [vmem:[%s8310 + $0x18] sm:$0xf]
      %v8318 = vld [vmem:[%s8310 + $0x1c] sm:$0xf]
      %v8327 = vunpack.c.l.b16 %v8311
      %v8328 = vunpack.c.l.b16 %v8312
      %v8329 = vunpack.c.l.b16 %v8313
      %v8330 = vunpack.c.l.b16 %v8314
      %v8331 = vunpack.c.l.b16 %v8315
      %v8332 = vunpack.c.l.b16 %v8316
      %v8333 = vunpack.c.l.b16 %v8317
      %v8334 = vunpack.c.l.b16 %v8318
      %v8335 = vpack.c.b16 %v8328, %v8327
      %v8336 = vpack.c.b16 %v8330, %v8329
      %v8337 = vpack.c.b16 %v8332, %v8331
      %v8338 = vpack.c.b16 %v8334, %v8333
      %v8344 = vsel %vm3318, %v8306, 0
      %v8347 = vsel %vm3318, %v8307, 0
      %v8350 = vsel %vm3318, %v8308, 0
      %v8353 = vsel %vm3318, %v8309, 0
      %8355 = vmatprep.subr.bf16.mxu0 0
      %8356 = vmatpush1.bf16.msra.mxu0 0
      %8357 = vmatprep.subr.bf16.mxu0 0
      %8358 = vmatpush1.bf16.msra.mxu0 0
      %8359 = vmatprep.subr.bf16.mxu0 0
      %8360 = vmatpush1.bf16.msra.mxu0 0
      %8361 = vmatprep.subr.bf16.mxu0 0
      %8362 = vmatpush1.bf16.msra.mxu0 0
      %8363 = vmatprep.subr.bf16.mxu0 0
      %8364 = vmatpush1.bf16.msra.mxu0 %v8338
      %8365 = vmatprep.subr.bf16.mxu0 0
      %8366 = vmatpush1.bf16.msra.mxu0 %v8337
      %8367 = vmatprep.subr.bf16.mxu0 0
      %8368 = vmatpush1.bf16.msra.mxu0 %v8336
      %8369 = vmatprep.subr.bf16.mxu0 0
      %8370 = vmatpush1.bf16.msra.mxu0 %v8335
      %8371 = vmatprep.subr.bf16.mxu0 0
      %8372 = vmatpush2.bf16.msra.mxu0 0
      %8373 = vmatprep.subr.bf16.mxu0 0
      %8374 = vmatpush2.bf16.msra.mxu0 0
      %8375 = vmatprep.subr.bf16.mxu0 0
      %8376 = vmatpush2.bf16.msra.mxu0 0
      %8377 = vmatprep.subr.bf16.mxu0 0
      %8378 = vmatpush2.bf16.msra.mxu0 0
      %8379 = vmatprep.subr.bf16.mxu0 0
      %8380 = vmatpush2.bf16.msra.mxu0 0
      %8381 = vmatprep.subr.bf16.mxu0 0
      %8382 = vmatpush2.bf16.msra.mxu0 0
      %8383 = vmatprep.subr.bf16.mxu0 0
      %8384 = vmatpush2.bf16.msra.mxu0 0
      %8385 = vmatprep.subr.bf16.mxu0 0
      %8386 = vmatpush2.bf16.msra.mxu0 0
      %8387 = vmatprep.mubr.bf16.mxu0 0
      %8388 = vmatmul.mubr.bf16.gmra.mxu0 %v8344
      %v8389 = vpop.f32.mrf.mxu0
      %v8390 = vadd.f32 0.0, %v8389
      %v8391 = vpop.f32.mrf.mxu0
      %v8392 = vpop.f32.mrf.mxu0
      %v8393 = vadd.f32 0.0, %v8392
      %v8394 = vpop.f32.mrf.mxu0
      %8395 = vmatprep.mubr.bf16.mxu0 0
      %8396 = vmatmul.mubr.bf16.gmra.mxu0 %v8347
      %v8397 = vpop.f32.mrf.mxu0
      %v8398 = vadd.f32 0.0, %v8397
      %v8399 = vpop.f32.mrf.mxu0
      %v8400 = vpop.f32.mrf.mxu0
      %v8401 = vadd.f32 0.0, %v8400
      %v8402 = vpop.f32.mrf.mxu0
      %8403 = vmatprep.mubr.bf16.mxu0 0
      %8404 = vmatmul.mubr.bf16.gmra.mxu0 %v8350
      %v8405 = vpop.f32.mrf.mxu0
      %v8406 = vadd.f32 0.0, %v8405
      %v8407 = vpop.f32.mrf.mxu0
      %v8408 = vpop.f32.mrf.mxu0
      %v8409 = vadd.f32 0.0, %v8408
      %v8410 = vpop.f32.mrf.mxu0
      %8411 = vmatprep.mubr.bf16.mxu0 0
      %8412 = vmatmul.mubr.bf16.gmra.mxu0 %v8353
      %v8413 = vpop.f32.mrf.mxu0
      %v8414 = vadd.f32 0.0, %v8413
      %v8415 = vpop.f32.mrf.mxu0
      %v8416 = vpop.f32.mrf.mxu0
      %v8417 = vadd.f32 0.0, %v8416
      %v8418 = vpop.f32.mrf.mxu0
      %8419 = vdwg.mxu0
      %v8428 = vunpack.c.l.b16 %v8290
      %v8429 = vunpack.c.l.b16 %v8291
      %v8430 = vunpack.c.l.b16 %v8292
      %v8431 = vunpack.c.l.b16 %v8293
      %v8432 = vunpack.c.l.b16 %v8294
      %v8433 = vunpack.c.l.b16 %v8295
      %v8434 = vunpack.c.l.b16 %v8296
      %v8435 = vunpack.c.l.b16 %v8297
      %v8436 = vpack.c.b16 %v8429, %v8428
      %v8437 = vpack.c.b16 %v8431, %v8430
      %v8438 = vpack.c.b16 %v8433, %v8432
      %v8439 = vpack.c.b16 %v8435, %v8434
      %v8445 = vsel %vm3318, %v8286, 0
      %v8448 = vsel %vm3318, %v8287, 0
      %v8451 = vsel %vm3318, %v8288, 0
      %v8454 = vsel %vm3318, %v8289, 0
      %8456 = vmatprep.subr.bf16.mxu0 0
      %8457 = vmatpush1.bf16.msra.mxu0 0
      %8458 = vmatprep.subr.bf16.mxu0 0
      %8459 = vmatpush1.bf16.msra.mxu0 0
      %8460 = vmatprep.subr.bf16.mxu0 0
      %8461 = vmatpush1.bf16.msra.mxu0 0
      %8462 = vmatprep.subr.bf16.mxu0 0
      %8463 = vmatpush1.bf16.msra.mxu0 0
      %8464 = vmatprep.subr.bf16.mxu0 0
      %8465 = vmatpush1.bf16.msra.mxu0 %v8439
      %8466 = vmatprep.subr.bf16.mxu0 0
      %8467 = vmatpush1.bf16.msra.mxu0 %v8438
      %8468 = vmatprep.subr.bf16.mxu0 0
      %8469 = vmatpush1.bf16.msra.mxu0 %v8437
      %8470 = vmatprep.subr.bf16.mxu0 0
      %8471 = vmatpush1.bf16.msra.mxu0 %v8436
      %8472 = vmatprep.subr.bf16.mxu0 0
      %8473 = vmatpush2.bf16.msra.mxu0 0
      %8474 = vmatprep.subr.bf16.mxu0 0
      %8475 = vmatpush2.bf16.msra.mxu0 0
      %8476 = vmatprep.subr.bf16.mxu0 0
      %8477 = vmatpush2.bf16.msra.mxu0 0
      %8478 = vmatprep.subr.bf16.mxu0 0
      %8479 = vmatpush2.bf16.msra.mxu0 0
      %8480 = vmatprep.subr.bf16.mxu0 0
      %8481 = vmatpush2.bf16.msra.mxu0 0
      %8482 = vmatprep.subr.bf16.mxu0 0
      %8483 = vmatpush2.bf16.msra.mxu0 0
      %8484 = vmatprep.subr.bf16.mxu0 0
      %8485 = vmatpush2.bf16.msra.mxu0 0
      %8486 = vmatprep.subr.bf16.mxu0 0
      %8487 = vmatpush2.bf16.msra.mxu0 0
      %8488 = vmatprep.mubr.bf16.mxu0 0
      %8489 = vmatmul.mubr.bf16.gmra.mxu0 %v8445
      %v8490 = vpop.f32.mrf.mxu0
      %v8491 = vadd.f32 %v8390, %v8490
      %v8492 = vpop.f32.mrf.mxu0
      %v8493 = vpop.f32.mrf.mxu0
      %v8494 = vadd.f32 %v8393, %v8493
      %v8495 = vpop.f32.mrf.mxu0
      %8496 = vmatprep.mubr.bf16.mxu0 0
      %8497 = vmatmul.mubr.bf16.gmra.mxu0 %v8448
      %v8498 = vpop.f32.mrf.mxu0
      %v8499 = vadd.f32 %v8398, %v8498
      %v8500 = vpop.f32.mrf.mxu0
      %v8501 = vpop.f32.mrf.mxu0
      %v8502 = vadd.f32 %v8401, %v8501
      %v8503 = vpop.f32.mrf.mxu0
      %8504 = vmatprep.mubr.bf16.mxu0 0
      %8505 = vmatmul.mubr.bf16.gmra.mxu0 %v8451
      %v8506 = vpop.f32.mrf.mxu0
      %v8507 = vadd.f32 %v8406, %v8506
      %v8508 = vpop.f32.mrf.mxu0
      %v8509 = vpop.f32.mrf.mxu0
      %v8510 = vadd.f32 %v8409, %v8509
      %v8511 = vpop.f32.mrf.mxu0
      %8512 = vmatprep.mubr.bf16.mxu0 0
      %8513 = vmatmul.mubr.bf16.gmra.mxu0 %v8454
      %v8514 = vpop.f32.mrf.mxu0
      %v8515 = vadd.f32 %v8414, %v8514
      %v8516 = vpop.f32.mrf.mxu0
      %v8517 = vpop.f32.mrf.mxu0
      %v8518 = vadd.f32 %v8417, %v8517
      %v8519 = vpop.f32.mrf.mxu0
      %8520 = vdwg.mxu0
      %v8521 = vld [vmem:[#allocation2 + $0x2] sm:$0xff]
      %v8522 = vld [vmem:[#allocation2 + $0x12] sm:$0xff]
      %v8523 = vld [vmem:[#allocation2 + $0x22] sm:$0xff]
      %v8524 = vld [vmem:[#allocation2 + $0x32] sm:$0xff]
      %v8525 = vld [vmem:[#allocation2 + $0x42] sm:$0xff]
      %v8526 = vld [vmem:[#allocation2 + $0x52] sm:$0xff]
      %v8527 = vld [vmem:[#allocation2 + $0x62] sm:$0xff]
      %v8528 = vld [vmem:[#allocation2 + $0x72] sm:$0xff]
      %v8529 = vpack.c.bf16 %v8522, %v8521
      %v8530 = vpack.c.bf16 %v8524, %v8523
      %v8531 = vpack.c.bf16 %v8526, %v8525
      %v8532 = vpack.c.bf16 %v8528, %v8527
      %s8533 = scalar_lea.vmem %s14, 64
      %v8534 = vld [vmem:[%s8533] sm:$0xf]
      %v8535 = vld [vmem:[%s8533 + $0x4] sm:$0xf]
      %v8536 = vld [vmem:[%s8533 + $0x8] sm:$0xf]
      %v8537 = vld [vmem:[%s8533 + $0xc] sm:$0xf]
      %v8538 = vld [vmem:[%s8533 + $0x10] sm:$0xf]
      %v8539 = vld [vmem:[%s8533 + $0x14] sm:$0xf]
      %v8540 = vld [vmem:[%s8533 + $0x18] sm:$0xf]
      %v8541 = vld [vmem:[%s8533 + $0x1c] sm:$0xf]
      %v8550 = vunpack.c.l.b16 %v8534
      %v8551 = vunpack.c.l.b16 %v8535
      %v8552 = vunpack.c.l.b16 %v8536
      %v8553 = vunpack.c.l.b16 %v8537
      %v8554 = vunpack.c.l.b16 %v8538
      %v8555 = vunpack.c.l.b16 %v8539
      %v8556 = vunpack.c.l.b16 %v8540
      %v8557 = vunpack.c.l.b16 %v8541
      %v8558 = vpack.c.b16 %v8551, %v8550
      %v8559 = vpack.c.b16 %v8553, %v8552
      %v8560 = vpack.c.b16 %v8555, %v8554
      %v8561 = vpack.c.b16 %v8557, %v8556
      %v8567 = vsel %vm3318, %v8529, 0
      %v8570 = vsel %vm3318, %v8530, 0
      %v8573 = vsel %vm3318, %v8531, 0
      %v8576 = vsel %vm3318, %v8532, 0
      %8578 = vmatprep.subr.bf16.mxu0 0
      %8579 = vmatpush1.bf16.msra.mxu0 0
      %8580 = vmatprep.subr.bf16.mxu0 0
      %8581 = vmatpush1.bf16.msra.mxu0 0
      %8582 = vmatprep.subr.bf16.mxu0 0
      %8583 = vmatpush1.bf16.msra.mxu0 0
      %8584 = vmatprep.subr.bf16.mxu0 0
      %8585 = vmatpush1.bf16.msra.mxu0 0
      %8586 = vmatprep.subr.bf16.mxu0 0
      %8587 = vmatpush1.bf16.msra.mxu0 %v8561
      %8588 = vmatprep.subr.bf16.mxu0 0
      %8589 = vmatpush1.bf16.msra.mxu0 %v8560
      %8590 = vmatprep.subr.bf16.mxu0 0
      %8591 = vmatpush1.bf16.msra.mxu0 %v8559
      %8592 = vmatprep.subr.bf16.mxu0 0
      %8593 = vmatpush1.bf16.msra.mxu0 %v8558
      %8594 = vmatprep.subr.bf16.mxu0 0
      %8595 = vmatpush2.bf16.msra.mxu0 0
      %8596 = vmatprep.subr.bf16.mxu0 0
      %8597 = vmatpush2.bf16.msra.mxu0 0
      %8598 = vmatprep.subr.bf16.mxu0 0
      %8599 = vmatpush2.bf16.msra.mxu0 0
      %8600 = vmatprep.subr.bf16.mxu0 0
      %8601 = vmatpush2.bf16.msra.mxu0 0
      %8602 = vmatprep.subr.bf16.mxu0 0
      %8603 = vmatpush2.bf16.msra.mxu0 0
      %8604 = vmatprep.subr.bf16.mxu0 0
      %8605 = vmatpush2.bf16.msra.mxu0 0
      %8606 = vmatprep.subr.bf16.mxu0 0
      %8607 = vmatpush2.bf16.msra.mxu0 0
      %8608 = vmatprep.subr.bf16.mxu0 0
      %8609 = vmatpush2.bf16.msra.mxu0 0
      %8610 = vmatprep.mubr.bf16.mxu0 0
      %8611 = vmatmul.mubr.bf16.gmra.mxu0 %v8567
      %v8612 = vpop.f32.mrf.mxu0
      %v8613 = vadd.f32 0.0, %v8612
      %v8614 = vpop.f32.mrf.mxu0
      %v8615 = vpop.f32.mrf.mxu0
      %v8616 = vadd.f32 0.0, %v8615
      %v8617 = vpop.f32.mrf.mxu0
      %8618 = vmatprep.mubr.bf16.mxu0 0
      %8619 = vmatmul.mubr.bf16.gmra.mxu0 %v8570
      %v8620 = vpop.f32.mrf.mxu0
      %v8621 = vadd.f32 0.0, %v8620
      %v8622 = vpop.f32.mrf.mxu0
      %v8623 = vpop.f32.mrf.mxu0
      %v8624 = vadd.f32 0.0, %v8623
      %v8625 = vpop.f32.mrf.mxu0
      %8626 = vmatprep.mubr.bf16.mxu0 0
      %8627 = vmatmul.mubr.bf16.gmra.mxu0 %v8573
      %v8628 = vpop.f32.mrf.mxu0
      %v8629 = vadd.f32 0.0, %v8628
      %v8630 = vpop.f32.mrf.mxu0
      %v8631 = vpop.f32.mrf.mxu0
      %v8632 = vadd.f32 0.0, %v8631
      %v8633 = vpop.f32.mrf.mxu0
      %8634 = vmatprep.mubr.bf16.mxu0 0
      %8635 = vmatmul.mubr.bf16.gmra.mxu0 %v8576
      %v8636 = vpop.f32.mrf.mxu0
      %v8637 = vadd.f32 0.0, %v8636
      %v8638 = vpop.f32.mrf.mxu0
      %v8639 = vpop.f32.mrf.mxu0
      %v8640 = vadd.f32 0.0, %v8639
      %v8641 = vpop.f32.mrf.mxu0
      %8642 = vdwg.mxu0
      %v8643 = vadd.f32 %v8491, %v8613
      %v8644 = vadd.f32 %v8494, %v8616
      %v8645 = vadd.f32 %v8499, %v8621
      %v8646 = vadd.f32 %v8502, %v8624
      %v8647 = vadd.f32 %v8507, %v8629
      %v8648 = vadd.f32 %v8510, %v8632
      %v8649 = vadd.f32 %v8515, %v8637
      %v8650 = vadd.f32 %v8518, %v8640
      %v8651 = vld [vmem:[%s4418] sm:$0xff]
      %v8652 = vld [vmem:[%s4418 + $0x10] sm:$0xff]
      %v8653 = vld [vmem:[%s4418 + $0x20] sm:$0xff]
      %v8654 = vld [vmem:[%s4418 + $0x30] sm:$0xff]
      %v8655 = vld [vmem:[%s4418 + $0x40] sm:$0xff]
      %v8656 = vld [vmem:[%s4418 + $0x50] sm:$0xff]
      %v8657 = vld [vmem:[%s4418 + $0x60] sm:$0xff]
      %v8658 = vld [vmem:[%s4418 + $0x70] sm:$0xff]
      %v8659 = vpack.c.bf16 %v8652, %v8651
      %v8660 = vpack.c.bf16 %v8654, %v8653
      %v8661 = vpack.c.bf16 %v8656, %v8655
      %v8662 = vpack.c.bf16 %v8658, %v8657
      %s8663 = scalar_lea.vmem %s14, 96
      %v8664 = vld [vmem:[%s8663] sm:$0xf]
      %v8665 = vld [vmem:[%s8663 + $0x4] sm:$0xf]
      %v8666 = vld [vmem:[%s8663 + $0x8] sm:$0xf]
      %v8667 = vld [vmem:[%s8663 + $0xc] sm:$0xf]
      %v8668 = vld [vmem:[%s8663 + $0x10] sm:$0xf]
      %v8669 = vld [vmem:[%s8663 + $0x14] sm:$0xf]
      %v8670 = vld [vmem:[%s8663 + $0x18] sm:$0xf]
      %v8671 = vld [vmem:[%s8663 + $0x1c] sm:$0xf]
      %v8680 = vunpack.c.l.b16 %v8664
      %v8681 = vunpack.c.l.b16 %v8665
      %v8682 = vunpack.c.l.b16 %v8666
      %v8683 = vunpack.c.l.b16 %v8667
      %v8684 = vunpack.c.l.b16 %v8668
      %v8685 = vunpack.c.l.b16 %v8669
      %v8686 = vunpack.c.l.b16 %v8670
      %v8687 = vunpack.c.l.b16 %v8671
      %v8688 = vpack.c.b16 %v8681, %v8680
      %v8689 = vpack.c.b16 %v8683, %v8682
      %v8690 = vpack.c.b16 %v8685, %v8684
      %v8691 = vpack.c.b16 %v8687, %v8686
      %v8697 = vsel %vm3318, %v8659, 0
      %v8700 = vsel %vm3318, %v8660, 0
      %v8703 = vsel %vm3318, %v8661, 0
      %v8706 = vsel %vm3318, %v8662, 0
      %8708 = vmatprep.subr.bf16.mxu0 0
      %8709 = vmatpush1.bf16.msra.mxu0 0
      %8710 = vmatprep.subr.bf16.mxu0 0
      %8711 = vmatpush1.bf16.msra.mxu0 0
      %8712 = vmatprep.subr.bf16.mxu0 0
      %8713 = vmatpush1.bf16.msra.mxu0 0
      %8714 = vmatprep.subr.bf16.mxu0 0
      %8715 = vmatpush1.bf16.msra.mxu0 0
      %8716 = vmatprep.subr.bf16.mxu0 0
      %8717 = vmatpush1.bf16.msra.mxu0 %v8691
      %8718 = vmatprep.subr.bf16.mxu0 0
      %8719 = vmatpush1.bf16.msra.mxu0 %v8690
      %8720 = vmatprep.subr.bf16.mxu0 0
      %8721 = vmatpush1.bf16.msra.mxu0 %v8689
      %8722 = vmatprep.subr.bf16.mxu0 0
      %8723 = vmatpush1.bf16.msra.mxu0 %v8688
      %8724 = vmatprep.subr.bf16.mxu0 0
      %8725 = vmatpush2.bf16.msra.mxu0 0
      %8726 = vmatprep.subr.bf16.mxu0 0
      %8727 = vmatpush2.bf16.msra.mxu0 0
      %8728 = vmatprep.subr.bf16.mxu0 0
      %8729 = vmatpush2.bf16.msra.mxu0 0
      %8730 = vmatprep.subr.bf16.mxu0 0
      %8731 = vmatpush2.bf16.msra.mxu0 0
      %8732 = vmatprep.subr.bf16.mxu0 0
      %8733 = vmatpush2.bf16.msra.mxu0 0
      %8734 = vmatprep.subr.bf16.mxu0 0
      %8735 = vmatpush2.bf16.msra.mxu0 0
      %8736 = vmatprep.subr.bf16.mxu0 0
      %8737 = vmatpush2.bf16.msra.mxu0 0
      %8738 = vmatprep.subr.bf16.mxu0 0
      %8739 = vmatpush2.bf16.msra.mxu0 0
      %8740 = vmatprep.mubr.bf16.mxu0 0
      %8741 = vmatmul.mubr.bf16.gmra.mxu0 %v8697
      %v8742 = vpop.f32.mrf.mxu0
      %v8743 = vadd.f32 0.0, %v8742
      %v8744 = vpop.f32.mrf.mxu0
      %v8745 = vpop.f32.mrf.mxu0
      %v8746 = vadd.f32 0.0, %v8745
      %v8747 = vpop.f32.mrf.mxu0
      %8748 = vmatprep.mubr.bf16.mxu0 0
      %8749 = vmatmul.mubr.bf16.gmra.mxu0 %v8700
      %v8750 = vpop.f32.mrf.mxu0
      %v8751 = vadd.f32 0.0, %v8750
      %v8752 = vpop.f32.mrf.mxu0
      %v8753 = vpop.f32.mrf.mxu0
      %v8754 = vadd.f32 0.0, %v8753
      %v8755 = vpop.f32.mrf.mxu0
      %8756 = vmatprep.mubr.bf16.mxu0 0
      %8757 = vmatmul.mubr.bf16.gmra.mxu0 %v8703
      %v8758 = vpop.f32.mrf.mxu0
      %v8759 = vadd.f32 0.0, %v8758
      %v8760 = vpop.f32.mrf.mxu0
      %v8761 = vpop.f32.mrf.mxu0
      %v8762 = vadd.f32 0.0, %v8761
      %v8763 = vpop.f32.mrf.mxu0
      %8764 = vmatprep.mubr.bf16.mxu0 0
      %8765 = vmatmul.mubr.bf16.gmra.mxu0 %v8706
      %v8766 = vpop.f32.mrf.mxu0
      %v8767 = vadd.f32 0.0, %v8766
      %v8768 = vpop.f32.mrf.mxu0
      %v8769 = vpop.f32.mrf.mxu0
      %v8770 = vadd.f32 0.0, %v8769
      %v8771 = vpop.f32.mrf.mxu0
      %8772 = vdwg.mxu0
      %v8773 = vadd.f32 %v8643, %v8743
      %v8774 = vadd.f32 %v8644, %v8746
      %v8775 = vadd.f32 %v8645, %v8751
      %v8776 = vadd.f32 %v8646, %v8754
      %v8777 = vadd.f32 %v8647, %v8759
      %v8778 = vadd.f32 %v8648, %v8762
      %v8779 = vadd.f32 %v8649, %v8767
      %v8780 = vadd.f32 %v8650, %v8770
      %v8781 = vld [vmem:[%s4418 + $0x1] sm:$0xff]
      %v8782 = vld [vmem:[%s4418 + $0x11] sm:$0xff]
      %v8783 = vld [vmem:[%s4418 + $0x21] sm:$0xff]
      %v8784 = vld [vmem:[%s4418 + $0x31] sm:$0xff]
      %v8785 = vld [vmem:[%s4418 + $0x41] sm:$0xff]
      %v8786 = vld [vmem:[%s4418 + $0x51] sm:$0xff]
      %v8787 = vld [vmem:[%s4418 + $0x61] sm:$0xff]
      %v8788 = vld [vmem:[%s4418 + $0x71] sm:$0xff]
      %v8789 = vpack.c.bf16 %v8782, %v8781
      %v8790 = vpack.c.bf16 %v8784, %v8783
      %v8791 = vpack.c.bf16 %v8786, %v8785
      %v8792 = vpack.c.bf16 %v8788, %v8787
      %s8793 = scalar_lea.vmem %s14, 128
      %v8794 = vld [vmem:[%s8793] sm:$0xf]
      %v8795 = vld [vmem:[%s8793 + $0x4] sm:$0xf]
      %v8796 = vld [vmem:[%s8793 + $0x8] sm:$0xf]
      %v8797 = vld [vmem:[%s8793 + $0xc] sm:$0xf]
      %v8798 = vld [vmem:[%s8793 + $0x10] sm:$0xf]
      %v8799 = vld [vmem:[%s8793 + $0x14] sm:$0xf]
      %v8800 = vld [vmem:[%s8793 + $0x18] sm:$0xf]
      %v8801 = vld [vmem:[%s8793 + $0x1c] sm:$0xf]
      %v8810 = vunpack.c.l.b16 %v8794
      %v8811 = vunpack.c.l.b16 %v8795
      %v8812 = vunpack.c.l.b16 %v8796
      %v8813 = vunpack.c.l.b16 %v8797
      %v8814 = vunpack.c.l.b16 %v8798
      %v8815 = vunpack.c.l.b16 %v8799
      %v8816 = vunpack.c.l.b16 %v8800
      %v8817 = vunpack.c.l.b16 %v8801
      %v8818 = vpack.c.b16 %v8811, %v8810
      %v8819 = vpack.c.b16 %v8813, %v8812
      %v8820 = vpack.c.b16 %v8815, %v8814
      %v8821 = vpack.c.b16 %v8817, %v8816
      %v8827 = vsel %vm3318, %v8789, 0
      %v8830 = vsel %vm3318, %v8790, 0
      %v8833 = vsel %vm3318, %v8791, 0
      %v8836 = vsel %vm3318, %v8792, 0
      %8838 = vmatprep.subr.bf16.mxu0 0
      %8839 = vmatpush1.bf16.msra.mxu0 0
      %8840 = vmatprep.subr.bf16.mxu0 0
      %8841 = vmatpush1.bf16.msra.mxu0 0
      %8842 = vmatprep.subr.bf16.mxu0 0
      %8843 = vmatpush1.bf16.msra.mxu0 0
      %8844 = vmatprep.subr.bf16.mxu0 0
      %8845 = vmatpush1.bf16.msra.mxu0 0
      %8846 = vmatprep.subr.bf16.mxu0 0
      %8847 = vmatpush1.bf16.msra.mxu0 %v8821
      %8848 = vmatprep.subr.bf16.mxu0 0
      %8849 = vmatpush1.bf16.msra.mxu0 %v8820
      %8850 = vmatprep.subr.bf16.mxu0 0
      %8851 = vmatpush1.bf16.msra.mxu0 %v8819
      %8852 = vmatprep.subr.bf16.mxu0 0
      %8853 = vmatpush1.bf16.msra.mxu0 %v8818
      %8854 = vmatprep.subr.bf16.mxu0 0
      %8855 = vmatpush2.bf16.msra.mxu0 0
      %8856 = vmatprep.subr.bf16.mxu0 0
      %8857 = vmatpush2.bf16.msra.mxu0 0
      %8858 = vmatprep.subr.bf16.mxu0 0
      %8859 = vmatpush2.bf16.msra.mxu0 0
      %8860 = vmatprep.subr.bf16.mxu0 0
      %8861 = vmatpush2.bf16.msra.mxu0 0
      %8862 = vmatprep.subr.bf16.mxu0 0
      %8863 = vmatpush2.bf16.msra.mxu0 0
      %8864 = vmatprep.subr.bf16.mxu0 0
      %8865 = vmatpush2.bf16.msra.mxu0 0
      %8866 = vmatprep.subr.bf16.mxu0 0
      %8867 = vmatpush2.bf16.msra.mxu0 0
      %8868 = vmatprep.subr.bf16.mxu0 0
      %8869 = vmatpush2.bf16.msra.mxu0 0
      %8870 = vmatprep.mubr.bf16.mxu0 0
      %8871 = vmatmul.mubr.bf16.gmra.mxu0 %v8827
      %v8872 = vpop.f32.mrf.mxu0
      %v8873 = vadd.f32 0.0, %v8872
      %v8874 = vpop.f32.mrf.mxu0
      %v8875 = vpop.f32.mrf.mxu0
      %v8876 = vadd.f32 0.0, %v8875
      %v8877 = vpop.f32.mrf.mxu0
      %8878 = vmatprep.mubr.bf16.mxu0 0
      %8879 = vmatmul.mubr.bf16.gmra.mxu0 %v8830
      %v8880 = vpop.f32.mrf.mxu0
      %v8881 = vadd.f32 0.0, %v8880
      %v8882 = vpop.f32.mrf.mxu0
      %v8883 = vpop.f32.mrf.mxu0
      %v8884 = vadd.f32 0.0, %v8883
      %v8885 = vpop.f32.mrf.mxu0
      %8886 = vmatprep.mubr.bf16.mxu0 0
      %8887 = vmatmul.mubr.bf16.gmra.mxu0 %v8833
      %v8888 = vpop.f32.mrf.mxu0
      %v8889 = vadd.f32 0.0, %v8888
      %v8890 = vpop.f32.mrf.mxu0
      %v8891 = vpop.f32.mrf.mxu0
      %v8892 = vadd.f32 0.0, %v8891
      %v8893 = vpop.f32.mrf.mxu0
      %8894 = vmatprep.mubr.bf16.mxu0 0
      %8895 = vmatmul.mubr.bf16.gmra.mxu0 %v8836
      %v8896 = vpop.f32.mrf.mxu0
      %v8897 = vadd.f32 0.0, %v8896
      %v8898 = vpop.f32.mrf.mxu0
      %v8899 = vpop.f32.mrf.mxu0
      %v8900 = vadd.f32 0.0, %v8899
      %v8901 = vpop.f32.mrf.mxu0
      %8902 = vdwg.mxu0
      %v8903 = vadd.f32 %v8773, %v8873
      %v8904 = vadd.f32 %v8774, %v8876
      %v8905 = vadd.f32 %v8775, %v8881
      %v8906 = vadd.f32 %v8776, %v8884
      %v8907 = vadd.f32 %v8777, %v8889
      %v8908 = vadd.f32 %v8778, %v8892
      %v8909 = vadd.f32 %v8779, %v8897
      %v8910 = vadd.f32 %v8780, %v8900
      %v8911 = vld [vmem:[%s4418 + $0x2] sm:$0xff]
      %v8912 = vld [vmem:[%s4418 + $0x12] sm:$0xff]
      %v8913 = vld [vmem:[%s4418 + $0x22] sm:$0xff]
      %v8914 = vld [vmem:[%s4418 + $0x32] sm:$0xff]
      %v8915 = vld [vmem:[%s4418 + $0x42] sm:$0xff]
      %v8916 = vld [vmem:[%s4418 + $0x52] sm:$0xff]
      %v8917 = vld [vmem:[%s4418 + $0x62] sm:$0xff]
      %v8918 = vld [vmem:[%s4418 + $0x72] sm:$0xff]
      %v8919 = vpack.c.bf16 %v8912, %v8911
      %v8920 = vpack.c.bf16 %v8914, %v8913
      %v8921 = vpack.c.bf16 %v8916, %v8915
      %v8922 = vpack.c.bf16 %v8918, %v8917
      %s8923 = scalar_lea.vmem %s14, 160
      %v8924 = vld [vmem:[%s8923] sm:$0xf]
      %v8925 = vld [vmem:[%s8923 + $0x4] sm:$0xf]
      %v8926 = vld [vmem:[%s8923 + $0x8] sm:$0xf]
      %v8927 = vld [vmem:[%s8923 + $0xc] sm:$0xf]
      %v8928 = vld [vmem:[%s8923 + $0x10] sm:$0xf]
      %v8929 = vld [vmem:[%s8923 + $0x14] sm:$0xf]
      %v8930 = vld [vmem:[%s8923 + $0x18] sm:$0xf]
      %v8931 = vld [vmem:[%s8923 + $0x1c] sm:$0xf]
      %v8940 = vunpack.c.l.b16 %v8924
      %v8941 = vunpack.c.l.b16 %v8925
      %v8942 = vunpack.c.l.b16 %v8926
      %v8943 = vunpack.c.l.b16 %v8927
      %v8944 = vunpack.c.l.b16 %v8928
      %v8945 = vunpack.c.l.b16 %v8929
      %v8946 = vunpack.c.l.b16 %v8930
      %v8947 = vunpack.c.l.b16 %v8931
      %v8948 = vpack.c.b16 %v8941, %v8940
      %v8949 = vpack.c.b16 %v8943, %v8942
      %v8950 = vpack.c.b16 %v8945, %v8944
      %v8951 = vpack.c.b16 %v8947, %v8946
      %v8957 = vsel %vm3318, %v8919, 0
      %v8960 = vsel %vm3318, %v8920, 0
      %v8963 = vsel %vm3318, %v8921, 0
      %v8966 = vsel %vm3318, %v8922, 0
      %8968 = vmatprep.subr.bf16.mxu0 0
      %8969 = vmatpush1.bf16.msra.mxu0 0
      %8970 = vmatprep.subr.bf16.mxu0 0
      %8971 = vmatpush1.bf16.msra.mxu0 0
      %8972 = vmatprep.subr.bf16.mxu0 0
      %8973 = vmatpush1.bf16.msra.mxu0 0
      %8974 = vmatprep.subr.bf16.mxu0 0
      %8975 = vmatpush1.bf16.msra.mxu0 0
      %8976 = vmatprep.subr.bf16.mxu0 0
      %8977 = vmatpush1.bf16.msra.mxu0 %v8951
      %8978 = vmatprep.subr.bf16.mxu0 0
      %8979 = vmatpush1.bf16.msra.mxu0 %v8950
      %8980 = vmatprep.subr.bf16.mxu0 0
      %8981 = vmatpush1.bf16.msra.mxu0 %v8949
      %8982 = vmatprep.subr.bf16.mxu0 0
      %8983 = vmatpush1.bf16.msra.mxu0 %v8948
      %8984 = vmatprep.subr.bf16.mxu0 0
      %8985 = vmatpush2.bf16.msra.mxu0 0
      %8986 = vmatprep.subr.bf16.mxu0 0
      %8987 = vmatpush2.bf16.msra.mxu0 0
      %8988 = vmatprep.subr.bf16.mxu0 0
      %8989 = vmatpush2.bf16.msra.mxu0 0
      %8990 = vmatprep.subr.bf16.mxu0 0
      %8991 = vmatpush2.bf16.msra.mxu0 0
      %8992 = vmatprep.subr.bf16.mxu0 0
      %8993 = vmatpush2.bf16.msra.mxu0 0
      %8994 = vmatprep.subr.bf16.mxu0 0
      %8995 = vmatpush2.bf16.msra.mxu0 0
      %8996 = vmatprep.subr.bf16.mxu0 0
      %8997 = vmatpush2.bf16.msra.mxu0 0
      %8998 = vmatprep.subr.bf16.mxu0 0
      %8999 = vmatpush2.bf16.msra.mxu0 0
      %9000 = vmatprep.mubr.bf16.mxu0 0
      %9001 = vmatmul.mubr.bf16.gmra.mxu0 %v8957
      %v9002 = vpop.f32.mrf.mxu0
      %v9003 = vadd.f32 0.0, %v9002
      %v9004 = vpop.f32.mrf.mxu0
      %v9005 = vpop.f32.mrf.mxu0
      %v9006 = vadd.f32 0.0, %v9005
      %v9007 = vpop.f32.mrf.mxu0
      %9008 = vmatprep.mubr.bf16.mxu0 0
      %9009 = vmatmul.mubr.bf16.gmra.mxu0 %v8960
      %v9010 = vpop.f32.mrf.mxu0
      %v9011 = vadd.f32 0.0, %v9010
      %v9012 = vpop.f32.mrf.mxu0
      %v9013 = vpop.f32.mrf.mxu0
      %v9014 = vadd.f32 0.0, %v9013
      %v9015 = vpop.f32.mrf.mxu0
      %9016 = vmatprep.mubr.bf16.mxu0 0
      %9017 = vmatmul.mubr.bf16.gmra.mxu0 %v8963
      %v9018 = vpop.f32.mrf.mxu0
      %v9019 = vadd.f32 0.0, %v9018
      %v9020 = vpop.f32.mrf.mxu0
      %v9021 = vpop.f32.mrf.mxu0
      %v9022 = vadd.f32 0.0, %v9021
      %v9023 = vpop.f32.mrf.mxu0
      %9024 = vmatprep.mubr.bf16.mxu0 0
      %9025 = vmatmul.mubr.bf16.gmra.mxu0 %v8966
      %v9026 = vpop.f32.mrf.mxu0
      %v9027 = vadd.f32 0.0, %v9026
      %v9028 = vpop.f32.mrf.mxu0
      %v9029 = vpop.f32.mrf.mxu0
      %v9030 = vadd.f32 0.0, %v9029
      %v9031 = vpop.f32.mrf.mxu0
      %9032 = vdwg.mxu0
      %v9033 = vadd.f32 %v8903, %v9003
      %v9034 = vadd.f32 %v8904, %v9006
      %v9035 = vadd.f32 %v8905, %v9011
      %v9036 = vadd.f32 %v8906, %v9014
      %v9037 = vadd.f32 %v8907, %v9019
      %v9038 = vadd.f32 %v8908, %v9022
      %v9039 = vadd.f32 %v8909, %v9027
      %v9040 = vadd.f32 %v8910, %v9030
      %v9041 = vld [vmem:[%s5190] sm:$0xff]
      %v9042 = vld [vmem:[%s5190 + $0x10] sm:$0xff]
      %v9043 = vld [vmem:[%s5190 + $0x20] sm:$0xff]
      %v9044 = vld [vmem:[%s5190 + $0x30] sm:$0xff]
      %v9045 = vld [vmem:[%s5190 + $0x40] sm:$0xff]
      %v9046 = vld [vmem:[%s5190 + $0x50] sm:$0xff]
      %v9047 = vld [vmem:[%s5190 + $0x60] sm:$0xff]
      %v9048 = vld [vmem:[%s5190 + $0x70] sm:$0xff]
      %v9049 = vpack.c.bf16 %v9042, %v9041
      %v9050 = vpack.c.bf16 %v9044, %v9043
      %v9051 = vpack.c.bf16 %v9046, %v9045
      %v9052 = vpack.c.bf16 %v9048, %v9047
      %s9053 = scalar_lea.vmem %s14, 192
      %v9054 = vld [vmem:[%s9053] sm:$0xf]
      %v9055 = vld [vmem:[%s9053 + $0x4] sm:$0xf]
      %v9056 = vld [vmem:[%s9053 + $0x8] sm:$0xf]
      %v9057 = vld [vmem:[%s9053 + $0xc] sm:$0xf]
      %v9058 = vld [vmem:[%s9053 + $0x10] sm:$0xf]
      %v9059 = vld [vmem:[%s9053 + $0x14] sm:$0xf]
      %v9060 = vld [vmem:[%s9053 + $0x18] sm:$0xf]
      %v9061 = vld [vmem:[%s9053 + $0x1c] sm:$0xf]
      %v9070 = vunpack.c.l.b16 %v9054
      %v9071 = vunpack.c.l.b16 %v9055
      %v9072 = vunpack.c.l.b16 %v9056
      %v9073 = vunpack.c.l.b16 %v9057
      %v9074 = vunpack.c.l.b16 %v9058
      %v9075 = vunpack.c.l.b16 %v9059
      %v9076 = vunpack.c.l.b16 %v9060
      %v9077 = vunpack.c.l.b16 %v9061
      %v9078 = vpack.c.b16 %v9071, %v9070
      %v9079 = vpack.c.b16 %v9073, %v9072
      %v9080 = vpack.c.b16 %v9075, %v9074
      %v9081 = vpack.c.b16 %v9077, %v9076
      %v9087 = vsel %vm3318, %v9049, 0
      %v9090 = vsel %vm3318, %v9050, 0
      %v9093 = vsel %vm3318, %v9051, 0
      %v9096 = vsel %vm3318, %v9052, 0
      %9098 = vmatprep.subr.bf16.mxu0 0
      %9099 = vmatpush1.bf16.msra.mxu0 0
      %9100 = vmatprep.subr.bf16.mxu0 0
      %9101 = vmatpush1.bf16.msra.mxu0 0
      %9102 = vmatprep.subr.bf16.mxu0 0
      %9103 = vmatpush1.bf16.msra.mxu0 0
      %9104 = vmatprep.subr.bf16.mxu0 0
      %9105 = vmatpush1.bf16.msra.mxu0 0
      %9106 = vmatprep.subr.bf16.mxu0 0
      %9107 = vmatpush1.bf16.msra.mxu0 %v9081
      %9108 = vmatprep.subr.bf16.mxu0 0
      %9109 = vmatpush1.bf16.msra.mxu0 %v9080
      %9110 = vmatprep.subr.bf16.mxu0 0
      %9111 = vmatpush1.bf16.msra.mxu0 %v9079
      %9112 = vmatprep.subr.bf16.mxu0 0
      %9113 = vmatpush1.bf16.msra.mxu0 %v9078
      %9114 = vmatprep.subr.bf16.mxu0 0
      %9115 = vmatpush2.bf16.msra.mxu0 0
      %9116 = vmatprep.subr.bf16.mxu0 0
      %9117 = vmatpush2.bf16.msra.mxu0 0
      %9118 = vmatprep.subr.bf16.mxu0 0
      %9119 = vmatpush2.bf16.msra.mxu0 0
      %9120 = vmatprep.subr.bf16.mxu0 0
      %9121 = vmatpush2.bf16.msra.mxu0 0
      %9122 = vmatprep.subr.bf16.mxu0 0
      %9123 = vmatpush2.bf16.msra.mxu0 0
      %9124 = vmatprep.subr.bf16.mxu0 0
      %9125 = vmatpush2.bf16.msra.mxu0 0
      %9126 = vmatprep.subr.bf16.mxu0 0
      %9127 = vmatpush2.bf16.msra.mxu0 0
      %9128 = vmatprep.subr.bf16.mxu0 0
      %9129 = vmatpush2.bf16.msra.mxu0 0
      %9130 = vmatprep.mubr.bf16.mxu0 0
      %9131 = vmatmul.mubr.bf16.gmra.mxu0 %v9087
      %v9132 = vpop.f32.mrf.mxu0
      %v9133 = vadd.f32 0.0, %v9132
      %v9134 = vpop.f32.mrf.mxu0
      %v9135 = vpop.f32.mrf.mxu0
      %v9136 = vadd.f32 0.0, %v9135
      %v9137 = vpop.f32.mrf.mxu0
      %9138 = vmatprep.mubr.bf16.mxu0 0
      %9139 = vmatmul.mubr.bf16.gmra.mxu0 %v9090
      %v9140 = vpop.f32.mrf.mxu0
      %v9141 = vadd.f32 0.0, %v9140
      %v9142 = vpop.f32.mrf.mxu0
      %v9143 = vpop.f32.mrf.mxu0
      %v9144 = vadd.f32 0.0, %v9143
      %v9145 = vpop.f32.mrf.mxu0
      %9146 = vmatprep.mubr.bf16.mxu0 0
      %9147 = vmatmul.mubr.bf16.gmra.mxu0 %v9093
      %v9148 = vpop.f32.mrf.mxu0
      %v9149 = vadd.f32 0.0, %v9148
      %v9150 = vpop.f32.mrf.mxu0
      %v9151 = vpop.f32.mrf.mxu0
      %v9152 = vadd.f32 0.0, %v9151
      %v9153 = vpop.f32.mrf.mxu0
      %9154 = vmatprep.mubr.bf16.mxu0 0
      %9155 = vmatmul.mubr.bf16.gmra.mxu0 %v9096
      %v9156 = vpop.f32.mrf.mxu0
      %v9157 = vadd.f32 0.0, %v9156
      %v9158 = vpop.f32.mrf.mxu0
      %v9159 = vpop.f32.mrf.mxu0
      %v9160 = vadd.f32 0.0, %v9159
      %v9161 = vpop.f32.mrf.mxu0
      %9162 = vdwg.mxu0
      %v9163 = vadd.f32 %v9033, %v9133
      %v9164 = vadd.f32 %v9034, %v9136
      %v9165 = vadd.f32 %v9035, %v9141
      %v9166 = vadd.f32 %v9036, %v9144
      %v9167 = vadd.f32 %v9037, %v9149
      %v9168 = vadd.f32 %v9038, %v9152
      %v9169 = vadd.f32 %v9039, %v9157
      %v9170 = vadd.f32 %v9040, %v9160
      %v9171 = vld [vmem:[%s5190 + $0x1] sm:$0xff]
      %v9172 = vld [vmem:[%s5190 + $0x11] sm:$0xff]
      %v9173 = vld [vmem:[%s5190 + $0x21] sm:$0xff]
      %v9174 = vld [vmem:[%s5190 + $0x31] sm:$0xff]
      %v9175 = vld [vmem:[%s5190 + $0x41] sm:$0xff]
      %v9176 = vld [vmem:[%s5190 + $0x51] sm:$0xff]
      %v9177 = vld [vmem:[%s5190 + $0x61] sm:$0xff]
      %v9178 = vld [vmem:[%s5190 + $0x71] sm:$0xff]
      %v9179 = vpack.c.bf16 %v9172, %v9171
      %v9180 = vpack.c.bf16 %v9174, %v9173
      %v9181 = vpack.c.bf16 %v9176, %v9175
      %v9182 = vpack.c.bf16 %v9178, %v9177
      %s9183 = scalar_lea.vmem %s14, 224
      %v9184 = vld [vmem:[%s9183] sm:$0xf]
      %v9185 = vld [vmem:[%s9183 + $0x4] sm:$0xf]
      %v9186 = vld [vmem:[%s9183 + $0x8] sm:$0xf]
      %v9187 = vld [vmem:[%s9183 + $0xc] sm:$0xf]
      %v9188 = vld [vmem:[%s9183 + $0x10] sm:$0xf]
      %v9189 = vld [vmem:[%s9183 + $0x14] sm:$0xf]
      %v9190 = vld [vmem:[%s9183 + $0x18] sm:$0xf]
      %v9191 = vld [vmem:[%s9183 + $0x1c] sm:$0xf]
      %v9200 = vunpack.c.l.b16 %v9184
      %v9201 = vunpack.c.l.b16 %v9185
      %v9202 = vunpack.c.l.b16 %v9186
      %v9203 = vunpack.c.l.b16 %v9187
      %v9204 = vunpack.c.l.b16 %v9188
      %v9205 = vunpack.c.l.b16 %v9189
      %v9206 = vunpack.c.l.b16 %v9190
      %v9207 = vunpack.c.l.b16 %v9191
      %v9208 = vpack.c.b16 %v9201, %v9200
      %v9209 = vpack.c.b16 %v9203, %v9202
      %v9210 = vpack.c.b16 %v9205, %v9204
      %v9211 = vpack.c.b16 %v9207, %v9206
      %v9217 = vsel %vm3318, %v9179, 0
      %v9220 = vsel %vm3318, %v9180, 0
      %v9223 = vsel %vm3318, %v9181, 0
      %v9226 = vsel %vm3318, %v9182, 0
      %9228 = vmatprep.subr.bf16.mxu0 0
      %9229 = vmatpush1.bf16.msra.mxu0 0
      %9230 = vmatprep.subr.bf16.mxu0 0
      %9231 = vmatpush1.bf16.msra.mxu0 0
      %9232 = vmatprep.subr.bf16.mxu0 0
      %9233 = vmatpush1.bf16.msra.mxu0 0
      %9234 = vmatprep.subr.bf16.mxu0 0
      %9235 = vmatpush1.bf16.msra.mxu0 0
      %9236 = vmatprep.subr.bf16.mxu0 0
      %9237 = vmatpush1.bf16.msra.mxu0 %v9211
      %9238 = vmatprep.subr.bf16.mxu0 0
      %9239 = vmatpush1.bf16.msra.mxu0 %v9210
      %9240 = vmatprep.subr.bf16.mxu0 0
      %9241 = vmatpush1.bf16.msra.mxu0 %v9209
      %9242 = vmatprep.subr.bf16.mxu0 0
      %9243 = vmatpush1.bf16.msra.mxu0 %v9208
      %9244 = vmatprep.subr.bf16.mxu0 0
      %9245 = vmatpush2.bf16.msra.mxu0 0
      %9246 = vmatprep.subr.bf16.mxu0 0
      %9247 = vmatpush2.bf16.msra.mxu0 0
      %9248 = vmatprep.subr.bf16.mxu0 0
      %9249 = vmatpush2.bf16.msra.mxu0 0
      %9250 = vmatprep.subr.bf16.mxu0 0
      %9251 = vmatpush2.bf16.msra.mxu0 0
      %9252 = vmatprep.subr.bf16.mxu0 0
      %9253 = vmatpush2.bf16.msra.mxu0 0
      %9254 = vmatprep.subr.bf16.mxu0 0
      %9255 = vmatpush2.bf16.msra.mxu0 0
      %9256 = vmatprep.subr.bf16.mxu0 0
      %9257 = vmatpush2.bf16.msra.mxu0 0
      %9258 = vmatprep.subr.bf16.mxu0 0
      %9259 = vmatpush2.bf16.msra.mxu0 0
      %9260 = vmatprep.mubr.bf16.mxu0 0
      %9261 = vmatmul.mubr.bf16.gmra.mxu0 %v9217
      %v9262 = vpop.f32.mrf.mxu0
      %v9263 = vadd.f32 0.0, %v9262
      %v9264 = vpop.f32.mrf.mxu0
      %v9265 = vpop.f32.mrf.mxu0
      %v9266 = vadd.f32 0.0, %v9265
      %v9267 = vpop.f32.mrf.mxu0
      %9268 = vmatprep.mubr.bf16.mxu0 0
      %9269 = vmatmul.mubr.bf16.gmra.mxu0 %v9220
      %v9270 = vpop.f32.mrf.mxu0
      %v9271 = vadd.f32 0.0, %v9270
      %v9272 = vpop.f32.mrf.mxu0
      %v9273 = vpop.f32.mrf.mxu0
      %v9274 = vadd.f32 0.0, %v9273
      %v9275 = vpop.f32.mrf.mxu0
      %9276 = vmatprep.mubr.bf16.mxu0 0
      %9277 = vmatmul.mubr.bf16.gmra.mxu0 %v9223
      %v9278 = vpop.f32.mrf.mxu0
      %v9279 = vadd.f32 0.0, %v9278
      %v9280 = vpop.f32.mrf.mxu0
      %v9281 = vpop.f32.mrf.mxu0
      %v9282 = vadd.f32 0.0, %v9281
      %v9283 = vpop.f32.mrf.mxu0
      %9284 = vmatprep.mubr.bf16.mxu0 0
      %9285 = vmatmul.mubr.bf16.gmra.mxu0 %v9226
      %v9286 = vpop.f32.mrf.mxu0
      %v9287 = vadd.f32 0.0, %v9286
      %v9288 = vpop.f32.mrf.mxu0
      %v9289 = vpop.f32.mrf.mxu0
      %v9290 = vadd.f32 0.0, %v9289
      %v9291 = vpop.f32.mrf.mxu0
      %9292 = vdwg.mxu0
      %v9293 = vadd.f32 %v9163, %v9263
      %v9294 = vadd.f32 %v9164, %v9266
      %v9295 = vadd.f32 %v9165, %v9271
      %v9296 = vadd.f32 %v9166, %v9274
      %v9297 = vadd.f32 %v9167, %v9279
      %v9298 = vadd.f32 %v9168, %v9282
      %v9299 = vadd.f32 %v9169, %v9287
      %v9300 = vadd.f32 %v9170, %v9290
      %v9301 = vld [vmem:[%s5190 + $0x2] sm:$0xff]
      %v9302 = vld [vmem:[%s5190 + $0x12] sm:$0xff]
      %v9303 = vld [vmem:[%s5190 + $0x22] sm:$0xff]
      %v9304 = vld [vmem:[%s5190 + $0x32] sm:$0xff]
      %v9305 = vld [vmem:[%s5190 + $0x42] sm:$0xff]
      %v9306 = vld [vmem:[%s5190 + $0x52] sm:$0xff]
      %v9307 = vld [vmem:[%s5190 + $0x62] sm:$0xff]
      %v9308 = vld [vmem:[%s5190 + $0x72] sm:$0xff]
      %v9309 = vpack.c.bf16 %v9302, %v9301
      %v9310 = vpack.c.bf16 %v9304, %v9303
      %v9311 = vpack.c.bf16 %v9306, %v9305
      %v9312 = vpack.c.bf16 %v9308, %v9307
      %s9313 = scalar_lea.vmem %s14, 256
      %v9314 = vld [vmem:[%s9313] sm:$0xf]
      %v9315 = vld [vmem:[%s9313 + $0x4] sm:$0xf]
      %v9316 = vld [vmem:[%s9313 + $0x8] sm:$0xf]
      %v9317 = vld [vmem:[%s9313 + $0xc] sm:$0xf]
      %v9318 = vld [vmem:[%s9313 + $0x10] sm:$0xf]
      %v9319 = vld [vmem:[%s9313 + $0x14] sm:$0xf]
      %v9320 = vld [vmem:[%s9313 + $0x18] sm:$0xf]
      %v9321 = vld [vmem:[%s9313 + $0x1c] sm:$0xf]
      %v9330 = vunpack.c.l.b16 %v9314
      %v9331 = vunpack.c.l.b16 %v9315
      %v9332 = vunpack.c.l.b16 %v9316
      %v9333 = vunpack.c.l.b16 %v9317
      %v9334 = vunpack.c.l.b16 %v9318
      %v9335 = vunpack.c.l.b16 %v9319
      %v9336 = vunpack.c.l.b16 %v9320
      %v9337 = vunpack.c.l.b16 %v9321
      %v9338 = vpack.c.b16 %v9331, %v9330
      %v9339 = vpack.c.b16 %v9333, %v9332
      %v9340 = vpack.c.b16 %v9335, %v9334
      %v9341 = vpack.c.b16 %v9337, %v9336
      %v9347 = vsel %vm3318, %v9309, 0
      %v9350 = vsel %vm3318, %v9310, 0
      %v9353 = vsel %vm3318, %v9311, 0
      %v9356 = vsel %vm3318, %v9312, 0
      %9358 = vmatprep.subr.bf16.mxu0 0
      %9359 = vmatpush1.bf16.msra.mxu0 0
      %9360 = vmatprep.subr.bf16.mxu0 0
      %9361 = vmatpush1.bf16.msra.mxu0 0
      %9362 = vmatprep.subr.bf16.mxu0 0
      %9363 = vmatpush1.bf16.msra.mxu0 0
      %9364 = vmatprep.subr.bf16.mxu0 0
      %9365 = vmatpush1.bf16.msra.mxu0 0
      %9366 = vmatprep.subr.bf16.mxu0 0
      %9367 = vmatpush1.bf16.msra.mxu0 %v9341
      %9368 = vmatprep.subr.bf16.mxu0 0
      %9369 = vmatpush1.bf16.msra.mxu0 %v9340
      %9370 = vmatprep.subr.bf16.mxu0 0
      %9371 = vmatpush1.bf16.msra.mxu0 %v9339
      %9372 = vmatprep.subr.bf16.mxu0 0
      %9373 = vmatpush1.bf16.msra.mxu0 %v9338
      %9374 = vmatprep.subr.bf16.mxu0 0
      %9375 = vmatpush2.bf16.msra.mxu0 0
      %9376 = vmatprep.subr.bf16.mxu0 0
      %9377 = vmatpush2.bf16.msra.mxu0 0
      %9378 = vmatprep.subr.bf16.mxu0 0
      %9379 = vmatpush2.bf16.msra.mxu0 0
      %9380 = vmatprep.subr.bf16.mxu0 0
      %9381 = vmatpush2.bf16.msra.mxu0 0
      %9382 = vmatprep.subr.bf16.mxu0 0
      %9383 = vmatpush2.bf16.msra.mxu0 0
      %9384 = vmatprep.subr.bf16.mxu0 0
      %9385 = vmatpush2.bf16.msra.mxu0 0
      %9386 = vmatprep.subr.bf16.mxu0 0
      %9387 = vmatpush2.bf16.msra.mxu0 0
      %9388 = vmatprep.subr.bf16.mxu0 0
      %9389 = vmatpush2.bf16.msra.mxu0 0
      %9390 = vmatprep.mubr.bf16.mxu0 0
      %9391 = vmatmul.mubr.bf16.gmra.mxu0 %v9347
      %v9392 = vpop.f32.mrf.mxu0
      %v9393 = vadd.f32 0.0, %v9392
      %v9394 = vpop.f32.mrf.mxu0
      %v9395 = vpop.f32.mrf.mxu0
      %v9396 = vadd.f32 0.0, %v9395
      %v9397 = vpop.f32.mrf.mxu0
      %9398 = vmatprep.mubr.bf16.mxu0 0
      %9399 = vmatmul.mubr.bf16.gmra.mxu0 %v9350
      %v9400 = vpop.f32.mrf.mxu0
      %v9401 = vadd.f32 0.0, %v9400
      %v9402 = vpop.f32.mrf.mxu0
      %v9403 = vpop.f32.mrf.mxu0
      %v9404 = vadd.f32 0.0, %v9403
      %v9405 = vpop.f32.mrf.mxu0
      %9406 = vmatprep.mubr.bf16.mxu0 0
      %9407 = vmatmul.mubr.bf16.gmra.mxu0 %v9353
      %v9408 = vpop.f32.mrf.mxu0
      %v9409 = vadd.f32 0.0, %v9408
      %v9410 = vpop.f32.mrf.mxu0
      %v9411 = vpop.f32.mrf.mxu0
      %v9412 = vadd.f32 0.0, %v9411
      %v9413 = vpop.f32.mrf.mxu0
      %9414 = vmatprep.mubr.bf16.mxu0 0
      %9415 = vmatmul.mubr.bf16.gmra.mxu0 %v9356
      %v9416 = vpop.f32.mrf.mxu0
      %v9417 = vadd.f32 0.0, %v9416
      %v9418 = vpop.f32.mrf.mxu0
      %v9419 = vpop.f32.mrf.mxu0
      %v9420 = vadd.f32 0.0, %v9419
      %v9421 = vpop.f32.mrf.mxu0
      %9422 = vdwg.mxu0
      %v9423 = vadd.f32 %v9293, %v9393
      %v9424 = vadd.f32 %v9294, %v9396
      %v9425 = vadd.f32 %v9295, %v9401
      %v9426 = vadd.f32 %v9296, %v9404
      %v9427 = vadd.f32 %v9297, %v9409
      %v9428 = vadd.f32 %v9298, %v9412
      %v9429 = vadd.f32 %v9299, %v9417
      %v9430 = vadd.f32 %v9300, %v9420
      %v9431 = vadd.f32 %v8270, %v9423
      %v9432 = vadd.f32 %v8271, %v9424
      %v9433 = vadd.f32 %v8272, %v9425
      %v9434 = vadd.f32 %v8273, %v9426
      %v9435 = vadd.f32 %v8274, %v9427
      %v9436 = vadd.f32 %v8275, %v9428
      %v9437 = vadd.f32 %v8276, %v9429
      %v9438 = vadd.f32 %v8277, %v9430
      %v9439 = vld [vmem:[%s15] sm:$0x1]
      %v9441 = vlaneseq
      %v9442 = vshrl.u32 %v9441, 7
      %v9443 = vsub.s32 0, %v9442
      %v9444 = vrot.slane %v9439, %v9443
      %v9446 = vmul.f32 %v9431, %v9444
      %v9447 = vmul.f32 %v9432, %v9444
      %v9448 = vmul.f32 %v9433, %v9444
      %v9449 = vmul.f32 %v9434, %v9444
      %v9450 = vmul.f32 %v9435, %v9444
      %v9451 = vmul.f32 %v9436, %v9444
      %v9452 = vmul.f32 %v9437, %v9444
      %v9453 = vmul.f32 %v9438, %v9444
      %v9454 = vld [vmem:[%s16] sm:$0x1]
      %v9456 = vlaneseq
      %v9457 = vshrl.u32 %v9456, 7
      %v9458 = vsub.s32 0, %v9457
      %v9459 = vrot.slane %v9454, %v9458
      %v9461 = vadd.f32 %v9446, %v9459
      %v9462 = vadd.f32 %v9447, %v9459
      %v9463 = vadd.f32 %v9448, %v9459
      %v9464 = vadd.f32 %v9449, %v9459
      %v9465 = vadd.f32 %v9450, %v9459
      %v9466 = vadd.f32 %v9451, %v9459
      %v9467 = vadd.f32 %v9452, %v9459
      %v9468 = vadd.f32 %v9453, %v9459
      %9469 = vst.msk [vmem:[%s549] sm:$0xff] %vm3318, %v9461
      %9470 = vst.msk [vmem:[%s549 + $0x8] sm:$0xff] %vm3318, %v9462
      %9471 = vst.msk [vmem:[%s549 + $0x10] sm:$0xff] %vm3318, %v9463
      %9472 = vst.msk [vmem:[%s549 + $0x18] sm:$0xff] %vm3318, %v9464
      %9473 = vst.msk [vmem:[%s549 + $0x20] sm:$0xff] %vm3318, %v9465
      %9474 = vst.msk [vmem:[%s549 + $0x28] sm:$0xff] %vm3318, %v9466
      %9475 = vst.msk [vmem:[%s549 + $0x30] sm:$0xff] %vm3318, %v9467
      %9476 = vst.msk [vmem:[%s549 + $0x38] sm:$0xff] %vm3318, %v9468
      %p9477 = scmp.lt.s32.totalorder %s29, 1
      %s9478 = scalar_select %p9477, %s29, 1
      %s9479 = smul.addr %s9478, 8
      %s9480 = smul.addr %s9479, 8
      %s9481 = scalar_lea.vmem %s17, %s9480
      // Predicated region
      $region89: #{rcca_forward.2} parent=87 // pred_check
        %p9482 = pneg %p409
      $region90: #{rcca_forward.2} parent=87 // pred_check_branch
        %9484 = sbr.rel (%p9482) target = $region92
      $region91: #{rcca_forward.2} parent=87 // pred_region
        _
      $region92: #{rcca_forward.2} parent=87 // pred_fallthru
        _
    $region88: #{rcca_forward.2} parent=5 // pred_fallthru
      _
    %p9485 = scmp.le.s32.totalorder 2, %s24
    // Predicated region
    $region93: #{rcca_forward.2} parent=5 // pred_check
      %p9486 = pneg %p9485
    $region94: #{rcca_forward.2} parent=5 // pred_check_branch
      %9488 = sbr.rel (%p9486) target = $region96
    $region95: #{rcca_forward.2} parent=5 // pred_region
      %s9489 = ssub.s32 %s24, 2
      // Predicated region
      $region97: #{rcca_forward.2} parent=95 // pred_check
        %p9490 = pneg %p415
      $region98: #{rcca_forward.2} parent=95 // pred_check_branch
        %9492 = sbr.rel (%p9490) target = $region100
      $region99: #{rcca_forward.2} parent=95 // pred_region
        %p9493 = scmp.lt.s32.totalorder %s30, 1
        %s9494 = scalar_select %p9493, %s30, 1
        %s9495 = smul.addr %s9494, 8
        %s9496 = smul.addr %s9495, 8
        %s9497 = scalar_lea.vmem %s17, %s9496
      $region100: #{rcca_forward.2} parent=95 // pred_fallthru
        _
    $region96: #{rcca_forward.2} parent=5 // pred_fallthru
      _
  $region6: #{rcca_forward.2} parent=0 // loop_footer
    %s28 = sadd.s32 1, %s24
  $region7: #{rcca_forward.2} parent=0 // loop_footer_branch
    %23 = sbr.rel target = $region3
  $region8: #{rcca_forward.2} parent=0 // loop_exit
    _

</llo_original>
